<compile_context>
chip_gen: v7x
topology: tpu7x:2x2x1
jax: 0.10.0
libtpu: 0.0.40
codegen_flags: <defaults>
</compile_context>

<pallas_src>
import functools

import jax
import jax.numpy as jnp
import numpy as np
from jax.experimental import pallas as pl
from jax.experimental.pallas import tpu as pltpu

EPS = 1e-5  # nn.LayerNorm default


# ---------------------------------------------------------------------------
# In-kernel helpers (operate on values, not refs)
# ---------------------------------------------------------------------------
def _layernorm(h, g, b, eps=EPS):
    mu = jnp.mean(h, axis=-1, keepdims=True)
    var = jnp.mean(jnp.square(h - mu), axis=-1, keepdims=True)
    return (h - mu) * jax.lax.rsqrt(var + eps) * g + b


def _gelu(x):
    # TODO(synk): FeedForward is not defined in the provided spec; assumed to
    # be Linear(d, 4d) -> GELU(tanh approx) -> Linear(4d, d), dropout = 0.
    return jax.nn.gelu(x, approximate=True)


def _mha(q, k, v, num_heads):
    """Multi-head attention on already-projected q/k/v.

    q: (Nq, C) with the softmax scale already folded into Wq.
    k, v: (Nk, C).  Heads are contiguous Dh-wide column groups (matching the
    PyTorch reshape(B, N, H, Dh) convention).  Returns (Nq, C) lane-dense.
    """
    nq, c = q.shape
    dh = c // num_heads
    outs = []
    for h in range(num_heads):  # static trip count; unrolled at trace time
        sl = slice(h * dh, (h + 1) * dh)
        qh, kh, vh = q[:, sl], k[:, sl], v[:, sl]
        # s = qh @ kh^T   (contract last dims directly; no explicit transpose)
        s = jax.lax.dot_general(qh, kh, (((1,), (1,)), ((), ())),
                                preferred_element_type=jnp.float32)
        m = jnp.max(s, axis=-1, keepdims=True)
        p = jnp.exp(s - m)
        l = jnp.sum(p, axis=-1, keepdims=True)
        # Normalize the (Nq, Dh) output instead of the (Nq, Nk) matrix.
        oh = jnp.dot(p, vh, preferred_element_type=jnp.float32) / l
        outs.append(oh)
    return jnp.concatenate(outs, axis=-1)


# ---------------------------------------------------------------------------
# Fused FuseBlock kernel:
#   z = z + Attn(LN_z1(z), LN_x(x) or x)
#   z = z + FF(LN_z2(z))
# ---------------------------------------------------------------------------
def _fuse_block_kernel(z_ref, x_ref,
                       gx_ref, bx_ref,
                       g1_ref, b1_ref,
                       wq_ref, wkv_ref, wo_ref, bo_ref,
                       g2_ref, b2_ref,
                       w1_ref, bf1_ref, w2_ref, bf2_ref,
                       o_ref, *, num_heads, norm_x_input, eps):
    z = z_ref[0].astype(jnp.float32)          # (Nz, Dz)
    x = x_ref[0].astype(jnp.float32)          # (Nx, Dx)
    dz = z.shape[-1]

    zn = _layernorm(z, g1_ref[...], b1_ref[...], eps)
    kv_in = _layernorm(x, gx_ref[...], bx_ref[...], eps) if norm_x_input else x

    q = jnp.dot(zn, wq_ref[...], preferred_element_type=jnp.float32)       # (Nz, Dz)
    kv = jnp.dot(kv_in, wkv_ref[...], preferred_element_type=jnp.float32)  # (Nx, 2Dz)
    k, v = kv[:, :dz], kv[:, dz:]

    a = _mha(q, k, v, num_heads)                                           # (Nz, Dz)
    a = jnp.dot(a, wo_ref[...], preferred_element_type=jnp.float32) + bo_ref[...]
    z = z + a

    zn2 = _layernorm(z, g2_ref[...], b2_ref[...], eps)
    h1 = _gelu(jnp.dot(zn2, w1_ref[...], preferred_element_type=jnp.float32)
               + bf1_ref[...])
    ff = jnp.dot(h1, w2_ref[...], preferred_element_type=jnp.float32) + bf2_ref[...]

    o_ref[0] = (z + ff).astype(o_ref.dtype)


# ---------------------------------------------------------------------------
# Fused BasicBlock kernel:
#   z = z + SelfAttn(LN1(z))
#   z = z + CrossAttn(LN2(z), cross or LN2(z))
#   z = z + FF(LN3(z))
# ---------------------------------------------------------------------------
def _basic_block_kernel(z_ref, c_ref,
                        g1_ref, b1_ref, wqkv1_ref, wo1_ref, bo1_ref,
                        g2_ref, b2_ref, wq2_ref, wkv2_ref, wo2_ref, bo2_ref,
                        g3_ref, b3_ref,
                        w1_ref, bf1_ref, w2_ref, bf2_ref,
                        o_ref, *, num_heads, has_cross, eps):
    z = z_ref[0].astype(jnp.float32)          # (Nz, Dz)
    dz = z.shape[-1]

    # ---- self-attention (merged QKV weight) ----
    zn1 = _layernorm(z, g1_ref[...], b1_ref[...], eps)
    qkv = jnp.dot(zn1, wqkv1_ref[...], preferred_element_type=jnp.float32)  # (Nz, 3Dz)
    q, k, v = qkv[:, :dz], qkv[:, dz:2 * dz], qkv[:, 2 * dz:]
    a = _mha(q, k, v, num_heads)
    a = jnp.dot(a, wo1_ref[...], preferred_element_type=jnp.float32) + bo1_ref[...]
    z = z + a

    # ---- cross-attention ----
    zn2 = _layernorm(z, g2_ref[...], b2_ref[...], eps)
    kv_src = c_ref[0].astype(jnp.float32) if has_cross else zn2
    q2 = jnp.dot(zn2, wq2_ref[...], preferred_element_type=jnp.float32)        # (Nz, Dz)
    kv2 = jnp.dot(kv_src, wkv2_ref[...], preferred_element_type=jnp.float32)   # (Nc, 2Dz)
    k2, v2 = kv2[:, :dz], kv2[:, dz:]
    a2 = _mha(q2, k2, v2, num_heads)
    a2 = jnp.dot(a2, wo2_ref[...], preferred_element_type=jnp.float32) + bo2_ref[...]
    z = z + a2

    # ---- feed-forward ----
    zn3 = _layernorm(z, g3_ref[...], b3_ref[...], eps)
    h1 = _gelu(jnp.dot(zn3, w1_ref[...], preferred_element_type=jnp.float32)
               + bf1_ref[...])
    ff = jnp.dot(h1, w2_ref[...], preferred_element_type=jnp.float32) + bf2_ref[...]

    o_ref[0] = (z + ff).astype(o_ref.dtype)


# ---------------------------------------------------------------------------
# pallas_call wrappers (grid over batch, full-array blocks otherwise)
# ---------------------------------------------------------------------------
def _full_spec(shape):
    return pl.BlockSpec(shape, lambda b, _n=len(shape): (0,) * _n)


_COMPILER_PARAMS = pltpu.CompilerParams(
    dimension_semantics=("parallel",),
    vmem_limit_bytes=64 << 20,
)


def fuse_block_pallas(z, x, kp, *, num_heads, norm_x_input=True):
    B, Nz, Dz = z.shape
    _, Nx, Dx = x.shape
    Hff = kp["w1"].shape[1]
    kernel = functools.partial(_fuse_block_kernel, num_heads=num_heads,
                               norm_x_input=norm_x_input, eps=EPS)
    in_specs = [
        pl.BlockSpec((1, Nz, Dz), lambda b: (b, 0, 0)),
        pl.BlockSpec((1, Nx, Dx), lambda b: (b, 0, 0)),
        _full_spec((1, Dx)), _full_spec((1, Dx)),
        _full_spec((1, Dz)), _full_spec((1, Dz)),
        _full_spec((Dz, Dz)), _full_spec((Dx, 2 * Dz)),
        _full_spec((Dz, Dz)), _full_spec((1, Dz)),
        _full_spec((1, Dz)), _full_spec((1, Dz)),
        _full_spec((Dz, Hff)), _full_spec((1, Hff)),
        _full_spec((Hff, Dz)), _full_spec((1, Dz)),
    ]
    return pl.pallas_call(
        kernel,
        out_shape=jax.ShapeDtypeStruct((B, Nz, Dz), z.dtype),
        grid=(B,),
        in_specs=in_specs,
        out_specs=pl.BlockSpec((1, Nz, Dz), lambda b: (b, 0, 0)),
        compiler_params=_COMPILER_PARAMS,
    )(z, x, kp["gx"], kp["bx"], kp["g1"], kp["b1"],
      kp["wq"], kp["wkv"], kp["wo"], kp["bo"],
      kp["g2"], kp["b2"],
      kp["w1"], kp["bf1"], kp["w2"], kp["bf2"])


def basic_block_pallas(z, cross, kp, *, num_heads):
    B, Nz, Dz = z.shape
    has_cross = cross is not None
    if not has_cross:
        cross = z  # placeholder ref; kernel ignores it when has_cross=False
    _, Nc, Dc = cross.shape
    Hff = kp["w1"].shape[1]
    kernel = functools.partial(_basic_block_kernel, num_heads=num_heads,
                               has_cross=has_cross, eps=EPS)
    in_specs = [
        pl.BlockSpec((1, Nz, Dz), lambda b: (b, 0, 0)),
        pl.BlockSpec((1, Nc, Dc), lambda b: (b, 0, 0)),
        _full_spec((1, Dz)), _full_spec((1, Dz)),
        _full_spec((Dz, 3 * Dz)), _full_spec((Dz, Dz)), _full_spec((1, Dz)),
        _full_spec((1, Dz)), _full_spec((1, Dz)),
        _full_spec((Dz, Dz)), _full_spec((Dc, 2 * Dz)),
        _full_spec((Dz, Dz)), _full_spec((1, Dz)),
        _full_spec((1, Dz)), _full_spec((1, Dz)),
        _full_spec((Dz, Hff)), _full_spec((1, Hff)),
        _full_spec((Hff, Dz)), _full_spec((1, Dz)),
    ]
    return pl.pallas_call(
        kernel,
        out_shape=jax.ShapeDtypeStruct((B, Nz, Dz), z.dtype),
        grid=(B,),
        in_specs=in_specs,
        out_specs=pl.BlockSpec((1, Nz, Dz), lambda b: (b, 0, 0)),
        compiler_params=_COMPILER_PARAMS,
    )(z, cross,
      kp["g1"], kp["b1"], kp["wqkv1"], kp["wo1"], kp["bo1"],
      kp["g2"], kp["b2"], kp["wq2"], kp["wkv2"], kp["wo2"], kp["bo2"],
      kp["g3"], kp["b3"],
      kp["w1"], kp["bf1"], kp["w2"], kp["bf2"])


def two_stream_block_pallas(latent, inp, cross, kparams, *, num_heads,
                            norm_x_input=True):
    latent = fuse_block_pallas(latent, inp, kparams["fuse_in"],
                               num_heads=num_heads, norm_x_input=norm_x_input)
    for bkp in kparams["blocks"]:
        latent = basic_block_pallas(latent, cross, bkp, num_heads=num_heads)
    inp = fuse_block_pallas(inp, latent, kparams["fuse_out"],
                            num_heads=num_heads, norm_x_input=norm_x_input)
    return latent, inp


# ---------------------------------------------------------------------------
# One-time parameter prep: transpose, merge QKV/KV, fold softmax scale into Wq
# (hoisted out of the forward path).
# ---------------------------------------------------------------------------
def _prep_norm(p):
    return p["g"].reshape(1, -1), p["b"].reshape(1, -1)


def _prep_ff(p):
    return {"w1": p["w1"].T, "bf1": p["b1"].reshape(1, -1),
            "w2": p["w2"].T, "bf2": p["b2"].reshape(1, -1)}


def prep_fuse_params(p, num_heads):
    dim_z = p["attn"]["wq"].shape[0]
    scale = (dim_z // num_heads) ** (-0.5)
    gx, bx = _prep_norm(p["norm_x"])
    g1, b1 = _prep_norm(p["norm_z1"])
    g2, b2 = _prep_norm(p["norm_z2"])
    a = p["attn"]
    out = {"gx": gx, "bx": bx, "g1": g1, "b1": b1,
           "wq": (a["wq"] * scale).T,
           "wkv": jnp.concatenate([a["wk"].T, a["wv"].T], axis=1),
           "wo": a["wo"].T, "bo": a["bo"].reshape(1, -1),
           "g2": g2, "b2": b2}
    out.update(_prep_ff(p["ff"]))
    return out


def prep_basic_params(p, num_heads):
    dim = p["attn1"]["wq"].shape[0]
    scale = (dim // num_heads) ** (-0.5)
    g1, b1 = _prep_norm(p["norm1"])
    g2, b2 = _prep_norm(p["norm2"])
    g3, b3 = _prep_norm(p["norm3"])
    a1, a2 = p["attn1"], p["attn2"]
    out = {"g1": g1, "b1": b1,
           "wqkv1": jnp.concatenate(
               [(a1["wq"] * scale).T, a1["wk"].T, a1["wv"].T], axis=1),
           "wo1": a1["wo"].T, "bo1": a1["bo"].reshape(1, -1),
           "g2": g2, "b2": b2,
           "wq2": (a2["wq"] * scale).T,
           "wkv2": jnp.concatenate([a2["wk"].T, a2["wv"].T], axis=1),
           "wo2": a2["wo"].T, "bo2": a2["bo"].reshape(1, -1),
           "g3": g3, "b3": b3}
    out.update(_prep_ff(p["ff"]))
    return out


def prep_two_stream_params(p, num_heads):
    return {"fuse_in": prep_fuse_params(p["fuse_in"], num_heads),
            "blocks": [prep_basic_params(bp, num_heads) for bp in p["blocks"]],
            "fuse_out": prep_fuse_params(p["fuse_out"], num_heads)}


# ---------------------------------------------------------------------------
# Pure-JAX reference (mirrors the PyTorch module, PyTorch weight layout)
# ---------------------------------------------------------------------------
def _layernorm_ref(x, g, b, eps=EPS):
    mu = x.mean(-1, keepdims=True)
    var = ((x - mu) ** 2).mean(-1, keepdims=True)
    return (x - mu) / jnp.sqrt(var + eps) * g + b


def _cross_attention_ref(xq, xkv, p, num_heads):
    B, Nq, C = xq.shape
    dh = C // num_heads
    scale = dh ** (-0.5)
    q = (xq @ p["wq"].T).reshape(B, Nq, num_heads, dh).transpose(0, 2, 1, 3)
    k = (xkv @ p["wk"].T).reshape(B, -1, num_heads, dh).transpose(0, 2, 1, 3)
    v = (xkv @ p["wv"].T).reshape(B, -1, num_heads, dh).transpose(0, 2, 1, 3)
    s = jnp.einsum("bhqd,bhkd->bhqk", q, k) * scale
    pr = jax.nn.softmax(s, axis=-1)
    o = jnp.einsum("bhqk,bhkd->bhqd", pr, v)
    o = o.transpose(0, 2, 1, 3).reshape(B, Nq, C)
    return o @ p["wo"].T + p["bo"]


def _ff_ref(x, p):
    h = jax.nn.gelu(x @ p["w1"].T + p["b1"], approximate=True)
    return h @ p["w2"].T + p["b2"]


def _fuse_block_ref(z, x, p, num_heads, norm_x_input=True):
    kv = _layernorm_ref(x, p["norm_x"]["g"], p["norm_x"]["b"]) if norm_x_input else x
    zq = _layernorm_ref(z, p["norm_z1"]["g"], p["norm_z1"]["b"])
    z = z + _cross_attention_ref(zq, kv, p["attn"], num_heads)
    z = z + _ff_ref(_layernorm_ref(z, p["norm_z2"]["g"], p["norm_z2"]["b"]), p["ff"])
    return z


def _basic_block_ref(z, x, p, num_heads):
    zn = _layernorm_ref(z, p["norm1"]["g"], p["norm1"]["b"])
    z = z + _cross_attention_ref(zn, zn, p["attn1"], num_heads)
    zn = _layernorm_ref(z, p["norm2"]["g"], p["norm2"]["b"])
    z = z + _cross_attention_ref(zn, x if x is not None else zn, p["attn2"], num_heads)
    zn = _layernorm_ref(z, p["norm3"]["g"], p["norm3"]["b"])
    z = z + _ff_ref(zn, p["ff"])
    return z


def two_stream_block_ref(latent, inp, cross, params, num_heads, norm_x_input=True):
    latent = _fuse_block_ref(latent, inp, params["fuse_in"], num_heads, norm_x_input)
    for bp in params["blocks"]:
        latent = _basic_block_ref(latent, cross, bp, num_heads)
    inp = _fuse_block_ref(inp, latent, params["fuse_out"], num_heads, norm_x_input)
    return latent, inp


# ---------------------------------------------------------------------------
# Parameter construction (PyTorch layouts: Linear weight (out, in))
# ---------------------------------------------------------------------------
def make_norm_params(key, dim):
    k1, k2 = jax.random.split(key)
    return {"g": 1.0 + 0.1 * jax.random.normal(k1, (dim,), jnp.float32),
            "b": 0.1 * jax.random.normal(k2, (dim,), jnp.float32)}


def make_attn_params(key, dim, kv_dim):
    ks = jax.random.split(key, 5)
    return {"wq": 0.05 * jax.random.normal(ks[0], (dim, dim), jnp.float32),
            "wk": 0.05 * jax.random.normal(ks[1], (dim, kv_dim), jnp.float32),
            "wv": 0.05 * jax.random.normal(ks[2], (dim, kv_dim), jnp.float32),
            "wo": 0.05 * jax.random.normal(ks[3], (dim, dim), jnp.float32),
            "bo": 0.01 * jax.random.normal(ks[4], (dim,), jnp.float32)}


def make_ff_params(key, dim, hidden):
    ks = jax.random.split(key, 4)
    return {"w1": 0.05 * jax.random.normal(ks[0], (hidden, dim), jnp.float32),
            "b1": 0.01 * jax.random.normal(ks[1], (hidden,), jnp.float32),
            "w2": 0.05 * jax.random.normal(ks[2], (dim, hidden), jnp.float32),
            "b2": 0.01 * jax.random.normal(ks[3], (dim,), jnp.float32)}


def make_fuse_params(key, dim_z, dim_x):
    ks = jax.random.split(key, 5)
    return {"norm_x": make_norm_params(ks[0], dim_x),
            "norm_z1": make_norm_params(ks[1], dim_z),
            "norm_z2": make_norm_params(ks[2], dim_z),
            "attn": make_attn_params(ks[3], dim_z, dim_x),
            "ff": make_ff_params(ks[4], dim_z, 4 * dim_z)}


def make_basic_params(key, dim, kv_dim):
    ks = jax.random.split(key, 6)
    return {"norm1": make_norm_params(ks[0], dim),
            "attn1": make_attn_params(ks[1], dim, dim),
            "norm2": make_norm_params(ks[2], dim),
            "attn2": make_attn_params(ks[3], dim, kv_dim),
            "norm3": make_norm_params(ks[4], dim),
            "ff": make_ff_params(ks[5], dim, 4 * dim)}


# ---------------------------------------------------------------------------
# Main
# ---------------------------------------------------------------------------
if __name__ == "__main__":
    B = 2
    n_latent, n_input, n_cross = 16, 32, 8
    dim_latent, dim_input, dim_cross = 64, 32, 96
    num_heads = 4
    num_basic_blocks = 2

    key = jax.random.PRNGKey(0)
    k_lat, k_inp, k_cross, k_fin, k_fout, k_blocks = jax.random.split(key, 6)

    latent = jax.random.normal(k_lat, (B, n_latent, dim_latent), jnp.float32)
    inp = jax.random.normal(k_inp, (B, n_input, dim_input), jnp.float32)
    cross = jax.random.normal(k_cross, (B, n_cross, dim_cross), jnp.float32)

    params = {
        "fuse_in": make_fuse_params(k_fin, dim_latent, dim_input),
        "blocks": [make_basic_params(kb, dim_latent, dim_cross)
                   for kb in jax.random.split(k_blocks, num_basic_blocks)],
        "fuse_out": make_fuse_params(k_fout, dim_input, dim_latent),
    }
    kparams = prep_two_stream_params(params, num_heads)

    fwd = jax.jit(functools.partial(two_stream_block_pallas, num_heads=num_heads))
    lat_out, inp_out = fwd(latent, inp, cross, kparams)
    (lat_out, inp_out) = jax.block_until_ready((lat_out, inp_out))

    lat_ref, inp_ref = two_stream_block_ref(latent, inp, cross, params, num_heads)
    np.testing.assert_allclose(np.asarray(lat_out), np.asarray(lat_ref),
                               rtol=1e-3, atol=1e-3)
    np.testing.assert_allclose(np.asarray(inp_out), np.asarray(inp_ref),
                               rtol=1e-3, atol=1e-3)
    print("KERNEL_OK")
</pallas_src>

<mosaic_0001>
module attributes {stable_mosaic.version = 11 : i64} {
  func.func @_basic_block_kernel(%arg0: i32, %arg1: memref<1x16x64xf32, #tpu.memory_space<vmem>>, %arg2: memref<1x8x96xf32, #tpu.memory_space<vmem>>, %arg3: memref<1x64xf32, #tpu.memory_space<vmem>>, %arg4: memref<1x64xf32, #tpu.memory_space<vmem>>, %arg5: memref<64x192xf32, #tpu.memory_space<vmem>>, %arg6: memref<64x64xf32, #tpu.memory_space<vmem>>, %arg7: memref<1x64xf32, #tpu.memory_space<vmem>>, %arg8: memref<1x64xf32, #tpu.memory_space<vmem>>, %arg9: memref<1x64xf32, #tpu.memory_space<vmem>>, %arg10: memref<64x64xf32, #tpu.memory_space<vmem>>, %arg11: memref<96x128xf32, #tpu.memory_space<vmem>>, %arg12: memref<64x64xf32, #tpu.memory_space<vmem>>, %arg13: memref<1x64xf32, #tpu.memory_space<vmem>>, %arg14: memref<1x64xf32, #tpu.memory_space<vmem>>, %arg15: memref<1x64xf32, #tpu.memory_space<vmem>>, %arg16: memref<64x256xf32, #tpu.memory_space<vmem>>, %arg17: memref<1x256xf32, #tpu.memory_space<vmem>>, %arg18: memref<256x64xf32, #tpu.memory_space<vmem>>, %arg19: memref<1x64xf32, #tpu.memory_space<vmem>>, %arg20: memref<1x16x64xf32, #tpu.memory_space<vmem>>) attributes {dimension_semantics = [#tpu.dimension_semantics<parallel>], iteration_bounds = array<i64: 2>, scalar_prefetch = 0 : i64, scratch_operands = 0 : i64, tpu.core_type = #tpu.core_type<tc>, window_params = [{transform_indices = @transform_0, window_bounds = array<i64: 1, 16, 64>}, {transform_indices = @transform_1, window_bounds = array<i64: 1, 8, 96>}, {pipeline_mode = #tpu.pipeline_mode<synchronous>, transform_indices = @transform_2, window_bounds = array<i64: 1, 64>}, {pipeline_mode = #tpu.pipeline_mode<synchronous>, transform_indices = @transform_3, window_bounds = array<i64: 1, 64>}, {pipeline_mode = #tpu.pipeline_mode<synchronous>, transform_indices = @transform_4, window_bounds = array<i64: 64, 192>}, {pipeline_mode = #tpu.pipeline_mode<synchronous>, transform_indices = @transform_5, window_bounds = array<i64: 64, 64>}, {pipeline_mode = #tpu.pipeline_mode<synchronous>, transform_indices = @transform_6, window_bounds = array<i64: 1, 64>}, {pipeline_mode = #tpu.pipeline_mode<synchronous>, transform_indices = @transform_7, window_bounds = array<i64: 1, 64>}, {pipeline_mode = #tpu.pipeline_mode<synchronous>, transform_indices = @transform_8, window_bounds = array<i64: 1, 64>}, {pipeline_mode = #tpu.pipeline_mode<synchronous>, transform_indices = @transform_9, window_bounds = array<i64: 64, 64>}, {pipeline_mode = #tpu.pipeline_mode<synchronous>, transform_indices = @transform_10, window_bounds = array<i64: 96, 128>}, {pipeline_mode = #tpu.pipeline_mode<synchronous>, transform_indices = @transform_11, window_bounds = array<i64: 64, 64>}, {pipeline_mode = #tpu.pipeline_mode<synchronous>, transform_indices = @transform_12, window_bounds = array<i64: 1, 64>}, {pipeline_mode = #tpu.pipeline_mode<synchronous>, transform_indices = @transform_13, window_bounds = array<i64: 1, 64>}, {pipeline_mode = #tpu.pipeline_mode<synchronous>, transform_indices = @transform_14, window_bounds = array<i64: 1, 64>}, {pipeline_mode = #tpu.pipeline_mode<synchronous>, transform_indices = @transform_15, window_bounds = array<i64: 64, 256>}, {pipeline_mode = #tpu.pipeline_mode<synchronous>, transform_indices = @transform_16, window_bounds = array<i64: 1, 256>}, {pipeline_mode = #tpu.pipeline_mode<synchronous>, transform_indices = @transform_17, window_bounds = array<i64: 256, 64>}, {pipeline_mode = #tpu.pipeline_mode<synchronous>, transform_indices = @transform_18, window_bounds = array<i64: 1, 64>}, {transform_indices = @transform_19, window_bounds = array<i64: 1, 16, 64>}]} {
    %c0 = arith.constant 0 : index
    %c0_0 = arith.constant 0 : index
    %c0_1 = arith.constant 0 : index
    %0 = vector.load %arg1[%c0, %c0_0, %c0_1] : memref<1x16x64xf32, #tpu.memory_space<vmem>>, vector<1x16x64xf32>
    %1 = vector.shape_cast %0 : vector<1x16x64xf32> to vector<16x64xf32>
    %c0_2 = arith.constant 0 : index
    %c0_3 = arith.constant 0 : index
    %2 = vector.load %arg3[%c0_2, %c0_3] : memref<1x64xf32, #tpu.memory_space<vmem>>, vector<1x64xf32>
    %c0_4 = arith.constant 0 : index
    %c0_5 = arith.constant 0 : index
    %3 = vector.load %arg4[%c0_4, %c0_5] : memref<1x64xf32, #tpu.memory_space<vmem>>, vector<1x64xf32>
    %cst = arith.constant dense<0.000000e+00> : vector<16xf32>
    %4 = vector.multi_reduction <add>, %1, %cst [1] : vector<16x64xf32> to vector<16xf32>
    %5 = vector.shape_cast %4 : vector<16xf32> to vector<16x1xf32>
    %cst_6 = arith.constant 6.400000e+01 : f32
    %6 = vector.broadcast %cst_6 : f32 to vector<16x1xf32>
    %7 = arith.divf %5, %6 : vector<16x1xf32>
    %8 = vector.broadcast %7 : vector<16x1xf32> to vector<16x64xf32>
    %9 = arith.subf %1, %8 : vector<16x64xf32>
    %10 = arith.mulf %9, %9 : vector<16x64xf32>
    %cst_7 = arith.constant dense<0.000000e+00> : vector<16xf32>
    %11 = vector.multi_reduction <add>, %10, %cst_7 [1] : vector<16x64xf32> to vector<16xf32>
    %12 = vector.shape_cast %11 : vector<16xf32> to vector<16x1xf32>
    %cst_8 = arith.constant 6.400000e+01 : f32
    %13 = vector.broadcast %cst_8 : f32 to vector<16x1xf32>
    %14 = arith.divf %12, %13 : vector<16x1xf32>
    %15 = vector.broadcast %7 : vector<16x1xf32> to vector<16x64xf32>
    %16 = arith.subf %1, %15 : vector<16x64xf32>
    %cst_9 = arith.constant 9.99999974E-6 : f32
    %17 = vector.broadcast %cst_9 : f32 to vector<16x1xf32>
    %18 = arith.addf %14, %17 : vector<16x1xf32>
    %19 = math.rsqrt %18 : vector<16x1xf32>
    %20 = vector.broadcast %19 : vector<16x1xf32> to vector<16x64xf32>
    %21 = arith.mulf %16, %20 : vector<16x64xf32>
    %22 = vector.broadcast %2 : vector<1x64xf32> to vector<16x64xf32>
    %23 = arith.mulf %21, %22 : vector<16x64xf32>
    %24 = vector.broadcast %3 : vector<1x64xf32> to vector<16x64xf32>
    %25 = arith.addf %23, %24 : vector<16x64xf32>
    %c0_10 = arith.constant 0 : index
    %c0_11 = arith.constant 0 : index
    %26 = vector.load %arg5[%c0_10, %c0_11] : memref<64x192xf32, #tpu.memory_space<vmem>>, vector<64x192xf32>
    %cst_12 = arith.constant dense<0.000000e+00> : vector<16x192xf32>
    %27 = tpu.matmul %25, %26, %cst_12 {dimension_numbers = #tpu.dot_dimension_numbers<[1], [0], [0], [1], [0, 0, 1, 1], [], []>} : vector<16x64xf32>, vector<64x192xf32>, vector<16x192xf32> -> vector<16x192xf32>
    %28 = vector.extract_strided_slice %27 {offsets = [0, 0], sizes = [16, 64], strides = [1, 1]} : vector<16x192xf32> to vector<16x64xf32>
    %29 = vector.extract_strided_slice %27 {offsets = [0, 64], sizes = [16, 64], strides = [1, 1]} : vector<16x192xf32> to vector<16x64xf32>
    %30 = vector.extract_strided_slice %27 {offsets = [0, 128], sizes = [16, 64], strides = [1, 1]} : vector<16x192xf32> to vector<16x64xf32>
    %31 = vector.extract_strided_slice %28 {offsets = [0, 0], sizes = [16, 16], strides = [1, 1]} : vector<16x64xf32> to vector<16x16xf32>
    %32 = vector.extract_strided_slice %29 {offsets = [0, 0], sizes = [16, 16], strides = [1, 1]} : vector<16x64xf32> to vector<16x16xf32>
    %33 = vector.extract_strided_slice %30 {offsets = [0, 0], sizes = [16, 16], strides = [1, 1]} : vector<16x64xf32> to vector<16x16xf32>
    %cst_13 = arith.constant dense<0.000000e+00> : vector<16x16xf32>
    %34 = tpu.matmul %31, %32, %cst_13 {dimension_numbers = #tpu.dot_dimension_numbers<[1], [1], [0], [0], [0, 0, 1, 0], [], []>} : vector<16x16xf32>, vector<16x16xf32>, vector<16x16xf32> -> vector<16x16xf32>
    %cst_14 = arith.constant dense<0xFF800000> : vector<16xf32>
    %35 = vector.multi_reduction <maximumf>, %34, %cst_14 [1] : vector<16x16xf32> to vector<16xf32>
    %36 = vector.shape_cast %35 : vector<16xf32> to vector<16x1xf32>
    %37 = vector.broadcast %36 : vector<16x1xf32> to vector<16x16xf32>
    %38 = arith.subf %34, %37 : vector<16x16xf32>
    %39 = math.exp %38 : vector<16x16xf32>
    %cst_15 = arith.constant dense<0.000000e+00> : vector<16xf32>
    %40 = vector.multi_reduction <add>, %39, %cst_15 [1] : vector<16x16xf32> to vector<16xf32>
    %41 = vector.shape_cast %40 : vector<16xf32> to vector<16x1xf32>
    %cst_16 = arith.constant dense<0.000000e+00> : vector<16x16xf32>
    %42 = tpu.matmul %39, %33, %cst_16 {dimension_numbers = #tpu.dot_dimension_numbers<[1], [0], [0], [1], [0, 0, 1, 1], [], []>} : vector<16x16xf32>, vector<16x16xf32>, vector<16x16xf32> -> vector<16x16xf32>
    %43 = vector.broadcast %41 : vector<16x1xf32> to vector<16x16xf32>
    %44 = arith.divf %42, %43 : vector<16x16xf32>
    %45 = vector.extract_strided_slice %28 {offsets = [0, 16], sizes = [16, 16], strides = [1, 1]} : vector<16x64xf32> to vector<16x16xf32>
    %46 = vector.extract_strided_slice %29 {offsets = [0, 16], sizes = [16, 16], strides = [1, 1]} : vector<16x64xf32> to vector<16x16xf32>
    %47 = vector.extract_strided_slice %30 {offsets = [0, 16], sizes = [16, 16], strides = [1, 1]} : vector<16x64xf32> to vector<16x16xf32>
    %cst_17 = arith.constant dense<0.000000e+00> : vector<16x16xf32>
    %48 = tpu.matmul %45, %46, %cst_17 {dimension_numbers = #tpu.dot_dimension_numbers<[1], [1], [0], [0], [0, 0, 1, 0], [], []>} : vector<16x16xf32>, vector<16x16xf32>, vector<16x16xf32> -> vector<16x16xf32>
    %cst_18 = arith.constant dense<0xFF800000> : vector<16xf32>
    %49 = vector.multi_reduction <maximumf>, %48, %cst_18 [1] : vector<16x16xf32> to vector<16xf32>
    %50 = vector.shape_cast %49 : vector<16xf32> to vector<16x1xf32>
    %51 = vector.broadcast %50 : vector<16x1xf32> to vector<16x16xf32>
    %52 = arith.subf %48, %51 : vector<16x16xf32>
    %53 = math.exp %52 : vector<16x16xf32>
    %cst_19 = arith.constant dense<0.000000e+00> : vector<16xf32>
    %54 = vector.multi_reduction <add>, %53, %cst_19 [1] : vector<16x16xf32> to vector<16xf32>
    %55 = vector.shape_cast %54 : vector<16xf32> to vector<16x1xf32>
    %cst_20 = arith.constant dense<0.000000e+00> : vector<16x16xf32>
    %56 = tpu.matmul %53, %47, %cst_20 {dimension_numbers = #tpu.dot_dimension_numbers<[1], [0], [0], [1], [0, 0, 1, 1], [], []>} : vector<16x16xf32>, vector<16x16xf32>, vector<16x16xf32> -> vector<16x16xf32>
    %57 = vector.broadcast %55 : vector<16x1xf32> to vector<16x16xf32>
    %58 = arith.divf %56, %57 : vector<16x16xf32>
    %59 = vector.extract_strided_slice %28 {offsets = [0, 32], sizes = [16, 16], strides = [1, 1]} : vector<16x64xf32> to vector<16x16xf32>
    %60 = vector.extract_strided_slice %29 {offsets = [0, 32], sizes = [16, 16], strides = [1, 1]} : vector<16x64xf32> to vector<16x16xf32>
    %61 = vector.extract_strided_slice %30 {offsets = [0, 32], sizes = [16, 16], strides = [1, 1]} : vector<16x64xf32> to vector<16x16xf32>
    %cst_21 = arith.constant dense<0.000000e+00> : vector<16x16xf32>
    %62 = tpu.matmul %59, %60, %cst_21 {dimension_numbers = #tpu.dot_dimension_numbers<[1], [1], [0], [0], [0, 0, 1, 0], [], []>} : vector<16x16xf32>, vector<16x16xf32>, vector<16x16xf32> -> vector<16x16xf32>
    %cst_22 = arith.constant dense<0xFF800000> : vector<16xf32>
    %63 = vector.multi_reduction <maximumf>, %62, %cst_22 [1] : vector<16x16xf32> to vector<16xf32>
    %64 = vector.shape_cast %63 : vector<16xf32> to vector<16x1xf32>
    %65 = vector.broadcast %64 : vector<16x1xf32> to vector<16x16xf32>
    %66 = arith.subf %62, %65 : vector<16x16xf32>
    %67 = math.exp %66 : vector<16x16xf32>
    %cst_23 = arith.constant dense<0.000000e+00> : vector<16xf32>
    %68 = vector.multi_reduction <add>, %67, %cst_23 [1] : vector<16x16xf32> to vector<16xf32>
    %69 = vector.shape_cast %68 : vector<16xf32> to vector<16x1xf32>
    %cst_24 = arith.constant dense<0.000000e+00> : vector<16x16xf32>
    %70 = tpu.matmul %67, %61, %cst_24 {dimension_numbers = #tpu.dot_dimension_numbers<[1], [0], [0], [1], [0, 0, 1, 1], [], []>} : vector<16x16xf32>, vector<16x16xf32>, vector<16x16xf32> -> vector<16x16xf32>
    %71 = vector.broadcast %69 : vector<16x1xf32> to vector<16x16xf32>
    %72 = arith.divf %70, %71 : vector<16x16xf32>
    %73 = vector.extract_strided_slice %28 {offsets = [0, 48], sizes = [16, 16], strides = [1, 1]} : vector<16x64xf32> to vector<16x16xf32>
    %74 = vector.extract_strided_slice %29 {offsets = [0, 48], sizes = [16, 16], strides = [1, 1]} : vector<16x64xf32> to vector<16x16xf32>
    %75 = vector.extract_strided_slice %30 {offsets = [0, 48], sizes = [16, 16], strides = [1, 1]} : vector<16x64xf32> to vector<16x16xf32>
    %cst_25 = arith.constant dense<0.000000e+00> : vector<16x16xf32>
    %76 = tpu.matmul %73, %74, %cst_25 {dimension_numbers = #tpu.dot_dimension_numbers<[1], [1], [0], [0], [0, 0, 1, 0], [], []>} : vector<16x16xf32>, vector<16x16xf32>, vector<16x16xf32> -> vector<16x16xf32>
    %cst_26 = arith.constant dense<0xFF800000> : vector<16xf32>
    %77 = vector.multi_reduction <maximumf>, %76, %cst_26 [1] : vector<16x16xf32> to vector<16xf32>
    %78 = vector.shape_cast %77 : vector<16xf32> to vector<16x1xf32>
    %79 = vector.broadcast %78 : vector<16x1xf32> to vector<16x16xf32>
    %80 = arith.subf %76, %79 : vector<16x16xf32>
    %81 = math.exp %80 : vector<16x16xf32>
    %cst_27 = arith.constant dense<0.000000e+00> : vector<16xf32>
    %82 = vector.multi_reduction <add>, %81, %cst_27 [1] : vector<16x16xf32> to vector<16xf32>
    %83 = vector.shape_cast %82 : vector<16xf32> to vector<16x1xf32>
    %cst_28 = arith.constant dense<0.000000e+00> : vector<16x16xf32>
    %84 = tpu.matmul %81, %75, %cst_28 {dimension_numbers = #tpu.dot_dimension_numbers<[1], [0], [0], [1], [0, 0, 1, 1], [], []>} : vector<16x16xf32>, vector<16x16xf32>, vector<16x16xf32> -> vector<16x16xf32>
    %85 = vector.broadcast %83 : vector<16x1xf32> to vector<16x16xf32>
    %86 = arith.divf %84, %85 : vector<16x16xf32>
    %87 = tpu.concatenate %44, %58, %72, %86 in 1 : vector<16x16xf32>, vector<16x16xf32>, vector<16x16xf32>, vector<16x16xf32> -> vector<16x64xf32>
    %c0_29 = arith.constant 0 : index
    %c0_30 = arith.constant 0 : index
    %88 = vector.load %arg6[%c0_29, %c0_30] : memref<64x64xf32, #tpu.memory_space<vmem>>, vector<64x64xf32>
    %cst_31 = arith.constant dense<0.000000e+00> : vector<16x64xf32>
    %89 = tpu.matmul %87, %88, %cst_31 {dimension_numbers = #tpu.dot_dimension_numbers<[1], [0], [0], [1], [0, 0, 1, 1], [], []>} : vector<16x64xf32>, vector<64x64xf32>, vector<16x64xf32> -> vector<16x64xf32>
    %c0_32 = arith.constant 0 : index
    %c0_33 = arith.constant 0 : index
    %90 = vector.load %arg7[%c0_32, %c0_33] : memref<1x64xf32, #tpu.memory_space<vmem>>, vector<1x64xf32>
    %91 = vector.broadcast %90 : vector<1x64xf32> to vector<16x64xf32>
    %92 = arith.addf %89, %91 : vector<16x64xf32>
    %93 = arith.addf %1, %92 : vector<16x64xf32>
    %c0_34 = arith.constant 0 : index
    %c0_35 = arith.constant 0 : index
    %94 = vector.load %arg8[%c0_34, %c0_35] : memref<1x64xf32, #tpu.memory_space<vmem>>, vector<1x64xf32>
    %c0_36 = arith.constant 0 : index
    %c0_37 = arith.constant 0 : index
    %95 = vector.load %arg9[%c0_36, %c0_37] : memref<1x64xf32, #tpu.memory_space<vmem>>, vector<1x64xf32>
    %cst_38 = arith.constant dense<0.000000e+00> : vector<16xf32>
    %96 = vector.multi_reduction <add>, %93, %cst_38 [1] : vector<16x64xf32> to vector<16xf32>
    %97 = vector.shape_cast %96 : vector<16xf32> to vector<16x1xf32>
    %cst_39 = arith.constant 6.400000e+01 : f32
    %98 = vector.broadcast %cst_39 : f32 to vector<16x1xf32>
    %99 = arith.divf %97, %98 : vector<16x1xf32>
    %100 = vector.broadcast %99 : vector<16x1xf32> to vector<16x64xf32>
    %101 = arith.subf %93, %100 : vector<16x64xf32>
    %102 = arith.mulf %101, %101 : vector<16x64xf32>
    %cst_40 = arith.constant dense<0.000000e+00> : vector<16xf32>
    %103 = vector.multi_reduction <add>, %102, %cst_40 [1] : vector<16x64xf32> to vector<16xf32>
    %104 = vector.shape_cast %103 : vector<16xf32> to vector<16x1xf32>
    %cst_41 = arith.constant 6.400000e+01 : f32
    %105 = vector.broadcast %cst_41 : f32 to vector<16x1xf32>
    %106 = arith.divf %104, %105 : vector<16x1xf32>
    %107 = vector.broadcast %99 : vector<16x1xf32> to vector<16x64xf32>
    %108 = arith.subf %93, %107 : vector<16x64xf32>
    %cst_42 = arith.constant 9.99999974E-6 : f32
    %109 = vector.broadcast %cst_42 : f32 to vector<16x1xf32>
    %110 = arith.addf %106, %109 : vector<16x1xf32>
    %111 = math.rsqrt %110 : vector<16x1xf32>
    %112 = vector.broadcast %111 : vector<16x1xf32> to vector<16x64xf32>
    %113 = arith.mulf %108, %112 : vector<16x64xf32>
    %114 = vector.broadcast %94 : vector<1x64xf32> to vector<16x64xf32>
    %115 = arith.mulf %113, %114 : vector<16x64xf32>
    %116 = vector.broadcast %95 : vector<1x64xf32> to vector<16x64xf32>
    %117 = arith.addf %115, %116 : vector<16x64xf32>
    %c0_43 = arith.constant 0 : index
    %c0_44 = arith.constant 0 : index
    %c0_45 = arith.constant 0 : index
    %118 = vector.load %arg2[%c0_43, %c0_44, %c0_45] : memref<1x8x96xf32, #tpu.memory_space<vmem>>, vector<1x8x96xf32>
    %119 = vector.shape_cast %118 : vector<1x8x96xf32> to vector<8x96xf32>
    %c0_46 = arith.constant 0 : index
    %c0_47 = arith.constant 0 : index
    %120 = vector.load %arg10[%c0_46, %c0_47] : memref<64x64xf32, #tpu.memory_space<vmem>>, vector<64x64xf32>
    %cst_48 = arith.constant dense<0.000000e+00> : vector<16x64xf32>
    %121 = tpu.matmul %117, %120, %cst_48 {dimension_numbers = #tpu.dot_dimension_numbers<[1], [0], [0], [1], [0, 0, 1, 1], [], []>} : vector<16x64xf32>, vector<64x64xf32>, vector<16x64xf32> -> vector<16x64xf32>
    %c0_49 = arith.constant 0 : index
    %c0_50 = arith.constant 0 : index
    %122 = vector.load %arg11[%c0_49, %c0_50] : memref<96x128xf32, #tpu.memory_space<vmem>>, vector<96x128xf32>
    %cst_51 = arith.constant dense<0.000000e+00> : vector<8x128xf32>
    %123 = tpu.matmul %119, %122, %cst_51 {dimension_numbers = #tpu.dot_dimension_numbers<[1], [0], [0], [1], [0, 0, 1, 1], [], []>} : vector<8x96xf32>, vector<96x128xf32>, vector<8x128xf32> -> vector<8x128xf32>
    %124 = vector.extract_strided_slice %123 {offsets = [0, 0], sizes = [8, 64], strides = [1, 1]} : vector<8x128xf32> to vector<8x64xf32>
    %125 = vector.extract_strided_slice %123 {offsets = [0, 64], sizes = [8, 64], strides = [1, 1]} : vector<8x128xf32> to vector<8x64xf32>
    %126 = vector.extract_strided_slice %121 {offsets = [0, 0], sizes = [16, 16], strides = [1, 1]} : vector<16x64xf32> to vector<16x16xf32>
    %127 = vector.extract_strided_slice %124 {offsets = [0, 0], sizes = [8, 16], strides = [1, 1]} : vector<8x64xf32> to vector<8x16xf32>
    %128 = vector.extract_strided_slice %125 {offsets = [0, 0], sizes = [8, 16], strides = [1, 1]} : vector<8x64xf32> to vector<8x16xf32>
    %cst_52 = arith.constant dense<0.000000e+00> : vector<16x8xf32>
    %129 = tpu.matmul %126, %127, %cst_52 {dimension_numbers = #tpu.dot_dimension_numbers<[1], [1], [0], [0], [0, 0, 1, 0], [], []>} : vector<16x16xf32>, vector<8x16xf32>, vector<16x8xf32> -> vector<16x8xf32>
    %cst_53 = arith.constant dense<0xFF800000> : vector<16xf32>
    %130 = vector.multi_reduction <maximumf>, %129, %cst_53 [1] : vector<16x8xf32> to vector<16xf32>
    %131 = vector.shape_cast %130 : vector<16xf32> to vector<16x1xf32>
    %132 = vector.broadcast %131 : vector<16x1xf32> to vector<16x8xf32>
    %133 = arith.subf %129, %132 : vector<16x8xf32>
    %134 = math.exp %133 : vector<16x8xf32>
    %cst_54 = arith.constant dense<0.000000e+00> : vector<16xf32>
    %135 = vector.multi_reduction <add>, %134, %cst_54 [1] : vector<16x8xf32> to vector<16xf32>
    %136 = vector.shape_cast %135 : vector<16xf32> to vector<16x1xf32>
    %cst_55 = arith.constant dense<0.000000e+00> : vector<16x16xf32>
    %137 = tpu.matmul %134, %128, %cst_55 {dimension_numbers = #tpu.dot_dimension_numbers<[1], [0], [0], [1], [0, 0, 1, 1], [], []>} : vector<16x8xf32>, vector<8x16xf32>, vector<16x16xf32> -> vector<16x16xf32>
    %138 = vector.broadcast %136 : vector<16x1xf32> to vector<16x16xf32>
    %139 = arith.divf %137, %138 : vector<16x16xf32>
    %140 = vector.extract_strided_slice %121 {offsets = [0, 16], sizes = [16, 16], strides = [1, 1]} : vector<16x64xf32> to vector<16x16xf32>
    %141 = vector.extract_strided_slice %124 {offsets = [0, 16], sizes = [8, 16], strides = [1, 1]} : vector<8x64xf32> to vector<8x16xf32>
    %142 = vector.extract_strided_slice %125 {offsets = [0, 16], sizes = [8, 16], strides = [1, 1]} : vector<8x64xf32> to vector<8x16xf32>
    %cst_56 = arith.constant dense<0.000000e+00> : vector<16x8xf32>
    %143 = tpu.matmul %140, %141, %cst_56 {dimension_numbers = #tpu.dot_dimension_numbers<[1], [1], [0], [0], [0, 0, 1, 0], [], []>} : vector<16x16xf32>, vector<8x16xf32>, vector<16x8xf32> -> vector<16x8xf32>
    %cst_57 = arith.constant dense<0xFF800000> : vector<16xf32>
    %144 = vector.multi_reduction <maximumf>, %143, %cst_57 [1] : vector<16x8xf32> to vector<16xf32>
    %145 = vector.shape_cast %144 : vector<16xf32> to vector<16x1xf32>
    %146 = vector.broadcast %145 : vector<16x1xf32> to vector<16x8xf32>
    %147 = arith.subf %143, %146 : vector<16x8xf32>
    %148 = math.exp %147 : vector<16x8xf32>
    %cst_58 = arith.constant dense<0.000000e+00> : vector<16xf32>
    %149 = vector.multi_reduction <add>, %148, %cst_58 [1] : vector<16x8xf32> to vector<16xf32>
    %150 = vector.shape_cast %149 : vector<16xf32> to vector<16x1xf32>
    %cst_59 = arith.constant dense<0.000000e+00> : vector<16x16xf32>
    %151 = tpu.matmul %148, %142, %cst_59 {dimension_numbers = #tpu.dot_dimension_numbers<[1], [0], [0], [1], [0, 0, 1, 1], [], []>} : vector<16x8xf32>, vector<8x16xf32>, vector<16x16xf32> -> vector<16x16xf32>
    %152 = vector.broadcast %150 : vector<16x1xf32> to vector<16x16xf32>
    %153 = arith.divf %151, %152 : vector<16x16xf32>
    %154 = vector.extract_strided_slice %121 {offsets = [0, 32], sizes = [16, 16], strides = [1, 1]} : vector<16x64xf32> to vector<16x16xf32>
    %155 = vector.extract_strided_slice %124 {offsets = [0, 32], sizes = [8, 16], strides = [1, 1]} : vector<8x64xf32> to vector<8x16xf32>
    %156 = vector.extract_strided_slice %125 {offsets = [0, 32], sizes = [8, 16], strides = [1, 1]} : vector<8x64xf32> to vector<8x16xf32>
    %cst_60 = arith.constant dense<0.000000e+00> : vector<16x8xf32>
    %157 = tpu.matmul %154, %155, %cst_60 {dimension_numbers = #tpu.dot_dimension_numbers<[1], [1], [0], [0], [0, 0, 1, 0], [], []>} : vector<16x16xf32>, vector<8x16xf32>, vector<16x8xf32> -> vector<16x8xf32>
    %cst_61 = arith.constant dense<0xFF800000> : vector<16xf32>
    %158 = vector.multi_reduction <maximumf>, %157, %cst_61 [1] : vector<16x8xf32> to vector<16xf32>
    %159 = vector.shape_cast %158 : vector<16xf32> to vector<16x1xf32>
    %160 = vector.broadcast %159 : vector<16x1xf32> to vector<16x8xf32>
    %161 = arith.subf %157, %160 : vector<16x8xf32>
    %162 = math.exp %161 : vector<16x8xf32>
    %cst_62 = arith.constant dense<0.000000e+00> : vector<16xf32>
    %163 = vector.multi_reduction <add>, %162, %cst_62 [1] : vector<16x8xf32> to vector<16xf32>
    %164 = vector.shape_cast %163 : vector<16xf32> to vector<16x1xf32>
    %cst_63 = arith.constant dense<0.000000e+00> : vector<16x16xf32>
    %165 = tpu.matmul %162, %156, %cst_63 {dimension_numbers = #tpu.dot_dimension_numbers<[1], [0], [0], [1], [0, 0, 1, 1], [], []>} : vector<16x8xf32>, vector<8x16xf32>, vector<16x16xf32> -> vector<16x16xf32>
    %166 = vector.broadcast %164 : vector<16x1xf32> to vector<16x16xf32>
    %167 = arith.divf %165, %166 : vector<16x16xf32>
    %168 = vector.extract_strided_slice %121 {offsets = [0, 48], sizes = [16, 16], strides = [1, 1]} : vector<16x64xf32> to vector<16x16xf32>
    %169 = vector.extract_strided_slice %124 {offsets = [0, 48], sizes = [8, 16], strides = [1, 1]} : vector<8x64xf32> to vector<8x16xf32>
    %170 = vector.extract_strided_slice %125 {offsets = [0, 48], sizes = [8, 16], strides = [1, 1]} : vector<8x64xf32> to vector<8x16xf32>
    %cst_64 = arith.constant dense<0.000000e+00> : vector<16x8xf32>
    %171 = tpu.matmul %168, %169, %cst_64 {dimension_numbers = #tpu.dot_dimension_numbers<[1], [1], [0], [0], [0, 0, 1, 0], [], []>} : vector<16x16xf32>, vector<8x16xf32>, vector<16x8xf32> -> vector<16x8xf32>
    %cst_65 = arith.constant dense<0xFF800000> : vector<16xf32>
    %172 = vector.multi_reduction <maximumf>, %171, %cst_65 [1] : vector<16x8xf32> to vector<16xf32>
    %173 = vector.shape_cast %172 : vector<16xf32> to vector<16x1xf32>
    %174 = vector.broadcast %173 : vector<16x1xf32> to vector<16x8xf32>
    %175 = arith.subf %171, %174 : vector<16x8xf32>
    %176 = math.exp %175 : vector<16x8xf32>
    %cst_66 = arith.constant dense<0.000000e+00> : vector<16xf32>
    %177 = vector.multi_reduction <add>, %176, %cst_66 [1] : vector<16x8xf32> to vector<16xf32>
    %178 = vector.shape_cast %177 : vector<16xf32> to vector<16x1xf32>
    %cst_67 = arith.constant dense<0.000000e+00> : vector<16x16xf32>
    %179 = tpu.matmul %176, %170, %cst_67 {dimension_numbers = #tpu.dot_dimension_numbers<[1], [0], [0], [1], [0, 0, 1, 1], [], []>} : vector<16x8xf32>, vector<8x16xf32>, vector<16x16xf32> -> vector<16x16xf32>
    %180 = vector.broadcast %178 : vector<16x1xf32> to vector<16x16xf32>
    %181 = arith.divf %179, %180 : vector<16x16xf32>
    %182 = tpu.concatenate %139, %153, %167, %181 in 1 : vector<16x16xf32>, vector<16x16xf32>, vector<16x16xf32>, vector<16x16xf32> -> vector<16x64xf32>
    %c0_68 = arith.constant 0 : index
    %c0_69 = arith.constant 0 : index
    %183 = vector.load %arg12[%c0_68, %c0_69] : memref<64x64xf32, #tpu.memory_space<vmem>>, vector<64x64xf32>
    %cst_70 = arith.constant dense<0.000000e+00> : vector<16x64xf32>
    %184 = tpu.matmul %182, %183, %cst_70 {dimension_numbers = #tpu.dot_dimension_numbers<[1], [0], [0], [1], [0, 0, 1, 1], [], []>} : vector<16x64xf32>, vector<64x64xf32>, vector<16x64xf32> -> vector<16x64xf32>
    %c0_71 = arith.constant 0 : index
    %c0_72 = arith.constant 0 : index
    %185 = vector.load %arg13[%c0_71, %c0_72] : memref<1x64xf32, #tpu.memory_space<vmem>>, vector<1x64xf32>
    %186 = vector.broadcast %185 : vector<1x64xf32> to vector<16x64xf32>
    %187 = arith.addf %184, %186 : vector<16x64xf32>
    %188 = arith.addf %93, %187 : vector<16x64xf32>
    %c0_73 = arith.constant 0 : index
    %c0_74 = arith.constant 0 : index
    %189 = vector.load %arg14[%c0_73, %c0_74] : memref<1x64xf32, #tpu.memory_space<vmem>>, vector<1x64xf32>
    %c0_75 = arith.constant 0 : index
    %c0_76 = arith.constant 0 : index
    %190 = vector.load %arg15[%c0_75, %c0_76] : memref<1x64xf32, #tpu.memory_space<vmem>>, vector<1x64xf32>
    %cst_77 = arith.constant dense<0.000000e+00> : vector<16xf32>
    %191 = vector.multi_reduction <add>, %188, %cst_77 [1] : vector<16x64xf32> to vector<16xf32>
    %192 = vector.shape_cast %191 : vector<16xf32> to vector<16x1xf32>
    %cst_78 = arith.constant 6.400000e+01 : f32
    %193 = vector.broadcast %cst_78 : f32 to vector<16x1xf32>
    %194 = arith.divf %192, %193 : vector<16x1xf32>
    %195 = vector.broadcast %194 : vector<16x1xf32> to vector<16x64xf32>
    %196 = arith.subf %188, %195 : vector<16x64xf32>
    %197 = arith.mulf %196, %196 : vector<16x64xf32>
    %cst_79 = arith.constant dense<0.000000e+00> : vector<16xf32>
    %198 = vector.multi_reduction <add>, %197, %cst_79 [1] : vector<16x64xf32> to vector<16xf32>
    %199 = vector.shape_cast %198 : vector<16xf32> to vector<16x1xf32>
    %cst_80 = arith.constant 6.400000e+01 : f32
    %200 = vector.broadcast %cst_80 : f32 to vector<16x1xf32>
    %201 = arith.divf %199, %200 : vector<16x1xf32>
    %202 = vector.broadcast %194 : vector<16x1xf32> to vector<16x64xf32>
    %203 = arith.subf %188, %202 : vector<16x64xf32>
    %cst_81 = arith.constant 9.99999974E-6 : f32
    %204 = vector.broadcast %cst_81 : f32 to vector<16x1xf32>
    %205 = arith.addf %201, %204 : vector<16x1xf32>
    %206 = math.rsqrt %205 : vector<16x1xf32>
    %207 = vector.broadcast %206 : vector<16x1xf32> to vector<16x64xf32>
    %208 = arith.mulf %203, %207 : vector<16x64xf32>
    %209 = vector.broadcast %189 : vector<1x64xf32> to vector<16x64xf32>
    %210 = arith.mulf %208, %209 : vector<16x64xf32>
    %211 = vector.broadcast %190 : vector<1x64xf32> to vector<16x64xf32>
    %212 = arith.addf %210, %211 : vector<16x64xf32>
    %c0_82 = arith.constant 0 : index
    %c0_83 = arith.constant 0 : index
    %213 = vector.load %arg16[%c0_82, %c0_83] : memref<64x256xf32, #tpu.memory_space<vmem>>, vector<64x256xf32>
    %cst_84 = arith.constant dense<0.000000e+00> : vector<16x256xf32>
    %214 = tpu.matmul %212, %213, %cst_84 {dimension_numbers = #tpu.dot_dimension_numbers<[1], [0], [0], [1], [0, 0, 1, 1], [], []>} : vector<16x64xf32>, vector<64x256xf32>, vector<16x256xf32> -> vector<16x256xf32>
    %c0_85 = arith.constant 0 : index
    %c0_86 = arith.constant 0 : index
    %215 = vector.load %arg17[%c0_85, %c0_86] : memref<1x256xf32, #tpu.memory_space<vmem>>, vector<1x256xf32>
    %216 = vector.broadcast %215 : vector<1x256xf32> to vector<16x256xf32>
    %217 = arith.addf %214, %216 : vector<16x256xf32>
    %218 = arith.mulf %217, %217 : vector<16x256xf32>
    %219 = arith.mulf %217, %218 : vector<16x256xf32>
    %cst_87 = arith.constant 4.471500e-02 : f32
    %220 = vector.broadcast %cst_87 : f32 to vector<16x256xf32>
    %221 = arith.mulf %220, %219 : vector<16x256xf32>
    %222 = arith.addf %217, %221 : vector<16x256xf32>
    %cst_88 = arith.constant 0.797884583 : f32
    %223 = vector.broadcast %cst_88 : f32 to vector<16x256xf32>
    %224 = arith.mulf %223, %222 : vector<16x256xf32>
    %225 = math.tanh %224 : vector<16x256xf32>
    %cst_89 = arith.constant 1.000000e+00 : f32
    %226 = vector.broadcast %cst_89 : f32 to vector<16x256xf32>
    %227 = arith.addf %226, %225 : vector<16x256xf32>
    %cst_90 = arith.constant 5.000000e-01 : f32
    %228 = vector.broadcast %cst_90 : f32 to vector<16x256xf32>
    %229 = arith.mulf %228, %227 : vector<16x256xf32>
    %230 = arith.mulf %217, %229 : vector<16x256xf32>
    %c0_91 = arith.constant 0 : index
    %c0_92 = arith.constant 0 : index
    %231 = vector.load %arg18[%c0_91, %c0_92] : memref<256x64xf32, #tpu.memory_space<vmem>>, vector<256x64xf32>
    %cst_93 = arith.constant dense<0.000000e+00> : vector<16x64xf32>
    %232 = tpu.matmul %230, %231, %cst_93 {dimension_numbers = #tpu.dot_dimension_numbers<[1], [0], [0], [1], [0, 0, 1, 1], [], []>} : vector<16x256xf32>, vector<256x64xf32>, vector<16x64xf32> -> vector<16x64xf32>
    %c0_94 = arith.constant 0 : index
    %c0_95 = arith.constant 0 : index
    %233 = vector.load %arg19[%c0_94, %c0_95] : memref<1x64xf32, #tpu.memory_space<vmem>>, vector<1x64xf32>
    %234 = vector.broadcast %233 : vector<1x64xf32> to vector<16x64xf32>
    %235 = arith.addf %232, %234 : vector<16x64xf32>
    %236 = arith.addf %188, %235 : vector<16x64xf32>
    %c0_96 = arith.constant 0 : index
    %c0_97 = arith.constant 0 : index
    %c0_98 = arith.constant 0 : index
    %237 = vector.load %arg20[%c0_96, %c0_97, %c0_98] : memref<1x16x64xf32, #tpu.memory_space<vmem>>, vector<1x16x64xf32>
    %238 = vector.shape_cast %237 : vector<1x16x64xf32> to vector<16x64xf32>
    %239 = vector.shape_cast %236 : vector<16x64xf32> to vector<1x16x64xf32>
    tpu.vector_store %arg20[%c0_96, %c0_97, %c0_98], %239 {strides = array<i32>} : memref<1x16x64xf32, #tpu.memory_space<vmem>>, vector<1x16x64xf32>,
    return
  }
  func.func @transform_0(%arg0: i32) -> (i32, i32, i32) {
    %c0_i32 = arith.constant 0 : i32
    %c0_i32_0 = arith.constant 0 : i32
    %c0_i32_1 = arith.constant 0 : i32
    return %arg0, %c0_i32, %c0_i32_0 : i32, i32, i32
  }
  func.func @transform_1(%arg0: i32) -> (i32, i32, i32) {
    %c0_i32 = arith.constant 0 : i32
    %c0_i32_0 = arith.constant 0 : i32
    %c0_i32_1 = arith.constant 0 : i32
    return %arg0, %c0_i32, %c0_i32_0 : i32, i32, i32
  }
  func.func @transform_2(%arg0: i32) -> (i32, i32) {
    %c0_i32 = arith.constant 0 : i32
    %c0_i32_0 = arith.constant 0 : i32
    %c0_i32_1 = arith.constant 0 : i32
    return %c0_i32, %c0_i32_0 : i32, i32
  }
  func.func @transform_3(%arg0: i32) -> (i32, i32) {
    %c0_i32 = arith.constant 0 : i32
    %c0_i32_0 = arith.constant 0 : i32
    %c0_i32_1 = arith.constant 0 : i32
    return %c0_i32, %c0_i32_0 : i32, i32
  }
  func.func @transform_4(%arg0: i32) -> (i32, i32) {
    %c0_i32 = arith.constant 0 : i32
    %c0_i32_0 = arith.constant 0 : i32
    %c0_i32_1 = arith.constant 0 : i32
    return %c0_i32, %c0_i32_0 : i32, i32
  }
  func.func @transform_5(%arg0: i32) -> (i32, i32) {
    %c0_i32 = arith.constant 0 : i32
    %c0_i32_0 = arith.constant 0 : i32
    %c0_i32_1 = arith.constant 0 : i32
    return %c0_i32, %c0_i32_0 : i32, i32
  }
  func.func @transform_6(%arg0: i32) -> (i32, i32) {
    %c0_i32 = arith.constant 0 : i32
    %c0_i32_0 = arith.constant 0 : i32
    %c0_i32_1 = arith.constant 0 : i32
    return %c0_i32, %c0_i32_0 : i32, i32
  }
  func.func @transform_7(%arg0: i32) -> (i32, i32) {
    %c0_i32 = arith.constant 0 : i32
    %c0_i32_0 = arith.constant 0 : i32
    %c0_i32_1 = arith.constant 0 : i32
    return %c0_i32, %c0_i32_0 : i32, i32
  }
  func.func @transform_8(%arg0: i32) -> (i32, i32) {
    %c0_i32 = arith.constant 0 : i32
    %c0_i32_0 = arith.constant 0 : i32
    %c0_i32_1 = arith.constant 0 : i32
    return %c0_i32, %c0_i32_0 : i32, i32
  }
  func.func @transform_9(%arg0: i32) -> (i32, i32) {
    %c0_i32 = arith.constant 0 : i32
    %c0_i32_0 = arith.constant 0 : i32
    %c0_i32_1 = arith.constant 0 : i32
    return %c0_i32, %c0_i32_0 : i32, i32
  }
  func.func @transform_10(%arg0: i32) -> (i32, i32) {
    %c0_i32 = arith.constant 0 : i32
    %c0_i32_0 = arith.constant 0 : i32
    %c0_i32_1 = arith.constant 0 : i32
    return %c0_i32, %c0_i32_0 : i32, i32
  }
  func.func @transform_11(%arg0: i32) -> (i32, i32) {
    %c0_i32 = arith.constant 0 : i32
    %c0_i32_0 = arith.constant 0 : i32
    %c0_i32_1 = arith.constant 0 : i32
    return %c0_i32, %c0_i32_0 : i32, i32
  }
  func.func @transform_12(%arg0: i32) -> (i32, i32) {
    %c0_i32 = arith.constant 0 : i32
    %c0_i32_0 = arith.constant 0 : i32
    %c0_i32_1 = arith.constant 0 : i32
    return %c0_i32, %c0_i32_0 : i32, i32
  }
  func.func @transform_13(%arg0: i32) -> (i32, i32) {
    %c0_i32 = arith.constant 0 : i32
    %c0_i32_0 = arith.constant 0 : i32
    %c0_i32_1 = arith.constant 0 : i32
    return %c0_i32, %c0_i32_0 : i32, i32
  }
  func.func @transform_14(%arg0: i32) -> (i32, i32) {
    %c0_i32 = arith.constant 0 : i32
    %c0_i32_0 = arith.constant 0 : i32
    %c0_i32_1 = arith.constant 0 : i32
    return %c0_i32, %c0_i32_0 : i32, i32
  }
  func.func @transform_15(%arg0: i32) -> (i32, i32) {
    %c0_i32 = arith.constant 0 : i32
    %c0_i32_0 = arith.constant 0 : i32
    %c0_i32_1 = arith.constant 0 : i32
    return %c0_i32, %c0_i32_0 : i32, i32
  }
  func.func @transform_16(%arg0: i32) -> (i32, i32) {
    %c0_i32 = arith.constant 0 : i32
    %c0_i32_0 = arith.constant 0 : i32
    %c0_i32_1 = arith.constant 0 : i32
    return %c0_i32, %c0_i32_0 : i32, i32
  }
  func.func @transform_17(%arg0: i32) -> (i32, i32) {
    %c0_i32 = arith.constant 0 : i32
    %c0_i32_0 = arith.constant 0 : i32
    %c0_i32_1 = arith.constant 0 : i32
    return %c0_i32, %c0_i32_0 : i32, i32
  }
  func.func @transform_18(%arg0: i32) -> (i32, i32) {
    %c0_i32 = arith.constant 0 : i32
    %c0_i32_0 = arith.constant 0 : i32
    %c0_i32_1 = arith.constant 0 : i32
    return %c0_i32, %c0_i32_0 : i32, i32
  }
  func.func @transform_19(%arg0: i32) -> (i32, i32, i32) {
    %c0_i32 = arith.constant 0 : i32
    %c0_i32_0 = arith.constant 0 : i32
    %c0_i32_1 = arith.constant 0 : i32
    return %arg0, %c0_i32, %c0_i32_0 : i32, i32, i32
  }
}

module attributes {stable_mosaic.version = 11 : i64} {
  func.func @_fuse_block_kernel(%arg0: i32, %arg1: memref<1x16x64xf32, #tpu.memory_space<vmem>>, %arg2: memref<1x32x32xf32, #tpu.memory_space<vmem>>, %arg3: memref<1x32xf32, #tpu.memory_space<vmem>>, %arg4: memref<1x32xf32, #tpu.memory_space<vmem>>, %arg5: memref<1x64xf32, #tpu.memory_space<vmem>>, %arg6: memref<1x64xf32, #tpu.memory_space<vmem>>, %arg7: memref<64x64xf32, #tpu.memory_space<vmem>>, %arg8: memref<32x128xf32, #tpu.memory_space<vmem>>, %arg9: memref<64x64xf32, #tpu.memory_space<vmem>>, %arg10: memref<1x64xf32, #tpu.memory_space<vmem>>, %arg11: memref<1x64xf32, #tpu.memory_space<vmem>>, %arg12: memref<1x64xf32, #tpu.memory_space<vmem>>, %arg13: memref<64x256xf32, #tpu.memory_space<vmem>>, %arg14: memref<1x256xf32, #tpu.memory_space<vmem>>, %arg15: memref<256x64xf32, #tpu.memory_space<vmem>>, %arg16: memref<1x64xf32, #tpu.memory_space<vmem>>, %arg17: memref<1x16x64xf32, #tpu.memory_space<vmem>>) attributes {dimension_semantics = [#tpu.dimension_semantics<parallel>], iteration_bounds = array<i64: 2>, scalar_prefetch = 0 : i64, scratch_operands = 0 : i64, tpu.core_type = #tpu.core_type<tc>, window_params = [{transform_indices = @transform_0, window_bounds = array<i64: 1, 16, 64>}, {transform_indices = @transform_1, window_bounds = array<i64: 1, 32, 32>}, {pipeline_mode = #tpu.pipeline_mode<synchronous>, transform_indices = @transform_2, window_bounds = array<i64: 1, 32>}, {pipeline_mode = #tpu.pipeline_mode<synchronous>, transform_indices = @transform_3, window_bounds = array<i64: 1, 32>}, {pipeline_mode = #tpu.pipeline_mode<synchronous>, transform_indices = @transform_4, window_bounds = array<i64: 1, 64>}, {pipeline_mode = #tpu.pipeline_mode<synchronous>, transform_indices = @transform_5, window_bounds = array<i64: 1, 64>}, {pipeline_mode = #tpu.pipeline_mode<synchronous>, transform_indices = @transform_6, window_bounds = array<i64: 64, 64>}, {pipeline_mode = #tpu.pipeline_mode<synchronous>, transform_indices = @transform_7, window_bounds = array<i64: 32, 128>}, {pipeline_mode = #tpu.pipeline_mode<synchronous>, transform_indices = @transform_8, window_bounds = array<i64: 64, 64>}, {pipeline_mode = #tpu.pipeline_mode<synchronous>, transform_indices = @transform_9, window_bounds = array<i64: 1, 64>}, {pipeline_mode = #tpu.pipeline_mode<synchronous>, transform_indices = @transform_10, window_bounds = array<i64: 1, 64>}, {pipeline_mode = #tpu.pipeline_mode<synchronous>, transform_indices = @transform_11, window_bounds = array<i64: 1, 64>}, {pipeline_mode = #tpu.pipeline_mode<synchronous>, transform_indices = @transform_12, window_bounds = array<i64: 64, 256>}, {pipeline_mode = #tpu.pipeline_mode<synchronous>, transform_indices = @transform_13, window_bounds = array<i64: 1, 256>}, {pipeline_mode = #tpu.pipeline_mode<synchronous>, transform_indices = @transform_14, window_bounds = array<i64: 256, 64>}, {pipeline_mode = #tpu.pipeline_mode<synchronous>, transform_indices = @transform_15, window_bounds = array<i64: 1, 64>}, {transform_indices = @transform_16, window_bounds = array<i64: 1, 16, 64>}]} {
    %c0 = arith.constant 0 : index
    %c0_0 = arith.constant 0 : index
    %c0_1 = arith.constant 0 : index
    %0 = vector.load %arg1[%c0, %c0_0, %c0_1] : memref<1x16x64xf32, #tpu.memory_space<vmem>>, vector<1x16x64xf32>
    %1 = vector.shape_cast %0 : vector<1x16x64xf32> to vector<16x64xf32>
    %c0_2 = arith.constant 0 : index
    %c0_3 = arith.constant 0 : index
    %c0_4 = arith.constant 0 : index
    %2 = vector.load %arg2[%c0_2, %c0_3, %c0_4] : memref<1x32x32xf32, #tpu.memory_space<vmem>>, vector<1x32x32xf32>
    %3 = vector.shape_cast %2 : vector<1x32x32xf32> to vector<32x32xf32>
    %c0_5 = arith.constant 0 : index
    %c0_6 = arith.constant 0 : index
    %4 = vector.load %arg5[%c0_5, %c0_6] : memref<1x64xf32, #tpu.memory_space<vmem>>, vector<1x64xf32>
    %c0_7 = arith.constant 0 : index
    %c0_8 = arith.constant 0 : index
    %5 = vector.load %arg6[%c0_7, %c0_8] : memref<1x64xf32, #tpu.memory_space<vmem>>, vector<1x64xf32>
    %cst = arith.constant dense<0.000000e+00> : vector<16xf32>
    %6 = vector.multi_reduction <add>, %1, %cst [1] : vector<16x64xf32> to vector<16xf32>
    %7 = vector.shape_cast %6 : vector<16xf32> to vector<16x1xf32>
    %cst_9 = arith.constant 6.400000e+01 : f32
    %8 = vector.broadcast %cst_9 : f32 to vector<16x1xf32>
    %9 = arith.divf %7, %8 : vector<16x1xf32>
    %10 = vector.broadcast %9 : vector<16x1xf32> to vector<16x64xf32>
    %11 = arith.subf %1, %10 : vector<16x64xf32>
    %12 = arith.mulf %11, %11 : vector<16x64xf32>
    %cst_10 = arith.constant dense<0.000000e+00> : vector<16xf32>
    %13 = vector.multi_reduction <add>, %12, %cst_10 [1] : vector<16x64xf32> to vector<16xf32>
    %14 = vector.shape_cast %13 : vector<16xf32> to vector<16x1xf32>
    %cst_11 = arith.constant 6.400000e+01 : f32
    %15 = vector.broadcast %cst_11 : f32 to vector<16x1xf32>
    %16 = arith.divf %14, %15 : vector<16x1xf32>
    %17 = vector.broadcast %9 : vector<16x1xf32> to vector<16x64xf32>
    %18 = arith.subf %1, %17 : vector<16x64xf32>
    %cst_12 = arith.constant 9.99999974E-6 : f32
    %19 = vector.broadcast %cst_12 : f32 to vector<16x1xf32>
    %20 = arith.addf %16, %19 : vector<16x1xf32>
    %21 = math.rsqrt %20 : vector<16x1xf32>
    %22 = vector.broadcast %21 : vector<16x1xf32> to vector<16x64xf32>
    %23 = arith.mulf %18, %22 : vector<16x64xf32>
    %24 = vector.broadcast %4 : vector<1x64xf32> to vector<16x64xf32>
    %25 = arith.mulf %23, %24 : vector<16x64xf32>
    %26 = vector.broadcast %5 : vector<1x64xf32> to vector<16x64xf32>
    %27 = arith.addf %25, %26 : vector<16x64xf32>
    %c0_13 = arith.constant 0 : index
    %c0_14 = arith.constant 0 : index
    %28 = vector.load %arg3[%c0_13, %c0_14] : memref<1x32xf32, #tpu.memory_space<vmem>>, vector<1x32xf32>
    %c0_15 = arith.constant 0 : index
    %c0_16 = arith.constant 0 : index
    %29 = vector.load %arg4[%c0_15, %c0_16] : memref<1x32xf32, #tpu.memory_space<vmem>>, vector<1x32xf32>
    %cst_17 = arith.constant dense<0.000000e+00> : vector<32xf32>
    %30 = vector.multi_reduction <add>, %3, %cst_17 [1] : vector<32x32xf32> to vector<32xf32>
    %31 = vector.shape_cast %30 : vector<32xf32> to vector<32x1xf32>
    %cst_18 = arith.constant 3.200000e+01 : f32
    %32 = vector.broadcast %cst_18 : f32 to vector<32x1xf32>
    %33 = arith.divf %31, %32 : vector<32x1xf32>
    %34 = vector.broadcast %33 : vector<32x1xf32> to vector<32x32xf32>
    %35 = arith.subf %3, %34 : vector<32x32xf32>
    %36 = arith.mulf %35, %35 : vector<32x32xf32>
    %cst_19 = arith.constant dense<0.000000e+00> : vector<32xf32>
    %37 = vector.multi_reduction <add>, %36, %cst_19 [1] : vector<32x32xf32> to vector<32xf32>
    %38 = vector.shape_cast %37 : vector<32xf32> to vector<32x1xf32>
    %cst_20 = arith.constant 3.200000e+01 : f32
    %39 = vector.broadcast %cst_20 : f32 to vector<32x1xf32>
    %40 = arith.divf %38, %39 : vector<32x1xf32>
    %41 = vector.broadcast %33 : vector<32x1xf32> to vector<32x32xf32>
    %42 = arith.subf %3, %41 : vector<32x32xf32>
    %cst_21 = arith.constant 9.99999974E-6 : f32
    %43 = vector.broadcast %cst_21 : f32 to vector<32x1xf32>
    %44 = arith.addf %40, %43 : vector<32x1xf32>
    %45 = math.rsqrt %44 : vector<32x1xf32>
    %46 = vector.broadcast %45 : vector<32x1xf32> to vector<32x32xf32>
    %47 = arith.mulf %42, %46 : vector<32x32xf32>
    %48 = vector.broadcast %28 : vector<1x32xf32> to vector<32x32xf32>
    %49 = arith.mulf %47, %48 : vector<32x32xf32>
    %50 = vector.broadcast %29 : vector<1x32xf32> to vector<32x32xf32>
    %51 = arith.addf %49, %50 : vector<32x32xf32>
    %c0_22 = arith.constant 0 : index
    %c0_23 = arith.constant 0 : index
    %52 = vector.load %arg7[%c0_22, %c0_23] : memref<64x64xf32, #tpu.memory_space<vmem>>, vector<64x64xf32>
    %cst_24 = arith.constant dense<0.000000e+00> : vector<16x64xf32>
    %53 = tpu.matmul %27, %52, %cst_24 {dimension_numbers = #tpu.dot_dimension_numbers<[1], [0], [0], [1], [0, 0, 1, 1], [], []>} : vector<16x64xf32>, vector<64x64xf32>, vector<16x64xf32> -> vector<16x64xf32>
    %c0_25 = arith.constant 0 : index
    %c0_26 = arith.constant 0 : index
    %54 = vector.load %arg8[%c0_25, %c0_26] : memref<32x128xf32, #tpu.memory_space<vmem>>, vector<32x128xf32>
    %cst_27 = arith.constant dense<0.000000e+00> : vector<32x128xf32>
    %55 = tpu.matmul %51, %54, %cst_27 {dimension_numbers = #tpu.dot_dimension_numbers<[1], [0], [0], [1], [0, 0, 1, 1], [], []>} : vector<32x32xf32>, vector<32x128xf32>, vector<32x128xf32> -> vector<32x128xf32>
    %56 = vector.extract_strided_slice %55 {offsets = [0, 0], sizes = [32, 64], strides = [1, 1]} : vector<32x128xf32> to vector<32x64xf32>
    %57 = vector.extract_strided_slice %55 {offsets = [0, 64], sizes = [32, 64], strides = [1, 1]} : vector<32x128xf32> to vector<32x64xf32>
    %58 = vector.extract_strided_slice %53 {offsets = [0, 0], sizes = [16, 16], strides = [1, 1]} : vector<16x64xf32> to vector<16x16xf32>
    %59 = vector.extract_strided_slice %56 {offsets = [0, 0], sizes = [32, 16], strides = [1, 1]} : vector<32x64xf32> to vector<32x16xf32>
    %60 = vector.extract_strided_slice %57 {offsets = [0, 0], sizes = [32, 16], strides = [1, 1]} : vector<32x64xf32> to vector<32x16xf32>
    %cst_28 = arith.constant dense<0.000000e+00> : vector<16x32xf32>
    %61 = tpu.matmul %58, %59, %cst_28 {dimension_numbers = #tpu.dot_dimension_numbers<[1], [1], [0], [0], [0, 0, 1, 0], [], []>} : vector<16x16xf32>, vector<32x16xf32>, vector<16x32xf32> -> vector<16x32xf32>
    %cst_29 = arith.constant dense<0xFF800000> : vector<16xf32>
    %62 = vector.multi_reduction <maximumf>, %61, %cst_29 [1] : vector<16x32xf32> to vector<16xf32>
    %63 = vector.shape_cast %62 : vector<16xf32> to vector<16x1xf32>
    %64 = vector.broadcast %63 : vector<16x1xf32> to vector<16x32xf32>
    %65 = arith.subf %61, %64 : vector<16x32xf32>
    %66 = math.exp %65 : vector<16x32xf32>
    %cst_30 = arith.constant dense<0.000000e+00> : vector<16xf32>
    %67 = vector.multi_reduction <add>, %66, %cst_30 [1] : vector<16x32xf32> to vector<16xf32>
    %68 = vector.shape_cast %67 : vector<16xf32> to vector<16x1xf32>
    %cst_31 = arith.constant dense<0.000000e+00> : vector<16x16xf32>
    %69 = tpu.matmul %66, %60, %cst_31 {dimension_numbers = #tpu.dot_dimension_numbers<[1], [0], [0], [1], [0, 0, 1, 1], [], []>} : vector<16x32xf32>, vector<32x16xf32>, vector<16x16xf32> -> vector<16x16xf32>
    %70 = vector.broadcast %68 : vector<16x1xf32> to vector<16x16xf32>
    %71 = arith.divf %69, %70 : vector<16x16xf32>
    %72 = vector.extract_strided_slice %53 {offsets = [0, 16], sizes = [16, 16], strides = [1, 1]} : vector<16x64xf32> to vector<16x16xf32>
    %73 = vector.extract_strided_slice %56 {offsets = [0, 16], sizes = [32, 16], strides = [1, 1]} : vector<32x64xf32> to vector<32x16xf32>
    %74 = vector.extract_strided_slice %57 {offsets = [0, 16], sizes = [32, 16], strides = [1, 1]} : vector<32x64xf32> to vector<32x16xf32>
    %cst_32 = arith.constant dense<0.000000e+00> : vector<16x32xf32>
    %75 = tpu.matmul %72, %73, %cst_32 {dimension_numbers = #tpu.dot_dimension_numbers<[1], [1], [0], [0], [0, 0, 1, 0], [], []>} : vector<16x16xf32>, vector<32x16xf32>, vector<16x32xf32> -> vector<16x32xf32>
    %cst_33 = arith.constant dense<0xFF800000> : vector<16xf32>
    %76 = vector.multi_reduction <maximumf>, %75, %cst_33 [1] : vector<16x32xf32> to vector<16xf32>
    %77 = vector.shape_cast %76 : vector<16xf32> to vector<16x1xf32>
    %78 = vector.broadcast %77 : vector<16x1xf32> to vector<16x32xf32>
    %79 = arith.subf %75, %78 : vector<16x32xf32>
    %80 = math.exp %79 : vector<16x32xf32>
    %cst_34 = arith.constant dense<0.000000e+00> : vector<16xf32>
    %81 = vector.multi_reduction <add>, %80, %cst_34 [1] : vector<16x32xf32> to vector<16xf32>
    %82 = vector.shape_cast %81 : vector<16xf32> to vector<16x1xf32>
    %cst_35 = arith.constant dense<0.000000e+00> : vector<16x16xf32>
    %83 = tpu.matmul %80, %74, %cst_35 {dimension_numbers = #tpu.dot_dimension_numbers<[1], [0], [0], [1], [0, 0, 1, 1], [], []>} : vector<16x32xf32>, vector<32x16xf32>, vector<16x16xf32> -> vector<16x16xf32>
    %84 = vector.broadcast %82 : vector<16x1xf32> to vector<16x16xf32>
    %85 = arith.divf %83, %84 : vector<16x16xf32>
    %86 = vector.extract_strided_slice %53 {offsets = [0, 32], sizes = [16, 16], strides = [1, 1]} : vector<16x64xf32> to vector<16x16xf32>
    %87 = vector.extract_strided_slice %56 {offsets = [0, 32], sizes = [32, 16], strides = [1, 1]} : vector<32x64xf32> to vector<32x16xf32>
    %88 = vector.extract_strided_slice %57 {offsets = [0, 32], sizes = [32, 16], strides = [1, 1]} : vector<32x64xf32> to vector<32x16xf32>
    %cst_36 = arith.constant dense<0.000000e+00> : vector<16x32xf32>
    %89 = tpu.matmul %86, %87, %cst_36 {dimension_numbers = #tpu.dot_dimension_numbers<[1], [1], [0], [0], [0, 0, 1, 0], [], []>} : vector<16x16xf32>, vector<32x16xf32>, vector<16x32xf32> -> vector<16x32xf32>
    %cst_37 = arith.constant dense<0xFF800000> : vector<16xf32>
    %90 = vector.multi_reduction <maximumf>, %89, %cst_37 [1] : vector<16x32xf32> to vector<16xf32>
    %91 = vector.shape_cast %90 : vector<16xf32> to vector<16x1xf32>
    %92 = vector.broadcast %91 : vector<16x1xf32> to vector<16x32xf32>
    %93 = arith.subf %89, %92 : vector<16x32xf32>
    %94 = math.exp %93 : vector<16x32xf32>
    %cst_38 = arith.constant dense<0.000000e+00> : vector<16xf32>
    %95 = vector.multi_reduction <add>, %94, %cst_38 [1] : vector<16x32xf32> to vector<16xf32>
    %96 = vector.shape_cast %95 : vector<16xf32> to vector<16x1xf32>
    %cst_39 = arith.constant dense<0.000000e+00> : vector<16x16xf32>
    %97 = tpu.matmul %94, %88, %cst_39 {dimension_numbers = #tpu.dot_dimension_numbers<[1], [0], [0], [1], [0, 0, 1, 1], [], []>} : vector<16x32xf32>, vector<32x16xf32>, vector<16x16xf32> -> vector<16x16xf32>
    %98 = vector.broadcast %96 : vector<16x1xf32> to vector<16x16xf32>
    %99 = arith.divf %97, %98 : vector<16x16xf32>
    %100 = vector.extract_strided_slice %53 {offsets = [0, 48], sizes = [16, 16], strides = [1, 1]} : vector<16x64xf32> to vector<16x16xf32>
    %101 = vector.extract_strided_slice %56 {offsets = [0, 48], sizes = [32, 16], strides = [1, 1]} : vector<32x64xf32> to vector<32x16xf32>
    %102 = vector.extract_strided_slice %57 {offsets = [0, 48], sizes = [32, 16], strides = [1, 1]} : vector<32x64xf32> to vector<32x16xf32>
    %cst_40 = arith.constant dense<0.000000e+00> : vector<16x32xf32>
    %103 = tpu.matmul %100, %101, %cst_40 {dimension_numbers = #tpu.dot_dimension_numbers<[1], [1], [0], [0], [0, 0, 1, 0], [], []>} : vector<16x16xf32>, vector<32x16xf32>, vector<16x32xf32> -> vector<16x32xf32>
    %cst_41 = arith.constant dense<0xFF800000> : vector<16xf32>
    %104 = vector.multi_reduction <maximumf>, %103, %cst_41 [1] : vector<16x32xf32> to vector<16xf32>
    %105 = vector.shape_cast %104 : vector<16xf32> to vector<16x1xf32>
    %106 = vector.broadcast %105 : vector<16x1xf32> to vector<16x32xf32>
    %107 = arith.subf %103, %106 : vector<16x32xf32>
    %108 = math.exp %107 : vector<16x32xf32>
    %cst_42 = arith.constant dense<0.000000e+00> : vector<16xf32>
    %109 = vector.multi_reduction <add>, %108, %cst_42 [1] : vector<16x32xf32> to vector<16xf32>
    %110 = vector.shape_cast %109 : vector<16xf32> to vector<16x1xf32>
    %cst_43 = arith.constant dense<0.000000e+00> : vector<16x16xf32>
    %111 = tpu.matmul %108, %102, %cst_43 {dimension_numbers = #tpu.dot_dimension_numbers<[1], [0], [0], [1], [0, 0, 1, 1], [], []>} : vector<16x32xf32>, vector<32x16xf32>, vector<16x16xf32> -> vector<16x16xf32>
    %112 = vector.broadcast %110 : vector<16x1xf32> to vector<16x16xf32>
    %113 = arith.divf %111, %112 : vector<16x16xf32>
    %114 = tpu.concatenate %71, %85, %99, %113 in 1 : vector<16x16xf32>, vector<16x16xf32>, vector<16x16xf32>, vector<16x16xf32> -> vector<16x64xf32>
    %c0_44 = arith.constant 0 : index
    %c0_45 = arith.constant 0 : index
    %115 = vector.load %arg9[%c0_44, %c0_45] : memref<64x64xf32, #tpu.memory_space<vmem>>, vector<64x64xf32>
    %cst_46 = arith.constant dense<0.000000e+00> : vector<16x64xf32>
    %116 = tpu.matmul %114, %115, %cst_46 {dimension_numbers = #tpu.dot_dimension_numbers<[1], [0], [0], [1], [0, 0, 1, 1], [], []>} : vector<16x64xf32>, vector<64x64xf32>, vector<16x64xf32> -> vector<16x64xf32>
    %c0_47 = arith.constant 0 : index
    %c0_48 = arith.constant 0 : index
    %117 = vector.load %arg10[%c0_47, %c0_48] : memref<1x64xf32, #tpu.memory_space<vmem>>, vector<1x64xf32>
    %118 = vector.broadcast %117 : vector<1x64xf32> to vector<16x64xf32>
    %119 = arith.addf %116, %118 : vector<16x64xf32>
    %120 = arith.addf %1, %119 : vector<16x64xf32>
    %c0_49 = arith.constant 0 : index
    %c0_50 = arith.constant 0 : index
    %121 = vector.load %arg11[%c0_49, %c0_50] : memref<1x64xf32, #tpu.memory_space<vmem>>, vector<1x64xf32>
    %c0_51 = arith.constant 0 : index
    %c0_52 = arith.constant 0 : index
    %122 = vector.load %arg12[%c0_51, %c0_52] : memref<1x64xf32, #tpu.memory_space<vmem>>, vector<1x64xf32>
    %cst_53 = arith.constant dense<0.000000e+00> : vector<16xf32>
    %123 = vector.multi_reduction <add>, %120, %cst_53 [1] : vector<16x64xf32> to vector<16xf32>
    %124 = vector.shape_cast %123 : vector<16xf32> to vector<16x1xf32>
    %cst_54 = arith.constant 6.400000e+01 : f32
    %125 = vector.broadcast %cst_54 : f32 to vector<16x1xf32>
    %126 = arith.divf %124, %125 : vector<16x1xf32>
    %127 = vector.broadcast %126 : vector<16x1xf32> to vector<16x64xf32>
    %128 = arith.subf %120, %127 : vector<16x64xf32>
    %129 = arith.mulf %128, %128 : vector<16x64xf32>
    %cst_55 = arith.constant dense<0.000000e+00> : vector<16xf32>
    %130 = vector.multi_reduction <add>, %129, %cst_55 [1] : vector<16x64xf32> to vector<16xf32>
    %131 = vector.shape_cast %130 : vector<16xf32> to vector<16x1xf32>
    %cst_56 = arith.constant 6.400000e+01 : f32
    %132 = vector.broadcast %cst_56 : f32 to vector<16x1xf32>
    %133 = arith.divf %131, %132 : vector<16x1xf32>
    %134 = vector.broadcast %126 : vector<16x1xf32> to vector<16x64xf32>
    %135 = arith.subf %120, %134 : vector<16x64xf32>
    %cst_57 = arith.constant 9.99999974E-6 : f32
    %136 = vector.broadcast %cst_57 : f32 to vector<16x1xf32>
    %137 = arith.addf %133, %136 : vector<16x1xf32>
    %138 = math.rsqrt %137 : vector<16x1xf32>
    %139 = vector.broadcast %138 : vector<16x1xf32> to vector<16x64xf32>
    %140 = arith.mulf %135, %139 : vector<16x64xf32>
    %141 = vector.broadcast %121 : vector<1x64xf32> to vector<16x64xf32>
    %142 = arith.mulf %140, %141 : vector<16x64xf32>
    %143 = vector.broadcast %122 : vector<1x64xf32> to vector<16x64xf32>
    %144 = arith.addf %142, %143 : vector<16x64xf32>
    %c0_58 = arith.constant 0 : index
    %c0_59 = arith.constant 0 : index
    %145 = vector.load %arg13[%c0_58, %c0_59] : memref<64x256xf32, #tpu.memory_space<vmem>>, vector<64x256xf32>
    %cst_60 = arith.constant dense<0.000000e+00> : vector<16x256xf32>
    %146 = tpu.matmul %144, %145, %cst_60 {dimension_numbers = #tpu.dot_dimension_numbers<[1], [0], [0], [1], [0, 0, 1, 1], [], []>} : vector<16x64xf32>, vector<64x256xf32>, vector<16x256xf32> -> vector<16x256xf32>
    %c0_61 = arith.constant 0 : index
    %c0_62 = arith.constant 0 : index
    %147 = vector.load %arg14[%c0_61, %c0_62] : memref<1x256xf32, #tpu.memory_space<vmem>>, vector<1x256xf32>
    %148 = vector.broadcast %147 : vector<1x256xf32> to vector<16x256xf32>
    %149 = arith.addf %146, %148 : vector<16x256xf32>
    %150 = arith.mulf %149, %149 : vector<16x256xf32>
    %151 = arith.mulf %149, %150 : vector<16x256xf32>
    %cst_63 = arith.constant 4.471500e-02 : f32
    %152 = vector.broadcast %cst_63 : f32 to vector<16x256xf32>
    %153 = arith.mulf %152, %151 : vector<16x256xf32>
    %154 = arith.addf %149, %153 : vector<16x256xf32>
    %cst_64 = arith.constant 0.797884583 : f32
    %155 = vector.broadcast %cst_64 : f32 to vector<16x256xf32>
    %156 = arith.mulf %155, %154 : vector<16x256xf32>
    %157 = math.tanh %156 : vector<16x256xf32>
    %cst_65 = arith.constant 1.000000e+00 : f32
    %158 = vector.broadcast %cst_65 : f32 to vector<16x256xf32>
    %159 = arith.addf %158, %157 : vector<16x256xf32>
    %cst_66 = arith.constant 5.000000e-01 : f32
    %160 = vector.broadcast %cst_66 : f32 to vector<16x256xf32>
    %161 = arith.mulf %160, %159 : vector<16x256xf32>
    %162 = arith.mulf %149, %161 : vector<16x256xf32>
    %c0_67 = arith.constant 0 : index
    %c0_68 = arith.constant 0 : index
    %163 = vector.load %arg15[%c0_67, %c0_68] : memref<256x64xf32, #tpu.memory_space<vmem>>, vector<256x64xf32>
    %cst_69 = arith.constant dense<0.000000e+00> : vector<16x64xf32>
    %164 = tpu.matmul %162, %163, %cst_69 {dimension_numbers = #tpu.dot_dimension_numbers<[1], [0], [0], [1], [0, 0, 1, 1], [], []>} : vector<16x256xf32>, vector<256x64xf32>, vector<16x64xf32> -> vector<16x64xf32>
    %c0_70 = arith.constant 0 : index
    %c0_71 = arith.constant 0 : index
    %165 = vector.load %arg16[%c0_70, %c0_71] : memref<1x64xf32, #tpu.memory_space<vmem>>, vector<1x64xf32>
    %166 = vector.broadcast %165 : vector<1x64xf32> to vector<16x64xf32>
    %167 = arith.addf %164, %166 : vector<16x64xf32>
    %168 = arith.addf %120, %167 : vector<16x64xf32>
    %c0_72 = arith.constant 0 : index
    %c0_73 = arith.constant 0 : index
    %c0_74 = arith.constant 0 : index
    %169 = vector.load %arg17[%c0_72, %c0_73, %c0_74] : memref<1x16x64xf32, #tpu.memory_space<vmem>>, vector<1x16x64xf32>
    %170 = vector.shape_cast %169 : vector<1x16x64xf32> to vector<16x64xf32>
    %171 = vector.shape_cast %168 : vector<16x64xf32> to vector<1x16x64xf32>
    tpu.vector_store %arg17[%c0_72, %c0_73, %c0_74], %171 {strides = array<i32>} : memref<1x16x64xf32, #tpu.memory_space<vmem>>, vector<1x16x64xf32>,
    return
  }
  func.func @transform_0(%arg0: i32) -> (i32, i32, i32) {
    %c0_i32 = arith.constant 0 : i32
    %c0_i32_0 = arith.constant 0 : i32
    %c0_i32_1 = arith.constant 0 : i32
    return %arg0, %c0_i32, %c0_i32_0 : i32, i32, i32
  }
  func.func @transform_1(%arg0: i32) -> (i32, i32, i32) {
    %c0_i32 = arith.constant 0 : i32
    %c0_i32_0 = arith.constant 0 : i32
    %c0_i32_1 = arith.constant 0 : i32
    return %arg0, %c0_i32, %c0_i32_0 : i32, i32, i32
  }
  func.func @transform_2(%arg0: i32) -> (i32, i32) {
    %c0_i32 = arith.constant 0 : i32
    %c0_i32_0 = arith.constant 0 : i32
    %c0_i32_1 = arith.constant 0 : i32
    return %c0_i32, %c0_i32_0 : i32, i32
  }
  func.func @transform_3(%arg0: i32) -> (i32, i32) {
    %c0_i32 = arith.constant 0 : i32
    %c0_i32_0 = arith.constant 0 : i32
    %c0_i32_1 = arith.constant 0 : i32
    return %c0_i32, %c0_i32_0 : i32, i32
  }
  func.func @transform_4(%arg0: i32) -> (i32, i32) {
    %c0_i32 = arith.constant 0 : i32
    %c0_i32_0 = arith.constant 0 : i32
    %c0_i32_1 = arith.constant 0 : i32
    return %c0_i32, %c0_i32_0 : i32, i32
  }
  func.func @transform_5(%arg0: i32) -> (i32, i32) {
    %c0_i32 = arith.constant 0 : i32
    %c0_i32_0 = arith.constant 0 : i32
    %c0_i32_1 = arith.constant 0 : i32
    return %c0_i32, %c0_i32_0 : i32, i32
  }
  func.func @transform_6(%arg0: i32) -> (i32, i32) {
    %c0_i32 = arith.constant 0 : i32
    %c0_i32_0 = arith.constant 0 : i32
    %c0_i32_1 = arith.constant 0 : i32
    return %c0_i32, %c0_i32_0 : i32, i32
  }
  func.func @transform_7(%arg0: i32) -> (i32, i32) {
    %c0_i32 = arith.constant 0 : i32
    %c0_i32_0 = arith.constant 0 : i32
    %c0_i32_1 = arith.constant 0 : i32
    return %c0_i32, %c0_i32_0 : i32, i32
  }
  func.func @transform_8(%arg0: i32) -> (i32, i32) {
    %c0_i32 = arith.constant 0 : i32
    %c0_i32_0 = arith.constant 0 : i32
    %c0_i32_1 = arith.constant 0 : i32
    return %c0_i32, %c0_i32_0 : i32, i32
  }
  func.func @transform_9(%arg0: i32) -> (i32, i32) {
    %c0_i32 = arith.constant 0 : i32
    %c0_i32_0 = arith.constant 0 : i32
    %c0_i32_1 = arith.constant 0 : i32
    return %c0_i32, %c0_i32_0 : i32, i32
  }
  func.func @transform_10(%arg0: i32) -> (i32, i32) {
    %c0_i32 = arith.constant 0 : i32
    %c0_i32_0 = arith.constant 0 : i32
    %c0_i32_1 = arith.constant 0 : i32
    return %c0_i32, %c0_i32_0 : i32, i32
  }
  func.func @transform_11(%arg0: i32) -> (i32, i32) {
    %c0_i32 = arith.constant 0 : i32
    %c0_i32_0 = arith.constant 0 : i32
    %c0_i32_1 = arith.constant 0 : i32
    return %c0_i32, %c0_i32_0 : i32, i32
  }
  func.func @transform_12(%arg0: i32) -> (i32, i32) {
    %c0_i32 = arith.constant 0 : i32
    %c0_i32_0 = arith.constant 0 : i32
    %c0_i32_1 = arith.constant 0 : i32
    return %c0_i32, %c0_i32_0 : i32, i32
  }
  func.func @transform_13(%arg0: i32) -> (i32, i32) {
    %c0_i32 = arith.constant 0 : i32
    %c0_i32_0 = arith.constant 0 : i32
    %c0_i32_1 = arith.constant 0 : i32
    return %c0_i32, %c0_i32_0 : i32, i32
  }
  func.func @transform_14(%arg0: i32) -> (i32, i32) {
    %c0_i32 = arith.constant 0 : i32
    %c0_i32_0 = arith.constant 0 : i32
    %c0_i32_1 = arith.constant 0 : i32
    return %c0_i32, %c0_i32_0 : i32, i32
  }
  func.func @transform_15(%arg0: i32) -> (i32, i32) {
    %c0_i32 = arith.constant 0 : i32
    %c0_i32_0 = arith.constant 0 : i32
    %c0_i32_1 = arith.constant 0 : i32
    return %c0_i32, %c0_i32_0 : i32, i32
  }
  func.func @transform_16(%arg0: i32) -> (i32, i32, i32) {
    %c0_i32 = arith.constant 0 : i32
    %c0_i32_0 = arith.constant 0 : i32
    %c0_i32_1 = arith.constant 0 : i32
    return %arg0, %c0_i32, %c0_i32_0 : i32, i32, i32
  }
}

module attributes {stable_mosaic.version = 11 : i64} {
  func.func @_fuse_block_kernel(%arg0: i32, %arg1: memref<1x32x32xf32, #tpu.memory_space<vmem>>, %arg2: memref<1x16x64xf32, #tpu.memory_space<vmem>>, %arg3: memref<1x64xf32, #tpu.memory_space<vmem>>, %arg4: memref<1x64xf32, #tpu.memory_space<vmem>>, %arg5: memref<1x32xf32, #tpu.memory_space<vmem>>, %arg6: memref<1x32xf32, #tpu.memory_space<vmem>>, %arg7: memref<32x32xf32, #tpu.memory_space<vmem>>, %arg8: memref<64x64xf32, #tpu.memory_space<vmem>>, %arg9: memref<32x32xf32, #tpu.memory_space<vmem>>, %arg10: memref<1x32xf32, #tpu.memory_space<vmem>>, %arg11: memref<1x32xf32, #tpu.memory_space<vmem>>, %arg12: memref<1x32xf32, #tpu.memory_space<vmem>>, %arg13: memref<32x128xf32, #tpu.memory_space<vmem>>, %arg14: memref<1x128xf32, #tpu.memory_space<vmem>>, %arg15: memref<128x32xf32, #tpu.memory_space<vmem>>, %arg16: memref<1x32xf32, #tpu.memory_space<vmem>>, %arg17: memref<1x32x32xf32, #tpu.memory_space<vmem>>) attributes {dimension_semantics = [#tpu.dimension_semantics<parallel>], iteration_bounds = array<i64: 2>, scalar_prefetch = 0 : i64, scratch_operands = 0 : i64, tpu.core_type = #tpu.core_type<tc>, window_params = [{transform_indices = @transform_0, window_bounds = array<i64: 1, 32, 32>}, {transform_indices = @transform_1, window_bounds = array<i64: 1, 16, 64>}, {pipeline_mode = #tpu.pipeline_mode<synchronous>, transform_indices = @transform_2, window_bounds = array<i64: 1, 64>}, {pipeline_mode = #tpu.pipeline_mode<synchronous>, transform_indices = @transform_3, window_bounds = array<i64: 1, 64>}, {pipeline_mode = #tpu.pipeline_mode<synchronous>, transform_indices = @transform_4, window_bounds = array<i64: 1, 32>}, {pipeline_mode = #tpu.pipeline_mode<synchronous>, transform_indices = @transform_5, window_bounds = array<i64: 1, 32>}, {pipeline_mode = #tpu.pipeline_mode<synchronous>, transform_indices = @transform_6, window_bounds = array<i64: 32, 32>}, {pipeline_mode = #tpu.pipeline_mode<synchronous>, transform_indices = @transform_7, window_bounds = array<i64: 64, 64>}, {pipeline_mode = #tpu.pipeline_mode<synchronous>, transform_indices = @transform_8, window_bounds = array<i64: 32, 32>}, {pipeline_mode = #tpu.pipeline_mode<synchronous>, transform_indices = @transform_9, window_bounds = array<i64: 1, 32>}, {pipeline_mode = #tpu.pipeline_mode<synchronous>, transform_indices = @transform_10, window_bounds = array<i64: 1, 32>}, {pipeline_mode = #tpu.pipeline_mode<synchronous>, transform_indices = @transform_11, window_bounds = array<i64: 1, 32>}, {pipeline_mode = #tpu.pipeline_mode<synchronous>, transform_indices = @transform_12, window_bounds = array<i64: 32, 128>}, {pipeline_mode = #tpu.pipeline_mode<synchronous>, transform_indices = @transform_13, window_bounds = array<i64: 1, 128>}, {pipeline_mode = #tpu.pipeline_mode<synchronous>, transform_indices = @transform_14, window_bounds = array<i64: 128, 32>}, {pipeline_mode = #tpu.pipeline_mode<synchronous>, transform_indices = @transform_15, window_bounds = array<i64: 1, 32>}, {transform_indices = @transform_16, window_bounds = array<i64: 1, 32, 32>}]} {
    %c0 = arith.constant 0 : index
    %c0_0 = arith.constant 0 : index
    %c0_1 = arith.constant 0 : index
    %0 = vector.load %arg1[%c0, %c0_0, %c0_1] : memref<1x32x32xf32, #tpu.memory_space<vmem>>, vector<1x32x32xf32>
    %1 = vector.shape_cast %0 : vector<1x32x32xf32> to vector<32x32xf32>
    %c0_2 = arith.constant 0 : index
    %c0_3 = arith.constant 0 : index
    %c0_4 = arith.constant 0 : index
    %2 = vector.load %arg2[%c0_2, %c0_3, %c0_4] : memref<1x16x64xf32, #tpu.memory_space<vmem>>, vector<1x16x64xf32>
    %3 = vector.shape_cast %2 : vector<1x16x64xf32> to vector<16x64xf32>
    %c0_5 = arith.constant 0 : index
    %c0_6 = arith.constant 0 : index
    %4 = vector.load %arg5[%c0_5, %c0_6] : memref<1x32xf32, #tpu.memory_space<vmem>>, vector<1x32xf32>
    %c0_7 = arith.constant 0 : index
    %c0_8 = arith.constant 0 : index
    %5 = vector.load %arg6[%c0_7, %c0_8] : memref<1x32xf32, #tpu.memory_space<vmem>>, vector<1x32xf32>
    %cst = arith.constant dense<0.000000e+00> : vector<32xf32>
    %6 = vector.multi_reduction <add>, %1, %cst [1] : vector<32x32xf32> to vector<32xf32>
    %7 = vector.shape_cast %6 : vector<32xf32> to vector<32x1xf32>
    %cst_9 = arith.constant 3.200000e+01 : f32
    %8 = vector.broadcast %cst_9 : f32 to vector<32x1xf32>
    %9 = arith.divf %7, %8 : vector<32x1xf32>
    %10 = vector.broadcast %9 : vector<32x1xf32> to vector<32x32xf32>
    %11 = arith.subf %1, %10 : vector<32x32xf32>
    %12 = arith.mulf %11, %11 : vector<32x32xf32>
    %cst_10 = arith.constant dense<0.000000e+00> : vector<32xf32>
    %13 = vector.multi_reduction <add>, %12, %cst_10 [1] : vector<32x32xf32> to vector<32xf32>
    %14 = vector.shape_cast %13 : vector<32xf32> to vector<32x1xf32>
    %cst_11 = arith.constant 3.200000e+01 : f32
    %15 = vector.broadcast %cst_11 : f32 to vector<32x1xf32>
    %16 = arith.divf %14, %15 : vector<32x1xf32>
    %17 = vector.broadcast %9 : vector<32x1xf32> to vector<32x32xf32>
    %18 = arith.subf %1, %17 : vector<32x32xf32>
    %cst_12 = arith.constant 9.99999974E-6 : f32
    %19 = vector.broadcast %cst_12 : f32 to vector<32x1xf32>
    %20 = arith.addf %16, %19 : vector<32x1xf32>
    %21 = math.rsqrt %20 : vector<32x1xf32>
    %22 = vector.broadcast %21 : vector<32x1xf32> to vector<32x32xf32>
    %23 = arith.mulf %18, %22 : vector<32x32xf32>
    %24 = vector.broadcast %4 : vector<1x32xf32> to vector<32x32xf32>
    %25 = arith.mulf %23, %24 : vector<32x32xf32>
    %26 = vector.broadcast %5 : vector<1x32xf32> to vector<32x32xf32>
    %27 = arith.addf %25, %26 : vector<32x32xf32>
    %c0_13 = arith.constant 0 : index
    %c0_14 = arith.constant 0 : index
    %28 = vector.load %arg3[%c0_13, %c0_14] : memref<1x64xf32, #tpu.memory_space<vmem>>, vector<1x64xf32>
    %c0_15 = arith.constant 0 : index
    %c0_16 = arith.constant 0 : index
    %29 = vector.load %arg4[%c0_15, %c0_16] : memref<1x64xf32, #tpu.memory_space<vmem>>, vector<1x64xf32>
    %cst_17 = arith.constant dense<0.000000e+00> : vector<16xf32>
    %30 = vector.multi_reduction <add>, %3, %cst_17 [1] : vector<16x64xf32> to vector<16xf32>
    %31 = vector.shape_cast %30 : vector<16xf32> to vector<16x1xf32>
    %cst_18 = arith.constant 6.400000e+01 : f32
    %32 = vector.broadcast %cst_18 : f32 to vector<16x1xf32>
    %33 = arith.divf %31, %32 : vector<16x1xf32>
    %34 = vector.broadcast %33 : vector<16x1xf32> to vector<16x64xf32>
    %35 = arith.subf %3, %34 : vector<16x64xf32>
    %36 = arith.mulf %35, %35 : vector<16x64xf32>
    %cst_19 = arith.constant dense<0.000000e+00> : vector<16xf32>
    %37 = vector.multi_reduction <add>, %36, %cst_19 [1] : vector<16x64xf32> to vector<16xf32>
    %38 = vector.shape_cast %37 : vector<16xf32> to vector<16x1xf32>
    %cst_20 = arith.constant 6.400000e+01 : f32
    %39 = vector.broadcast %cst_20 : f32 to vector<16x1xf32>
    %40 = arith.divf %38, %39 : vector<16x1xf32>
    %41 = vector.broadcast %33 : vector<16x1xf32> to vector<16x64xf32>
    %42 = arith.subf %3, %41 : vector<16x64xf32>
    %cst_21 = arith.constant 9.99999974E-6 : f32
    %43 = vector.broadcast %cst_21 : f32 to vector<16x1xf32>
    %44 = arith.addf %40, %43 : vector<16x1xf32>
    %45 = math.rsqrt %44 : vector<16x1xf32>
    %46 = vector.broadcast %45 : vector<16x1xf32> to vector<16x64xf32>
    %47 = arith.mulf %42, %46 : vector<16x64xf32>
    %48 = vector.broadcast %28 : vector<1x64xf32> to vector<16x64xf32>
    %49 = arith.mulf %47, %48 : vector<16x64xf32>
    %50 = vector.broadcast %29 : vector<1x64xf32> to vector<16x64xf32>
    %51 = arith.addf %49, %50 : vector<16x64xf32>
    %c0_22 = arith.constant 0 : index
    %c0_23 = arith.constant 0 : index
    %52 = vector.load %arg7[%c0_22, %c0_23] : memref<32x32xf32, #tpu.memory_space<vmem>>, vector<32x32xf32>
    %cst_24 = arith.constant dense<0.000000e+00> : vector<32x32xf32>
    %53 = tpu.matmul %27, %52, %cst_24 {dimension_numbers = #tpu.dot_dimension_numbers<[1], [0], [0], [1], [0, 0, 1, 1], [], []>} : vector<32x32xf32>, vector<32x32xf32>, vector<32x32xf32> -> vector<32x32xf32>
    %c0_25 = arith.constant 0 : index
    %c0_26 = arith.constant 0 : index
    %54 = vector.load %arg8[%c0_25, %c0_26] : memref<64x64xf32, #tpu.memory_space<vmem>>, vector<64x64xf32>
    %cst_27 = arith.constant dense<0.000000e+00> : vector<16x64xf32>
    %55 = tpu.matmul %51, %54, %cst_27 {dimension_numbers = #tpu.dot_dimension_numbers<[1], [0], [0], [1], [0, 0, 1, 1], [], []>} : vector<16x64xf32>, vector<64x64xf32>, vector<16x64xf32> -> vector<16x64xf32>
    %56 = vector.extract_strided_slice %55 {offsets = [0, 0], sizes = [16, 32], strides = [1, 1]} : vector<16x64xf32> to vector<16x32xf32>
    %57 = vector.extract_strided_slice %55 {offsets = [0, 32], sizes = [16, 32], strides = [1, 1]} : vector<16x64xf32> to vector<16x32xf32>
    %58 = vector.extract_strided_slice %53 {offsets = [0, 0], sizes = [32, 8], strides = [1, 1]} : vector<32x32xf32> to vector<32x8xf32>
    %59 = vector.extract_strided_slice %56 {offsets = [0, 0], sizes = [16, 8], strides = [1, 1]} : vector<16x32xf32> to vector<16x8xf32>
    %60 = vector.extract_strided_slice %57 {offsets = [0, 0], sizes = [16, 8], strides = [1, 1]} : vector<16x32xf32> to vector<16x8xf32>
    %cst_28 = arith.constant dense<0.000000e+00> : vector<32x16xf32>
    %61 = tpu.matmul %58, %59, %cst_28 {dimension_numbers = #tpu.dot_dimension_numbers<[1], [1], [0], [0], [0, 0, 1, 0], [], []>} : vector<32x8xf32>, vector<16x8xf32>, vector<32x16xf32> -> vector<32x16xf32>
    %cst_29 = arith.constant dense<0xFF800000> : vector<32xf32>
    %62 = vector.multi_reduction <maximumf>, %61, %cst_29 [1] : vector<32x16xf32> to vector<32xf32>
    %63 = vector.shape_cast %62 : vector<32xf32> to vector<32x1xf32>
    %64 = vector.broadcast %63 : vector<32x1xf32> to vector<32x16xf32>
    %65 = arith.subf %61, %64 : vector<32x16xf32>
    %66 = math.exp %65 : vector<32x16xf32>
    %cst_30 = arith.constant dense<0.000000e+00> : vector<32xf32>
    %67 = vector.multi_reduction <add>, %66, %cst_30 [1] : vector<32x16xf32> to vector<32xf32>
    %68 = vector.shape_cast %67 : vector<32xf32> to vector<32x1xf32>
    %cst_31 = arith.constant dense<0.000000e+00> : vector<32x8xf32>
    %69 = tpu.matmul %66, %60, %cst_31 {dimension_numbers = #tpu.dot_dimension_numbers<[1], [0], [0], [1], [0, 0, 1, 1], [], []>} : vector<32x16xf32>, vector<16x8xf32>, vector<32x8xf32> -> vector<32x8xf32>
    %70 = vector.broadcast %68 : vector<32x1xf32> to vector<32x8xf32>
    %71 = arith.divf %69, %70 : vector<32x8xf32>
    %72 = vector.extract_strided_slice %53 {offsets = [0, 8], sizes = [32, 8], strides = [1, 1]} : vector<32x32xf32> to vector<32x8xf32>
    %73 = vector.extract_strided_slice %56 {offsets = [0, 8], sizes = [16, 8], strides = [1, 1]} : vector<16x32xf32> to vector<16x8xf32>
    %74 = vector.extract_strided_slice %57 {offsets = [0, 8], sizes = [16, 8], strides = [1, 1]} : vector<16x32xf32> to vector<16x8xf32>
    %cst_32 = arith.constant dense<0.000000e+00> : vector<32x16xf32>
    %75 = tpu.matmul %72, %73, %cst_32 {dimension_numbers = #tpu.dot_dimension_numbers<[1], [1], [0], [0], [0, 0, 1, 0], [], []>} : vector<32x8xf32>, vector<16x8xf32>, vector<32x16xf32> -> vector<32x16xf32>
    %cst_33 = arith.constant dense<0xFF800000> : vector<32xf32>
    %76 = vector.multi_reduction <maximumf>, %75, %cst_33 [1] : vector<32x16xf32> to vector<32xf32>
    %77 = vector.shape_cast %76 : vector<32xf32> to vector<32x1xf32>
    %78 = vector.broadcast %77 : vector<32x1xf32> to vector<32x16xf32>
    %79 = arith.subf %75, %78 : vector<32x16xf32>
    %80 = math.exp %79 : vector<32x16xf32>
    %cst_34 = arith.constant dense<0.000000e+00> : vector<32xf32>
    %81 = vector.multi_reduction <add>, %80, %cst_34 [1] : vector<32x16xf32> to vector<32xf32>
    %82 = vector.shape_cast %81 : vector<32xf32> to vector<32x1xf32>
    %cst_35 = arith.constant dense<0.000000e+00> : vector<32x8xf32>
    %83 = tpu.matmul %80, %74, %cst_35 {dimension_numbers = #tpu.dot_dimension_numbers<[1], [0], [0], [1], [0, 0, 1, 1], [], []>} : vector<32x16xf32>, vector<16x8xf32>, vector<32x8xf32> -> vector<32x8xf32>
    %84 = vector.broadcast %82 : vector<32x1xf32> to vector<32x8xf32>
    %85 = arith.divf %83, %84 : vector<32x8xf32>
    %86 = vector.extract_strided_slice %53 {offsets = [0, 16], sizes = [32, 8], strides = [1, 1]} : vector<32x32xf32> to vector<32x8xf32>
    %87 = vector.extract_strided_slice %56 {offsets = [0, 16], sizes = [16, 8], strides = [1, 1]} : vector<16x32xf32> to vector<16x8xf32>
    %88 = vector.extract_strided_slice %57 {offsets = [0, 16], sizes = [16, 8], strides = [1, 1]} : vector<16x32xf32> to vector<16x8xf32>
    %cst_36 = arith.constant dense<0.000000e+00> : vector<32x16xf32>
    %89 = tpu.matmul %86, %87, %cst_36 {dimension_numbers = #tpu.dot_dimension_numbers<[1], [1], [0], [0], [0, 0, 1, 0], [], []>} : vector<32x8xf32>, vector<16x8xf32>, vector<32x16xf32> -> vector<32x16xf32>
    %cst_37 = arith.constant dense<0xFF800000> : vector<32xf32>
    %90 = vector.multi_reduction <maximumf>, %89, %cst_37 [1] : vector<32x16xf32> to vector<32xf32>
    %91 = vector.shape_cast %90 : vector<32xf32> to vector<32x1xf32>
    %92 = vector.broadcast %91 : vector<32x1xf32> to vector<32x16xf32>
    %93 = arith.subf %89, %92 : vector<32x16xf32>
    %94 = math.exp %93 : vector<32x16xf32>
    %cst_38 = arith.constant dense<0.000000e+00> : vector<32xf32>
    %95 = vector.multi_reduction <add>, %94, %cst_38 [1] : vector<32x16xf32> to vector<32xf32>
    %96 = vector.shape_cast %95 : vector<32xf32> to vector<32x1xf32>
    %cst_39 = arith.constant dense<0.000000e+00> : vector<32x8xf32>
    %97 = tpu.matmul %94, %88, %cst_39 {dimension_numbers = #tpu.dot_dimension_numbers<[1], [0], [0], [1], [0, 0, 1, 1], [], []>} : vector<32x16xf32>, vector<16x8xf32>, vector<32x8xf32> -> vector<32x8xf32>
    %98 = vector.broadcast %96 : vector<32x1xf32> to vector<32x8xf32>
    %99 = arith.divf %97, %98 : vector<32x8xf32>
    %100 = vector.extract_strided_slice %53 {offsets = [0, 24], sizes = [32, 8], strides = [1, 1]} : vector<32x32xf32> to vector<32x8xf32>
    %101 = vector.extract_strided_slice %56 {offsets = [0, 24], sizes = [16, 8], strides = [1, 1]} : vector<16x32xf32> to vector<16x8xf32>
    %102 = vector.extract_strided_slice %57 {offsets = [0, 24], sizes = [16, 8], strides = [1, 1]} : vector<16x32xf32> to vector<16x8xf32>
    %cst_40 = arith.constant dense<0.000000e+00> : vector<32x16xf32>
    %103 = tpu.matmul %100, %101, %cst_40 {dimension_numbers = #tpu.dot_dimension_numbers<[1], [1], [0], [0], [0, 0, 1, 0], [], []>} : vector<32x8xf32>, vector<16x8xf32>, vector<32x16xf32> -> vector<32x16xf32>
    %cst_41 = arith.constant dense<0xFF800000> : vector<32xf32>
    %104 = vector.multi_reduction <maximumf>, %103, %cst_41 [1] : vector<32x16xf32> to vector<32xf32>
    %105 = vector.shape_cast %104 : vector<32xf32> to vector<32x1xf32>
    %106 = vector.broadcast %105 : vector<32x1xf32> to vector<32x16xf32>
    %107 = arith.subf %103, %106 : vector<32x16xf32>
    %108 = math.exp %107 : vector<32x16xf32>
    %cst_42 = arith.constant dense<0.000000e+00> : vector<32xf32>
    %109 = vector.multi_reduction <add>, %108, %cst_42 [1] : vector<32x16xf32> to vector<32xf32>
    %110 = vector.shape_cast %109 : vector<32xf32> to vector<32x1xf32>
    %cst_43 = arith.constant dense<0.000000e+00> : vector<32x8xf32>
    %111 = tpu.matmul %108, %102, %cst_43 {dimension_numbers = #tpu.dot_dimension_numbers<[1], [0], [0], [1], [0, 0, 1, 1], [], []>} : vector<32x16xf32>, vector<16x8xf32>, vector<32x8xf32> -> vector<32x8xf32>
    %112 = vector.broadcast %110 : vector<32x1xf32> to vector<32x8xf32>
    %113 = arith.divf %111, %112 : vector<32x8xf32>
    %114 = tpu.concatenate %71, %85, %99, %113 in 1 : vector<32x8xf32>, vector<32x8xf32>, vector<32x8xf32>, vector<32x8xf32> -> vector<32x32xf32>
    %c0_44 = arith.constant 0 : index
    %c0_45 = arith.constant 0 : index
    %115 = vector.load %arg9[%c0_44, %c0_45] : memref<32x32xf32, #tpu.memory_space<vmem>>, vector<32x32xf32>
    %cst_46 = arith.constant dense<0.000000e+00> : vector<32x32xf32>
    %116 = tpu.matmul %114, %115, %cst_46 {dimension_numbers = #tpu.dot_dimension_numbers<[1], [0], [0], [1], [0, 0, 1, 1], [], []>} : vector<32x32xf32>, vector<32x32xf32>, vector<32x32xf32> -> vector<32x32xf32>
    %c0_47 = arith.constant 0 : index
    %c0_48 = arith.constant 0 : index
    %117 = vector.load %arg10[%c0_47, %c0_48] : memref<1x32xf32, #tpu.memory_space<vmem>>, vector<1x32xf32>
    %118 = vector.broadcast %117 : vector<1x32xf32> to vector<32x32xf32>
    %119 = arith.addf %116, %118 : vector<32x32xf32>
    %120 = arith.addf %1, %119 : vector<32x32xf32>
    %c0_49 = arith.constant 0 : index
    %c0_50 = arith.constant 0 : index
    %121 = vector.load %arg11[%c0_49, %c0_50] : memref<1x32xf32, #tpu.memory_space<vmem>>, vector<1x32xf32>
    %c0_51 = arith.constant 0 : index
    %c0_52 = arith.constant 0 : index
    %122 = vector.load %arg12[%c0_51, %c0_52] : memref<1x32xf32, #tpu.memory_space<vmem>>, vector<1x32xf32>
    %cst_53 = arith.constant dense<0.000000e+00> : vector<32xf32>
    %123 = vector.multi_reduction <add>, %120, %cst_53 [1] : vector<32x32xf32> to vector<32xf32>
    %124 = vector.shape_cast %123 : vector<32xf32> to vector<32x1xf32>
    %cst_54 = arith.constant 3.200000e+01 : f32
    %125 = vector.broadcast %cst_54 : f32 to vector<32x1xf32>
    %126 = arith.divf %124, %125 : vector<32x1xf32>
    %127 = vector.broadcast %126 : vector<32x1xf32> to vector<32x32xf32>
    %128 = arith.subf %120, %127 : vector<32x32xf32>
    %129 = arith.mulf %128, %128 : vector<32x32xf32>
    %cst_55 = arith.constant dense<0.000000e+00> : vector<32xf32>
    %130 = vector.multi_reduction <add>, %129, %cst_55 [1] : vector<32x32xf32> to vector<32xf32>
    %131 = vector.shape_cast %130 : vector<32xf32> to vector<32x1xf32>
    %cst_56 = arith.constant 3.200000e+01 : f32
    %132 = vector.broadcast %cst_56 : f32 to vector<32x1xf32>
    %133 = arith.divf %131, %132 : vector<32x1xf32>
    %134 = vector.broadcast %126 : vector<32x1xf32> to vector<32x32xf32>
    %135 = arith.subf %120, %134 : vector<32x32xf32>
    %cst_57 = arith.constant 9.99999974E-6 : f32
    %136 = vector.broadcast %cst_57 : f32 to vector<32x1xf32>
    %137 = arith.addf %133, %136 : vector<32x1xf32>
    %138 = math.rsqrt %137 : vector<32x1xf32>
    %139 = vector.broadcast %138 : vector<32x1xf32> to vector<32x32xf32>
    %140 = arith.mulf %135, %139 : vector<32x32xf32>
    %141 = vector.broadcast %121 : vector<1x32xf32> to vector<32x32xf32>
    %142 = arith.mulf %140, %141 : vector<32x32xf32>
    %143 = vector.broadcast %122 : vector<1x32xf32> to vector<32x32xf32>
    %144 = arith.addf %142, %143 : vector<32x32xf32>
    %c0_58 = arith.constant 0 : index
    %c0_59 = arith.constant 0 : index
    %145 = vector.load %arg13[%c0_58, %c0_59] : memref<32x128xf32, #tpu.memory_space<vmem>>, vector<32x128xf32>
    %cst_60 = arith.constant dense<0.000000e+00> : vector<32x128xf32>
    %146 = tpu.matmul %144, %145, %cst_60 {dimension_numbers = #tpu.dot_dimension_numbers<[1], [0], [0], [1], [0, 0, 1, 1], [], []>} : vector<32x32xf32>, vector<32x128xf32>, vector<32x128xf32> -> vector<32x128xf32>
    %c0_61 = arith.constant 0 : index
    %c0_62 = arith.constant 0 : index
    %147 = vector.load %arg14[%c0_61, %c0_62] : memref<1x128xf32, #tpu.memory_space<vmem>>, vector<1x128xf32>
    %148 = vector.broadcast %147 : vector<1x128xf32> to vector<32x128xf32>
    %149 = arith.addf %146, %148 : vector<32x128xf32>
    %150 = arith.mulf %149, %149 : vector<32x128xf32>
    %151 = arith.mulf %149, %150 : vector<32x128xf32>
    %cst_63 = arith.constant 4.471500e-02 : f32
    %152 = vector.broadcast %cst_63 : f32 to vector<32x128xf32>
    %153 = arith.mulf %152, %151 : vector<32x128xf32>
    %154 = arith.addf %149, %153 : vector<32x128xf32>
    %cst_64 = arith.constant 0.797884583 : f32
    %155 = vector.broadcast %cst_64 : f32 to vector<32x128xf32>
    %156 = arith.mulf %155, %154 : vector<32x128xf32>
    %157 = math.tanh %156 : vector<32x128xf32>
    %cst_65 = arith.constant 1.000000e+00 : f32
    %158 = vector.broadcast %cst_65 : f32 to vector<32x128xf32>
    %159 = arith.addf %158, %157 : vector<32x128xf32>
    %cst_66 = arith.constant 5.000000e-01 : f32
    %160 = vector.broadcast %cst_66 : f32 to vector<32x128xf32>
    %161 = arith.mulf %160, %159 : vector<32x128xf32>
    %162 = arith.mulf %149, %161 : vector<32x128xf32>
    %c0_67 = arith.constant 0 : index
    %c0_68 = arith.constant 0 : index
    %163 = vector.load %arg15[%c0_67, %c0_68] : memref<128x32xf32, #tpu.memory_space<vmem>>, vector<128x32xf32>
    %cst_69 = arith.constant dense<0.000000e+00> : vector<32x32xf32>
    %164 = tpu.matmul %162, %163, %cst_69 {dimension_numbers = #tpu.dot_dimension_numbers<[1], [0], [0], [1], [0, 0, 1, 1], [], []>} : vector<32x128xf32>, vector<128x32xf32>, vector<32x32xf32> -> vector<32x32xf32>
    %c0_70 = arith.constant 0 : index
    %c0_71 = arith.constant 0 : index
    %165 = vector.load %arg16[%c0_70, %c0_71] : memref<1x32xf32, #tpu.memory_space<vmem>>, vector<1x32xf32>
    %166 = vector.broadcast %165 : vector<1x32xf32> to vector<32x32xf32>
    %167 = arith.addf %164, %166 : vector<32x32xf32>
    %168 = arith.addf %120, %167 : vector<32x32xf32>
    %c0_72 = arith.constant 0 : index
    %c0_73 = arith.constant 0 : index
    %c0_74 = arith.constant 0 : index
    %169 = vector.load %arg17[%c0_72, %c0_73, %c0_74] : memref<1x32x32xf32, #tpu.memory_space<vmem>>, vector<1x32x32xf32>
    %170 = vector.shape_cast %169 : vector<1x32x32xf32> to vector<32x32xf32>
    %171 = vector.shape_cast %168 : vector<32x32xf32> to vector<1x32x32xf32>
    tpu.vector_store %arg17[%c0_72, %c0_73, %c0_74], %171 {strides = array<i32>} : memref<1x32x32xf32, #tpu.memory_space<vmem>>, vector<1x32x32xf32>,
    return
  }
  func.func @transform_0(%arg0: i32) -> (i32, i32, i32) {
    %c0_i32 = arith.constant 0 : i32
    %c0_i32_0 = arith.constant 0 : i32
    %c0_i32_1 = arith.constant 0 : i32
    return %arg0, %c0_i32, %c0_i32_0 : i32, i32, i32
  }
  func.func @transform_1(%arg0: i32) -> (i32, i32, i32) {
    %c0_i32 = arith.constant 0 : i32
    %c0_i32_0 = arith.constant 0 : i32
    %c0_i32_1 = arith.constant 0 : i32
    return %arg0, %c0_i32, %c0_i32_0 : i32, i32, i32
  }
  func.func @transform_2(%arg0: i32) -> (i32, i32) {
    %c0_i32 = arith.constant 0 : i32
    %c0_i32_0 = arith.constant 0 : i32
    %c0_i32_1 = arith.constant 0 : i32
    return %c0_i32, %c0_i32_0 : i32, i32
  }
  func.func @transform_3(%arg0: i32) -> (i32, i32) {
    %c0_i32 = arith.constant 0 : i32
    %c0_i32_0 = arith.constant 0 : i32
    %c0_i32_1 = arith.constant 0 : i32
    return %c0_i32, %c0_i32_0 : i32, i32
  }
  func.func @transform_4(%arg0: i32) -> (i32, i32) {
    %c0_i32 = arith.constant 0 : i32
    %c0_i32_0 = arith.constant 0 : i32
    %c0_i32_1 = arith.constant 0 : i32
    return %c0_i32, %c0_i32_0 : i32, i32
  }
  func.func @transform_5(%arg0: i32) -> (i32, i32) {
    %c0_i32 = arith.constant 0 : i32
    %c0_i32_0 = arith.constant 0 : i32
    %c0_i32_1 = arith.constant 0 : i32
    return %c0_i32, %c0_i32_0 : i32, i32
  }
  func.func @transform_6(%arg0: i32) -> (i32, i32) {
    %c0_i32 = arith.constant 0 : i32
    %c0_i32_0 = arith.constant 0 : i32
    %c0_i32_1 = arith.constant 0 : i32
    return %c0_i32, %c0_i32_0 : i32, i32
  }
  func.func @transform_7(%arg0: i32) -> (i32, i32) {
    %c0_i32 = arith.constant 0 : i32
    %c0_i32_0 = arith.constant 0 : i32
    %c0_i32_1 = arith.constant 0 : i32
    return %c0_i32, %c0_i32_0 : i32, i32
  }
  func.func @transform_8(%arg0: i32) -> (i32, i32) {
    %c0_i32 = arith.constant 0 : i32
    %c0_i32_0 = arith.constant 0 : i32
    %c0_i32_1 = arith.constant 0 : i32
    return %c0_i32, %c0_i32_0 : i32, i32
  }
  func.func @transform_9(%arg0: i32) -> (i32, i32) {
    %c0_i32 = arith.constant 0 : i32
    %c0_i32_0 = arith.constant 0 : i32
    %c0_i32_1 = arith.constant 0 : i32
    return %c0_i32, %c0_i32_0 : i32, i32
  }
  func.func @transform_10(%arg0: i32) -> (i32, i32) {
    %c0_i32 = arith.constant 0 : i32
    %c0_i32_0 = arith.constant 0 : i32
    %c0_i32_1 = arith.constant 0 : i32
    return %c0_i32, %c0_i32_0 : i32, i32
  }
  func.func @transform_11(%arg0: i32) -> (i32, i32) {
    %c0_i32 = arith.constant 0 : i32
    %c0_i32_0 = arith.constant 0 : i32
    %c0_i32_1 = arith.constant 0 : i32
    return %c0_i32, %c0_i32_0 : i32, i32
  }
  func.func @transform_12(%arg0: i32) -> (i32, i32) {
    %c0_i32 = arith.constant 0 : i32
    %c0_i32_0 = arith.constant 0 : i32
    %c0_i32_1 = arith.constant 0 : i32
    return %c0_i32, %c0_i32_0 : i32, i32
  }
  func.func @transform_13(%arg0: i32) -> (i32, i32) {
    %c0_i32 = arith.constant 0 : i32
    %c0_i32_0 = arith.constant 0 : i32
    %c0_i32_1 = arith.constant 0 : i32
    return %c0_i32, %c0_i32_0 : i32, i32
  }
  func.func @transform_14(%arg0: i32) -> (i32, i32) {
    %c0_i32 = arith.constant 0 : i32
    %c0_i32_0 = arith.constant 0 : i32
    %c0_i32_1 = arith.constant 0 : i32
    return %c0_i32, %c0_i32_0 : i32, i32
  }
  func.func @transform_15(%arg0: i32) -> (i32, i32) {
    %c0_i32 = arith.constant 0 : i32
    %c0_i32_0 = arith.constant 0 : i32
    %c0_i32_1 = arith.constant 0 : i32
    return %c0_i32, %c0_i32_0 : i32, i32
  }
  func.func @transform_16(%arg0: i32) -> (i32, i32, i32) {
    %c0_i32 = arith.constant 0 : i32
    %c0_i32_0 = arith.constant 0 : i32
    %c0_i32_1 = arith.constant 0 : i32
    return %arg0, %c0_i32, %c0_i32_0 : i32, i32, i32
  }
}

</mosaic_0001>

<llo_original>
// kernel: two_stream_block_pallas.5
$region0: #{two_stream_block_pallas.5}
  #allocation0 [shape = 'u32[]', space=smem, size = 0x4, offset = 0x4, fixed_abs, tag = 'smem constant byte address 0x4 - core index']
  #allocation1 [shape = 'u32[144,128]{1,0:T(1,128)}', space=vmem, size = 0x12000, scoped, tag = 'internal scratch']
  %s0 = inlined_call_operand.hbm [shape: f32[2,16,64], index: 0, kind: input, shape index: {}]
  %s1 = inlined_call_operand.hbm [shape: f32[2,8,96], index: 1, kind: input, shape index: {}]
  %s2 = inlined_call_operand.hbm [shape: f32[1,64], index: 2, kind: input, shape index: {}]
  %s3 = inlined_call_operand.hbm [shape: f32[1,64], index: 3, kind: input, shape index: {}]
  %s4 = inlined_call_operand.hbm [shape: f32[64,192], index: 4, kind: input, shape index: {}]
  %s5 = inlined_call_operand.hbm [shape: f32[64,64], index: 5, kind: input, shape index: {}]
  %s6 = inlined_call_operand.hbm [shape: f32[1,64], index: 6, kind: input, shape index: {}]
  %s7 = inlined_call_operand.hbm [shape: f32[1,64], index: 7, kind: input, shape index: {}]
  %s8 = inlined_call_operand.hbm [shape: f32[1,64], index: 8, kind: input, shape index: {}]
  %s9 = inlined_call_operand.hbm [shape: f32[64,64], index: 9, kind: input, shape index: {}]
  %s10 = inlined_call_operand.hbm [shape: f32[96,128], index: 10, kind: input, shape index: {}]
  %s11 = inlined_call_operand.hbm [shape: f32[64,64], index: 11, kind: input, shape index: {}]
  %s12 = inlined_call_operand.hbm [shape: f32[1,64], index: 12, kind: input, shape index: {}]
  %s13 = inlined_call_operand.hbm [shape: f32[1,64], index: 13, kind: input, shape index: {}]
  %s14 = inlined_call_operand.hbm [shape: f32[1,64], index: 14, kind: input, shape index: {}]
  %s15 = inlined_call_operand.hbm [shape: f32[64,256], index: 15, kind: input, shape index: {}]
  %s16 = inlined_call_operand.hbm [shape: f32[1,256], index: 16, kind: input, shape index: {}]
  %s17 = inlined_call_operand.hbm [shape: f32[256,64], index: 17, kind: input, shape index: {}]
  %s18 = inlined_call_operand.hbm [shape: f32[1,64], index: 18, kind: input, shape index: {}]
  %s19 = inlined_call_operand.hbm [shape: f32[2,16,64], index: 19, kind: output, shape index: {}]
  %s20 = sld [smem:[#allocation0]]
  $region185: #{two_stream_block_pallas.5} parent=0
    _
  %s22 = ssub.s32 1, %s20
  %s23 = scalar_select 0, %s22, %s20
  $region1: #{two_stream_block_pallas.5} parent=0
    #allocation2 [shape = 'u8[16384]{0}', space=vmem, size = 0x4000, scoped, tag = 'input window, operand 0']
    #allocation3 [shape = 's32[2]{0}', space=sflag, size = 0x8, scoped, tag = 'scoped memory for two_stream_block_pallas.5']
    #allocation4 [shape = 's32[2]{0}', space=sflag, size = 0x8, scoped, tag = 'scoped memory for two_stream_block_pallas.5']
    #allocation5 [shape = 'u8[8192]{0}', space=vmem, size = 0x2000, scoped, tag = 'input window, operand 1']
    #allocation6 [shape = 's32[2]{0}', space=sflag, size = 0x8, scoped, tag = 'scoped memory for two_stream_block_pallas.5']
    #allocation7 [shape = 'u8[512]{0}', space=vmem, size = 0x400, scoped, tag = 'input window, operand 2, single buffered']
    #allocation8 [shape = 'u8[512]{0}', space=vmem, size = 0x400, scoped, tag = 'input window, operand 3, single buffered']
    #allocation9 [shape = 's32[1]{0}', space=sflag, size = 0x4, scoped, tag = 'scoped memory for two_stream_block_pallas.5']
    #allocation10 [shape = 'u8[65536]{0}', space=vmem, size = 0x10000, scoped, tag = 'input window, operand 4, single buffered']
    #allocation11 [shape = 'u8[32768]{0}', space=vmem, size = 0x8000, scoped, tag = 'input window, operand 5, single buffered']
    #allocation12 [shape = 's32[1]{0}', space=sflag, size = 0x4, scoped, tag = 'scoped memory for two_stream_block_pallas.5']
    #allocation13 [shape = 'u8[512]{0}', space=vmem, size = 0x400, scoped, tag = 'input window, operand 6, single buffered']
    #allocation14 [shape = 'u8[512]{0}', space=vmem, size = 0x400, scoped, tag = 'input window, operand 7, single buffered']
    #allocation15 [shape = 's32[1]{0}', space=sflag, size = 0x4, scoped, tag = 'scoped memory for two_stream_block_pallas.5']
    #allocation16 [shape = 'u8[512]{0}', space=vmem, size = 0x400, scoped, tag = 'input window, operand 8, single buffered']
    #allocation17 [shape = 'u8[32768]{0}', space=vmem, size = 0x8000, scoped, tag = 'input window, operand 9, single buffered']
    #allocation18 [shape = 's32[1]{0}', space=sflag, size = 0x4, scoped, tag = 'scoped memory for two_stream_block_pallas.5']
    #allocation19 [shape = 'u8[49152]{0}', space=vmem, size = 0xc000, scoped, tag = 'input window, operand 10, single buffered']
    #allocation20 [shape = 'u8[32768]{0}', space=vmem, size = 0x8000, scoped, tag = 'input window, operand 11, single buffered']
    #allocation21 [shape = 's32[1]{0}', space=sflag, size = 0x4, scoped, tag = 'scoped memory for two_stream_block_pallas.5']
    #allocation22 [shape = 'u8[512]{0}', space=vmem, size = 0x400, scoped, tag = 'input window, operand 12, single buffered']
    #allocation23 [shape = 'u8[512]{0}', space=vmem, size = 0x400, scoped, tag = 'input window, operand 13, single buffered']
    #allocation24 [shape = 's32[1]{0}', space=sflag, size = 0x4, scoped, tag = 'scoped memory for two_stream_block_pallas.5']
    #allocation25 [shape = 'u8[512]{0}', space=vmem, size = 0x400, scoped, tag = 'input window, operand 14, single buffered']
    #allocation26 [shape = 'u8[65536]{0}', space=vmem, size = 0x10000, scoped, tag = 'input window, operand 15, single buffered']
    #allocation27 [shape = 's32[1]{0}', space=sflag, size = 0x4, scoped, tag = 'scoped memory for two_stream_block_pallas.5']
    #allocation28 [shape = 'u8[1024]{0}', space=vmem, size = 0x400, scoped, tag = 'input window, operand 16, single buffered']
    #allocation29 [shape = 'u8[131072]{0}', space=vmem, size = 0x20000, scoped, tag = 'input window, operand 17, single buffered']
    #allocation30 [shape = 's32[1]{0}', space=sflag, size = 0x4, scoped, tag = 'scoped memory for two_stream_block_pallas.5']
    #allocation31 [shape = 'u8[512]{0}', space=vmem, size = 0x400, scoped, tag = 'input window, operand 18, single buffered']
    #allocation32 [shape = 'u8[16384]{0}', space=vmem, size = 0x4000, scoped, tag = 'output window, operand 0']
    %24 = vsyncpa [#allocation3], 0
    %s25 = scalar_lea.sflag [#allocation3], 1
    %26 = vsyncpa %s25, 0
    %27 = vsyncpa [#allocation6], 0
    %s28 = scalar_lea.sflag [#allocation6], 1
    %29 = vsyncpa %s28, 0
    %30 = vsyncpa [#allocation9], 0
    %31 = vsyncpa [#allocation12], 0
    %32 = vsyncpa [#allocation15], 0
    %33 = vsyncpa [#allocation18], 0
    %34 = vsyncpa [#allocation21], 0
    %35 = vsyncpa [#allocation24], 0
    %36 = vsyncpa [#allocation27], 0
    %37 = vsyncpa [#allocation30], 0
    %38 = vsyncpa [#allocation4], 0
    %s39 = scalar_lea.sflag [#allocation4], 1
    %40 = vsyncpa %s39, 0
    loop: start=0, step=1, limit=4
    $region2: #{two_stream_block_pallas.5} parent=1 // loop_pre_header
      _
    $region3: #{two_stream_block_pallas.5} parent=1 // loop_header
      %s42 = sphi 0, %s46
      %p43 = scmp.ge.s32.totalorder %s42, 4
      %s52 = sphi 0, %s54
      %s55 = sphi 0, %s52
      %s56 = sphi 0, %s55
      %s72 = sphi 0, %s56
      %s78 = sphi 0, %s80
      %s81 = sphi 0, %s78
      %s82 = sphi 0, %s81
      %s98 = sphi 0, %s82
      %s102 = sphi 0, %s102
      %s104 = sphi 0, %s102
      %s105 = sphi 0, %s104
      %s119 = sphi 0, %s105
      %s123 = sphi 0, %s123
      %s125 = sphi 0, %s123
      %s126 = sphi 0, %s125
      %s140 = sphi 0, %s126
      %s144 = sphi 0, %s144
      %s146 = sphi 0, %s144
      %s147 = sphi 0, %s146
      %s161 = sphi 0, %s147
      %s165 = sphi 0, %s165
      %s167 = sphi 0, %s165
      %s168 = sphi 0, %s167
      %s182 = sphi 0, %s168
      %s186 = sphi 0, %s186
      %s188 = sphi 0, %s186
      %s189 = sphi 0, %s188
      %s203 = sphi 0, %s189
      %s207 = sphi 0, %s207
      %s209 = sphi 0, %s207
      %s210 = sphi 0, %s209
      %s224 = sphi 0, %s210
      %s228 = sphi 0, %s228
      %s230 = sphi 0, %s228
      %s231 = sphi 0, %s230
      %s245 = sphi 0, %s231
      %s249 = sphi 0, %s249
      %s251 = sphi 0, %s249
      %s252 = sphi 0, %s251
      %s266 = sphi 0, %s252
      %s270 = sphi 0, %s270
      %s272 = sphi 0, %s270
      %s273 = sphi 0, %s272
      %s287 = sphi 0, %s273
      %s291 = sphi 0, %s291
      %s293 = sphi 0, %s291
      %s294 = sphi 0, %s293
      %s308 = sphi 0, %s294
      %s312 = sphi 0, %s312
      %s314 = sphi 0, %s312
      %s315 = sphi 0, %s314
      %s329 = sphi 0, %s315
      %s333 = sphi 0, %s333
      %s335 = sphi 0, %s333
      %s336 = sphi 0, %s335
      %s350 = sphi 0, %s336
      %s354 = sphi 0, %s354
      %s356 = sphi 0, %s354
      %s357 = sphi 0, %s356
      %s371 = sphi 0, %s357
      %s375 = sphi 0, %s375
      %s377 = sphi 0, %s375
      %s378 = sphi 0, %s377
      %s392 = sphi 0, %s378
      %s396 = sphi 0, %s396
      %s398 = sphi 0, %s396
      %s399 = sphi 0, %s398
      %s413 = sphi 0, %s399
      %s417 = sphi 0, %s417
      %s419 = sphi 0, %s417
      %s420 = sphi 0, %s419
      %s434 = sphi 0, %s420
      %s438 = sphi 0, %s438
      %s440 = sphi 0, %s438
      %s441 = sphi 0, %s440
      %s455 = sphi 0, %s441
      %s461 = sphi 0, %s463
      %s464 = sphi 0, %s461
      %s465 = sphi 0, %s464
      %s481 = sphi 0, %s465
    $region4: #{two_stream_block_pallas.5} parent=1 // loop_header_branch
      %45 = sbr.rel (%p43) target = $region8
    $region5: #{two_stream_block_pallas.5} parent=1 // loop_body
      %s47 = ssub.s32 %s42, 1
      %s48 = ssub.s32 %s42, 2
      %s49 = sadd.s32 %s42, 1
      %s50 = ssub.s32 %s42, %s49
      %p51 = scmp.eq.s32.totalorder %s50, 0
      %s53 = sadd.s32 %s52, 1
      %s54 = scalar_select %p51, %s52, %s53
      %p57 = pneg %p51
      %p58 = scmp.eq.s32.totalorder %s42, 1
      %p59 = por %p57, %p58
      %p60 = scmp.ne.s32.totalorder %s52, %s55
      %p61 = scmp.eq.s32.totalorder %s42, 0
      %p62 = por %p60, %p61
      %p63 = scmp.ne.s32.totalorder %s52, %s55
      %p64 = scmp.eq.s32.totalorder %s47, 1
      %p65 = por %p63, %p64
      %p66 = scmp.ne.s32.totalorder %s55, %s56
      %p67 = scmp.eq.s32.totalorder %s47, 0
      %p68 = por %p66, %p67
      %p69 = scmp.ne.s32.totalorder %s55, %s56
      %p70 = scmp.eq.s32.totalorder %s48, 1
      %p71 = por %p69, %p70
      %p73 = scmp.ne.s32.totalorder %s56, %s72
      %p74 = scmp.eq.s32.totalorder %s48, 0
      %p75 = por %p73, %p74
      %s76 = ssub.s32 %s42, %s49
      %p77 = scmp.eq.s32.totalorder %s76, 0
      %s79 = sadd.s32 %s78, 1
      %s80 = scalar_select %p77, %s78, %s79
      %p83 = pneg %p77
      %p84 = scmp.eq.s32.totalorder %s42, 1
      %p85 = por %p83, %p84
      %p86 = scmp.ne.s32.totalorder %s78, %s81
      %p87 = scmp.eq.s32.totalorder %s42, 0
      %p88 = por %p86, %p87
      %p89 = scmp.ne.s32.totalorder %s78, %s81
      %p90 = scmp.eq.s32.totalorder %s47, 1
      %p91 = por %p89, %p90
      %p92 = scmp.ne.s32.totalorder %s81, %s82
      %p93 = scmp.eq.s32.totalorder %s47, 0
      %p94 = por %p92, %p93
      %p95 = scmp.ne.s32.totalorder %s81, %s82
      %p96 = scmp.eq.s32.totalorder %s48, 1
      %p97 = por %p95, %p96
      %p99 = scmp.ne.s32.totalorder %s82, %s98
      %p100 = scmp.eq.s32.totalorder %s48, 0
      %p101 = por %p99, %p100
      %s103 = sadd.s32 %s102, 1
      %p106 = scmp.eq.s32.totalorder %s42, 1
      %p107 = scmp.ne.s32.totalorder %s102, %s104
      %p108 = scmp.eq.s32.totalorder %s42, 0
      %p109 = por %p107, %p108
      %p110 = scmp.ne.s32.totalorder %s102, %s104
      %p111 = scmp.eq.s32.totalorder %s47, 1
      %p112 = por %p110, %p111
      %p113 = scmp.ne.s32.totalorder %s104, %s105
      %p114 = scmp.eq.s32.totalorder %s47, 0
      %p115 = por %p113, %p114
      %p116 = scmp.ne.s32.totalorder %s104, %s105
      %p117 = scmp.eq.s32.totalorder %s48, 1
      %p118 = por %p116, %p117
      %p120 = scmp.ne.s32.totalorder %s105, %s119
      %p121 = scmp.eq.s32.totalorder %s48, 0
      %p122 = por %p120, %p121
      %s124 = sadd.s32 %s123, 1
      %p127 = scmp.eq.s32.totalorder %s42, 1
      %p128 = scmp.ne.s32.totalorder %s123, %s125
      %p129 = scmp.eq.s32.totalorder %s42, 0
      %p130 = por %p128, %p129
      %p131 = scmp.ne.s32.totalorder %s123, %s125
      %p132 = scmp.eq.s32.totalorder %s47, 1
      %p133 = por %p131, %p132
      %p134 = scmp.ne.s32.totalorder %s125, %s126
      %p135 = scmp.eq.s32.totalorder %s47, 0
      %p136 = por %p134, %p135
      %p137 = scmp.ne.s32.totalorder %s125, %s126
      %p138 = scmp.eq.s32.totalorder %s48, 1
      %p139 = por %p137, %p138
      %p141 = scmp.ne.s32.totalorder %s126, %s140
      %p142 = scmp.eq.s32.totalorder %s48, 0
      %p143 = por %p141, %p142
      %s145 = sadd.s32 %s144, 1
      %p148 = scmp.eq.s32.totalorder %s42, 1
      %p149 = scmp.ne.s32.totalorder %s144, %s146
      %p150 = scmp.eq.s32.totalorder %s42, 0
      %p151 = por %p149, %p150
      %p152 = scmp.ne.s32.totalorder %s144, %s146
      %p153 = scmp.eq.s32.totalorder %s47, 1
      %p154 = por %p152, %p153
      %p155 = scmp.ne.s32.totalorder %s146, %s147
      %p156 = scmp.eq.s32.totalorder %s47, 0
      %p157 = por %p155, %p156
      %p158 = scmp.ne.s32.totalorder %s146, %s147
      %p159 = scmp.eq.s32.totalorder %s48, 1
      %p160 = por %p158, %p159
      %p162 = scmp.ne.s32.totalorder %s147, %s161
      %p163 = scmp.eq.s32.totalorder %s48, 0
      %p164 = por %p162, %p163
      %s166 = sadd.s32 %s165, 1
      %p169 = scmp.eq.s32.totalorder %s42, 1
      %p170 = scmp.ne.s32.totalorder %s165, %s167
      %p171 = scmp.eq.s32.totalorder %s42, 0
      %p172 = por %p170, %p171
      %p173 = scmp.ne.s32.totalorder %s165, %s167
      %p174 = scmp.eq.s32.totalorder %s47, 1
      %p175 = por %p173, %p174
      %p176 = scmp.ne.s32.totalorder %s167, %s168
      %p177 = scmp.eq.s32.totalorder %s47, 0
      %p178 = por %p176, %p177
      %p179 = scmp.ne.s32.totalorder %s167, %s168
      %p180 = scmp.eq.s32.totalorder %s48, 1
      %p181 = por %p179, %p180
      %p183 = scmp.ne.s32.totalorder %s168, %s182
      %p184 = scmp.eq.s32.totalorder %s48, 0
      %p185 = por %p183, %p184
      %s187 = sadd.s32 %s186, 1
      %p190 = scmp.eq.s32.totalorder %s42, 1
      %p191 = scmp.ne.s32.totalorder %s186, %s188
      %p192 = scmp.eq.s32.totalorder %s42, 0
      %p193 = por %p191, %p192
      %p194 = scmp.ne.s32.totalorder %s186, %s188
      %p195 = scmp.eq.s32.totalorder %s47, 1
      %p196 = por %p194, %p195
      %p197 = scmp.ne.s32.totalorder %s188, %s189
      %p198 = scmp.eq.s32.totalorder %s47, 0
      %p199 = por %p197, %p198
      %p200 = scmp.ne.s32.totalorder %s188, %s189
      %p201 = scmp.eq.s32.totalorder %s48, 1
      %p202 = por %p200, %p201
      %p204 = scmp.ne.s32.totalorder %s189, %s203
      %p205 = scmp.eq.s32.totalorder %s48, 0
      %p206 = por %p204, %p205
      %s208 = sadd.s32 %s207, 1
      %p211 = scmp.eq.s32.totalorder %s42, 1
      %p212 = scmp.ne.s32.totalorder %s207, %s209
      %p213 = scmp.eq.s32.totalorder %s42, 0
      %p214 = por %p212, %p213
      %p215 = scmp.ne.s32.totalorder %s207, %s209
      %p216 = scmp.eq.s32.totalorder %s47, 1
      %p217 = por %p215, %p216
      %p218 = scmp.ne.s32.totalorder %s209, %s210
      %p219 = scmp.eq.s32.totalorder %s47, 0
      %p220 = por %p218, %p219
      %p221 = scmp.ne.s32.totalorder %s209, %s210
      %p222 = scmp.eq.s32.totalorder %s48, 1
      %p223 = por %p221, %p222
      %p225 = scmp.ne.s32.totalorder %s210, %s224
      %p226 = scmp.eq.s32.totalorder %s48, 0
      %p227 = por %p225, %p226
      %s229 = sadd.s32 %s228, 1
      %p232 = scmp.eq.s32.totalorder %s42, 1
      %p233 = scmp.ne.s32.totalorder %s228, %s230
      %p234 = scmp.eq.s32.totalorder %s42, 0
      %p235 = por %p233, %p234
      %p236 = scmp.ne.s32.totalorder %s228, %s230
      %p237 = scmp.eq.s32.totalorder %s47, 1
      %p238 = por %p236, %p237
      %p239 = scmp.ne.s32.totalorder %s230, %s231
      %p240 = scmp.eq.s32.totalorder %s47, 0
      %p241 = por %p239, %p240
      %p242 = scmp.ne.s32.totalorder %s230, %s231
      %p243 = scmp.eq.s32.totalorder %s48, 1
      %p244 = por %p242, %p243
      %p246 = scmp.ne.s32.totalorder %s231, %s245
      %p247 = scmp.eq.s32.totalorder %s48, 0
      %p248 = por %p246, %p247
      %s250 = sadd.s32 %s249, 1
      %p253 = scmp.eq.s32.totalorder %s42, 1
      %p254 = scmp.ne.s32.totalorder %s249, %s251
      %p255 = scmp.eq.s32.totalorder %s42, 0
      %p256 = por %p254, %p255
      %p257 = scmp.ne.s32.totalorder %s249, %s251
      %p258 = scmp.eq.s32.totalorder %s47, 1
      %p259 = por %p257, %p258
      %p260 = scmp.ne.s32.totalorder %s251, %s252
      %p261 = scmp.eq.s32.totalorder %s47, 0
      %p262 = por %p260, %p261
      %p263 = scmp.ne.s32.totalorder %s251, %s252
      %p264 = scmp.eq.s32.totalorder %s48, 1
      %p265 = por %p263, %p264
      %p267 = scmp.ne.s32.totalorder %s252, %s266
      %p268 = scmp.eq.s32.totalorder %s48, 0
      %p269 = por %p267, %p268
      %s271 = sadd.s32 %s270, 1
      %p274 = scmp.eq.s32.totalorder %s42, 1
      %p275 = scmp.ne.s32.totalorder %s270, %s272
      %p276 = scmp.eq.s32.totalorder %s42, 0
      %p277 = por %p275, %p276
      %p278 = scmp.ne.s32.totalorder %s270, %s272
      %p279 = scmp.eq.s32.totalorder %s47, 1
      %p280 = por %p278, %p279
      %p281 = scmp.ne.s32.totalorder %s272, %s273
      %p282 = scmp.eq.s32.totalorder %s47, 0
      %p283 = por %p281, %p282
      %p284 = scmp.ne.s32.totalorder %s272, %s273
      %p285 = scmp.eq.s32.totalorder %s48, 1
      %p286 = por %p284, %p285
      %p288 = scmp.ne.s32.totalorder %s273, %s287
      %p289 = scmp.eq.s32.totalorder %s48, 0
      %p290 = por %p288, %p289
      %s292 = sadd.s32 %s291, 1
      %p295 = scmp.eq.s32.totalorder %s42, 1
      %p296 = scmp.ne.s32.totalorder %s291, %s293
      %p297 = scmp.eq.s32.totalorder %s42, 0
      %p298 = por %p296, %p297
      %p299 = scmp.ne.s32.totalorder %s291, %s293
      %p300 = scmp.eq.s32.totalorder %s47, 1
      %p301 = por %p299, %p300
      %p302 = scmp.ne.s32.totalorder %s293, %s294
      %p303 = scmp.eq.s32.totalorder %s47, 0
      %p304 = por %p302, %p303
      %p305 = scmp.ne.s32.totalorder %s293, %s294
      %p306 = scmp.eq.s32.totalorder %s48, 1
      %p307 = por %p305, %p306
      %p309 = scmp.ne.s32.totalorder %s294, %s308
      %p310 = scmp.eq.s32.totalorder %s48, 0
      %p311 = por %p309, %p310
      %s313 = sadd.s32 %s312, 1
      %p316 = scmp.eq.s32.totalorder %s42, 1
      %p317 = scmp.ne.s32.totalorder %s312, %s314
      %p318 = scmp.eq.s32.totalorder %s42, 0
      %p319 = por %p317, %p318
      %p320 = scmp.ne.s32.totalorder %s312, %s314
      %p321 = scmp.eq.s32.totalorder %s47, 1
      %p322 = por %p320, %p321
      %p323 = scmp.ne.s32.totalorder %s314, %s315
      %p324 = scmp.eq.s32.totalorder %s47, 0
      %p325 = por %p323, %p324
      %p326 = scmp.ne.s32.totalorder %s314, %s315
      %p327 = scmp.eq.s32.totalorder %s48, 1
      %p328 = por %p326, %p327
      %p330 = scmp.ne.s32.totalorder %s315, %s329
      %p331 = scmp.eq.s32.totalorder %s48, 0
      %p332 = por %p330, %p331
      %s334 = sadd.s32 %s333, 1
      %p337 = scmp.eq.s32.totalorder %s42, 1
      %p338 = scmp.ne.s32.totalorder %s333, %s335
      %p339 = scmp.eq.s32.totalorder %s42, 0
      %p340 = por %p338, %p339
      %p341 = scmp.ne.s32.totalorder %s333, %s335
      %p342 = scmp.eq.s32.totalorder %s47, 1
      %p343 = por %p341, %p342
      %p344 = scmp.ne.s32.totalorder %s335, %s336
      %p345 = scmp.eq.s32.totalorder %s47, 0
      %p346 = por %p344, %p345
      %p347 = scmp.ne.s32.totalorder %s335, %s336
      %p348 = scmp.eq.s32.totalorder %s48, 1
      %p349 = por %p347, %p348
      %p351 = scmp.ne.s32.totalorder %s336, %s350
      %p352 = scmp.eq.s32.totalorder %s48, 0
      %p353 = por %p351, %p352
      %s355 = sadd.s32 %s354, 1
      %p358 = scmp.eq.s32.totalorder %s42, 1
      %p359 = scmp.ne.s32.totalorder %s354, %s356
      %p360 = scmp.eq.s32.totalorder %s42, 0
      %p361 = por %p359, %p360
      %p362 = scmp.ne.s32.totalorder %s354, %s356
      %p363 = scmp.eq.s32.totalorder %s47, 1
      %p364 = por %p362, %p363
      %p365 = scmp.ne.s32.totalorder %s356, %s357
      %p366 = scmp.eq.s32.totalorder %s47, 0
      %p367 = por %p365, %p366
      %p368 = scmp.ne.s32.totalorder %s356, %s357
      %p369 = scmp.eq.s32.totalorder %s48, 1
      %p370 = por %p368, %p369
      %p372 = scmp.ne.s32.totalorder %s357, %s371
      %p373 = scmp.eq.s32.totalorder %s48, 0
      %p374 = por %p372, %p373
      %s376 = sadd.s32 %s375, 1
      %p379 = scmp.eq.s32.totalorder %s42, 1
      %p380 = scmp.ne.s32.totalorder %s375, %s377
      %p381 = scmp.eq.s32.totalorder %s42, 0
      %p382 = por %p380, %p381
      %p383 = scmp.ne.s32.totalorder %s375, %s377
      %p384 = scmp.eq.s32.totalorder %s47, 1
      %p385 = por %p383, %p384
      %p386 = scmp.ne.s32.totalorder %s377, %s378
      %p387 = scmp.eq.s32.totalorder %s47, 0
      %p388 = por %p386, %p387
      %p389 = scmp.ne.s32.totalorder %s377, %s378
      %p390 = scmp.eq.s32.totalorder %s48, 1
      %p391 = por %p389, %p390
      %p393 = scmp.ne.s32.totalorder %s378, %s392
      %p394 = scmp.eq.s32.totalorder %s48, 0
      %p395 = por %p393, %p394
      %s397 = sadd.s32 %s396, 1
      %p400 = scmp.eq.s32.totalorder %s42, 1
      %p401 = scmp.ne.s32.totalorder %s396, %s398
      %p402 = scmp.eq.s32.totalorder %s42, 0
      %p403 = por %p401, %p402
      %p404 = scmp.ne.s32.totalorder %s396, %s398
      %p405 = scmp.eq.s32.totalorder %s47, 1
      %p406 = por %p404, %p405
      %p407 = scmp.ne.s32.totalorder %s398, %s399
      %p408 = scmp.eq.s32.totalorder %s47, 0
      %p409 = por %p407, %p408
      %p410 = scmp.ne.s32.totalorder %s398, %s399
      %p411 = scmp.eq.s32.totalorder %s48, 1
      %p412 = por %p410, %p411
      %p414 = scmp.ne.s32.totalorder %s399, %s413
      %p415 = scmp.eq.s32.totalorder %s48, 0
      %p416 = por %p414, %p415
      %s418 = sadd.s32 %s417, 1
      %p421 = scmp.eq.s32.totalorder %s42, 1
      %p422 = scmp.ne.s32.totalorder %s417, %s419
      %p423 = scmp.eq.s32.totalorder %s42, 0
      %p424 = por %p422, %p423
      %p425 = scmp.ne.s32.totalorder %s417, %s419
      %p426 = scmp.eq.s32.totalorder %s47, 1
      %p427 = por %p425, %p426
      %p428 = scmp.ne.s32.totalorder %s419, %s420
      %p429 = scmp.eq.s32.totalorder %s47, 0
      %p430 = por %p428, %p429
      %p431 = scmp.ne.s32.totalorder %s419, %s420
      %p432 = scmp.eq.s32.totalorder %s48, 1
      %p433 = por %p431, %p432
      %p435 = scmp.ne.s32.totalorder %s420, %s434
      %p436 = scmp.eq.s32.totalorder %s48, 0
      %p437 = por %p435, %p436
      %s439 = sadd.s32 %s438, 1
      %p442 = scmp.eq.s32.totalorder %s42, 1
      %p443 = scmp.ne.s32.totalorder %s438, %s440
      %p444 = scmp.eq.s32.totalorder %s42, 0
      %p445 = por %p443, %p444
      %p446 = scmp.ne.s32.totalorder %s438, %s440
      %p447 = scmp.eq.s32.totalorder %s47, 1
      %p448 = por %p446, %p447
      %p449 = scmp.ne.s32.totalorder %s440, %s441
      %p450 = scmp.eq.s32.totalorder %s47, 0
      %p451 = por %p449, %p450
      %p452 = scmp.ne.s32.totalorder %s440, %s441
      %p453 = scmp.eq.s32.totalorder %s48, 1
      %p454 = por %p452, %p453
      %p456 = scmp.ne.s32.totalorder %s441, %s455
      %p457 = scmp.eq.s32.totalorder %s48, 0
      %p458 = por %p456, %p457
      %s459 = ssub.s32 %s42, %s49
      %p460 = scmp.eq.s32.totalorder %s459, 0
      %s462 = sadd.s32 %s461, 1
      %s463 = scalar_select %p460, %s461, %s462
      %p466 = pneg %p460
      %p467 = scmp.eq.s32.totalorder %s42, 1
      %p468 = por %p466, %p467
      %p469 = scmp.ne.s32.totalorder %s461, %s464
      %p470 = scmp.eq.s32.totalorder %s42, 0
      %p471 = por %p469, %p470
      %p472 = scmp.ne.s32.totalorder %s461, %s464
      %p473 = scmp.eq.s32.totalorder %s47, 1
      %p474 = por %p472, %p473
      %p475 = scmp.ne.s32.totalorder %s464, %s465
      %p476 = scmp.eq.s32.totalorder %s47, 0
      %p477 = por %p475, %p476
      %p478 = scmp.ne.s32.totalorder %s464, %s465
      %p479 = scmp.eq.s32.totalorder %s48, 1
      %p480 = por %p478, %p479
      %p482 = scmp.ne.s32.totalorder %s465, %s481
      %p483 = scmp.eq.s32.totalorder %s48, 0
      %p484 = por %p482, %p483
      %p485 = scmp.le.s32.totalorder 1, %s42
      %p486 = scmp.lt.s32.totalorder %s42, 3
      %p487 = pnand %p485, %p486
      %p488 = pneg %p487
      // Predicated region
      $region9: #{two_stream_block_pallas.5} parent=5 // pred_check
        _
      $region10: #{two_stream_block_pallas.5} parent=5 // pred_check_branch
        %490 = sbr.rel (%p487) target = $region12
      $region11: #{two_stream_block_pallas.5} parent=5 // pred_region
        %s491 = ssub.s32 %s42, 1
        // Predicated region
        $region13: #{two_stream_block_pallas.5} parent=11 // pred_check
          %p492 = pneg %p115
        $region14: #{two_stream_block_pallas.5} parent=11 // pred_check_branch
          %494 = sbr.rel (%p492) target = $region16
        $region15: #{two_stream_block_pallas.5} parent=11 // pred_region
          %s496 = ssub.s32 16, 16
          %497 = vsyncadd [#allocation6], %s496
          %s499 = sshll.u32 [#allocation7], 4
          %s500 = int_to_ptr.vmem [resolvable:$true] %s499
          %502 = dma.hbm_to_vmem [thread:$0]  %s2, 16, %s500, [#allocation6]
        $region16: #{two_stream_block_pallas.5} parent=11 // pred_fallthru
          _
        // Predicated region
        $region17: #{two_stream_block_pallas.5} parent=11 // pred_check
          %p503 = pneg %p136
        $region18: #{two_stream_block_pallas.5} parent=11 // pred_check_branch
          %505 = sbr.rel (%p503) target = $region20
        $region19: #{two_stream_block_pallas.5} parent=11 // pred_region
          %s507 = ssub.s32 16, 16
          %508 = vsyncadd [#allocation9], %s507
          %s510 = sshll.u32 [#allocation8], 4
          %s511 = int_to_ptr.vmem [resolvable:$true] %s510
          %513 = dma.hbm_to_vmem [thread:$0]  %s3, 16, %s511, [#allocation9]
        $region20: #{two_stream_block_pallas.5} parent=11 // pred_fallthru
          _
        // Predicated region
        $region21: #{two_stream_block_pallas.5} parent=11 // pred_check
          %p514 = pneg %p157
        $region22: #{two_stream_block_pallas.5} parent=11 // pred_check_branch
          %516 = sbr.rel (%p514) target = $region24
        $region23: #{two_stream_block_pallas.5} parent=11 // pred_region
          %s518 = ssub.s32 2048, 2048
          %519 = vsyncadd [#allocation9], %s518
          %s520 = sshll.u32 [#allocation10], 4
          %s521 = int_to_ptr.vmem [resolvable:$true] %s520
          %526 = dma.hbm_to_vmem [thread:$0]  %s4, 2048, %s521, [#allocation9], 256, 256, 16
        $region24: #{two_stream_block_pallas.5} parent=11 // pred_fallthru
          _
        // Predicated region
        $region25: #{two_stream_block_pallas.5} parent=11 // pred_check
          %p527 = pneg %p178
        $region26: #{two_stream_block_pallas.5} parent=11 // pred_check_branch
          %529 = sbr.rel (%p527) target = $region28
        $region27: #{two_stream_block_pallas.5} parent=11 // pred_region
          %s531 = ssub.s32 1024, 1024
          %532 = vsyncadd [#allocation12], %s531
          %s533 = sshll.u32 [#allocation11], 4
          %s534 = int_to_ptr.vmem [resolvable:$true] %s533
          %539 = dma.hbm_to_vmem [thread:$0]  %s5, 1024, %s534, [#allocation12], 128, 128, 8
        $region28: #{two_stream_block_pallas.5} parent=11 // pred_fallthru
          _
        // Predicated region
        $region29: #{two_stream_block_pallas.5} parent=11 // pred_check
          %p540 = pneg %p199
        $region30: #{two_stream_block_pallas.5} parent=11 // pred_check_branch
          %542 = sbr.rel (%p540) target = $region32
        $region31: #{two_stream_block_pallas.5} parent=11 // pred_region
          %s544 = ssub.s32 16, 16
          %545 = vsyncadd [#allocation12], %s544
          %s547 = sshll.u32 [#allocation13], 4
          %s548 = int_to_ptr.vmem [resolvable:$true] %s547
          %550 = dma.hbm_to_vmem [thread:$0]  %s6, 16, %s548, [#allocation12]
        $region32: #{two_stream_block_pallas.5} parent=11 // pred_fallthru
          _
        // Predicated region
        $region33: #{two_stream_block_pallas.5} parent=11 // pred_check
          %p551 = pneg %p220
        $region34: #{two_stream_block_pallas.5} parent=11 // pred_check_branch
          %553 = sbr.rel (%p551) target = $region36
        $region35: #{two_stream_block_pallas.5} parent=11 // pred_region
          %s555 = ssub.s32 16, 16
          %556 = vsyncadd [#allocation15], %s555
          %s558 = sshll.u32 [#allocation14], 4
          %s559 = int_to_ptr.vmem [resolvable:$true] %s558
          %561 = dma.hbm_to_vmem [thread:$0]  %s7, 16, %s559, [#allocation15]
        $region36: #{two_stream_block_pallas.5} parent=11 // pred_fallthru
          _
        // Predicated region
        $region37: #{two_stream_block_pallas.5} parent=11 // pred_check
          %p562 = pneg %p241
        $region38: #{two_stream_block_pallas.5} parent=11 // pred_check_branch
          %564 = sbr.rel (%p562) target = $region40
        $region39: #{two_stream_block_pallas.5} parent=11 // pred_region
          %s566 = ssub.s32 16, 16
          %567 = vsyncadd [#allocation15], %s566
          %s569 = sshll.u32 [#allocation16], 4
          %s570 = int_to_ptr.vmem [resolvable:$true] %s569
          %572 = dma.hbm_to_vmem [thread:$0]  %s8, 16, %s570, [#allocation15]
        $region40: #{two_stream_block_pallas.5} parent=11 // pred_fallthru
          _
        // Predicated region
        $region41: #{two_stream_block_pallas.5} parent=11 // pred_check
          %p573 = pneg %p262
        $region42: #{two_stream_block_pallas.5} parent=11 // pred_check_branch
          %575 = sbr.rel (%p573) target = $region44
        $region43: #{two_stream_block_pallas.5} parent=11 // pred_region
          %s577 = ssub.s32 1024, 1024
          %578 = vsyncadd [#allocation18], %s577
          %s579 = sshll.u32 [#allocation17], 4
          %s580 = int_to_ptr.vmem [resolvable:$true] %s579
          %585 = dma.hbm_to_vmem [thread:$0]  %s9, 1024, %s580, [#allocation18], 128, 128, 8
        $region44: #{two_stream_block_pallas.5} parent=11 // pred_fallthru
          _
        // Predicated region
        $region45: #{two_stream_block_pallas.5} parent=11 // pred_check
          %p586 = pneg %p283
        $region46: #{two_stream_block_pallas.5} parent=11 // pred_check_branch
          %588 = sbr.rel (%p586) target = $region48
        $region47: #{two_stream_block_pallas.5} parent=11 // pred_region
          %s590 = ssub.s32 1536, 1536
          %591 = vsyncadd [#allocation18], %s590
          %s592 = sshll.u32 [#allocation19], 4
          %s593 = int_to_ptr.vmem [resolvable:$true] %s592
          %598 = dma.hbm_to_vmem [thread:$0]  %s10, 1536, %s593, [#allocation18], 128, 128, 8
        $region48: #{two_stream_block_pallas.5} parent=11 // pred_fallthru
          _
        // Predicated region
        $region49: #{two_stream_block_pallas.5} parent=11 // pred_check
          %p599 = pneg %p304
        $region50: #{two_stream_block_pallas.5} parent=11 // pred_check_branch
          %601 = sbr.rel (%p599) target = $region52
        $region51: #{two_stream_block_pallas.5} parent=11 // pred_region
          %s603 = ssub.s32 1024, 1024
          %604 = vsyncadd [#allocation21], %s603
          %s605 = sshll.u32 [#allocation20], 4
          %s606 = int_to_ptr.vmem [resolvable:$true] %s605
          %611 = dma.hbm_to_vmem [thread:$0]  %s11, 1024, %s606, [#allocation21], 128, 128, 8
        $region52: #{two_stream_block_pallas.5} parent=11 // pred_fallthru
          _
        // Predicated region
        $region53: #{two_stream_block_pallas.5} parent=11 // pred_check
          %p612 = pneg %p325
        $region54: #{two_stream_block_pallas.5} parent=11 // pred_check_branch
          %614 = sbr.rel (%p612) target = $region56
        $region55: #{two_stream_block_pallas.5} parent=11 // pred_region
          %s616 = ssub.s32 16, 16
          %617 = vsyncadd [#allocation21], %s616
          %s619 = sshll.u32 [#allocation22], 4
          %s620 = int_to_ptr.vmem [resolvable:$true] %s619
          %622 = dma.hbm_to_vmem [thread:$0]  %s12, 16, %s620, [#allocation21]
        $region56: #{two_stream_block_pallas.5} parent=11 // pred_fallthru
          _
        // Predicated region
        $region57: #{two_stream_block_pallas.5} parent=11 // pred_check
          %p623 = pneg %p346
        $region58: #{two_stream_block_pallas.5} parent=11 // pred_check_branch
          %625 = sbr.rel (%p623) target = $region60
        $region59: #{two_stream_block_pallas.5} parent=11 // pred_region
          %s627 = ssub.s32 16, 16
          %628 = vsyncadd [#allocation24], %s627
          %s630 = sshll.u32 [#allocation23], 4
          %s631 = int_to_ptr.vmem [resolvable:$true] %s630
          %633 = dma.hbm_to_vmem [thread:$0]  %s13, 16, %s631, [#allocation24]
        $region60: #{two_stream_block_pallas.5} parent=11 // pred_fallthru
          _
        // Predicated region
        $region61: #{two_stream_block_pallas.5} parent=11 // pred_check
          %p634 = pneg %p367
        $region62: #{two_stream_block_pallas.5} parent=11 // pred_check_branch
          %636 = sbr.rel (%p634) target = $region64
        $region63: #{two_stream_block_pallas.5} parent=11 // pred_region
          %s638 = ssub.s32 16, 16
          %639 = vsyncadd [#allocation24], %s638
          %s641 = sshll.u32 [#allocation25], 4
          %s642 = int_to_ptr.vmem [resolvable:$true] %s641
          %644 = dma.hbm_to_vmem [thread:$0]  %s14, 16, %s642, [#allocation24]
        $region64: #{two_stream_block_pallas.5} parent=11 // pred_fallthru
          _
        // Predicated region
        $region65: #{two_stream_block_pallas.5} parent=11 // pred_check
          %p645 = pneg %p388
        $region66: #{two_stream_block_pallas.5} parent=11 // pred_check_branch
          %647 = sbr.rel (%p645) target = $region68
        $region67: #{two_stream_block_pallas.5} parent=11 // pred_region
          %s649 = ssub.s32 2048, 2048
          %650 = vsyncadd [#allocation27], %s649
          %s651 = sshll.u32 [#allocation26], 4
          %s652 = int_to_ptr.vmem [resolvable:$true] %s651
          %657 = dma.hbm_to_vmem [thread:$0]  %s15, 2048, %s652, [#allocation27], 256, 256, 16
        $region68: #{two_stream_block_pallas.5} parent=11 // pred_fallthru
          _
        // Predicated region
        $region69: #{two_stream_block_pallas.5} parent=11 // pred_check
          %p658 = pneg %p409
        $region70: #{two_stream_block_pallas.5} parent=11 // pred_check_branch
          %660 = sbr.rel (%p658) target = $region72
        $region71: #{two_stream_block_pallas.5} parent=11 // pred_region
          %s662 = ssub.s32 32, 32
          %663 = vsyncadd [#allocation27], %s662
          %s665 = sshll.u32 [#allocation28], 4
          %s666 = int_to_ptr.vmem [resolvable:$true] %s665
          %668 = dma.hbm_to_vmem [thread:$0]  %s16, 32, %s666, [#allocation27]
        $region72: #{two_stream_block_pallas.5} parent=11 // pred_fallthru
          _
        // Predicated region
        $region73: #{two_stream_block_pallas.5} parent=11 // pred_check
          %p669 = pneg %p430
        $region74: #{two_stream_block_pallas.5} parent=11 // pred_check_branch
          %671 = sbr.rel (%p669) target = $region76
        $region75: #{two_stream_block_pallas.5} parent=11 // pred_region
          %s673 = ssub.s32 4096, 4096
          %674 = vsyncadd [#allocation30], %s673
          %s675 = sshll.u32 [#allocation29], 4
          %s676 = int_to_ptr.vmem [resolvable:$true] %s675
          %681 = dma.hbm_to_vmem [thread:$0]  %s17, 4096, %s676, [#allocation30], 128, 128, 8
        $region76: #{two_stream_block_pallas.5} parent=11 // pred_fallthru
          _
        // Predicated region
        $region77: #{two_stream_block_pallas.5} parent=11 // pred_check
          %p682 = pneg %p451
        $region78: #{two_stream_block_pallas.5} parent=11 // pred_check_branch
          %684 = sbr.rel (%p682) target = $region80
        $region79: #{two_stream_block_pallas.5} parent=11 // pred_region
          %s686 = ssub.s32 16, 16
          %687 = vsyncadd [#allocation30], %s686
          %s689 = sshll.u32 [#allocation31], 4
          %s690 = int_to_ptr.vmem [resolvable:$true] %s689
          %692 = dma.hbm_to_vmem [thread:$0]  %s18, 16, %s690, [#allocation30]
        $region80: #{two_stream_block_pallas.5} parent=11 // pred_fallthru
          _
      $region12: #{two_stream_block_pallas.5} parent=5 // pred_fallthru
        _
      %p693 = scmp.lt.s32.totalorder %s42, 2
      // Predicated region
      $region81: #{two_stream_block_pallas.5} parent=5 // pred_check
        %p694 = pneg %p693
      $region82: #{two_stream_block_pallas.5} parent=5 // pred_check_branch
        %696 = sbr.rel (%p694) target = $region84
      $region83: #{two_stream_block_pallas.5} parent=5 // pred_region
        // Predicated region
        $region85: #{two_stream_block_pallas.5} parent=83 // pred_check
          %p697 = pneg %p62
        $region86: #{two_stream_block_pallas.5} parent=83 // pred_check_branch
          %699 = sbr.rel (%p697) target = $region88
        $region87: #{two_stream_block_pallas.5} parent=83 // pred_region
          %s700 = sand.u32 %s52, 1
          %s701 = scalar_lea.sflag [#allocation3], %s700
          %s702 = sand.u32 %s52, 1
          %s703 = smul.addr %s702, 16
          %s704 = scalar_lea.vmem [#allocation2], %s703
          %s706 = ssub.s32 256, 256
          %707 = vsyncadd %s701, %s706
          %s708 = smul.addr %s42, 2
          %s709 = smul.addr %s708, 128
          %s710 = scalar_lea.hbm %s0, %s709
          %s711 = sshll.u32 %s704, 4
          %s712 = int_to_ptr.vmem [resolvable:$true] %s711
          %717 = dma.hbm_to_vmem [thread:$0]  %s710, 256, %s712, %s701, 128, 128, 8
        $region88: #{two_stream_block_pallas.5} parent=83 // pred_fallthru
          _
        // Predicated region
        $region89: #{two_stream_block_pallas.5} parent=83 // pred_check
          %p718 = pneg %p88
        $region90: #{two_stream_block_pallas.5} parent=83 // pred_check_branch
          %720 = sbr.rel (%p718) target = $region92
        $region91: #{two_stream_block_pallas.5} parent=83 // pred_region
          %s721 = sand.u32 %s42, 1
          %s722 = scalar_lea.sflag [#allocation6], %s721
          %s723 = sand.u32 %s78, 1
          %s724 = smul.addr %s723, 8
          %s725 = scalar_lea.vmem [#allocation5], %s724
          %s727 = ssub.s32 128, 128
          %728 = vsyncadd %s722, %s727
          %s729 = smul.addr %s42, 128
          %s730 = scalar_lea.hbm %s1, %s729
          %s732 = sshll.u32 %s725, 4
          %s733 = int_to_ptr.vmem [resolvable:$true] %s732
          %735 = dma.hbm_to_vmem [thread:$0]  %s730, 128, %s733, %s722
        $region92: #{two_stream_block_pallas.5} parent=83 // pred_fallthru
          _
      $region84: #{two_stream_block_pallas.5} parent=5 // pred_fallthru
        _
      %p736 = scmp.le.s32.totalorder 1, %s42
      %p737 = scmp.lt.s32.totalorder %s42, 3
      %p738 = pnand %p736, %p737
      %p739 = pneg %p738
      // Predicated region
      $region93: #{two_stream_block_pallas.5} parent=5 // pred_check
        _
      $region94: #{two_stream_block_pallas.5} parent=5 // pred_check_branch
        %741 = sbr.rel (%p738) target = $region96
      $region95: #{two_stream_block_pallas.5} parent=5 // pred_region
        %s742 = ssub.s32 %s42, 1
        %s743 = sand.u32 %s55, 1
        %s744 = scalar_lea.sflag [#allocation3], %s743
        %s745 = sand.u32 %s55, 1
        %s746 = smul.addr %s745, 16
        %s747 = scalar_lea.vmem [#allocation2], %s746
        // Predicated region
        $region97: #{two_stream_block_pallas.5} parent=95 // pred_check
          %p748 = pneg %p68
        $region98: #{two_stream_block_pallas.5} parent=95 // pred_check_branch
          %750 = sbr.rel (%p748) target = $region100
        $region99: #{two_stream_block_pallas.5} parent=95 // pred_region
          %751 = dma.done %s744, 256
        $region100: #{two_stream_block_pallas.5} parent=95 // pred_fallthru
          _
        %s752 = sand.u32 %s47, 1
        %s753 = scalar_lea.sflag [#allocation6], %s752
        %s754 = sand.u32 %s81, 1
        %s755 = smul.addr %s754, 8
        %s756 = scalar_lea.vmem [#allocation5], %s755
        // Predicated region
        $region101: #{two_stream_block_pallas.5} parent=95 // pred_check
          %p757 = pneg %p94
        $region102: #{two_stream_block_pallas.5} parent=95 // pred_check_branch
          %759 = sbr.rel (%p757) target = $region104
        $region103: #{two_stream_block_pallas.5} parent=95 // pred_region
          %760 = dma.done %s753, 128
        $region104: #{two_stream_block_pallas.5} parent=95 // pred_fallthru
          _
        // Predicated region
        $region105: #{two_stream_block_pallas.5} parent=95 // pred_check
          %p761 = pneg %p115
        $region106: #{two_stream_block_pallas.5} parent=95 // pred_check_branch
          %763 = sbr.rel (%p761) target = $region108
        $region107: #{two_stream_block_pallas.5} parent=95 // pred_region
          %764 = dma.done [#allocation6], 16
        $region108: #{two_stream_block_pallas.5} parent=95 // pred_fallthru
          _
        // Predicated region
        $region109: #{two_stream_block_pallas.5} parent=95 // pred_check
          %p765 = pneg %p136
        $region110: #{two_stream_block_pallas.5} parent=95 // pred_check_branch
          %767 = sbr.rel (%p765) target = $region112
        $region111: #{two_stream_block_pallas.5} parent=95 // pred_region
          %768 = dma.done [#allocation9], 16
        $region112: #{two_stream_block_pallas.5} parent=95 // pred_fallthru
          _
        // Predicated region
        $region113: #{two_stream_block_pallas.5} parent=95 // pred_check
          %p769 = pneg %p157
        $region114: #{two_stream_block_pallas.5} parent=95 // pred_check_branch
          %771 = sbr.rel (%p769) target = $region116
        $region115: #{two_stream_block_pallas.5} parent=95 // pred_region
          %772 = dma.done [#allocation9], 2048
        $region116: #{two_stream_block_pallas.5} parent=95 // pred_fallthru
          _
        // Predicated region
        $region117: #{two_stream_block_pallas.5} parent=95 // pred_check
          %p773 = pneg %p178
        $region118: #{two_stream_block_pallas.5} parent=95 // pred_check_branch
          %775 = sbr.rel (%p773) target = $region120
        $region119: #{two_stream_block_pallas.5} parent=95 // pred_region
          %776 = dma.done [#allocation12], 1024
        $region120: #{two_stream_block_pallas.5} parent=95 // pred_fallthru
          _
        // Predicated region
        $region121: #{two_stream_block_pallas.5} parent=95 // pred_check
          %p777 = pneg %p199
        $region122: #{two_stream_block_pallas.5} parent=95 // pred_check_branch
          %779 = sbr.rel (%p777) target = $region124
        $region123: #{two_stream_block_pallas.5} parent=95 // pred_region
          %780 = dma.done [#allocation12], 16
        $region124: #{two_stream_block_pallas.5} parent=95 // pred_fallthru
          _
        // Predicated region
        $region125: #{two_stream_block_pallas.5} parent=95 // pred_check
          %p781 = pneg %p220
        $region126: #{two_stream_block_pallas.5} parent=95 // pred_check_branch
          %783 = sbr.rel (%p781) target = $region128
        $region127: #{two_stream_block_pallas.5} parent=95 // pred_region
          %784 = dma.done [#allocation15], 16
        $region128: #{two_stream_block_pallas.5} parent=95 // pred_fallthru
          _
        // Predicated region
        $region129: #{two_stream_block_pallas.5} parent=95 // pred_check
          %p785 = pneg %p241
        $region130: #{two_stream_block_pallas.5} parent=95 // pred_check_branch
          %787 = sbr.rel (%p785) target = $region132
        $region131: #{two_stream_block_pallas.5} parent=95 // pred_region
          %788 = dma.done [#allocation15], 16
        $region132: #{two_stream_block_pallas.5} parent=95 // pred_fallthru
          _
        // Predicated region
        $region133: #{two_stream_block_pallas.5} parent=95 // pred_check
          %p789 = pneg %p262
        $region134: #{two_stream_block_pallas.5} parent=95 // pred_check_branch
          %791 = sbr.rel (%p789) target = $region136
        $region135: #{two_stream_block_pallas.5} parent=95 // pred_region
          %792 = dma.done [#allocation18], 1024
        $region136: #{two_stream_block_pallas.5} parent=95 // pred_fallthru
          _
        // Predicated region
        $region137: #{two_stream_block_pallas.5} parent=95 // pred_check
          %p793 = pneg %p283
        $region138: #{two_stream_block_pallas.5} parent=95 // pred_check_branch
          %795 = sbr.rel (%p793) target = $region140
        $region139: #{two_stream_block_pallas.5} parent=95 // pred_region
          %796 = dma.done [#allocation18], 1536
        $region140: #{two_stream_block_pallas.5} parent=95 // pred_fallthru
          _
        // Predicated region
        $region141: #{two_stream_block_pallas.5} parent=95 // pred_check
          %p797 = pneg %p304
        $region142: #{two_stream_block_pallas.5} parent=95 // pred_check_branch
          %799 = sbr.rel (%p797) target = $region144
        $region143: #{two_stream_block_pallas.5} parent=95 // pred_region
          %800 = dma.done [#allocation21], 1024
        $region144: #{two_stream_block_pallas.5} parent=95 // pred_fallthru
          _
        // Predicated region
        $region145: #{two_stream_block_pallas.5} parent=95 // pred_check
          %p801 = pneg %p325
        $region146: #{two_stream_block_pallas.5} parent=95 // pred_check_branch
          %803 = sbr.rel (%p801) target = $region148
        $region147: #{two_stream_block_pallas.5} parent=95 // pred_region
          %804 = dma.done [#allocation21], 16
        $region148: #{two_stream_block_pallas.5} parent=95 // pred_fallthru
          _
        // Predicated region
        $region149: #{two_stream_block_pallas.5} parent=95 // pred_check
          %p805 = pneg %p346
        $region150: #{two_stream_block_pallas.5} parent=95 // pred_check_branch
          %807 = sbr.rel (%p805) target = $region152
        $region151: #{two_stream_block_pallas.5} parent=95 // pred_region
          %808 = dma.done [#allocation24], 16
        $region152: #{two_stream_block_pallas.5} parent=95 // pred_fallthru
          _
        // Predicated region
        $region153: #{two_stream_block_pallas.5} parent=95 // pred_check
          %p809 = pneg %p367
        $region154: #{two_stream_block_pallas.5} parent=95 // pred_check_branch
          %811 = sbr.rel (%p809) target = $region156
        $region155: #{two_stream_block_pallas.5} parent=95 // pred_region
          %812 = dma.done [#allocation24], 16
        $region156: #{two_stream_block_pallas.5} parent=95 // pred_fallthru
          _
        // Predicated region
        $region157: #{two_stream_block_pallas.5} parent=95 // pred_check
          %p813 = pneg %p388
        $region158: #{two_stream_block_pallas.5} parent=95 // pred_check_branch
          %815 = sbr.rel (%p813) target = $region160
        $region159: #{two_stream_block_pallas.5} parent=95 // pred_region
          %816 = dma.done [#allocation27], 2048
        $region160: #{two_stream_block_pallas.5} parent=95 // pred_fallthru
          _
        // Predicated region
        $region161: #{two_stream_block_pallas.5} parent=95 // pred_check
          %p817 = pneg %p409
        $region162: #{two_stream_block_pallas.5} parent=95 // pred_check_branch
          %819 = sbr.rel (%p817) target = $region164
        $region163: #{two_stream_block_pallas.5} parent=95 // pred_region
          %820 = dma.done [#allocation27], 32
        $region164: #{two_stream_block_pallas.5} parent=95 // pred_fallthru
          _
        // Predicated region
        $region165: #{two_stream_block_pallas.5} parent=95 // pred_check
          %p821 = pneg %p430
        $region166: #{two_stream_block_pallas.5} parent=95 // pred_check_branch
          %823 = sbr.rel (%p821) target = $region168
        $region167: #{two_stream_block_pallas.5} parent=95 // pred_region
          %824 = dma.done [#allocation30], 4096
        $region168: #{two_stream_block_pallas.5} parent=95 // pred_fallthru
          _
        // Predicated region
        $region169: #{two_stream_block_pallas.5} parent=95 // pred_check
          %p825 = pneg %p451
        $region170: #{two_stream_block_pallas.5} parent=95 // pred_check_branch
          %827 = sbr.rel (%p825) target = $region172
        $region171: #{two_stream_block_pallas.5} parent=95 // pred_region
          %828 = dma.done [#allocation30], 16
        $region172: #{two_stream_block_pallas.5} parent=95 // pred_fallthru
          _
        %s829 = sand.u32 %s55, 1
        %s830 = scalar_lea.sflag [#allocation3], %s829
        %s831 = sand.u32 %s55, 1
        %s832 = smul.addr %s831, 16
        %s833 = scalar_lea.vmem [#allocation2], %s832
        %p834 = pneg %p68
        %p835 = pneg %p65
        %s836 = sand.u32 %s47, 1
        %s837 = scalar_lea.sflag [#allocation6], %s836
        %s838 = sand.u32 %s81, 1
        %s839 = smul.addr %s838, 8
        %s840 = scalar_lea.vmem [#allocation5], %s839
        %p841 = pneg %p94
        %p842 = pneg %p91
        %p843 = pneg %p115
        %p844 = pneg %p112
        %p845 = pneg %p136
        %p846 = pneg %p133
        %p847 = pneg %p157
        %p848 = pneg %p154
        %p849 = pneg %p178
        %p850 = pneg %p175
        %p851 = pneg %p199
        %p852 = pneg %p196
        %p853 = pneg %p220
        %p854 = pneg %p217
        %p855 = pneg %p241
        %p856 = pneg %p238
        %p857 = pneg %p262
        %p858 = pneg %p259
        %p859 = pneg %p283
        %p860 = pneg %p280
        %p861 = pneg %p304
        %p862 = pneg %p301
        %p863 = pneg %p325
        %p864 = pneg %p322
        %p865 = pneg %p346
        %p866 = pneg %p343
        %p867 = pneg %p367
        %p868 = pneg %p364
        %p869 = pneg %p388
        %p870 = pneg %p385
        %p871 = pneg %p409
        %p872 = pneg %p406
        %p873 = pneg %p430
        %p874 = pneg %p427
        %p875 = pneg %p451
        %p876 = pneg %p448
        %p877 = pneg %p477
        %p878 = pneg %p474
        %s879 = sand.u32 %s464, 1
        %s880 = scalar_lea.sflag [#allocation4], %s879
        %s881 = sand.u32 %s464, 1
        %s882 = smul.addr %s881, 16
        %s883 = scalar_lea.vmem [#allocation32], %s882
        %v884 = vld [vmem:[%s747] sm:$0xff]
        %v885 = vld [vmem:[%s747 + $0x8] sm:$0xff]
        %v886 = vld [vmem:[#allocation7] sm:$0x1]
        %v887 = vld [vmem:[#allocation8] sm:$0x1]
        %vm888 = vcmask 523264
        %v889 = vsel %vm888, %v884, 0.0
        %890 = vadd.xlane.f32.xlu0 %v889
        %v891 = vpop.xlane.xlu0 %890
        %v892 = vsel %vm888, %v885, 0.0
        %893 = vadd.xlane.f32.xlu0 %v892
        %v894 = vpop.xlane.xlu0 %893
        %v895 = vrcp.pop 64.0
        %v896 = vmul.f32 %v891, %v895
        %v897 = vmul.f32 %v894, %v895
        %v898 = vsub.f32 %v884, %v896
        %v899 = vsub.f32 %v885, %v897
        %v900 = vmul.f32 %v898, %v898
        %v901 = vmul.f32 %v899, %v899
        %v902 = vsel %vm888, %v900, 0.0
        %903 = vadd.xlane.f32.xlu0 %v902
        %v904 = vpop.xlane.xlu0 %903
        %v905 = vsel %vm888, %v901, 0.0
        %906 = vadd.xlane.f32.xlu0 %v905
        %v907 = vpop.xlane.xlu0 %906
        %v908 = vmul.f32 %v904, %v895
        %v909 = vmul.f32 %v907, %v895
        %v910 = vadd.f32 %v908, 1e-05
        %v911 = vadd.f32 %v909, 1e-05
        %v912 = vrsqrt.pop %v910
        %v913 = vrsqrt.pop %v911
        %v914 = vmul.f32 %v898, %v912
        %v915 = vmul.f32 %v899, %v913
        %v917 = vlaneseq
        %v918 = vshrl.u32 %v917, 7
        %v919 = vsub.s32 0, %v918
        %v920 = vrot.slane %v886, %v919
        %v922 = vmul.f32 %v914, %v920
        %v923 = vmul.f32 %v915, %v920
        %v925 = vlaneseq
        %v926 = vshrl.u32 %v925, 7
        %v927 = vsub.s32 0, %v926
        %v928 = vrot.slane %v887, %v927
        %v930 = vadd.f32 %v922, %v928
        %v931 = vadd.f32 %v923, %v928
        %v932 = vld [vmem:[#allocation10] sm:$0xff]
        %v933 = vld [vmem:[#allocation10 + $0x8] sm:$0xff]
        %v934 = vld [vmem:[#allocation10 + $0x10] sm:$0xff]
        %v935 = vld [vmem:[#allocation10 + $0x18] sm:$0xff]
        %v936 = vld [vmem:[#allocation10 + $0x20] sm:$0xff]
        %v937 = vld [vmem:[#allocation10 + $0x28] sm:$0xff]
        %v938 = vld [vmem:[#allocation10 + $0x30] sm:$0xff]
        %v939 = vld [vmem:[#allocation10 + $0x38] sm:$0xff]
        %v940 = vld [vmem:[#allocation10 + $0x40] sm:$0xff]
        %v941 = vld [vmem:[#allocation10 + $0x48] sm:$0xff]
        %v942 = vld [vmem:[#allocation10 + $0x50] sm:$0xff]
        %v943 = vld [vmem:[#allocation10 + $0x58] sm:$0xff]
        %v944 = vld [vmem:[#allocation10 + $0x60] sm:$0xff]
        %v945 = vld [vmem:[#allocation10 + $0x68] sm:$0xff]
        %v946 = vld [vmem:[#allocation10 + $0x70] sm:$0xff]
        %v947 = vld [vmem:[#allocation10 + $0x78] sm:$0xff]
        %v949 = vsel %vm888, %v930, 0
        %v952 = vsel %vm888, %v931, 0
        %954 = vmatprep.subr.mxu0 %v933
        %955 = vmatpush1.msra.mxu0 %v932
        %956 = vmatprep.subr.mxu0 %v935
        %957 = vmatpush1.msra.mxu0 %v934
        %958 = vmatprep.subr.mxu0 %v937
        %959 = vmatpush1.msra.mxu0 %v936
        %960 = vmatprep.subr.mxu0 %v939
        %961 = vmatpush1.msra.mxu0 %v938
        %962 = vmatprep.subr.mxu0 %v941
        %963 = vmatpush1.msra.mxu0 %v940
        %964 = vmatprep.subr.mxu0 %v943
        %965 = vmatpush1.msra.mxu0 %v942
        %966 = vmatprep.subr.mxu0 %v945
        %967 = vmatpush1.msra.mxu0 %v944
        %968 = vmatprep.subr.mxu0 %v947
        %969 = vmatpush1.msra.mxu0 %v946
        %970 = vmatprep.subr.mxu0 0.0
        %971 = vmatpush1.msra.mxu0 0.0
        %972 = vmatprep.subr.mxu0 0.0
        %973 = vmatpush1.msra.mxu0 0.0
        %974 = vmatprep.subr.mxu0 0.0
        %975 = vmatpush1.msra.mxu0 0.0
        %976 = vmatprep.subr.mxu0 0.0
        %977 = vmatpush1.msra.mxu0 0.0
        %978 = vmatprep.subr.mxu0 0.0
        %979 = vmatpush1.msra.mxu0 0.0
        %980 = vmatprep.subr.mxu0 0.0
        %981 = vmatpush1.msra.mxu0 0.0
        %982 = vmatprep.subr.mxu0 0.0
        %983 = vmatpush1.msra.mxu0 0.0
        %984 = vmatprep.subr.mxu0 0.0
        %985 = vmatpush1.msra.mxu0 0.0
        %986 = vmatprep.subr.mxu0 0.0
        %987 = vmatpush1.msra.mxu0 0.0
        %988 = vmatprep.subr.mxu0 0.0
        %989 = vmatpush1.msra.mxu0 0.0
        %990 = vmatprep.subr.mxu0 0.0
        %991 = vmatpush1.msra.mxu0 0.0
        %992 = vmatprep.subr.mxu0 0.0
        %993 = vmatpush1.msra.mxu0 0.0
        %994 = vmatprep.subr.mxu0 0.0
        %995 = vmatpush1.msra.mxu0 0.0
        %996 = vmatprep.subr.mxu0 0.0
        %997 = vmatpush1.msra.mxu0 0.0
        %998 = vmatprep.subr.mxu0 0.0
        %999 = vmatpush1.msra.mxu0 0.0
        %1000 = vmatprep.subr.mxu0 0.0
        %1001 = vmatpush1.msra.mxu0 0.0
        %1002 = vmatprep.subr.mxu0 0.0
        %1003 = vmatpush1.msra.mxu0 0.0
        %1004 = vmatprep.subr.mxu0 0.0
        %1005 = vmatpush1.msra.mxu0 0.0
        %1006 = vmatprep.subr.mxu0 0.0
        %1007 = vmatpush1.msra.mxu0 0.0
        %1008 = vmatprep.subr.mxu0 0.0
        %1009 = vmatpush1.msra.mxu0 0.0
        %1010 = vmatprep.subr.mxu0 0.0
        %1011 = vmatpush1.msra.mxu0 0.0
        %1012 = vmatprep.subr.mxu0 0.0
        %1013 = vmatpush1.msra.mxu0 0.0
        %1014 = vmatprep.subr.mxu0 0.0
        %1015 = vmatpush1.msra.mxu0 0.0
        %1016 = vmatprep.subr.mxu0 0.0
        %1017 = vmatpush1.msra.mxu0 0.0
        %1018 = vmatprep.mubr.f32.mxu0 0.0
        %1019 = vmatmul.mubr.f32.gmra.mrb[0].mxu0 %v949
        %v1020 = vpop.f32.mrb[0].mxu0
        %v1021 = vadd.f32 0.0, %v1020
        %v1022 = vpop.f32.mrb[0].mxu0
        %v1023 = vadd.f32 0.0, %v1022
        %1024 = vmatprep.mubr.f32.mxu0 0.0
        %1025 = vmatmul.mubr.f32.gmra.mrb[0].mxu0 %v952
        %v1026 = vpop.f32.mrb[0].mxu0
        %v1027 = vadd.f32 0.0, %v1026
        %v1028 = vpop.f32.mrb[0].mxu0
        %v1029 = vadd.f32 0.0, %v1028
        %1030 = vdwg.mxu0
        %1033 = vrot.lane.b32.xlu0 %v1021, 64
        %v1034 = vpop.permute.xlu0 %1033
        %1035 = vrot.lane.b32.xlu0 %v1027, 64
        %v1036 = vpop.permute.xlu0 %1035
        %vm1037 = vcmask 130048
        %v1038 = vsel %vm1037, %v1021, 0
        %v1040 = vsel %vm1037, %v1027, 0
        %v1042 = vsel %vm1037, %v1034, 0
        %v1044 = vsel %vm1037, %v1036, 0
        %1046 = vmatprep.subr.mxu0 0.0
        %1047 = vmatpush1.xpose.msra.mxu0 %v1042
        %1048 = vmatprep.subr.mxu0 0.0
        %1049 = vmatpush1.xpose.msra.mxu0 %v1044
        %1050 = vmatprep.subr.mxu0 0.0
        %1051 = vmatpush1.xpose.msra.mxu0 0.0
        %1052 = vmatprep.subr.mxu0 0.0
        %1053 = vmatpush1.xpose.msra.mxu0 0.0
        %1054 = vmatprep.subr.mxu0 0.0
        %1055 = vmatpush1.xpose.msra.mxu0 0.0
        %1056 = vmatprep.subr.mxu0 0.0
        %1057 = vmatpush1.xpose.msra.mxu0 0.0
        %1058 = vmatprep.subr.mxu0 0.0
        %1059 = vmatpush1.xpose.msra.mxu0 0.0
        %1060 = vmatprep.subr.mxu0 0.0
        %1061 = vmatpush1.xpose.msra.mxu0 0.0
        %1062 = vmatprep.subr.mxu0 0.0
        %1063 = vmatpush1.xpose.msra.mxu0 0.0
        %1064 = vmatprep.subr.mxu0 0.0
        %1065 = vmatpush1.xpose.msra.mxu0 0.0
        %1066 = vmatprep.subr.mxu0 0.0
        %1067 = vmatpush1.xpose.msra.mxu0 0.0
        %1068 = vmatprep.subr.mxu0 0.0
        %1069 = vmatpush1.xpose.msra.mxu0 0.0
        %1070 = vmatprep.subr.mxu0 0.0
        %1071 = vmatpush1.xpose.msra.mxu0 0.0
        %1072 = vmatprep.subr.mxu0 0.0
        %1073 = vmatpush1.xpose.msra.mxu0 0.0
        %1074 = vmatprep.subr.mxu0 0.0
        %1075 = vmatpush1.xpose.msra.mxu0 0.0
        %1076 = vmatprep.subr.mxu0 0.0
        %1077 = vmatpush1.xpose.msra.mxu0 0.0
        %1078 = vmatprep.subr.mxu0 0.0
        %1079 = vmatpush1.xpose.msra.mxu0 0.0
        %1080 = vmatprep.subr.mxu0 0.0
        %1081 = vmatpush1.xpose.msra.mxu0 0.0
        %1082 = vmatprep.subr.mxu0 0.0
        %1083 = vmatpush1.xpose.msra.mxu0 0.0
        %1084 = vmatprep.subr.mxu0 0.0
        %1085 = vmatpush1.xpose.msra.mxu0 0.0
        %1086 = vmatprep.subr.mxu0 0.0
        %1087 = vmatpush1.xpose.msra.mxu0 0.0
        %1088 = vmatprep.subr.mxu0 0.0
        %1089 = vmatpush1.xpose.msra.mxu0 0.0
        %1090 = vmatprep.subr.mxu0 0.0
        %1091 = vmatpush1.xpose.msra.mxu0 0.0
        %1092 = vmatprep.subr.mxu0 0.0
        %1093 = vmatpush1.xpose.msra.mxu0 0.0
        %1094 = vmatprep.subr.mxu0 0.0
        %1095 = vmatpush1.xpose.msra.mxu0 0.0
        %1096 = vmatprep.subr.mxu0 0.0
        %1097 = vmatpush1.xpose.msra.mxu0 0.0
        %1098 = vmatprep.subr.mxu0 0.0
        %1099 = vmatpush1.xpose.msra.mxu0 0.0
        %1100 = vmatprep.subr.mxu0 0.0
        %1101 = vmatpush1.xpose.msra.mxu0 0.0
        %1102 = vmatprep.subr.mxu0 0.0
        %1103 = vmatpush1.xpose.msra.mxu0 0.0
        %1104 = vmatprep.subr.mxu0 0.0
        %1105 = vmatpush1.xpose.msra.mxu0 0.0
        %1106 = vmatprep.subr.mxu0 0.0
        %1107 = vmatpush1.xpose.msra.mxu0 0.0
        %1108 = vmatprep.subr.mxu0 0.0
        %1109 = vmatpush1.xpose.msra.mxu0 0.0
        %1110 = vmatprep.mubr.f32.mxu0 0.0
        %1111 = vmatmul.mubr.f32.gmra.mrb[0].mxu0 %v1038
        %v1112 = vpop.f32.mrb[0].mxu0
        %v1113 = vadd.f32 0.0, %v1112
        %v1114 = vpop.f32.mrb[0].mxu0
        %1115 = vmatprep.mubr.f32.mxu0 0.0
        %1116 = vmatmul.mubr.f32.gmra.mrb[0].mxu0 %v1040
        %v1117 = vpop.f32.mrb[0].mxu0
        %v1118 = vadd.f32 0.0, %v1117
        %v1119 = vpop.f32.mrb[0].mxu0
        %1120 = vdwg.mxu0
        %v1121 = vsel %vm1037, %v1113, -inf
        %1122 = vmax.xlane.f32.xlu0 %v1121
        %v1123 = vpop.xlane.xlu0 %1122
        %v1124 = vsel %vm1037, %v1118, -inf
        %1125 = vmax.xlane.f32.xlu0 %v1124
        %v1126 = vpop.xlane.xlu0 %1125
        %v1127 = vsub.f32 %v1113, %v1123
        %v1128 = vsub.f32 %v1118, %v1126
        %v1129 = vmul.f32 %v1127, 1.442695
        %v1130 = vpow.pop %v1129
        %v1131 = vmul.f32 %v1128, 1.442695
        %v1132 = vpow.pop %v1131
        %v1133 = vsel %vm1037, %v1130, 0.0
        %1134 = vadd.xlane.f32.xlu0 %v1133
        %v1135 = vpop.xlane.xlu0 %1134
        %v1136 = vsel %vm1037, %v1132, 0.0
        %1137 = vadd.xlane.f32.xlu0 %v1136
        %v1138 = vpop.xlane.xlu0 %1137
        %v1140 = vsel %vm1037, %v1130, 0
        %v1143 = vsel %vm1037, %v1132, 0
        %1145 = vmatprep.subr.mxu0 0.0
        %1146 = vmatpush1.msra.mxu0 %v1023
        %1147 = vmatprep.subr.mxu0 0.0
        %1148 = vmatpush1.msra.mxu0 %v1029
        %1149 = vmatprep.subr.mxu0 0.0
        %1150 = vmatpush1.msra.mxu0 0.0
        %1151 = vmatprep.subr.mxu0 0.0
        %1152 = vmatpush1.msra.mxu0 0.0
        %1153 = vmatprep.subr.mxu0 0.0
        %1154 = vmatpush1.msra.mxu0 0.0
        %1155 = vmatprep.subr.mxu0 0.0
        %1156 = vmatpush1.msra.mxu0 0.0
        %1157 = vmatprep.subr.mxu0 0.0
        %1158 = vmatpush1.msra.mxu0 0.0
        %1159 = vmatprep.subr.mxu0 0.0
        %1160 = vmatpush1.msra.mxu0 0.0
        %1161 = vmatprep.subr.mxu0 0.0
        %1162 = vmatpush1.msra.mxu0 0.0
        %1163 = vmatprep.subr.mxu0 0.0
        %1164 = vmatpush1.msra.mxu0 0.0
        %1165 = vmatprep.subr.mxu0 0.0
        %1166 = vmatpush1.msra.mxu0 0.0
        %1167 = vmatprep.subr.mxu0 0.0
        %1168 = vmatpush1.msra.mxu0 0.0
        %1169 = vmatprep.subr.mxu0 0.0
        %1170 = vmatpush1.msra.mxu0 0.0
        %1171 = vmatprep.subr.mxu0 0.0
        %1172 = vmatpush1.msra.mxu0 0.0
        %1173 = vmatprep.subr.mxu0 0.0
        %1174 = vmatpush1.msra.mxu0 0.0
        %1175 = vmatprep.subr.mxu0 0.0
        %1176 = vmatpush1.msra.mxu0 0.0
        %1177 = vmatprep.subr.mxu0 0.0
        %1178 = vmatpush1.msra.mxu0 0.0
        %1179 = vmatprep.subr.mxu0 0.0
        %1180 = vmatpush1.msra.mxu0 0.0
        %1181 = vmatprep.subr.mxu0 0.0
        %1182 = vmatpush1.msra.mxu0 0.0
        %1183 = vmatprep.subr.mxu0 0.0
        %1184 = vmatpush1.msra.mxu0 0.0
        %1185 = vmatprep.subr.mxu0 0.0
        %1186 = vmatpush1.msra.mxu0 0.0
        %1187 = vmatprep.subr.mxu0 0.0
        %1188 = vmatpush1.msra.mxu0 0.0
        %1189 = vmatprep.subr.mxu0 0.0
        %1190 = vmatpush1.msra.mxu0 0.0
        %1191 = vmatprep.subr.mxu0 0.0
        %1192 = vmatpush1.msra.mxu0 0.0
        %1193 = vmatprep.subr.mxu0 0.0
        %1194 = vmatpush1.msra.mxu0 0.0
        %1195 = vmatprep.subr.mxu0 0.0
        %1196 = vmatpush1.msra.mxu0 0.0
        %1197 = vmatprep.subr.mxu0 0.0
        %1198 = vmatpush1.msra.mxu0 0.0
        %1199 = vmatprep.subr.mxu0 0.0
        %1200 = vmatpush1.msra.mxu0 0.0
        %1201 = vmatprep.subr.mxu0 0.0
        %1202 = vmatpush1.msra.mxu0 0.0
        %1203 = vmatprep.subr.mxu0 0.0
        %1204 = vmatpush1.msra.mxu0 0.0
        %1205 = vmatprep.subr.mxu0 0.0
        %1206 = vmatpush1.msra.mxu0 0.0
        %1207 = vmatprep.subr.mxu0 0.0
        %1208 = vmatpush1.msra.mxu0 0.0
        %1209 = vmatprep.mubr.f32.mxu0 0.0
        %1210 = vmatmul.mubr.f32.gmra.mrb[0].mxu0 %v1140
        %v1211 = vpop.f32.mrb[0].mxu0
        %v1212 = vadd.f32 0.0, %v1211
        %v1213 = vpop.f32.mrb[0].mxu0
        %1214 = vmatprep.mubr.f32.mxu0 0.0
        %1215 = vmatmul.mubr.f32.gmra.mrb[0].mxu0 %v1143
        %v1216 = vpop.f32.mrb[0].mxu0
        %v1217 = vadd.f32 0.0, %v1216
        %v1218 = vpop.f32.mrb[0].mxu0
        %1219 = vdwg.mxu0
        %v1220 = vrcp.pop %v1135
        %v1221 = vmul.f32 %v1212, %v1220
        %v1222 = vrcp.pop %v1138
        %v1223 = vmul.f32 %v1217, %v1222
        %1224 = vrot.lane.b32.xlu0 %v1021, 112
        %v1225 = vpop.permute.xlu0 %1224
        %1226 = vrot.lane.b32.xlu0 %v1027, 112
        %v1227 = vpop.permute.xlu0 %1226
        %1228 = vrot.lane.b32.xlu0 %v1021, 48
        %v1229 = vpop.permute.xlu0 %1228
        %1230 = vrot.lane.b32.xlu0 %v1027, 48
        %v1231 = vpop.permute.xlu0 %1230
        %v1232 = vsel %vm1037, %v1225, 0
        %v1234 = vsel %vm1037, %v1227, 0
        %v1236 = vsel %vm1037, %v1229, 0
        %v1238 = vsel %vm1037, %v1231, 0
        %1240 = vmatprep.subr.mxu0 0.0
        %1241 = vmatpush1.xpose.msra.mxu0 %v1236
        %1242 = vmatprep.subr.mxu0 0.0
        %1243 = vmatpush1.xpose.msra.mxu0 %v1238
        %1244 = vmatprep.subr.mxu0 0.0
        %1245 = vmatpush1.xpose.msra.mxu0 0.0
        %1246 = vmatprep.subr.mxu0 0.0
        %1247 = vmatpush1.xpose.msra.mxu0 0.0
        %1248 = vmatprep.subr.mxu0 0.0
        %1249 = vmatpush1.xpose.msra.mxu0 0.0
        %1250 = vmatprep.subr.mxu0 0.0
        %1251 = vmatpush1.xpose.msra.mxu0 0.0
        %1252 = vmatprep.subr.mxu0 0.0
        %1253 = vmatpush1.xpose.msra.mxu0 0.0
        %1254 = vmatprep.subr.mxu0 0.0
        %1255 = vmatpush1.xpose.msra.mxu0 0.0
        %1256 = vmatprep.subr.mxu0 0.0
        %1257 = vmatpush1.xpose.msra.mxu0 0.0
        %1258 = vmatprep.subr.mxu0 0.0
        %1259 = vmatpush1.xpose.msra.mxu0 0.0
        %1260 = vmatprep.subr.mxu0 0.0
        %1261 = vmatpush1.xpose.msra.mxu0 0.0
        %1262 = vmatprep.subr.mxu0 0.0
        %1263 = vmatpush1.xpose.msra.mxu0 0.0
        %1264 = vmatprep.subr.mxu0 0.0
        %1265 = vmatpush1.xpose.msra.mxu0 0.0
        %1266 = vmatprep.subr.mxu0 0.0
        %1267 = vmatpush1.xpose.msra.mxu0 0.0
        %1268 = vmatprep.subr.mxu0 0.0
        %1269 = vmatpush1.xpose.msra.mxu0 0.0
        %1270 = vmatprep.subr.mxu0 0.0
        %1271 = vmatpush1.xpose.msra.mxu0 0.0
        %1272 = vmatprep.subr.mxu0 0.0
        %1273 = vmatpush1.xpose.msra.mxu0 0.0
        %1274 = vmatprep.subr.mxu0 0.0
        %1275 = vmatpush1.xpose.msra.mxu0 0.0
        %1276 = vmatprep.subr.mxu0 0.0
        %1277 = vmatpush1.xpose.msra.mxu0 0.0
        %1278 = vmatprep.subr.mxu0 0.0
        %1279 = vmatpush1.xpose.msra.mxu0 0.0
        %1280 = vmatprep.subr.mxu0 0.0
        %1281 = vmatpush1.xpose.msra.mxu0 0.0
        %1282 = vmatprep.subr.mxu0 0.0
        %1283 = vmatpush1.xpose.msra.mxu0 0.0
        %1284 = vmatprep.subr.mxu0 0.0
        %1285 = vmatpush1.xpose.msra.mxu0 0.0
        %1286 = vmatprep.subr.mxu0 0.0
        %1287 = vmatpush1.xpose.msra.mxu0 0.0
        %1288 = vmatprep.subr.mxu0 0.0
        %1289 = vmatpush1.xpose.msra.mxu0 0.0
        %1290 = vmatprep.subr.mxu0 0.0
        %1291 = vmatpush1.xpose.msra.mxu0 0.0
        %1292 = vmatprep.subr.mxu0 0.0
        %1293 = vmatpush1.xpose.msra.mxu0 0.0
        %1294 = vmatprep.subr.mxu0 0.0
        %1295 = vmatpush1.xpose.msra.mxu0 0.0
        %1296 = vmatprep.subr.mxu0 0.0
        %1297 = vmatpush1.xpose.msra.mxu0 0.0
        %1298 = vmatprep.subr.mxu0 0.0
        %1299 = vmatpush1.xpose.msra.mxu0 0.0
        %1300 = vmatprep.subr.mxu0 0.0
        %1301 = vmatpush1.xpose.msra.mxu0 0.0
        %1302 = vmatprep.subr.mxu0 0.0
        %1303 = vmatpush1.xpose.msra.mxu0 0.0
        %1304 = vmatprep.mubr.f32.mxu0 0.0
        %1305 = vmatmul.mubr.f32.gmra.mrb[0].mxu0 %v1232
        %v1306 = vpop.f32.mrb[0].mxu0
        %v1307 = vadd.f32 0.0, %v1306
        %v1308 = vpop.f32.mrb[0].mxu0
        %1309 = vmatprep.mubr.f32.mxu0 0.0
        %1310 = vmatmul.mubr.f32.gmra.mrb[0].mxu0 %v1234
        %v1311 = vpop.f32.mrb[0].mxu0
        %v1312 = vadd.f32 0.0, %v1311
        %v1313 = vpop.f32.mrb[0].mxu0
        %1314 = vdwg.mxu0
        %v1315 = vsel %vm1037, %v1307, -inf
        %1316 = vmax.xlane.f32.xlu0 %v1315
        %v1317 = vpop.xlane.xlu0 %1316
        %v1318 = vsel %vm1037, %v1312, -inf
        %1319 = vmax.xlane.f32.xlu0 %v1318
        %v1320 = vpop.xlane.xlu0 %1319
        %v1321 = vsub.f32 %v1307, %v1317
        %v1322 = vsub.f32 %v1312, %v1320
        %v1323 = vmul.f32 %v1321, 1.442695
        %v1324 = vpow.pop %v1323
        %v1325 = vmul.f32 %v1322, 1.442695
        %v1326 = vpow.pop %v1325
        %v1327 = vsel %vm1037, %v1324, 0.0
        %1328 = vadd.xlane.f32.xlu0 %v1327
        %v1329 = vpop.xlane.xlu0 %1328
        %v1330 = vsel %vm1037, %v1326, 0.0
        %1331 = vadd.xlane.f32.xlu0 %v1330
        %v1332 = vpop.xlane.xlu0 %1331
        %1335 = vrot.lane.b32.xlu0 %v1023, 112
        %v1336 = vpop.permute.xlu0 %1335
        %1337 = vrot.lane.b32.xlu0 %v1029, 112
        %v1338 = vpop.permute.xlu0 %1337
        %v1342 = vsel %vm1037, %v1324, 0
        %v1345 = vsel %vm1037, %v1326, 0
        %1347 = vmatprep.subr.mxu0 0.0
        %1348 = vmatpush1.msra.mxu0 %v1336
        %1349 = vmatprep.subr.mxu0 0.0
        %1350 = vmatpush1.msra.mxu0 %v1338
        %1351 = vmatprep.subr.mxu0 0.0
        %1352 = vmatpush1.msra.mxu0 0.0
        %1353 = vmatprep.subr.mxu0 0.0
        %1354 = vmatpush1.msra.mxu0 0.0
        %1355 = vmatprep.subr.mxu0 0.0
        %1356 = vmatpush1.msra.mxu0 0.0
        %1357 = vmatprep.subr.mxu0 0.0
        %1358 = vmatpush1.msra.mxu0 0.0
        %1359 = vmatprep.subr.mxu0 0.0
        %1360 = vmatpush1.msra.mxu0 0.0
        %1361 = vmatprep.subr.mxu0 0.0
        %1362 = vmatpush1.msra.mxu0 0.0
        %1363 = vmatprep.subr.mxu0 0.0
        %1364 = vmatpush1.msra.mxu0 0.0
        %1365 = vmatprep.subr.mxu0 0.0
        %1366 = vmatpush1.msra.mxu0 0.0
        %1367 = vmatprep.subr.mxu0 0.0
        %1368 = vmatpush1.msra.mxu0 0.0
        %1369 = vmatprep.subr.mxu0 0.0
        %1370 = vmatpush1.msra.mxu0 0.0
        %1371 = vmatprep.subr.mxu0 0.0
        %1372 = vmatpush1.msra.mxu0 0.0
        %1373 = vmatprep.subr.mxu0 0.0
        %1374 = vmatpush1.msra.mxu0 0.0
        %1375 = vmatprep.subr.mxu0 0.0
        %1376 = vmatpush1.msra.mxu0 0.0
        %1377 = vmatprep.subr.mxu0 0.0
        %1378 = vmatpush1.msra.mxu0 0.0
        %1379 = vmatprep.subr.mxu0 0.0
        %1380 = vmatpush1.msra.mxu0 0.0
        %1381 = vmatprep.subr.mxu0 0.0
        %1382 = vmatpush1.msra.mxu0 0.0
        %1383 = vmatprep.subr.mxu0 0.0
        %1384 = vmatpush1.msra.mxu0 0.0
        %1385 = vmatprep.subr.mxu0 0.0
        %1386 = vmatpush1.msra.mxu0 0.0
        %1387 = vmatprep.subr.mxu0 0.0
        %1388 = vmatpush1.msra.mxu0 0.0
        %1389 = vmatprep.subr.mxu0 0.0
        %1390 = vmatpush1.msra.mxu0 0.0
        %1391 = vmatprep.subr.mxu0 0.0
        %1392 = vmatpush1.msra.mxu0 0.0
        %1393 = vmatprep.subr.mxu0 0.0
        %1394 = vmatpush1.msra.mxu0 0.0
        %1395 = vmatprep.subr.mxu0 0.0
        %1396 = vmatpush1.msra.mxu0 0.0
        %1397 = vmatprep.subr.mxu0 0.0
        %1398 = vmatpush1.msra.mxu0 0.0
        %1399 = vmatprep.subr.mxu0 0.0
        %1400 = vmatpush1.msra.mxu0 0.0
        %1401 = vmatprep.subr.mxu0 0.0
        %1402 = vmatpush1.msra.mxu0 0.0
        %1403 = vmatprep.subr.mxu0 0.0
        %1404 = vmatpush1.msra.mxu0 0.0
        %1405 = vmatprep.subr.mxu0 0.0
        %1406 = vmatpush1.msra.mxu0 0.0
        %1407 = vmatprep.subr.mxu0 0.0
        %1408 = vmatpush1.msra.mxu0 0.0
        %1409 = vmatprep.subr.mxu0 0.0
        %1410 = vmatpush1.msra.mxu0 0.0
        %1411 = vmatprep.mubr.f32.mxu0 0.0
        %1412 = vmatmul.mubr.f32.gmra.mrb[0].mxu0 %v1342
        %v1413 = vpop.f32.mrb[0].mxu0
        %v1414 = vadd.f32 0.0, %v1413
        %v1415 = vpop.f32.mrb[0].mxu0
        %1416 = vmatprep.mubr.f32.mxu0 0.0
        %1417 = vmatmul.mubr.f32.gmra.mrb[0].mxu0 %v1345
        %v1418 = vpop.f32.mrb[0].mxu0
        %v1419 = vadd.f32 0.0, %v1418
        %v1420 = vpop.f32.mrb[0].mxu0
        %1421 = vdwg.mxu0
        %v1422 = vrcp.pop %v1329
        %v1423 = vmul.f32 %v1414, %v1422
        %v1424 = vrcp.pop %v1332
        %v1425 = vmul.f32 %v1419, %v1424
        %1426 = vrot.lane.b32.xlu0 %v1021, 96
        %v1427 = vpop.permute.xlu0 %1426
        %1428 = vrot.lane.b32.xlu0 %v1027, 96
        %v1429 = vpop.permute.xlu0 %1428
        %1430 = vrot.lane.b32.xlu0 %v1021, 32
        %v1431 = vpop.permute.xlu0 %1430
        %1432 = vrot.lane.b32.xlu0 %v1027, 32
        %v1433 = vpop.permute.xlu0 %1432
        %v1434 = vsel %vm1037, %v1427, 0
        %v1436 = vsel %vm1037, %v1429, 0
        %v1438 = vsel %vm1037, %v1431, 0
        %v1440 = vsel %vm1037, %v1433, 0
        %1442 = vmatprep.subr.mxu0 0.0
        %1443 = vmatpush1.xpose.msra.mxu0 %v1438
        %1444 = vmatprep.subr.mxu0 0.0
        %1445 = vmatpush1.xpose.msra.mxu0 %v1440
        %1446 = vmatprep.subr.mxu0 0.0
        %1447 = vmatpush1.xpose.msra.mxu0 0.0
        %1448 = vmatprep.subr.mxu0 0.0
        %1449 = vmatpush1.xpose.msra.mxu0 0.0
        %1450 = vmatprep.subr.mxu0 0.0
        %1451 = vmatpush1.xpose.msra.mxu0 0.0
        %1452 = vmatprep.subr.mxu0 0.0
        %1453 = vmatpush1.xpose.msra.mxu0 0.0
        %1454 = vmatprep.subr.mxu0 0.0
        %1455 = vmatpush1.xpose.msra.mxu0 0.0
        %1456 = vmatprep.subr.mxu0 0.0
        %1457 = vmatpush1.xpose.msra.mxu0 0.0
        %1458 = vmatprep.subr.mxu0 0.0
        %1459 = vmatpush1.xpose.msra.mxu0 0.0
        %1460 = vmatprep.subr.mxu0 0.0
        %1461 = vmatpush1.xpose.msra.mxu0 0.0
        %1462 = vmatprep.subr.mxu0 0.0
        %1463 = vmatpush1.xpose.msra.mxu0 0.0
        %1464 = vmatprep.subr.mxu0 0.0
        %1465 = vmatpush1.xpose.msra.mxu0 0.0
        %1466 = vmatprep.subr.mxu0 0.0
        %1467 = vmatpush1.xpose.msra.mxu0 0.0
        %1468 = vmatprep.subr.mxu0 0.0
        %1469 = vmatpush1.xpose.msra.mxu0 0.0
        %1470 = vmatprep.subr.mxu0 0.0
        %1471 = vmatpush1.xpose.msra.mxu0 0.0
        %1472 = vmatprep.subr.mxu0 0.0
        %1473 = vmatpush1.xpose.msra.mxu0 0.0
        %1474 = vmatprep.subr.mxu0 0.0
        %1475 = vmatpush1.xpose.msra.mxu0 0.0
        %1476 = vmatprep.subr.mxu0 0.0
        %1477 = vmatpush1.xpose.msra.mxu0 0.0
        %1478 = vmatprep.subr.mxu0 0.0
        %1479 = vmatpush1.xpose.msra.mxu0 0.0
        %1480 = vmatprep.subr.mxu0 0.0
        %1481 = vmatpush1.xpose.msra.mxu0 0.0
        %1482 = vmatprep.subr.mxu0 0.0
        %1483 = vmatpush1.xpose.msra.mxu0 0.0
        %1484 = vmatprep.subr.mxu0 0.0
        %1485 = vmatpush1.xpose.msra.mxu0 0.0
        %1486 = vmatprep.subr.mxu0 0.0
        %1487 = vmatpush1.xpose.msra.mxu0 0.0
        %1488 = vmatprep.subr.mxu0 0.0
        %1489 = vmatpush1.xpose.msra.mxu0 0.0
        %1490 = vmatprep.subr.mxu0 0.0
        %1491 = vmatpush1.xpose.msra.mxu0 0.0
        %1492 = vmatprep.subr.mxu0 0.0
        %1493 = vmatpush1.xpose.msra.mxu0 0.0
        %1494 = vmatprep.subr.mxu0 0.0
        %1495 = vmatpush1.xpose.msra.mxu0 0.0
        %1496 = vmatprep.subr.mxu0 0.0
        %1497 = vmatpush1.xpose.msra.mxu0 0.0
        %1498 = vmatprep.subr.mxu0 0.0
        %1499 = vmatpush1.xpose.msra.mxu0 0.0
        %1500 = vmatprep.subr.mxu0 0.0
        %1501 = vmatpush1.xpose.msra.mxu0 0.0
        %1502 = vmatprep.subr.mxu0 0.0
        %1503 = vmatpush1.xpose.msra.mxu0 0.0
        %1504 = vmatprep.subr.mxu0 0.0
        %1505 = vmatpush1.xpose.msra.mxu0 0.0
        %1506 = vmatprep.mubr.f32.mxu0 0.0
        %1507 = vmatmul.mubr.f32.gmra.mrb[0].mxu0 %v1434
        %v1508 = vpop.f32.mrb[0].mxu0
        %v1509 = vadd.f32 0.0, %v1508
        %v1510 = vpop.f32.mrb[0].mxu0
        %1511 = vmatprep.mubr.f32.mxu0 0.0
        %1512 = vmatmul.mubr.f32.gmra.mrb[0].mxu0 %v1436
        %v1513 = vpop.f32.mrb[0].mxu0
        %v1514 = vadd.f32 0.0, %v1513
        %v1515 = vpop.f32.mrb[0].mxu0
        %1516 = vdwg.mxu0
        %v1517 = vsel %vm1037, %v1509, -inf
        %1518 = vmax.xlane.f32.xlu0 %v1517
        %v1519 = vpop.xlane.xlu0 %1518
        %v1520 = vsel %vm1037, %v1514, -inf
        %1521 = vmax.xlane.f32.xlu0 %v1520
        %v1522 = vpop.xlane.xlu0 %1521
        %v1523 = vsub.f32 %v1509, %v1519
        %v1524 = vsub.f32 %v1514, %v1522
        %v1525 = vmul.f32 %v1523, 1.442695
        %v1526 = vpow.pop %v1525
        %v1527 = vmul.f32 %v1524, 1.442695
        %v1528 = vpow.pop %v1527
        %v1529 = vsel %vm1037, %v1526, 0.0
        %1530 = vadd.xlane.f32.xlu0 %v1529
        %v1531 = vpop.xlane.xlu0 %1530
        %v1532 = vsel %vm1037, %v1528, 0.0
        %1533 = vadd.xlane.f32.xlu0 %v1532
        %v1534 = vpop.xlane.xlu0 %1533
        %1535 = vrot.lane.b32.xlu0 %v1023, 96
        %v1536 = vpop.permute.xlu0 %1535
        %1537 = vrot.lane.b32.xlu0 %v1029, 96
        %v1538 = vpop.permute.xlu0 %1537
        %v1542 = vsel %vm1037, %v1526, 0
        %v1545 = vsel %vm1037, %v1528, 0
        %1547 = vmatprep.subr.mxu0 0.0
        %1548 = vmatpush1.msra.mxu0 %v1536
        %1549 = vmatprep.subr.mxu0 0.0
        %1550 = vmatpush1.msra.mxu0 %v1538
        %1551 = vmatprep.subr.mxu0 0.0
        %1552 = vmatpush1.msra.mxu0 0.0
        %1553 = vmatprep.subr.mxu0 0.0
        %1554 = vmatpush1.msra.mxu0 0.0
        %1555 = vmatprep.subr.mxu0 0.0
        %1556 = vmatpush1.msra.mxu0 0.0
        %1557 = vmatprep.subr.mxu0 0.0
        %1558 = vmatpush1.msra.mxu0 0.0
        %1559 = vmatprep.subr.mxu0 0.0
        %1560 = vmatpush1.msra.mxu0 0.0
        %1561 = vmatprep.subr.mxu0 0.0
        %1562 = vmatpush1.msra.mxu0 0.0
        %1563 = vmatprep.subr.mxu0 0.0
        %1564 = vmatpush1.msra.mxu0 0.0
        %1565 = vmatprep.subr.mxu0 0.0
        %1566 = vmatpush1.msra.mxu0 0.0
        %1567 = vmatprep.subr.mxu0 0.0
        %1568 = vmatpush1.msra.mxu0 0.0
        %1569 = vmatprep.subr.mxu0 0.0
        %1570 = vmatpush1.msra.mxu0 0.0
        %1571 = vmatprep.subr.mxu0 0.0
        %1572 = vmatpush1.msra.mxu0 0.0
        %1573 = vmatprep.subr.mxu0 0.0
        %1574 = vmatpush1.msra.mxu0 0.0
        %1575 = vmatprep.subr.mxu0 0.0
        %1576 = vmatpush1.msra.mxu0 0.0
        %1577 = vmatprep.subr.mxu0 0.0
        %1578 = vmatpush1.msra.mxu0 0.0
        %1579 = vmatprep.subr.mxu0 0.0
        %1580 = vmatpush1.msra.mxu0 0.0
        %1581 = vmatprep.subr.mxu0 0.0
        %1582 = vmatpush1.msra.mxu0 0.0
        %1583 = vmatprep.subr.mxu0 0.0
        %1584 = vmatpush1.msra.mxu0 0.0
        %1585 = vmatprep.subr.mxu0 0.0
        %1586 = vmatpush1.msra.mxu0 0.0
        %1587 = vmatprep.subr.mxu0 0.0
        %1588 = vmatpush1.msra.mxu0 0.0
        %1589 = vmatprep.subr.mxu0 0.0
        %1590 = vmatpush1.msra.mxu0 0.0
        %1591 = vmatprep.subr.mxu0 0.0
        %1592 = vmatpush1.msra.mxu0 0.0
        %1593 = vmatprep.subr.mxu0 0.0
        %1594 = vmatpush1.msra.mxu0 0.0
        %1595 = vmatprep.subr.mxu0 0.0
        %1596 = vmatpush1.msra.mxu0 0.0
        %1597 = vmatprep.subr.mxu0 0.0
        %1598 = vmatpush1.msra.mxu0 0.0
        %1599 = vmatprep.subr.mxu0 0.0
        %1600 = vmatpush1.msra.mxu0 0.0
        %1601 = vmatprep.subr.mxu0 0.0
        %1602 = vmatpush1.msra.mxu0 0.0
        %1603 = vmatprep.subr.mxu0 0.0
        %1604 = vmatpush1.msra.mxu0 0.0
        %1605 = vmatprep.subr.mxu0 0.0
        %1606 = vmatpush1.msra.mxu0 0.0
        %1607 = vmatprep.subr.mxu0 0.0
        %1608 = vmatpush1.msra.mxu0 0.0
        %1609 = vmatprep.subr.mxu0 0.0
        %1610 = vmatpush1.msra.mxu0 0.0
        %1611 = vmatprep.mubr.f32.mxu0 0.0
        %1612 = vmatmul.mubr.f32.gmra.mrb[0].mxu0 %v1542
        %v1613 = vpop.f32.mrb[0].mxu0
        %v1614 = vadd.f32 0.0, %v1613
        %v1615 = vpop.f32.mrb[0].mxu0
        %1616 = vmatprep.mubr.f32.mxu0 0.0
        %1617 = vmatmul.mubr.f32.gmra.mrb[0].mxu0 %v1545
        %v1618 = vpop.f32.mrb[0].mxu0
        %v1619 = vadd.f32 0.0, %v1618
        %v1620 = vpop.f32.mrb[0].mxu0
        %1621 = vdwg.mxu0
        %v1622 = vrcp.pop %v1531
        %v1623 = vmul.f32 %v1614, %v1622
        %v1624 = vrcp.pop %v1534
        %v1625 = vmul.f32 %v1619, %v1624
        %1626 = vrot.lane.b32.xlu0 %v1021, 80
        %v1627 = vpop.permute.xlu0 %1626
        %1628 = vrot.lane.b32.xlu0 %v1027, 80
        %v1629 = vpop.permute.xlu0 %1628
        %1630 = vrot.lane.b32.xlu0 %v1021, 16
        %v1631 = vpop.permute.xlu0 %1630
        %1632 = vrot.lane.b32.xlu0 %v1027, 16
        %v1633 = vpop.permute.xlu0 %1632
        %v1634 = vsel %vm1037, %v1627, 0
        %v1636 = vsel %vm1037, %v1629, 0
        %v1638 = vsel %vm1037, %v1631, 0
        %v1640 = vsel %vm1037, %v1633, 0
        %1642 = vmatprep.subr.mxu0 0.0
        %1643 = vmatpush1.xpose.msra.mxu0 %v1638
        %1644 = vmatprep.subr.mxu0 0.0
        %1645 = vmatpush1.xpose.msra.mxu0 %v1640
        %1646 = vmatprep.subr.mxu0 0.0
        %1647 = vmatpush1.xpose.msra.mxu0 0.0
        %1648 = vmatprep.subr.mxu0 0.0
        %1649 = vmatpush1.xpose.msra.mxu0 0.0
        %1650 = vmatprep.subr.mxu0 0.0
        %1651 = vmatpush1.xpose.msra.mxu0 0.0
        %1652 = vmatprep.subr.mxu0 0.0
        %1653 = vmatpush1.xpose.msra.mxu0 0.0
        %1654 = vmatprep.subr.mxu0 0.0
        %1655 = vmatpush1.xpose.msra.mxu0 0.0
        %1656 = vmatprep.subr.mxu0 0.0
        %1657 = vmatpush1.xpose.msra.mxu0 0.0
        %1658 = vmatprep.subr.mxu0 0.0
        %1659 = vmatpush1.xpose.msra.mxu0 0.0
        %1660 = vmatprep.subr.mxu0 0.0
        %1661 = vmatpush1.xpose.msra.mxu0 0.0
        %1662 = vmatprep.subr.mxu0 0.0
        %1663 = vmatpush1.xpose.msra.mxu0 0.0
        %1664 = vmatprep.subr.mxu0 0.0
        %1665 = vmatpush1.xpose.msra.mxu0 0.0
        %1666 = vmatprep.subr.mxu0 0.0
        %1667 = vmatpush1.xpose.msra.mxu0 0.0
        %1668 = vmatprep.subr.mxu0 0.0
        %1669 = vmatpush1.xpose.msra.mxu0 0.0
        %1670 = vmatprep.subr.mxu0 0.0
        %1671 = vmatpush1.xpose.msra.mxu0 0.0
        %1672 = vmatprep.subr.mxu0 0.0
        %1673 = vmatpush1.xpose.msra.mxu0 0.0
        %1674 = vmatprep.subr.mxu0 0.0
        %1675 = vmatpush1.xpose.msra.mxu0 0.0
        %1676 = vmatprep.subr.mxu0 0.0
        %1677 = vmatpush1.xpose.msra.mxu0 0.0
        %1678 = vmatprep.subr.mxu0 0.0
        %1679 = vmatpush1.xpose.msra.mxu0 0.0
        %1680 = vmatprep.subr.mxu0 0.0
        %1681 = vmatpush1.xpose.msra.mxu0 0.0
        %1682 = vmatprep.subr.mxu0 0.0
        %1683 = vmatpush1.xpose.msra.mxu0 0.0
        %1684 = vmatprep.subr.mxu0 0.0
        %1685 = vmatpush1.xpose.msra.mxu0 0.0
        %1686 = vmatprep.subr.mxu0 0.0
        %1687 = vmatpush1.xpose.msra.mxu0 0.0
        %1688 = vmatprep.subr.mxu0 0.0
        %1689 = vmatpush1.xpose.msra.mxu0 0.0
        %1690 = vmatprep.subr.mxu0 0.0
        %1691 = vmatpush1.xpose.msra.mxu0 0.0
        %1692 = vmatprep.subr.mxu0 0.0
        %1693 = vmatpush1.xpose.msra.mxu0 0.0
        %1694 = vmatprep.subr.mxu0 0.0
        %1695 = vmatpush1.xpose.msra.mxu0 0.0
        %1696 = vmatprep.subr.mxu0 0.0
        %1697 = vmatpush1.xpose.msra.mxu0 0.0
        %1698 = vmatprep.subr.mxu0 0.0
        %1699 = vmatpush1.xpose.msra.mxu0 0.0
        %1700 = vmatprep.subr.mxu0 0.0
        %1701 = vmatpush1.xpose.msra.mxu0 0.0
        %1702 = vmatprep.subr.mxu0 0.0
        %1703 = vmatpush1.xpose.msra.mxu0 0.0
        %1704 = vmatprep.subr.mxu0 0.0
        %1705 = vmatpush1.xpose.msra.mxu0 0.0
        %1706 = vmatprep.mubr.f32.mxu0 0.0
        %1707 = vmatmul.mubr.f32.gmra.mrb[0].mxu0 %v1634
        %v1708 = vpop.f32.mrb[0].mxu0
        %v1709 = vadd.f32 0.0, %v1708
        %v1710 = vpop.f32.mrb[0].mxu0
        %1711 = vmatprep.mubr.f32.mxu0 0.0
        %1712 = vmatmul.mubr.f32.gmra.mrb[0].mxu0 %v1636
        %v1713 = vpop.f32.mrb[0].mxu0
        %v1714 = vadd.f32 0.0, %v1713
        %v1715 = vpop.f32.mrb[0].mxu0
        %1716 = vdwg.mxu0
        %v1717 = vsel %vm1037, %v1709, -inf
        %1718 = vmax.xlane.f32.xlu0 %v1717
        %v1719 = vpop.xlane.xlu0 %1718
        %v1720 = vsel %vm1037, %v1714, -inf
        %1721 = vmax.xlane.f32.xlu0 %v1720
        %v1722 = vpop.xlane.xlu0 %1721
        %v1723 = vsub.f32 %v1709, %v1719
        %v1724 = vsub.f32 %v1714, %v1722
        %v1725 = vmul.f32 %v1723, 1.442695
        %v1726 = vpow.pop %v1725
        %v1727 = vmul.f32 %v1724, 1.442695
        %v1728 = vpow.pop %v1727
        %v1729 = vsel %vm1037, %v1726, 0.0
        %1730 = vadd.xlane.f32.xlu0 %v1729
        %v1731 = vpop.xlane.xlu0 %1730
        %v1732 = vsel %vm1037, %v1728, 0.0
        %1733 = vadd.xlane.f32.xlu0 %v1732
        %v1734 = vpop.xlane.xlu0 %1733
        %1735 = vrot.lane.b32.xlu0 %v1023, 80
        %v1736 = vpop.permute.xlu0 %1735
        %1737 = vrot.lane.b32.xlu0 %v1029, 80
        %v1738 = vpop.permute.xlu0 %1737
        %v1742 = vsel %vm1037, %v1726, 0
        %v1745 = vsel %vm1037, %v1728, 0
        %1747 = vmatprep.subr.mxu0 0.0
        %1748 = vmatpush1.msra.mxu0 %v1736
        %1749 = vmatprep.subr.mxu0 0.0
        %1750 = vmatpush1.msra.mxu0 %v1738
        %1751 = vmatprep.subr.mxu0 0.0
        %1752 = vmatpush1.msra.mxu0 0.0
        %1753 = vmatprep.subr.mxu0 0.0
        %1754 = vmatpush1.msra.mxu0 0.0
        %1755 = vmatprep.subr.mxu0 0.0
        %1756 = vmatpush1.msra.mxu0 0.0
        %1757 = vmatprep.subr.mxu0 0.0
        %1758 = vmatpush1.msra.mxu0 0.0
        %1759 = vmatprep.subr.mxu0 0.0
        %1760 = vmatpush1.msra.mxu0 0.0
        %1761 = vmatprep.subr.mxu0 0.0
        %1762 = vmatpush1.msra.mxu0 0.0
        %1763 = vmatprep.subr.mxu0 0.0
        %1764 = vmatpush1.msra.mxu0 0.0
        %1765 = vmatprep.subr.mxu0 0.0
        %1766 = vmatpush1.msra.mxu0 0.0
        %1767 = vmatprep.subr.mxu0 0.0
        %1768 = vmatpush1.msra.mxu0 0.0
        %1769 = vmatprep.subr.mxu0 0.0
        %1770 = vmatpush1.msra.mxu0 0.0
        %1771 = vmatprep.subr.mxu0 0.0
        %1772 = vmatpush1.msra.mxu0 0.0
        %1773 = vmatprep.subr.mxu0 0.0
        %1774 = vmatpush1.msra.mxu0 0.0
        %1775 = vmatprep.subr.mxu0 0.0
        %1776 = vmatpush1.msra.mxu0 0.0
        %1777 = vmatprep.subr.mxu0 0.0
        %1778 = vmatpush1.msra.mxu0 0.0
        %1779 = vmatprep.subr.mxu0 0.0
        %1780 = vmatpush1.msra.mxu0 0.0
        %1781 = vmatprep.subr.mxu0 0.0
        %1782 = vmatpush1.msra.mxu0 0.0
        %1783 = vmatprep.subr.mxu0 0.0
        %1784 = vmatpush1.msra.mxu0 0.0
        %1785 = vmatprep.subr.mxu0 0.0
        %1786 = vmatpush1.msra.mxu0 0.0
        %1787 = vmatprep.subr.mxu0 0.0
        %1788 = vmatpush1.msra.mxu0 0.0
        %1789 = vmatprep.subr.mxu0 0.0
        %1790 = vmatpush1.msra.mxu0 0.0
        %1791 = vmatprep.subr.mxu0 0.0
        %1792 = vmatpush1.msra.mxu0 0.0
        %1793 = vmatprep.subr.mxu0 0.0
        %1794 = vmatpush1.msra.mxu0 0.0
        %1795 = vmatprep.subr.mxu0 0.0
        %1796 = vmatpush1.msra.mxu0 0.0
        %1797 = vmatprep.subr.mxu0 0.0
        %1798 = vmatpush1.msra.mxu0 0.0
        %1799 = vmatprep.subr.mxu0 0.0
        %1800 = vmatpush1.msra.mxu0 0.0
        %1801 = vmatprep.subr.mxu0 0.0
        %1802 = vmatpush1.msra.mxu0 0.0
        %1803 = vmatprep.subr.mxu0 0.0
        %1804 = vmatpush1.msra.mxu0 0.0
        %1805 = vmatprep.subr.mxu0 0.0
        %1806 = vmatpush1.msra.mxu0 0.0
        %1807 = vmatprep.subr.mxu0 0.0
        %1808 = vmatpush1.msra.mxu0 0.0
        %1809 = vmatprep.subr.mxu0 0.0
        %1810 = vmatpush1.msra.mxu0 0.0
        %1811 = vmatprep.mubr.f32.mxu0 0.0
        %1812 = vmatmul.mubr.f32.gmra.mrb[0].mxu0 %v1742
        %v1813 = vpop.f32.mrb[0].mxu0
        %v1814 = vadd.f32 0.0, %v1813
        %v1815 = vpop.f32.mrb[0].mxu0
        %1816 = vmatprep.mubr.f32.mxu0 0.0
        %1817 = vmatmul.mubr.f32.gmra.mrb[0].mxu0 %v1745
        %v1818 = vpop.f32.mrb[0].mxu0
        %v1819 = vadd.f32 0.0, %v1818
        %v1820 = vpop.f32.mrb[0].mxu0
        %1821 = vdwg.mxu0
        %v1822 = vrcp.pop %v1731
        %v1823 = vmul.f32 %v1814, %v1822
        %v1824 = vrcp.pop %v1734
        %v1825 = vmul.f32 %v1819, %v1824
        %1828 = vrot.lane.b32.xlu0 %v1423, 16
        %v1829 = vpop.permute.xlu0 %1828
        %1830 = vrot.lane.b32.xlu0 %v1425, 16
        %v1831 = vpop.permute.xlu0 %1830
        %1836 = vrot.lane.b32.xlu0 %v1623, 32
        %v1837 = vpop.permute.xlu0 %1836
        %1838 = vrot.lane.b32.xlu0 %v1625, 32
        %v1839 = vpop.permute.xlu0 %1838
        %1844 = vrot.lane.b32.xlu0 %v1823, 48
        %v1845 = vpop.permute.xlu0 %1844
        %1846 = vrot.lane.b32.xlu0 %v1825, 48
        %v1847 = vpop.permute.xlu0 %1846
        %v1850 = vsel %vm1037, %v1221, %v1829
        %v1851 = vsel %vm1037, %v1223, %v1831
        %vm1852 = vcmask 261120
        %v1853 = vsel %vm1852, %v1850, %v1837
        %v1854 = vsel %vm1852, %v1851, %v1839
        %vm1855 = vcmask 392192
        %v1856 = vsel %vm1855, %v1853, %v1845
        %v1857 = vsel %vm1855, %v1854, %v1847
        %v1858 = vld [vmem:[#allocation11] sm:$0xff]
        %v1859 = vld [vmem:[#allocation11 + $0x8] sm:$0xff]
        %v1860 = vld [vmem:[#allocation11 + $0x10] sm:$0xff]
        %v1861 = vld [vmem:[#allocation11 + $0x18] sm:$0xff]
        %v1862 = vld [vmem:[#allocation11 + $0x20] sm:$0xff]
        %v1863 = vld [vmem:[#allocation11 + $0x28] sm:$0xff]
        %v1864 = vld [vmem:[#allocation11 + $0x30] sm:$0xff]
        %v1865 = vld [vmem:[#allocation11 + $0x38] sm:$0xff]
        %v1866 = vld [vmem:[#allocation13] sm:$0x1]
        %v1868 = vlaneseq
        %v1869 = vshrl.u32 %v1868, 7
        %v1870 = vsub.s32 0, %v1869
        %v1871 = vrot.slane %v1866, %v1870
        %v1874 = vsel %vm888, %v1856, 0
        %v1877 = vsel %vm888, %v1857, 0
        %1879 = vmatprep.subr.mxu0 0.0
        %1880 = vmatpush1.msra.mxu0 %v1858
        %1881 = vmatprep.subr.mxu0 0.0
        %1882 = vmatpush1.msra.mxu0 %v1859
        %1883 = vmatprep.subr.mxu0 0.0
        %1884 = vmatpush1.msra.mxu0 %v1860
        %1885 = vmatprep.subr.mxu0 0.0
        %1886 = vmatpush1.msra.mxu0 %v1861
        %1887 = vmatprep.subr.mxu0 0.0
        %1888 = vmatpush1.msra.mxu0 %v1862
        %1889 = vmatprep.subr.mxu0 0.0
        %1890 = vmatpush1.msra.mxu0 %v1863
        %1891 = vmatprep.subr.mxu0 0.0
        %1892 = vmatpush1.msra.mxu0 %v1864
        %1893 = vmatprep.subr.mxu0 0.0
        %1894 = vmatpush1.msra.mxu0 %v1865
        %1895 = vmatprep.subr.mxu0 0.0
        %1896 = vmatpush1.msra.mxu0 0.0
        %1897 = vmatprep.subr.mxu0 0.0
        %1898 = vmatpush1.msra.mxu0 0.0
        %1899 = vmatprep.subr.mxu0 0.0
        %1900 = vmatpush1.msra.mxu0 0.0
        %1901 = vmatprep.subr.mxu0 0.0
        %1902 = vmatpush1.msra.mxu0 0.0
        %1903 = vmatprep.subr.mxu0 0.0
        %1904 = vmatpush1.msra.mxu0 0.0
        %1905 = vmatprep.subr.mxu0 0.0
        %1906 = vmatpush1.msra.mxu0 0.0
        %1907 = vmatprep.subr.mxu0 0.0
        %1908 = vmatpush1.msra.mxu0 0.0
        %1909 = vmatprep.subr.mxu0 0.0
        %1910 = vmatpush1.msra.mxu0 0.0
        %1911 = vmatprep.subr.mxu0 0.0
        %1912 = vmatpush1.msra.mxu0 0.0
        %1913 = vmatprep.subr.mxu0 0.0
        %1914 = vmatpush1.msra.mxu0 0.0
        %1915 = vmatprep.subr.mxu0 0.0
        %1916 = vmatpush1.msra.mxu0 0.0
        %1917 = vmatprep.subr.mxu0 0.0
        %1918 = vmatpush1.msra.mxu0 0.0
        %1919 = vmatprep.subr.mxu0 0.0
        %1920 = vmatpush1.msra.mxu0 0.0
        %1921 = vmatprep.subr.mxu0 0.0
        %1922 = vmatpush1.msra.mxu0 0.0
        %1923 = vmatprep.subr.mxu0 0.0
        %1924 = vmatpush1.msra.mxu0 0.0
        %1925 = vmatprep.subr.mxu0 0.0
        %1926 = vmatpush1.msra.mxu0 0.0
        %1927 = vmatprep.subr.mxu0 0.0
        %1928 = vmatpush1.msra.mxu0 0.0
        %1929 = vmatprep.subr.mxu0 0.0
        %1930 = vmatpush1.msra.mxu0 0.0
        %1931 = vmatprep.subr.mxu0 0.0
        %1932 = vmatpush1.msra.mxu0 0.0
        %1933 = vmatprep.subr.mxu0 0.0
        %1934 = vmatpush1.msra.mxu0 0.0
        %1935 = vmatprep.subr.mxu0 0.0
        %1936 = vmatpush1.msra.mxu0 0.0
        %1937 = vmatprep.subr.mxu0 0.0
        %1938 = vmatpush1.msra.mxu0 0.0
        %1939 = vmatprep.subr.mxu0 0.0
        %1940 = vmatpush1.msra.mxu0 0.0
        %1941 = vmatprep.subr.mxu0 0.0
        %1942 = vmatpush1.msra.mxu0 0.0
        %1943 = vmatprep.mubr.f32.mxu0 0.0
        %1944 = vmatmul.mubr.f32.gmra.mrb[0].mxu0 %v1874
        %v1945 = vpop.f32.mrb[0].mxu0
        %v1946 = vadd.f32 %v1871, %v1945
        %v1947 = vpop.f32.mrb[0].mxu0
        %1948 = vmatprep.mubr.f32.mxu0 0.0
        %1949 = vmatmul.mubr.f32.gmra.mrb[0].mxu0 %v1877
        %v1950 = vpop.f32.mrb[0].mxu0
        %v1951 = vadd.f32 %v1871, %v1950
        %v1952 = vpop.f32.mrb[0].mxu0
        %1953 = vdwg.mxu0
        %v1954 = vadd.f32 %v884, %v1946
        %v1955 = vadd.f32 %v885, %v1951
        %v1956 = vld [vmem:[#allocation14] sm:$0x1]
        %v1957 = vld [vmem:[#allocation16] sm:$0x1]
        %v1958 = vsel %vm888, %v1954, 0.0
        %1959 = vadd.xlane.f32.xlu0 %v1958
        %v1960 = vpop.xlane.xlu0 %1959
        %v1961 = vsel %vm888, %v1955, 0.0
        %1962 = vadd.xlane.f32.xlu0 %v1961
        %v1963 = vpop.xlane.xlu0 %1962
        %v1964 = vmul.f32 %v1960, %v895
        %v1965 = vmul.f32 %v1963, %v895
        %v1966 = vsub.f32 %v1954, %v1964
        %v1967 = vsub.f32 %v1955, %v1965
        %v1968 = vmul.f32 %v1966, %v1966
        %v1969 = vmul.f32 %v1967, %v1967
        %v1970 = vsel %vm888, %v1968, 0.0
        %1971 = vadd.xlane.f32.xlu0 %v1970
        %v1972 = vpop.xlane.xlu0 %1971
        %v1973 = vsel %vm888, %v1969, 0.0
        %1974 = vadd.xlane.f32.xlu0 %v1973
        %v1975 = vpop.xlane.xlu0 %1974
        %v1976 = vmul.f32 %v1972, %v895
        %v1977 = vmul.f32 %v1975, %v895
        %v1978 = vadd.f32 %v1976, 1e-05
        %v1979 = vadd.f32 %v1977, 1e-05
        %v1980 = vrsqrt.pop %v1978
        %v1981 = vrsqrt.pop %v1979
        %v1982 = vmul.f32 %v1966, %v1980
        %v1983 = vmul.f32 %v1967, %v1981
        %v1985 = vlaneseq
        %v1986 = vshrl.u32 %v1985, 7
        %v1987 = vsub.s32 0, %v1986
        %v1988 = vrot.slane %v1956, %v1987
        %v1990 = vmul.f32 %v1982, %v1988
        %v1991 = vmul.f32 %v1983, %v1988
        %v1993 = vlaneseq
        %v1994 = vshrl.u32 %v1993, 7
        %v1995 = vsub.s32 0, %v1994
        %v1996 = vrot.slane %v1957, %v1995
        %v1998 = vadd.f32 %v1990, %v1996
        %v1999 = vadd.f32 %v1991, %v1996
        %v2000 = vld [vmem:[%s756] sm:$0xff]
        %v2001 = vld [vmem:[#allocation17] sm:$0xff]
        %v2002 = vld [vmem:[#allocation17 + $0x8] sm:$0xff]
        %v2003 = vld [vmem:[#allocation17 + $0x10] sm:$0xff]
        %v2004 = vld [vmem:[#allocation17 + $0x18] sm:$0xff]
        %v2005 = vld [vmem:[#allocation17 + $0x20] sm:$0xff]
        %v2006 = vld [vmem:[#allocation17 + $0x28] sm:$0xff]
        %v2007 = vld [vmem:[#allocation17 + $0x30] sm:$0xff]
        %v2008 = vld [vmem:[#allocation17 + $0x38] sm:$0xff]
        %v2010 = vsel %vm888, %v1998, 0
        %v2013 = vsel %vm888, %v1999, 0
        %2015 = vmatprep.subr.mxu0 0.0
        %2016 = vmatpush1.msra.mxu0 %v2001
        %2017 = vmatprep.subr.mxu0 0.0
        %2018 = vmatpush1.msra.mxu0 %v2002
        %2019 = vmatprep.subr.mxu0 0.0
        %2020 = vmatpush1.msra.mxu0 %v2003
        %2021 = vmatprep.subr.mxu0 0.0
        %2022 = vmatpush1.msra.mxu0 %v2004
        %2023 = vmatprep.subr.mxu0 0.0
        %2024 = vmatpush1.msra.mxu0 %v2005
        %2025 = vmatprep.subr.mxu0 0.0
        %2026 = vmatpush1.msra.mxu0 %v2006
        %2027 = vmatprep.subr.mxu0 0.0
        %2028 = vmatpush1.msra.mxu0 %v2007
        %2029 = vmatprep.subr.mxu0 0.0
        %2030 = vmatpush1.msra.mxu0 %v2008
        %2031 = vmatprep.subr.mxu0 0.0
        %2032 = vmatpush1.msra.mxu0 0.0
        %2033 = vmatprep.subr.mxu0 0.0
        %2034 = vmatpush1.msra.mxu0 0.0
        %2035 = vmatprep.subr.mxu0 0.0
        %2036 = vmatpush1.msra.mxu0 0.0
        %2037 = vmatprep.subr.mxu0 0.0
        %2038 = vmatpush1.msra.mxu0 0.0
        %2039 = vmatprep.subr.mxu0 0.0
        %2040 = vmatpush1.msra.mxu0 0.0
        %2041 = vmatprep.subr.mxu0 0.0
        %2042 = vmatpush1.msra.mxu0 0.0
        %2043 = vmatprep.subr.mxu0 0.0
        %2044 = vmatpush1.msra.mxu0 0.0
        %2045 = vmatprep.subr.mxu0 0.0
        %2046 = vmatpush1.msra.mxu0 0.0
        %2047 = vmatprep.subr.mxu0 0.0
        %2048 = vmatpush1.msra.mxu0 0.0
        %2049 = vmatprep.subr.mxu0 0.0
        %2050 = vmatpush1.msra.mxu0 0.0
        %2051 = vmatprep.subr.mxu0 0.0
        %2052 = vmatpush1.msra.mxu0 0.0
        %2053 = vmatprep.subr.mxu0 0.0
        %2054 = vmatpush1.msra.mxu0 0.0
        %2055 = vmatprep.subr.mxu0 0.0
        %2056 = vmatpush1.msra.mxu0 0.0
        %2057 = vmatprep.subr.mxu0 0.0
        %2058 = vmatpush1.msra.mxu0 0.0
        %2059 = vmatprep.subr.mxu0 0.0
        %2060 = vmatpush1.msra.mxu0 0.0
        %2061 = vmatprep.subr.mxu0 0.0
        %2062 = vmatpush1.msra.mxu0 0.0
        %2063 = vmatprep.subr.mxu0 0.0
        %2064 = vmatpush1.msra.mxu0 0.0
        %2065 = vmatprep.subr.mxu0 0.0
        %2066 = vmatpush1.msra.mxu0 0.0
        %2067 = vmatprep.subr.mxu0 0.0
        %2068 = vmatpush1.msra.mxu0 0.0
        %2069 = vmatprep.subr.mxu0 0.0
        %2070 = vmatpush1.msra.mxu0 0.0
        %2071 = vmatprep.subr.mxu0 0.0
        %2072 = vmatpush1.msra.mxu0 0.0
        %2073 = vmatprep.subr.mxu0 0.0
        %2074 = vmatpush1.msra.mxu0 0.0
        %2075 = vmatprep.subr.mxu0 0.0
        %2076 = vmatpush1.msra.mxu0 0.0
        %2077 = vmatprep.subr.mxu0 0.0
        %2078 = vmatpush1.msra.mxu0 0.0
        %2079 = vmatprep.mubr.f32.mxu0 0.0
        %2080 = vmatmul.mubr.f32.gmra.mrb[0].mxu0 %v2010
        %v2081 = vpop.f32.mrb[0].mxu0
        %v2082 = vadd.f32 0.0, %v2081
        %v2083 = vpop.f32.mrb[0].mxu0
        %2084 = vmatprep.mubr.f32.mxu0 0.0
        %2085 = vmatmul.mubr.f32.gmra.mrb[0].mxu0 %v2013
        %v2086 = vpop.f32.mrb[0].mxu0
        %v2087 = vadd.f32 0.0, %v2086
        %v2088 = vpop.f32.mrb[0].mxu0
        %2089 = vdwg.mxu0
        %v2090 = vld [vmem:[#allocation19] sm:$0xff]
        %v2091 = vld [vmem:[#allocation19 + $0x8] sm:$0xff]
        %v2092 = vld [vmem:[#allocation19 + $0x10] sm:$0xff]
        %v2093 = vld [vmem:[#allocation19 + $0x18] sm:$0xff]
        %v2094 = vld [vmem:[#allocation19 + $0x20] sm:$0xff]
        %v2095 = vld [vmem:[#allocation19 + $0x28] sm:$0xff]
        %v2096 = vld [vmem:[#allocation19 + $0x30] sm:$0xff]
        %v2097 = vld [vmem:[#allocation19 + $0x38] sm:$0xff]
        %v2098 = vld [vmem:[#allocation19 + $0x40] sm:$0xff]
        %v2099 = vld [vmem:[#allocation19 + $0x48] sm:$0xff]
        %v2100 = vld [vmem:[#allocation19 + $0x50] sm:$0xff]
        %v2101 = vld [vmem:[#allocation19 + $0x58] sm:$0xff]
        %vm2102 = vcmask 785408
        %v2104 = vsel %vm2102, %v2000, 0
        %2106 = vmatprep.subr.mxu0 0.0
        %2107 = vmatpush1.msra.mxu0 %v2090
        %2108 = vmatprep.subr.mxu0 0.0
        %2109 = vmatpush1.msra.mxu0 %v2091
        %2110 = vmatprep.subr.mxu0 0.0
        %2111 = vmatpush1.msra.mxu0 %v2092
        %2112 = vmatprep.subr.mxu0 0.0
        %2113 = vmatpush1.msra.mxu0 %v2093
        %2114 = vmatprep.subr.mxu0 0.0
        %2115 = vmatpush1.msra.mxu0 %v2094
        %2116 = vmatprep.subr.mxu0 0.0
        %2117 = vmatpush1.msra.mxu0 %v2095
        %2118 = vmatprep.subr.mxu0 0.0
        %2119 = vmatpush1.msra.mxu0 %v2096
        %2120 = vmatprep.subr.mxu0 0.0
        %2121 = vmatpush1.msra.mxu0 %v2097
        %2122 = vmatprep.subr.mxu0 0.0
        %2123 = vmatpush1.msra.mxu0 %v2098
        %2124 = vmatprep.subr.mxu0 0.0
        %2125 = vmatpush1.msra.mxu0 %v2099
        %2126 = vmatprep.subr.mxu0 0.0
        %2127 = vmatpush1.msra.mxu0 %v2100
        %2128 = vmatprep.subr.mxu0 0.0
        %2129 = vmatpush1.msra.mxu0 %v2101
        %2130 = vmatprep.subr.mxu0 0.0
        %2131 = vmatpush1.msra.mxu0 0.0
        %2132 = vmatprep.subr.mxu0 0.0
        %2133 = vmatpush1.msra.mxu0 0.0
        %2134 = vmatprep.subr.mxu0 0.0
        %2135 = vmatpush1.msra.mxu0 0.0
        %2136 = vmatprep.subr.mxu0 0.0
        %2137 = vmatpush1.msra.mxu0 0.0
        %2138 = vmatprep.subr.mxu0 0.0
        %2139 = vmatpush1.msra.mxu0 0.0
        %2140 = vmatprep.subr.mxu0 0.0
        %2141 = vmatpush1.msra.mxu0 0.0
        %2142 = vmatprep.subr.mxu0 0.0
        %2143 = vmatpush1.msra.mxu0 0.0
        %2144 = vmatprep.subr.mxu0 0.0
        %2145 = vmatpush1.msra.mxu0 0.0
        %2146 = vmatprep.subr.mxu0 0.0
        %2147 = vmatpush1.msra.mxu0 0.0
        %2148 = vmatprep.subr.mxu0 0.0
        %2149 = vmatpush1.msra.mxu0 0.0
        %2150 = vmatprep.subr.mxu0 0.0
        %2151 = vmatpush1.msra.mxu0 0.0
        %2152 = vmatprep.subr.mxu0 0.0
        %2153 = vmatpush1.msra.mxu0 0.0
        %2154 = vmatprep.subr.mxu0 0.0
        %2155 = vmatpush1.msra.mxu0 0.0
        %2156 = vmatprep.subr.mxu0 0.0
        %2157 = vmatpush1.msra.mxu0 0.0
        %2158 = vmatprep.subr.mxu0 0.0
        %2159 = vmatpush1.msra.mxu0 0.0
        %2160 = vmatprep.subr.mxu0 0.0
        %2161 = vmatpush1.msra.mxu0 0.0
        %2162 = vmatprep.subr.mxu0 0.0
        %2163 = vmatpush1.msra.mxu0 0.0
        %2164 = vmatprep.subr.mxu0 0.0
        %2165 = vmatpush1.msra.mxu0 0.0
        %2166 = vmatprep.subr.mxu0 0.0
        %2167 = vmatpush1.msra.mxu0 0.0
        %2168 = vmatprep.subr.mxu0 0.0
        %2169 = vmatpush1.msra.mxu0 0.0
        %2170 = vmatprep.mubr.f32.mxu0 0.0
        %2171 = vmatmul.mubr.f32.gmra.mrb[0].mxu0 %v2104
        %v2172 = vpop.f32.mrb[0].mxu0
        %v2173 = vadd.f32 0.0, %v2172
        %v2174 = vpop.f32.mrb[0].mxu0
        %2175 = vdwg.mxu0
        %v2177 = vsel %vm1037, %v2082, 0
        %v2180 = vsel %vm1037, %v2087, 0
        %v2183 = vsel %vm1037, %v2173, 0
        %2185 = vmatprep.subr.mxu0 0.0
        %2186 = vmatpush1.xpose.msra.mxu0 %v2183
        %2187 = vmatprep.subr.mxu0 0.0
        %2188 = vmatpush1.xpose.msra.mxu0 0.0
        %2189 = vmatprep.subr.mxu0 0.0
        %2190 = vmatpush1.xpose.msra.mxu0 0.0
        %2191 = vmatprep.subr.mxu0 0.0
        %2192 = vmatpush1.xpose.msra.mxu0 0.0
        %2193 = vmatprep.subr.mxu0 0.0
        %2194 = vmatpush1.xpose.msra.mxu0 0.0
        %2195 = vmatprep.subr.mxu0 0.0
        %2196 = vmatpush1.xpose.msra.mxu0 0.0
        %2197 = vmatprep.subr.mxu0 0.0
        %2198 = vmatpush1.xpose.msra.mxu0 0.0
        %2199 = vmatprep.subr.mxu0 0.0
        %2200 = vmatpush1.xpose.msra.mxu0 0.0
        %2201 = vmatprep.subr.mxu0 0.0
        %2202 = vmatpush1.xpose.msra.mxu0 0.0
        %2203 = vmatprep.subr.mxu0 0.0
        %2204 = vmatpush1.xpose.msra.mxu0 0.0
        %2205 = vmatprep.subr.mxu0 0.0
        %2206 = vmatpush1.xpose.msra.mxu0 0.0
        %2207 = vmatprep.subr.mxu0 0.0
        %2208 = vmatpush1.xpose.msra.mxu0 0.0
        %2209 = vmatprep.subr.mxu0 0.0
        %2210 = vmatpush1.xpose.msra.mxu0 0.0
        %2211 = vmatprep.subr.mxu0 0.0
        %2212 = vmatpush1.xpose.msra.mxu0 0.0
        %2213 = vmatprep.subr.mxu0 0.0
        %2214 = vmatpush1.xpose.msra.mxu0 0.0
        %2215 = vmatprep.subr.mxu0 0.0
        %2216 = vmatpush1.xpose.msra.mxu0 0.0
        %2217 = vmatprep.subr.mxu0 0.0
        %2218 = vmatpush1.xpose.msra.mxu0 0.0
        %2219 = vmatprep.subr.mxu0 0.0
        %2220 = vmatpush1.xpose.msra.mxu0 0.0
        %2221 = vmatprep.subr.mxu0 0.0
        %2222 = vmatpush1.xpose.msra.mxu0 0.0
        %2223 = vmatprep.subr.mxu0 0.0
        %2224 = vmatpush1.xpose.msra.mxu0 0.0
        %2225 = vmatprep.subr.mxu0 0.0
        %2226 = vmatpush1.xpose.msra.mxu0 0.0
        %2227 = vmatprep.subr.mxu0 0.0
        %2228 = vmatpush1.xpose.msra.mxu0 0.0
        %2229 = vmatprep.subr.mxu0 0.0
        %2230 = vmatpush1.xpose.msra.mxu0 0.0
        %2231 = vmatprep.subr.mxu0 0.0
        %2232 = vmatpush1.xpose.msra.mxu0 0.0
        %2233 = vmatprep.subr.mxu0 0.0
        %2234 = vmatpush1.xpose.msra.mxu0 0.0
        %2235 = vmatprep.subr.mxu0 0.0
        %2236 = vmatpush1.xpose.msra.mxu0 0.0
        %2237 = vmatprep.subr.mxu0 0.0
        %2238 = vmatpush1.xpose.msra.mxu0 0.0
        %2239 = vmatprep.subr.mxu0 0.0
        %2240 = vmatpush1.xpose.msra.mxu0 0.0
        %2241 = vmatprep.subr.mxu0 0.0
        %2242 = vmatpush1.xpose.msra.mxu0 0.0
        %2243 = vmatprep.subr.mxu0 0.0
        %2244 = vmatpush1.xpose.msra.mxu0 0.0
        %2245 = vmatprep.subr.mxu0 0.0
        %2246 = vmatpush1.xpose.msra.mxu0 0.0
        %2247 = vmatprep.subr.mxu0 0.0
        %2248 = vmatpush1.xpose.msra.mxu0 0.0
        %2249 = vmatprep.mubr.f32.mxu0 0.0
        %2250 = vmatmul.mubr.f32.gmra.mrb[0].mxu0 %v2177
        %v2251 = vpop.f32.mrb[0].mxu0
        %v2252 = vadd.f32 0.0, %v2251
        %v2253 = vpop.f32.mrb[0].mxu0
        %2254 = vmatprep.mubr.f32.mxu0 0.0
        %2255 = vmatmul.mubr.f32.gmra.mrb[0].mxu0 %v2180
        %v2256 = vpop.f32.mrb[0].mxu0
        %v2257 = vadd.f32 0.0, %v2256
        %v2258 = vpop.f32.mrb[0].mxu0
        %2259 = vdwg.mxu0
        %vm2260 = vcmask 64512
        %v2261 = vsel %vm2260, %v2252, -inf
        %2262 = vmax.xlane.f32.xlu0 %v2261
        %v2263 = vpop.xlane.xlu0 %2262
        %v2264 = vsel %vm2260, %v2257, -inf
        %2265 = vmax.xlane.f32.xlu0 %v2264
        %v2266 = vpop.xlane.xlu0 %2265
        %v2267 = vsub.f32 %v2252, %v2263
        %v2268 = vsub.f32 %v2257, %v2266
        %v2269 = vmul.f32 %v2267, 1.442695
        %v2270 = vpow.pop %v2269
        %v2271 = vmul.f32 %v2268, 1.442695
        %v2272 = vpow.pop %v2271
        %v2273 = vsel %vm2260, %v2270, 0.0
        %2274 = vadd.xlane.f32.xlu0 %v2273
        %v2275 = vpop.xlane.xlu0 %2274
        %v2276 = vsel %vm2260, %v2272, 0.0
        %2277 = vadd.xlane.f32.xlu0 %v2276
        %v2278 = vpop.xlane.xlu0 %2277
        %2279 = vrot.lane.b32.xlu0 %v2173, 64
        %v2280 = vpop.permute.xlu0 %2279
        %v2283 = vsel %vm2260, %v2270, 0
        %v2286 = vsel %vm2260, %v2272, 0
        %2288 = vmatprep.subr.mxu0 0.0
        %2289 = vmatpush1.msra.mxu0 %v2280
        %2290 = vmatprep.subr.mxu0 0.0
        %2291 = vmatpush1.msra.mxu0 0.0
        %2292 = vmatprep.subr.mxu0 0.0
        %2293 = vmatpush1.msra.mxu0 0.0
        %2294 = vmatprep.subr.mxu0 0.0
        %2295 = vmatpush1.msra.mxu0 0.0
        %2296 = vmatprep.subr.mxu0 0.0
        %2297 = vmatpush1.msra.mxu0 0.0
        %2298 = vmatprep.subr.mxu0 0.0
        %2299 = vmatpush1.msra.mxu0 0.0
        %2300 = vmatprep.subr.mxu0 0.0
        %2301 = vmatpush1.msra.mxu0 0.0
        %2302 = vmatprep.subr.mxu0 0.0
        %2303 = vmatpush1.msra.mxu0 0.0
        %2304 = vmatprep.subr.mxu0 0.0
        %2305 = vmatpush1.msra.mxu0 0.0
        %2306 = vmatprep.subr.mxu0 0.0
        %2307 = vmatpush1.msra.mxu0 0.0
        %2308 = vmatprep.subr.mxu0 0.0
        %2309 = vmatpush1.msra.mxu0 0.0
        %2310 = vmatprep.subr.mxu0 0.0
        %2311 = vmatpush1.msra.mxu0 0.0
        %2312 = vmatprep.subr.mxu0 0.0
        %2313 = vmatpush1.msra.mxu0 0.0
        %2314 = vmatprep.subr.mxu0 0.0
        %2315 = vmatpush1.msra.mxu0 0.0
        %2316 = vmatprep.subr.mxu0 0.0
        %2317 = vmatpush1.msra.mxu0 0.0
        %2318 = vmatprep.subr.mxu0 0.0
        %2319 = vmatpush1.msra.mxu0 0.0
        %2320 = vmatprep.subr.mxu0 0.0
        %2321 = vmatpush1.msra.mxu0 0.0
        %2322 = vmatprep.subr.mxu0 0.0
        %2323 = vmatpush1.msra.mxu0 0.0
        %2324 = vmatprep.subr.mxu0 0.0
        %2325 = vmatpush1.msra.mxu0 0.0
        %2326 = vmatprep.subr.mxu0 0.0
        %2327 = vmatpush1.msra.mxu0 0.0
        %2328 = vmatprep.subr.mxu0 0.0
        %2329 = vmatpush1.msra.mxu0 0.0
        %2330 = vmatprep.subr.mxu0 0.0
        %2331 = vmatpush1.msra.mxu0 0.0
        %2332 = vmatprep.subr.mxu0 0.0
        %2333 = vmatpush1.msra.mxu0 0.0
        %2334 = vmatprep.subr.mxu0 0.0
        %2335 = vmatpush1.msra.mxu0 0.0
        %2336 = vmatprep.subr.mxu0 0.0
        %2337 = vmatpush1.msra.mxu0 0.0
        %2338 = vmatprep.subr.mxu0 0.0
        %2339 = vmatpush1.msra.mxu0 0.0
        %2340 = vmatprep.subr.mxu0 0.0
        %2341 = vmatpush1.msra.mxu0 0.0
        %2342 = vmatprep.subr.mxu0 0.0
        %2343 = vmatpush1.msra.mxu0 0.0
        %2344 = vmatprep.subr.mxu0 0.0
        %2345 = vmatpush1.msra.mxu0 0.0
        %2346 = vmatprep.subr.mxu0 0.0
        %2347 = vmatpush1.msra.mxu0 0.0
        %2348 = vmatprep.subr.mxu0 0.0
        %2349 = vmatpush1.msra.mxu0 0.0
        %2350 = vmatprep.subr.mxu0 0.0
        %2351 = vmatpush1.msra.mxu0 0.0
        %2352 = vmatprep.mubr.f32.mxu0 0.0
        %2353 = vmatmul.mubr.f32.gmra.mrb[0].mxu0 %v2283
        %v2354 = vpop.f32.mrb[0].mxu0
        %v2355 = vadd.f32 0.0, %v2354
        %v2356 = vpop.f32.mrb[0].mxu0
        %2357 = vmatprep.mubr.f32.mxu0 0.0
        %2358 = vmatmul.mubr.f32.gmra.mrb[0].mxu0 %v2286
        %v2359 = vpop.f32.mrb[0].mxu0
        %v2360 = vadd.f32 0.0, %v2359
        %v2361 = vpop.f32.mrb[0].mxu0
        %2362 = vdwg.mxu0
        %v2363 = vrcp.pop %v2275
        %v2364 = vmul.f32 %v2355, %v2363
        %v2365 = vrcp.pop %v2278
        %v2366 = vmul.f32 %v2360, %v2365
        %2367 = vrot.lane.b32.xlu0 %v2082, 112
        %v2368 = vpop.permute.xlu0 %2367
        %2369 = vrot.lane.b32.xlu0 %v2087, 112
        %v2370 = vpop.permute.xlu0 %2369
        %2371 = vrot.lane.b32.xlu0 %v2173, 112
        %v2372 = vpop.permute.xlu0 %2371
        %v2373 = vsel %vm1037, %v2368, 0
        %v2375 = vsel %vm1037, %v2370, 0
        %v2377 = vsel %vm1037, %v2372, 0
        %2379 = vmatprep.subr.mxu0 0.0
        %2380 = vmatpush1.xpose.msra.mxu0 %v2377
        %2381 = vmatprep.subr.mxu0 0.0
        %2382 = vmatpush1.xpose.msra.mxu0 0.0
        %2383 = vmatprep.subr.mxu0 0.0
        %2384 = vmatpush1.xpose.msra.mxu0 0.0
        %2385 = vmatprep.subr.mxu0 0.0
        %2386 = vmatpush1.xpose.msra.mxu0 0.0
        %2387 = vmatprep.subr.mxu0 0.0
        %2388 = vmatpush1.xpose.msra.mxu0 0.0
        %2389 = vmatprep.subr.mxu0 0.0
        %2390 = vmatpush1.xpose.msra.mxu0 0.0
        %2391 = vmatprep.subr.mxu0 0.0
        %2392 = vmatpush1.xpose.msra.mxu0 0.0
        %2393 = vmatprep.subr.mxu0 0.0
        %2394 = vmatpush1.xpose.msra.mxu0 0.0
        %2395 = vmatprep.subr.mxu0 0.0
        %2396 = vmatpush1.xpose.msra.mxu0 0.0
        %2397 = vmatprep.subr.mxu0 0.0
        %2398 = vmatpush1.xpose.msra.mxu0 0.0
        %2399 = vmatprep.subr.mxu0 0.0
        %2400 = vmatpush1.xpose.msra.mxu0 0.0
        %2401 = vmatprep.subr.mxu0 0.0
        %2402 = vmatpush1.xpose.msra.mxu0 0.0
        %2403 = vmatprep.subr.mxu0 0.0
        %2404 = vmatpush1.xpose.msra.mxu0 0.0
        %2405 = vmatprep.subr.mxu0 0.0
        %2406 = vmatpush1.xpose.msra.mxu0 0.0
        %2407 = vmatprep.subr.mxu0 0.0
        %2408 = vmatpush1.xpose.msra.mxu0 0.0
        %2409 = vmatprep.subr.mxu0 0.0
        %2410 = vmatpush1.xpose.msra.mxu0 0.0
        %2411 = vmatprep.subr.mxu0 0.0
        %2412 = vmatpush1.xpose.msra.mxu0 0.0
        %2413 = vmatprep.subr.mxu0 0.0
        %2414 = vmatpush1.xpose.msra.mxu0 0.0
        %2415 = vmatprep.subr.mxu0 0.0
        %2416 = vmatpush1.xpose.msra.mxu0 0.0
        %2417 = vmatprep.subr.mxu0 0.0
        %2418 = vmatpush1.xpose.msra.mxu0 0.0
        %2419 = vmatprep.subr.mxu0 0.0
        %2420 = vmatpush1.xpose.msra.mxu0 0.0
        %2421 = vmatprep.subr.mxu0 0.0
        %2422 = vmatpush1.xpose.msra.mxu0 0.0
        %2423 = vmatprep.subr.mxu0 0.0
        %2424 = vmatpush1.xpose.msra.mxu0 0.0
        %2425 = vmatprep.subr.mxu0 0.0
        %2426 = vmatpush1.xpose.msra.mxu0 0.0
        %2427 = vmatprep.subr.mxu0 0.0
        %2428 = vmatpush1.xpose.msra.mxu0 0.0
        %2429 = vmatprep.subr.mxu0 0.0
        %2430 = vmatpush1.xpose.msra.mxu0 0.0
        %2431 = vmatprep.subr.mxu0 0.0
        %2432 = vmatpush1.xpose.msra.mxu0 0.0
        %2433 = vmatprep.subr.mxu0 0.0
        %2434 = vmatpush1.xpose.msra.mxu0 0.0
        %2435 = vmatprep.subr.mxu0 0.0
        %2436 = vmatpush1.xpose.msra.mxu0 0.0
        %2437 = vmatprep.subr.mxu0 0.0
        %2438 = vmatpush1.xpose.msra.mxu0 0.0
        %2439 = vmatprep.subr.mxu0 0.0
        %2440 = vmatpush1.xpose.msra.mxu0 0.0
        %2441 = vmatprep.subr.mxu0 0.0
        %2442 = vmatpush1.xpose.msra.mxu0 0.0
        %2443 = vmatprep.mubr.f32.mxu0 0.0
        %2444 = vmatmul.mubr.f32.gmra.mrb[0].mxu0 %v2373
        %v2445 = vpop.f32.mrb[0].mxu0
        %v2446 = vadd.f32 0.0, %v2445
        %v2447 = vpop.f32.mrb[0].mxu0
        %2448 = vmatprep.mubr.f32.mxu0 0.0
        %2449 = vmatmul.mubr.f32.gmra.mrb[0].mxu0 %v2375
        %v2450 = vpop.f32.mrb[0].mxu0
        %v2451 = vadd.f32 0.0, %v2450
        %v2452 = vpop.f32.mrb[0].mxu0
        %2453 = vdwg.mxu0
        %v2454 = vsel %vm2260, %v2446, -inf
        %2455 = vmax.xlane.f32.xlu0 %v2454
        %v2456 = vpop.xlane.xlu0 %2455
        %v2457 = vsel %vm2260, %v2451, -inf
        %2458 = vmax.xlane.f32.xlu0 %v2457
        %v2459 = vpop.xlane.xlu0 %2458
        %v2460 = vsub.f32 %v2446, %v2456
        %v2461 = vsub.f32 %v2451, %v2459
        %v2462 = vmul.f32 %v2460, 1.442695
        %v2463 = vpow.pop %v2462
        %v2464 = vmul.f32 %v2461, 1.442695
        %v2465 = vpow.pop %v2464
        %v2466 = vsel %vm2260, %v2463, 0.0
        %2467 = vadd.xlane.f32.xlu0 %v2466
        %v2468 = vpop.xlane.xlu0 %2467
        %v2469 = vsel %vm2260, %v2465, 0.0
        %2470 = vadd.xlane.f32.xlu0 %v2469
        %v2471 = vpop.xlane.xlu0 %2470
        %2472 = vrot.lane.b32.xlu0 %v2173, 48
        %v2473 = vpop.permute.xlu0 %2472
        %v2476 = vsel %vm2260, %v2463, 0
        %v2479 = vsel %vm2260, %v2465, 0
        %2481 = vmatprep.subr.mxu0 0.0
        %2482 = vmatpush1.msra.mxu0 %v2473
        %2483 = vmatprep.subr.mxu0 0.0
        %2484 = vmatpush1.msra.mxu0 0.0
        %2485 = vmatprep.subr.mxu0 0.0
        %2486 = vmatpush1.msra.mxu0 0.0
        %2487 = vmatprep.subr.mxu0 0.0
        %2488 = vmatpush1.msra.mxu0 0.0
        %2489 = vmatprep.subr.mxu0 0.0
        %2490 = vmatpush1.msra.mxu0 0.0
        %2491 = vmatprep.subr.mxu0 0.0
        %2492 = vmatpush1.msra.mxu0 0.0
        %2493 = vmatprep.subr.mxu0 0.0
        %2494 = vmatpush1.msra.mxu0 0.0
        %2495 = vmatprep.subr.mxu0 0.0
        %2496 = vmatpush1.msra.mxu0 0.0
        %2497 = vmatprep.subr.mxu0 0.0
        %2498 = vmatpush1.msra.mxu0 0.0
        %2499 = vmatprep.subr.mxu0 0.0
        %2500 = vmatpush1.msra.mxu0 0.0
        %2501 = vmatprep.subr.mxu0 0.0
        %2502 = vmatpush1.msra.mxu0 0.0
        %2503 = vmatprep.subr.mxu0 0.0
        %2504 = vmatpush1.msra.mxu0 0.0
        %2505 = vmatprep.subr.mxu0 0.0
        %2506 = vmatpush1.msra.mxu0 0.0
        %2507 = vmatprep.subr.mxu0 0.0
        %2508 = vmatpush1.msra.mxu0 0.0
        %2509 = vmatprep.subr.mxu0 0.0
        %2510 = vmatpush1.msra.mxu0 0.0
        %2511 = vmatprep.subr.mxu0 0.0
        %2512 = vmatpush1.msra.mxu0 0.0
        %2513 = vmatprep.subr.mxu0 0.0
        %2514 = vmatpush1.msra.mxu0 0.0
        %2515 = vmatprep.subr.mxu0 0.0
        %2516 = vmatpush1.msra.mxu0 0.0
        %2517 = vmatprep.subr.mxu0 0.0
        %2518 = vmatpush1.msra.mxu0 0.0
        %2519 = vmatprep.subr.mxu0 0.0
        %2520 = vmatpush1.msra.mxu0 0.0
        %2521 = vmatprep.subr.mxu0 0.0
        %2522 = vmatpush1.msra.mxu0 0.0
        %2523 = vmatprep.subr.mxu0 0.0
        %2524 = vmatpush1.msra.mxu0 0.0
        %2525 = vmatprep.subr.mxu0 0.0
        %2526 = vmatpush1.msra.mxu0 0.0
        %2527 = vmatprep.subr.mxu0 0.0
        %2528 = vmatpush1.msra.mxu0 0.0
        %2529 = vmatprep.subr.mxu0 0.0
        %2530 = vmatpush1.msra.mxu0 0.0
        %2531 = vmatprep.subr.mxu0 0.0
        %2532 = vmatpush1.msra.mxu0 0.0
        %2533 = vmatprep.subr.mxu0 0.0
        %2534 = vmatpush1.msra.mxu0 0.0
        %2535 = vmatprep.subr.mxu0 0.0
        %2536 = vmatpush1.msra.mxu0 0.0
        %2537 = vmatprep.subr.mxu0 0.0
        %2538 = vmatpush1.msra.mxu0 0.0
        %2539 = vmatprep.subr.mxu0 0.0
        %2540 = vmatpush1.msra.mxu0 0.0
        %2541 = vmatprep.subr.mxu0 0.0
        %2542 = vmatpush1.msra.mxu0 0.0
        %2543 = vmatprep.subr.mxu0 0.0
        %2544 = vmatpush1.msra.mxu0 0.0
        %2545 = vmatprep.mubr.f32.mxu0 0.0
        %2546 = vmatmul.mubr.f32.gmra.mrb[0].mxu0 %v2476
        %v2547 = vpop.f32.mrb[0].mxu0
        %v2548 = vadd.f32 0.0, %v2547
        %v2549 = vpop.f32.mrb[0].mxu0
        %2550 = vmatprep.mubr.f32.mxu0 0.0
        %2551 = vmatmul.mubr.f32.gmra.mrb[0].mxu0 %v2479
        %v2552 = vpop.f32.mrb[0].mxu0
        %v2553 = vadd.f32 0.0, %v2552
        %v2554 = vpop.f32.mrb[0].mxu0
        %2555 = vdwg.mxu0
        %v2556 = vrcp.pop %v2468
        %v2557 = vmul.f32 %v2548, %v2556
        %v2558 = vrcp.pop %v2471
        %v2559 = vmul.f32 %v2553, %v2558
        %2560 = vrot.lane.b32.xlu0 %v2082, 96
        %v2561 = vpop.permute.xlu0 %2560
        %2562 = vrot.lane.b32.xlu0 %v2087, 96
        %v2563 = vpop.permute.xlu0 %2562
        %2564 = vrot.lane.b32.xlu0 %v2173, 96
        %v2565 = vpop.permute.xlu0 %2564
        %v2566 = vsel %vm1037, %v2561, 0
        %v2568 = vsel %vm1037, %v2563, 0
        %v2570 = vsel %vm1037, %v2565, 0
        %2572 = vmatprep.subr.mxu0 0.0
        %2573 = vmatpush1.xpose.msra.mxu0 %v2570
        %2574 = vmatprep.subr.mxu0 0.0
        %2575 = vmatpush1.xpose.msra.mxu0 0.0
        %2576 = vmatprep.subr.mxu0 0.0
        %2577 = vmatpush1.xpose.msra.mxu0 0.0
        %2578 = vmatprep.subr.mxu0 0.0
        %2579 = vmatpush1.xpose.msra.mxu0 0.0
        %2580 = vmatprep.subr.mxu0 0.0
        %2581 = vmatpush1.xpose.msra.mxu0 0.0
        %2582 = vmatprep.subr.mxu0 0.0
        %2583 = vmatpush1.xpose.msra.mxu0 0.0
        %2584 = vmatprep.subr.mxu0 0.0
        %2585 = vmatpush1.xpose.msra.mxu0 0.0
        %2586 = vmatprep.subr.mxu0 0.0
        %2587 = vmatpush1.xpose.msra.mxu0 0.0
        %2588 = vmatprep.subr.mxu0 0.0
        %2589 = vmatpush1.xpose.msra.mxu0 0.0
        %2590 = vmatprep.subr.mxu0 0.0
        %2591 = vmatpush1.xpose.msra.mxu0 0.0
        %2592 = vmatprep.subr.mxu0 0.0
        %2593 = vmatpush1.xpose.msra.mxu0 0.0
        %2594 = vmatprep.subr.mxu0 0.0
        %2595 = vmatpush1.xpose.msra.mxu0 0.0
        %2596 = vmatprep.subr.mxu0 0.0
        %2597 = vmatpush1.xpose.msra.mxu0 0.0
        %2598 = vmatprep.subr.mxu0 0.0
        %2599 = vmatpush1.xpose.msra.mxu0 0.0
        %2600 = vmatprep.subr.mxu0 0.0
        %2601 = vmatpush1.xpose.msra.mxu0 0.0
        %2602 = vmatprep.subr.mxu0 0.0
        %2603 = vmatpush1.xpose.msra.mxu0 0.0
        %2604 = vmatprep.subr.mxu0 0.0
        %2605 = vmatpush1.xpose.msra.mxu0 0.0
        %2606 = vmatprep.subr.mxu0 0.0
        %2607 = vmatpush1.xpose.msra.mxu0 0.0
        %2608 = vmatprep.subr.mxu0 0.0
        %2609 = vmatpush1.xpose.msra.mxu0 0.0
        %2610 = vmatprep.subr.mxu0 0.0
        %2611 = vmatpush1.xpose.msra.mxu0 0.0
        %2612 = vmatprep.subr.mxu0 0.0
        %2613 = vmatpush1.xpose.msra.mxu0 0.0
        %2614 = vmatprep.subr.mxu0 0.0
        %2615 = vmatpush1.xpose.msra.mxu0 0.0
        %2616 = vmatprep.subr.mxu0 0.0
        %2617 = vmatpush1.xpose.msra.mxu0 0.0
        %2618 = vmatprep.subr.mxu0 0.0
        %2619 = vmatpush1.xpose.msra.mxu0 0.0
        %2620 = vmatprep.subr.mxu0 0.0
        %2621 = vmatpush1.xpose.msra.mxu0 0.0
        %2622 = vmatprep.subr.mxu0 0.0
        %2623 = vmatpush1.xpose.msra.mxu0 0.0
        %2624 = vmatprep.subr.mxu0 0.0
        %2625 = vmatpush1.xpose.msra.mxu0 0.0
        %2626 = vmatprep.subr.mxu0 0.0
        %2627 = vmatpush1.xpose.msra.mxu0 0.0
        %2628 = vmatprep.subr.mxu0 0.0
        %2629 = vmatpush1.xpose.msra.mxu0 0.0
        %2630 = vmatprep.subr.mxu0 0.0
        %2631 = vmatpush1.xpose.msra.mxu0 0.0
        %2632 = vmatprep.subr.mxu0 0.0
        %2633 = vmatpush1.xpose.msra.mxu0 0.0
        %2634 = vmatprep.subr.mxu0 0.0
        %2635 = vmatpush1.xpose.msra.mxu0 0.0
        %2636 = vmatprep.mubr.f32.mxu0 0.0
        %2637 = vmatmul.mubr.f32.gmra.mrb[0].mxu0 %v2566
        %v2638 = vpop.f32.mrb[0].mxu0
        %v2639 = vadd.f32 0.0, %v2638
        %v2640 = vpop.f32.mrb[0].mxu0
        %2641 = vmatprep.mubr.f32.mxu0 0.0
        %2642 = vmatmul.mubr.f32.gmra.mrb[0].mxu0 %v2568
        %v2643 = vpop.f32.mrb[0].mxu0
        %v2644 = vadd.f32 0.0, %v2643
        %v2645 = vpop.f32.mrb[0].mxu0
        %2646 = vdwg.mxu0
        %v2647 = vsel %vm2260, %v2639, -inf
        %2648 = vmax.xlane.f32.xlu0 %v2647
        %v2649 = vpop.xlane.xlu0 %2648
        %v2650 = vsel %vm2260, %v2644, -inf
        %2651 = vmax.xlane.f32.xlu0 %v2650
        %v2652 = vpop.xlane.xlu0 %2651
        %v2653 = vsub.f32 %v2639, %v2649
        %v2654 = vsub.f32 %v2644, %v2652
        %v2655 = vmul.f32 %v2653, 1.442695
        %v2656 = vpow.pop %v2655
        %v2657 = vmul.f32 %v2654, 1.442695
        %v2658 = vpow.pop %v2657
        %v2659 = vsel %vm2260, %v2656, 0.0
        %2660 = vadd.xlane.f32.xlu0 %v2659
        %v2661 = vpop.xlane.xlu0 %2660
        %v2662 = vsel %vm2260, %v2658, 0.0
        %2663 = vadd.xlane.f32.xlu0 %v2662
        %v2664 = vpop.xlane.xlu0 %2663
        %2665 = vrot.lane.b32.xlu0 %v2173, 32
        %v2666 = vpop.permute.xlu0 %2665
        %v2669 = vsel %vm2260, %v2656, 0
        %v2672 = vsel %vm2260, %v2658, 0
        %2674 = vmatprep.subr.mxu0 0.0
        %2675 = vmatpush1.msra.mxu0 %v2666
        %2676 = vmatprep.subr.mxu0 0.0
        %2677 = vmatpush1.msra.mxu0 0.0
        %2678 = vmatprep.subr.mxu0 0.0
        %2679 = vmatpush1.msra.mxu0 0.0
        %2680 = vmatprep.subr.mxu0 0.0
        %2681 = vmatpush1.msra.mxu0 0.0
        %2682 = vmatprep.subr.mxu0 0.0
        %2683 = vmatpush1.msra.mxu0 0.0
        %2684 = vmatprep.subr.mxu0 0.0
        %2685 = vmatpush1.msra.mxu0 0.0
        %2686 = vmatprep.subr.mxu0 0.0
        %2687 = vmatpush1.msra.mxu0 0.0
        %2688 = vmatprep.subr.mxu0 0.0
        %2689 = vmatpush1.msra.mxu0 0.0
        %2690 = vmatprep.subr.mxu0 0.0
        %2691 = vmatpush1.msra.mxu0 0.0
        %2692 = vmatprep.subr.mxu0 0.0
        %2693 = vmatpush1.msra.mxu0 0.0
        %2694 = vmatprep.subr.mxu0 0.0
        %2695 = vmatpush1.msra.mxu0 0.0
        %2696 = vmatprep.subr.mxu0 0.0
        %2697 = vmatpush1.msra.mxu0 0.0
        %2698 = vmatprep.subr.mxu0 0.0
        %2699 = vmatpush1.msra.mxu0 0.0
        %2700 = vmatprep.subr.mxu0 0.0
        %2701 = vmatpush1.msra.mxu0 0.0
        %2702 = vmatprep.subr.mxu0 0.0
        %2703 = vmatpush1.msra.mxu0 0.0
        %2704 = vmatprep.subr.mxu0 0.0
        %2705 = vmatpush1.msra.mxu0 0.0
        %2706 = vmatprep.subr.mxu0 0.0
        %2707 = vmatpush1.msra.mxu0 0.0
        %2708 = vmatprep.subr.mxu0 0.0
        %2709 = vmatpush1.msra.mxu0 0.0
        %2710 = vmatprep.subr.mxu0 0.0
        %2711 = vmatpush1.msra.mxu0 0.0
        %2712 = vmatprep.subr.mxu0 0.0
        %2713 = vmatpush1.msra.mxu0 0.0
        %2714 = vmatprep.subr.mxu0 0.0
        %2715 = vmatpush1.msra.mxu0 0.0
        %2716 = vmatprep.subr.mxu0 0.0
        %2717 = vmatpush1.msra.mxu0 0.0
        %2718 = vmatprep.subr.mxu0 0.0
        %2719 = vmatpush1.msra.mxu0 0.0
        %2720 = vmatprep.subr.mxu0 0.0
        %2721 = vmatpush1.msra.mxu0 0.0
        %2722 = vmatprep.subr.mxu0 0.0
        %2723 = vmatpush1.msra.mxu0 0.0
        %2724 = vmatprep.subr.mxu0 0.0
        %2725 = vmatpush1.msra.mxu0 0.0
        %2726 = vmatprep.subr.mxu0 0.0
        %2727 = vmatpush1.msra.mxu0 0.0
        %2728 = vmatprep.subr.mxu0 0.0
        %2729 = vmatpush1.msra.mxu0 0.0
        %2730 = vmatprep.subr.mxu0 0.0
        %2731 = vmatpush1.msra.mxu0 0.0
        %2732 = vmatprep.subr.mxu0 0.0
        %2733 = vmatpush1.msra.mxu0 0.0
        %2734 = vmatprep.subr.mxu0 0.0
        %2735 = vmatpush1.msra.mxu0 0.0
        %2736 = vmatprep.subr.mxu0 0.0
        %2737 = vmatpush1.msra.mxu0 0.0
        %2738 = vmatprep.mubr.f32.mxu0 0.0
        %2739 = vmatmul.mubr.f32.gmra.mrb[0].mxu0 %v2669
        %v2740 = vpop.f32.mrb[0].mxu0
        %v2741 = vadd.f32 0.0, %v2740
        %v2742 = vpop.f32.mrb[0].mxu0
        %2743 = vmatprep.mubr.f32.mxu0 0.0
        %2744 = vmatmul.mubr.f32.gmra.mrb[0].mxu0 %v2672
        %v2745 = vpop.f32.mrb[0].mxu0
        %v2746 = vadd.f32 0.0, %v2745
        %v2747 = vpop.f32.mrb[0].mxu0
        %2748 = vdwg.mxu0
        %v2749 = vrcp.pop %v2661
        %v2750 = vmul.f32 %v2741, %v2749
        %v2751 = vrcp.pop %v2664
        %v2752 = vmul.f32 %v2746, %v2751
        %2753 = vrot.lane.b32.xlu0 %v2082, 80
        %v2754 = vpop.permute.xlu0 %2753
        %2755 = vrot.lane.b32.xlu0 %v2087, 80
        %v2756 = vpop.permute.xlu0 %2755
        %2757 = vrot.lane.b32.xlu0 %v2173, 80
        %v2758 = vpop.permute.xlu0 %2757
        %v2759 = vsel %vm1037, %v2754, 0
        %v2761 = vsel %vm1037, %v2756, 0
        %v2763 = vsel %vm1037, %v2758, 0
        %2765 = vmatprep.subr.mxu0 0.0
        %2766 = vmatpush1.xpose.msra.mxu0 %v2763
        %2767 = vmatprep.subr.mxu0 0.0
        %2768 = vmatpush1.xpose.msra.mxu0 0.0
        %2769 = vmatprep.subr.mxu0 0.0
        %2770 = vmatpush1.xpose.msra.mxu0 0.0
        %2771 = vmatprep.subr.mxu0 0.0
        %2772 = vmatpush1.xpose.msra.mxu0 0.0
        %2773 = vmatprep.subr.mxu0 0.0
        %2774 = vmatpush1.xpose.msra.mxu0 0.0
        %2775 = vmatprep.subr.mxu0 0.0
        %2776 = vmatpush1.xpose.msra.mxu0 0.0
        %2777 = vmatprep.subr.mxu0 0.0
        %2778 = vmatpush1.xpose.msra.mxu0 0.0
        %2779 = vmatprep.subr.mxu0 0.0
        %2780 = vmatpush1.xpose.msra.mxu0 0.0
        %2781 = vmatprep.subr.mxu0 0.0
        %2782 = vmatpush1.xpose.msra.mxu0 0.0
        %2783 = vmatprep.subr.mxu0 0.0
        %2784 = vmatpush1.xpose.msra.mxu0 0.0
        %2785 = vmatprep.subr.mxu0 0.0
        %2786 = vmatpush1.xpose.msra.mxu0 0.0
        %2787 = vmatprep.subr.mxu0 0.0
        %2788 = vmatpush1.xpose.msra.mxu0 0.0
        %2789 = vmatprep.subr.mxu0 0.0
        %2790 = vmatpush1.xpose.msra.mxu0 0.0
        %2791 = vmatprep.subr.mxu0 0.0
        %2792 = vmatpush1.xpose.msra.mxu0 0.0
        %2793 = vmatprep.subr.mxu0 0.0
        %2794 = vmatpush1.xpose.msra.mxu0 0.0
        %2795 = vmatprep.subr.mxu0 0.0
        %2796 = vmatpush1.xpose.msra.mxu0 0.0
        %2797 = vmatprep.subr.mxu0 0.0
        %2798 = vmatpush1.xpose.msra.mxu0 0.0
        %2799 = vmatprep.subr.mxu0 0.0
        %2800 = vmatpush1.xpose.msra.mxu0 0.0
        %2801 = vmatprep.subr.mxu0 0.0
        %2802 = vmatpush1.xpose.msra.mxu0 0.0
        %2803 = vmatprep.subr.mxu0 0.0
        %2804 = vmatpush1.xpose.msra.mxu0 0.0
        %2805 = vmatprep.subr.mxu0 0.0
        %2806 = vmatpush1.xpose.msra.mxu0 0.0
        %2807 = vmatprep.subr.mxu0 0.0
        %2808 = vmatpush1.xpose.msra.mxu0 0.0
        %2809 = vmatprep.subr.mxu0 0.0
        %2810 = vmatpush1.xpose.msra.mxu0 0.0
        %2811 = vmatprep.subr.mxu0 0.0
        %2812 = vmatpush1.xpose.msra.mxu0 0.0
        %2813 = vmatprep.subr.mxu0 0.0
        %2814 = vmatpush1.xpose.msra.mxu0 0.0
        %2815 = vmatprep.subr.mxu0 0.0
        %2816 = vmatpush1.xpose.msra.mxu0 0.0
        %2817 = vmatprep.subr.mxu0 0.0
        %2818 = vmatpush1.xpose.msra.mxu0 0.0
        %2819 = vmatprep.subr.mxu0 0.0
        %2820 = vmatpush1.xpose.msra.mxu0 0.0
        %2821 = vmatprep.subr.mxu0 0.0
        %2822 = vmatpush1.xpose.msra.mxu0 0.0
        %2823 = vmatprep.subr.mxu0 0.0
        %2824 = vmatpush1.xpose.msra.mxu0 0.0
        %2825 = vmatprep.subr.mxu0 0.0
        %2826 = vmatpush1.xpose.msra.mxu0 0.0
        %2827 = vmatprep.subr.mxu0 0.0
        %2828 = vmatpush1.xpose.msra.mxu0 0.0
        %2829 = vmatprep.mubr.f32.mxu0 0.0
        %2830 = vmatmul.mubr.f32.gmra.mrb[0].mxu0 %v2759
        %v2831 = vpop.f32.mrb[0].mxu0
        %v2832 = vadd.f32 0.0, %v2831
        %v2833 = vpop.f32.mrb[0].mxu0
        %2834 = vmatprep.mubr.f32.mxu0 0.0
        %2835 = vmatmul.mubr.f32.gmra.mrb[0].mxu0 %v2761
        %v2836 = vpop.f32.mrb[0].mxu0
        %v2837 = vadd.f32 0.0, %v2836
        %v2838 = vpop.f32.mrb[0].mxu0
        %2839 = vdwg.mxu0
        %v2840 = vsel %vm2260, %v2832, -inf
        %2841 = vmax.xlane.f32.xlu0 %v2840
        %v2842 = vpop.xlane.xlu0 %2841
        %v2843 = vsel %vm2260, %v2837, -inf
        %2844 = vmax.xlane.f32.xlu0 %v2843
        %v2845 = vpop.xlane.xlu0 %2844
        %v2846 = vsub.f32 %v2832, %v2842
        %v2847 = vsub.f32 %v2837, %v2845
        %v2848 = vmul.f32 %v2846, 1.442695
        %v2849 = vpow.pop %v2848
        %v2850 = vmul.f32 %v2847, 1.442695
        %v2851 = vpow.pop %v2850
        %v2852 = vsel %vm2260, %v2849, 0.0
        %2853 = vadd.xlane.f32.xlu0 %v2852
        %v2854 = vpop.xlane.xlu0 %2853
        %v2855 = vsel %vm2260, %v2851, 0.0
        %2856 = vadd.xlane.f32.xlu0 %v2855
        %v2857 = vpop.xlane.xlu0 %2856
        %2858 = vrot.lane.b32.xlu0 %v2173, 16
        %v2859 = vpop.permute.xlu0 %2858
        %v2862 = vsel %vm2260, %v2849, 0
        %v2865 = vsel %vm2260, %v2851, 0
        %2867 = vmatprep.subr.mxu0 0.0
        %2868 = vmatpush1.msra.mxu0 %v2859
        %2869 = vmatprep.subr.mxu0 0.0
        %2870 = vmatpush1.msra.mxu0 0.0
        %2871 = vmatprep.subr.mxu0 0.0
        %2872 = vmatpush1.msra.mxu0 0.0
        %2873 = vmatprep.subr.mxu0 0.0
        %2874 = vmatpush1.msra.mxu0 0.0
        %2875 = vmatprep.subr.mxu0 0.0
        %2876 = vmatpush1.msra.mxu0 0.0
        %2877 = vmatprep.subr.mxu0 0.0
        %2878 = vmatpush1.msra.mxu0 0.0
        %2879 = vmatprep.subr.mxu0 0.0
        %2880 = vmatpush1.msra.mxu0 0.0
        %2881 = vmatprep.subr.mxu0 0.0
        %2882 = vmatpush1.msra.mxu0 0.0
        %2883 = vmatprep.subr.mxu0 0.0
        %2884 = vmatpush1.msra.mxu0 0.0
        %2885 = vmatprep.subr.mxu0 0.0
        %2886 = vmatpush1.msra.mxu0 0.0
        %2887 = vmatprep.subr.mxu0 0.0
        %2888 = vmatpush1.msra.mxu0 0.0
        %2889 = vmatprep.subr.mxu0 0.0
        %2890 = vmatpush1.msra.mxu0 0.0
        %2891 = vmatprep.subr.mxu0 0.0
        %2892 = vmatpush1.msra.mxu0 0.0
        %2893 = vmatprep.subr.mxu0 0.0
        %2894 = vmatpush1.msra.mxu0 0.0
        %2895 = vmatprep.subr.mxu0 0.0
        %2896 = vmatpush1.msra.mxu0 0.0
        %2897 = vmatprep.subr.mxu0 0.0
        %2898 = vmatpush1.msra.mxu0 0.0
        %2899 = vmatprep.subr.mxu0 0.0
        %2900 = vmatpush1.msra.mxu0 0.0
        %2901 = vmatprep.subr.mxu0 0.0
        %2902 = vmatpush1.msra.mxu0 0.0
        %2903 = vmatprep.subr.mxu0 0.0
        %2904 = vmatpush1.msra.mxu0 0.0
        %2905 = vmatprep.subr.mxu0 0.0
        %2906 = vmatpush1.msra.mxu0 0.0
        %2907 = vmatprep.subr.mxu0 0.0
        %2908 = vmatpush1.msra.mxu0 0.0
        %2909 = vmatprep.subr.mxu0 0.0
        %2910 = vmatpush1.msra.mxu0 0.0
        %2911 = vmatprep.subr.mxu0 0.0
        %2912 = vmatpush1.msra.mxu0 0.0
        %2913 = vmatprep.subr.mxu0 0.0
        %2914 = vmatpush1.msra.mxu0 0.0
        %2915 = vmatprep.subr.mxu0 0.0
        %2916 = vmatpush1.msra.mxu0 0.0
        %2917 = vmatprep.subr.mxu0 0.0
        %2918 = vmatpush1.msra.mxu0 0.0
        %2919 = vmatprep.subr.mxu0 0.0
        %2920 = vmatpush1.msra.mxu0 0.0
        %2921 = vmatprep.subr.mxu0 0.0
        %2922 = vmatpush1.msra.mxu0 0.0
        %2923 = vmatprep.subr.mxu0 0.0
        %2924 = vmatpush1.msra.mxu0 0.0
        %2925 = vmatprep.subr.mxu0 0.0
        %2926 = vmatpush1.msra.mxu0 0.0
        %2927 = vmatprep.subr.mxu0 0.0
        %2928 = vmatpush1.msra.mxu0 0.0
        %2929 = vmatprep.subr.mxu0 0.0
        %2930 = vmatpush1.msra.mxu0 0.0
        %2931 = vmatprep.mubr.f32.mxu0 0.0
        %2932 = vmatmul.mubr.f32.gmra.mrb[0].mxu0 %v2862
        %v2933 = vpop.f32.mrb[0].mxu0
        %v2934 = vadd.f32 0.0, %v2933
        %v2935 = vpop.f32.mrb[0].mxu0
        %2936 = vmatprep.mubr.f32.mxu0 0.0
        %2937 = vmatmul.mubr.f32.gmra.mrb[0].mxu0 %v2865
        %v2938 = vpop.f32.mrb[0].mxu0
        %v2939 = vadd.f32 0.0, %v2938
        %v2940 = vpop.f32.mrb[0].mxu0
        %2941 = vdwg.mxu0
        %v2942 = vrcp.pop %v2854
        %v2943 = vmul.f32 %v2934, %v2942
        %v2944 = vrcp.pop %v2857
        %v2945 = vmul.f32 %v2939, %v2944
        %2948 = vrot.lane.b32.xlu0 %v2557, 16
        %v2949 = vpop.permute.xlu0 %2948
        %2950 = vrot.lane.b32.xlu0 %v2559, 16
        %v2951 = vpop.permute.xlu0 %2950
        %2956 = vrot.lane.b32.xlu0 %v2750, 32
        %v2957 = vpop.permute.xlu0 %2956
        %2958 = vrot.lane.b32.xlu0 %v2752, 32
        %v2959 = vpop.permute.xlu0 %2958
        %2964 = vrot.lane.b32.xlu0 %v2943, 48
        %v2965 = vpop.permute.xlu0 %2964
        %2966 = vrot.lane.b32.xlu0 %v2945, 48
        %v2967 = vpop.permute.xlu0 %2966
        %v2970 = vsel %vm1037, %v2364, %v2949
        %v2971 = vsel %vm1037, %v2366, %v2951
        %v2972 = vsel %vm1852, %v2970, %v2957
        %v2973 = vsel %vm1852, %v2971, %v2959
        %v2974 = vsel %vm1855, %v2972, %v2965
        %v2975 = vsel %vm1855, %v2973, %v2967
        %v2976 = vld [vmem:[#allocation20] sm:$0xff]
        %v2977 = vld [vmem:[#allocation20 + $0x8] sm:$0xff]
        %v2978 = vld [vmem:[#allocation20 + $0x10] sm:$0xff]
        %v2979 = vld [vmem:[#allocation20 + $0x18] sm:$0xff]
        %v2980 = vld [vmem:[#allocation20 + $0x20] sm:$0xff]
        %v2981 = vld [vmem:[#allocation20 + $0x28] sm:$0xff]
        %v2982 = vld [vmem:[#allocation20 + $0x30] sm:$0xff]
        %v2983 = vld [vmem:[#allocation20 + $0x38] sm:$0xff]
        %v2984 = vld [vmem:[#allocation22] sm:$0x1]
        %v2986 = vlaneseq
        %v2987 = vshrl.u32 %v2986, 7
        %v2988 = vsub.s32 0, %v2987
        %v2989 = vrot.slane %v2984, %v2988
        %v2992 = vsel %vm888, %v2974, 0
        %v2995 = vsel %vm888, %v2975, 0
        %2997 = vmatprep.subr.mxu0 0.0
        %2998 = vmatpush1.msra.mxu0 %v2976
        %2999 = vmatprep.subr.mxu0 0.0
        %3000 = vmatpush1.msra.mxu0 %v2977
        %3001 = vmatprep.subr.mxu0 0.0
        %3002 = vmatpush1.msra.mxu0 %v2978
        %3003 = vmatprep.subr.mxu0 0.0
        %3004 = vmatpush1.msra.mxu0 %v2979
        %3005 = vmatprep.subr.mxu0 0.0
        %3006 = vmatpush1.msra.mxu0 %v2980
        %3007 = vmatprep.subr.mxu0 0.0
        %3008 = vmatpush1.msra.mxu0 %v2981
        %3009 = vmatprep.subr.mxu0 0.0
        %3010 = vmatpush1.msra.mxu0 %v2982
        %3011 = vmatprep.subr.mxu0 0.0
        %3012 = vmatpush1.msra.mxu0 %v2983
        %3013 = vmatprep.subr.mxu0 0.0
        %3014 = vmatpush1.msra.mxu0 0.0
        %3015 = vmatprep.subr.mxu0 0.0
        %3016 = vmatpush1.msra.mxu0 0.0
        %3017 = vmatprep.subr.mxu0 0.0
        %3018 = vmatpush1.msra.mxu0 0.0
        %3019 = vmatprep.subr.mxu0 0.0
        %3020 = vmatpush1.msra.mxu0 0.0
        %3021 = vmatprep.subr.mxu0 0.0
        %3022 = vmatpush1.msra.mxu0 0.0
        %3023 = vmatprep.subr.mxu0 0.0
        %3024 = vmatpush1.msra.mxu0 0.0
        %3025 = vmatprep.subr.mxu0 0.0
        %3026 = vmatpush1.msra.mxu0 0.0
        %3027 = vmatprep.subr.mxu0 0.0
        %3028 = vmatpush1.msra.mxu0 0.0
        %3029 = vmatprep.subr.mxu0 0.0
        %3030 = vmatpush1.msra.mxu0 0.0
        %3031 = vmatprep.subr.mxu0 0.0
        %3032 = vmatpush1.msra.mxu0 0.0
        %3033 = vmatprep.subr.mxu0 0.0
        %3034 = vmatpush1.msra.mxu0 0.0
        %3035 = vmatprep.subr.mxu0 0.0
        %3036 = vmatpush1.msra.mxu0 0.0
        %3037 = vmatprep.subr.mxu0 0.0
        %3038 = vmatpush1.msra.mxu0 0.0
        %3039 = vmatprep.subr.mxu0 0.0
        %3040 = vmatpush1.msra.mxu0 0.0
        %3041 = vmatprep.subr.mxu0 0.0
        %3042 = vmatpush1.msra.mxu0 0.0
        %3043 = vmatprep.subr.mxu0 0.0
        %3044 = vmatpush1.msra.mxu0 0.0
        %3045 = vmatprep.subr.mxu0 0.0
        %3046 = vmatpush1.msra.mxu0 0.0
        %3047 = vmatprep.subr.mxu0 0.0
        %3048 = vmatpush1.msra.mxu0 0.0
        %3049 = vmatprep.subr.mxu0 0.0
        %3050 = vmatpush1.msra.mxu0 0.0
        %3051 = vmatprep.subr.mxu0 0.0
        %3052 = vmatpush1.msra.mxu0 0.0
        %3053 = vmatprep.subr.mxu0 0.0
        %3054 = vmatpush1.msra.mxu0 0.0
        %3055 = vmatprep.subr.mxu0 0.0
        %3056 = vmatpush1.msra.mxu0 0.0
        %3057 = vmatprep.subr.mxu0 0.0
        %3058 = vmatpush1.msra.mxu0 0.0
        %3059 = vmatprep.subr.mxu0 0.0
        %3060 = vmatpush1.msra.mxu0 0.0
        %3061 = vmatprep.mubr.f32.mxu0 0.0
        %3062 = vmatmul.mubr.f32.gmra.mrb[0].mxu0 %v2992
        %v3063 = vpop.f32.mrb[0].mxu0
        %v3064 = vadd.f32 %v2989, %v3063
        %v3065 = vpop.f32.mrb[0].mxu0
        %3066 = vmatprep.mubr.f32.mxu0 0.0
        %3067 = vmatmul.mubr.f32.gmra.mrb[0].mxu0 %v2995
        %v3068 = vpop.f32.mrb[0].mxu0
        %v3069 = vadd.f32 %v2989, %v3068
        %v3070 = vpop.f32.mrb[0].mxu0
        %3071 = vdwg.mxu0
        %v3072 = vadd.f32 %v1954, %v3064
        %v3073 = vadd.f32 %v1955, %v3069
        %v3074 = vld [vmem:[#allocation23] sm:$0x1]
        %v3075 = vld [vmem:[#allocation25] sm:$0x1]
        %v3076 = vsel %vm888, %v3072, 0.0
        %3077 = vadd.xlane.f32.xlu0 %v3076
        %v3078 = vpop.xlane.xlu0 %3077
        %v3079 = vsel %vm888, %v3073, 0.0
        %3080 = vadd.xlane.f32.xlu0 %v3079
        %v3081 = vpop.xlane.xlu0 %3080
        %v3082 = vmul.f32 %v3078, %v895
        %v3083 = vmul.f32 %v3081, %v895
        %v3084 = vsub.f32 %v3072, %v3082
        %v3085 = vsub.f32 %v3073, %v3083
        %v3086 = vmul.f32 %v3084, %v3084
        %v3087 = vmul.f32 %v3085, %v3085
        %v3088 = vsel %vm888, %v3086, 0.0
        %3089 = vadd.xlane.f32.xlu0 %v3088
        %v3090 = vpop.xlane.xlu0 %3089
        %v3091 = vsel %vm888, %v3087, 0.0
        %3092 = vadd.xlane.f32.xlu0 %v3091
        %v3093 = vpop.xlane.xlu0 %3092
        %v3094 = vmul.f32 %v3090, %v895
        %v3095 = vmul.f32 %v3093, %v895
        %v3096 = vadd.f32 %v3094, 1e-05
        %v3097 = vadd.f32 %v3095, 1e-05
        %v3098 = vrsqrt.pop %v3096
        %v3099 = vrsqrt.pop %v3097
        %v3100 = vmul.f32 %v3084, %v3098
        %v3101 = vmul.f32 %v3085, %v3099
        %v3103 = vlaneseq
        %v3104 = vshrl.u32 %v3103, 7
        %v3105 = vsub.s32 0, %v3104
        %v3106 = vrot.slane %v3074, %v3105
        %v3108 = vmul.f32 %v3100, %v3106
        %v3109 = vmul.f32 %v3101, %v3106
        %v3111 = vlaneseq
        %v3112 = vshrl.u32 %v3111, 7
        %v3113 = vsub.s32 0, %v3112
        %v3114 = vrot.slane %v3075, %v3113
        %v3116 = vadd.f32 %v3108, %v3114
        %v3117 = vadd.f32 %v3109, %v3114
        %v3118 = vld [vmem:[#allocation26] sm:$0xff]
        %v3119 = vld [vmem:[#allocation26 + $0x8] sm:$0xff]
        %v3120 = vld [vmem:[#allocation26 + $0x10] sm:$0xff]
        %v3121 = vld [vmem:[#allocation26 + $0x18] sm:$0xff]
        %v3122 = vld [vmem:[#allocation26 + $0x20] sm:$0xff]
        %v3123 = vld [vmem:[#allocation26 + $0x28] sm:$0xff]
        %v3124 = vld [vmem:[#allocation26 + $0x30] sm:$0xff]
        %v3125 = vld [vmem:[#allocation26 + $0x38] sm:$0xff]
        %v3126 = vld [vmem:[#allocation26 + $0x40] sm:$0xff]
        %v3127 = vld [vmem:[#allocation26 + $0x48] sm:$0xff]
        %v3128 = vld [vmem:[#allocation26 + $0x50] sm:$0xff]
        %v3129 = vld [vmem:[#allocation26 + $0x58] sm:$0xff]
        %v3130 = vld [vmem:[#allocation26 + $0x60] sm:$0xff]
        %v3131 = vld [vmem:[#allocation26 + $0x68] sm:$0xff]
        %v3132 = vld [vmem:[#allocation26 + $0x70] sm:$0xff]
        %v3133 = vld [vmem:[#allocation26 + $0x78] sm:$0xff]
        %v3134 = vld [vmem:[#allocation28] sm:$0x3]
        %v3136 = vlaneseq
        %v3137 = vshrl.u32 %v3136, 7
        %v3138 = vsub.s32 0, %v3137
        %v3139 = vrot.slane %v3134, %v3138
        %v3140 = vlaneseq
        %v3141 = vshrl.u32 %v3140, 7
        %v3142 = vsub.s32 1, %v3141
        %v3143 = vrot.slane %v3134, %v3142
        %v3147 = vsel %vm888, %v3116, 0
        %v3150 = vsel %vm888, %v3117, 0
        %3152 = vmatprep.subr.mxu0 %v3119
        %3153 = vmatpush1.msra.mxu0 %v3118
        %3154 = vmatprep.subr.mxu0 %v3121
        %3155 = vmatpush1.msra.mxu0 %v3120
        %3156 = vmatprep.subr.mxu0 %v3123
        %3157 = vmatpush1.msra.mxu0 %v3122
        %3158 = vmatprep.subr.mxu0 %v3125
        %3159 = vmatpush1.msra.mxu0 %v3124
        %3160 = vmatprep.subr.mxu0 %v3127
        %3161 = vmatpush1.msra.mxu0 %v3126
        %3162 = vmatprep.subr.mxu0 %v3129
        %3163 = vmatpush1.msra.mxu0 %v3128
        %3164 = vmatprep.subr.mxu0 %v3131
        %3165 = vmatpush1.msra.mxu0 %v3130
        %3166 = vmatprep.subr.mxu0 %v3133
        %3167 = vmatpush1.msra.mxu0 %v3132
        %3168 = vmatprep.subr.mxu0 0.0
        %3169 = vmatpush1.msra.mxu0 0.0
        %3170 = vmatprep.subr.mxu0 0.0
        %3171 = vmatpush1.msra.mxu0 0.0
        %3172 = vmatprep.subr.mxu0 0.0
        %3173 = vmatpush1.msra.mxu0 0.0
        %3174 = vmatprep.subr.mxu0 0.0
        %3175 = vmatpush1.msra.mxu0 0.0
        %3176 = vmatprep.subr.mxu0 0.0
        %3177 = vmatpush1.msra.mxu0 0.0
        %3178 = vmatprep.subr.mxu0 0.0
        %3179 = vmatpush1.msra.mxu0 0.0
        %3180 = vmatprep.subr.mxu0 0.0
        %3181 = vmatpush1.msra.mxu0 0.0
        %3182 = vmatprep.subr.mxu0 0.0
        %3183 = vmatpush1.msra.mxu0 0.0
        %3184 = vmatprep.subr.mxu0 0.0
        %3185 = vmatpush1.msra.mxu0 0.0
        %3186 = vmatprep.subr.mxu0 0.0
        %3187 = vmatpush1.msra.mxu0 0.0
        %3188 = vmatprep.subr.mxu0 0.0
        %3189 = vmatpush1.msra.mxu0 0.0
        %3190 = vmatprep.subr.mxu0 0.0
        %3191 = vmatpush1.msra.mxu0 0.0
        %3192 = vmatprep.subr.mxu0 0.0
        %3193 = vmatpush1.msra.mxu0 0.0
        %3194 = vmatprep.subr.mxu0 0.0
        %3195 = vmatpush1.msra.mxu0 0.0
        %3196 = vmatprep.subr.mxu0 0.0
        %3197 = vmatpush1.msra.mxu0 0.0
        %3198 = vmatprep.subr.mxu0 0.0
        %3199 = vmatpush1.msra.mxu0 0.0
        %3200 = vmatprep.subr.mxu0 0.0
        %3201 = vmatpush1.msra.mxu0 0.0
        %3202 = vmatprep.subr.mxu0 0.0
        %3203 = vmatpush1.msra.mxu0 0.0
        %3204 = vmatprep.subr.mxu0 0.0
        %3205 = vmatpush1.msra.mxu0 0.0
        %3206 = vmatprep.subr.mxu0 0.0
        %3207 = vmatpush1.msra.mxu0 0.0
        %3208 = vmatprep.subr.mxu0 0.0
        %3209 = vmatpush1.msra.mxu0 0.0
        %3210 = vmatprep.subr.mxu0 0.0
        %3211 = vmatpush1.msra.mxu0 0.0
        %3212 = vmatprep.subr.mxu0 0.0
        %3213 = vmatpush1.msra.mxu0 0.0
        %3214 = vmatprep.subr.mxu0 0.0
        %3215 = vmatpush1.msra.mxu0 0.0
        %3216 = vmatprep.mubr.f32.mxu0 0.0
        %3217 = vmatmul.mubr.f32.gmra.mrb[0].mxu0 %v3147
        %v3218 = vpop.f32.mrb[0].mxu0
        %v3219 = vadd.f32 %v3139, %v3218
        %v3220 = vpop.f32.mrb[0].mxu0
        %v3221 = vadd.f32 %v3143, %v3220
        %3222 = vmatprep.mubr.f32.mxu0 0.0
        %3223 = vmatmul.mubr.f32.gmra.mrb[0].mxu0 %v3150
        %v3224 = vpop.f32.mrb[0].mxu0
        %v3225 = vadd.f32 %v3139, %v3224
        %v3226 = vpop.f32.mrb[0].mxu0
        %v3227 = vadd.f32 %v3143, %v3226
        %3228 = vdwg.mxu0
        %v3229 = vmul.f32 %v3219, %v3219
        %v3230 = vmul.f32 %v3221, %v3221
        %v3231 = vmul.f32 %v3225, %v3225
        %v3232 = vmul.f32 %v3227, %v3227
        %v3233 = vmul.f32 %v3219, %v3229
        %v3234 = vmul.f32 %v3221, %v3230
        %v3235 = vmul.f32 %v3225, %v3231
        %v3236 = vmul.f32 %v3227, %v3232
        %v3237 = vmul.f32 %v3233, 0.044715
        %v3238 = vmul.f32 %v3234, 0.044715
        %v3239 = vmul.f32 %v3235, 0.044715
        %v3240 = vmul.f32 %v3236, 0.044715
        %v3241 = vadd.f32 %v3219, %v3237
        %v3242 = vadd.f32 %v3221, %v3238
        %v3243 = vadd.f32 %v3225, %v3239
        %v3244 = vadd.f32 %v3227, %v3240
        %v3245 = vmul.f32 %v3241, 0.7978846
        %v3246 = vmul.f32 %v3242, 0.7978846
        %v3247 = vmul.f32 %v3243, 0.7978846
        %v3248 = vmul.f32 %v3244, 0.7978846
        %v3249 = vtanh.pop %v3245
        %v3250 = vtanh.pop %v3246
        %v3251 = vtanh.pop %v3247
        %v3252 = vtanh.pop %v3248
        %v3253 = vadd.f32 %v3249, 1.0
        %v3254 = vadd.f32 %v3250, 1.0
        %v3255 = vadd.f32 %v3251, 1.0
        %v3256 = vadd.f32 %v3252, 1.0
        %v3257 = vmul.f32 %v3253, 0.5
        %v3258 = vmul.f32 %v3254, 0.5
        %v3259 = vmul.f32 %v3255, 0.5
        %v3260 = vmul.f32 %v3256, 0.5
        %v3261 = vmul.f32 %v3219, %v3257
        %v3262 = vmul.f32 %v3221, %v3258
        %v3263 = vmul.f32 %v3225, %v3259
        %v3264 = vmul.f32 %v3227, %v3260
        %v3265 = vld [vmem:[#allocation29] sm:$0xff]
        %v3266 = vld [vmem:[#allocation29 + $0x8] sm:$0xff]
        %v3267 = vld [vmem:[#allocation29 + $0x10] sm:$0xff]
        %v3268 = vld [vmem:[#allocation29 + $0x18] sm:$0xff]
        %v3269 = vld [vmem:[#allocation29 + $0x20] sm:$0xff]
        %v3270 = vld [vmem:[#allocation29 + $0x28] sm:$0xff]
        %v3271 = vld [vmem:[#allocation29 + $0x30] sm:$0xff]
        %v3272 = vld [vmem:[#allocation29 + $0x38] sm:$0xff]
        %v3273 = vld [vmem:[#allocation29 + $0x40] sm:$0xff]
        %v3274 = vld [vmem:[#allocation29 + $0x48] sm:$0xff]
        %v3275 = vld [vmem:[#allocation29 + $0x50] sm:$0xff]
        %v3276 = vld [vmem:[#allocation29 + $0x58] sm:$0xff]
        %v3277 = vld [vmem:[#allocation29 + $0x60] sm:$0xff]
        %v3278 = vld [vmem:[#allocation29 + $0x68] sm:$0xff]
        %v3279 = vld [vmem:[#allocation29 + $0x70] sm:$0xff]
        %v3280 = vld [vmem:[#allocation29 + $0x78] sm:$0xff]
        %v3281 = vld [vmem:[#allocation29 + $0x80] sm:$0xff]
        %v3282 = vld [vmem:[#allocation29 + $0x88] sm:$0xff]
        %v3283 = vld [vmem:[#allocation29 + $0x90] sm:$0xff]
        %v3284 = vld [vmem:[#allocation29 + $0x98] sm:$0xff]
        %v3285 = vld [vmem:[#allocation29 + $0xa0] sm:$0xff]
        %v3286 = vld [vmem:[#allocation29 + $0xa8] sm:$0xff]
        %v3287 = vld [vmem:[#allocation29 + $0xb0] sm:$0xff]
        %v3288 = vld [vmem:[#allocation29 + $0xb8] sm:$0xff]
        %v3289 = vld [vmem:[#allocation29 + $0xc0] sm:$0xff]
        %v3290 = vld [vmem:[#allocation29 + $0xc8] sm:$0xff]
        %v3291 = vld [vmem:[#allocation29 + $0xd0] sm:$0xff]
        %v3292 = vld [vmem:[#allocation29 + $0xd8] sm:$0xff]
        %v3293 = vld [vmem:[#allocation29 + $0xe0] sm:$0xff]
        %v3294 = vld [vmem:[#allocation29 + $0xe8] sm:$0xff]
        %v3295 = vld [vmem:[#allocation29 + $0xf0] sm:$0xff]
        %v3296 = vld [vmem:[#allocation29 + $0xf8] sm:$0xff]
        %v3297 = vld [vmem:[#allocation31] sm:$0x1]
        %v3299 = vlaneseq
        %v3300 = vshrl.u32 %v3299, 7
        %v3301 = vsub.s32 0, %v3300
        %v3302 = vrot.slane %v3297, %v3301
        %3304 = vmatprep.subr.mxu0 0.0
        %3305 = vmatpush1.msra.mxu0 %v3265
        %3306 = vmatprep.subr.mxu0 0.0
        %3307 = vmatpush1.msra.mxu0 %v3266
        %3308 = vmatprep.subr.mxu0 0.0
        %3309 = vmatpush1.msra.mxu0 %v3267
        %3310 = vmatprep.subr.mxu0 0.0
        %3311 = vmatpush1.msra.mxu0 %v3268
        %3312 = vmatprep.subr.mxu0 0.0
        %3313 = vmatpush1.msra.mxu0 %v3269
        %3314 = vmatprep.subr.mxu0 0.0
        %3315 = vmatpush1.msra.mxu0 %v3270
        %3316 = vmatprep.subr.mxu0 0.0
        %3317 = vmatpush1.msra.mxu0 %v3271
        %3318 = vmatprep.subr.mxu0 0.0
        %3319 = vmatpush1.msra.mxu0 %v3272
        %3320 = vmatprep.subr.mxu0 0.0
        %3321 = vmatpush1.msra.mxu0 %v3273
        %3322 = vmatprep.subr.mxu0 0.0
        %3323 = vmatpush1.msra.mxu0 %v3274
        %3324 = vmatprep.subr.mxu0 0.0
        %3325 = vmatpush1.msra.mxu0 %v3275
        %3326 = vmatprep.subr.mxu0 0.0
        %3327 = vmatpush1.msra.mxu0 %v3276
        %3328 = vmatprep.subr.mxu0 0.0
        %3329 = vmatpush1.msra.mxu0 %v3277
        %3330 = vmatprep.subr.mxu0 0.0
        %3331 = vmatpush1.msra.mxu0 %v3278
        %3332 = vmatprep.subr.mxu0 0.0
        %3333 = vmatpush1.msra.mxu0 %v3279
        %3334 = vmatprep.subr.mxu0 0.0
        %3335 = vmatpush1.msra.mxu0 %v3280
        %3336 = vmatprep.subr.mxu0 0.0
        %3337 = vmatpush1.msra.mxu0 %v3281
        %3338 = vmatprep.subr.mxu0 0.0
        %3339 = vmatpush1.msra.mxu0 %v3282
        %3340 = vmatprep.subr.mxu0 0.0
        %3341 = vmatpush1.msra.mxu0 %v3283
        %3342 = vmatprep.subr.mxu0 0.0
        %3343 = vmatpush1.msra.mxu0 %v3284
        %3344 = vmatprep.subr.mxu0 0.0
        %3345 = vmatpush1.msra.mxu0 %v3285
        %3346 = vmatprep.subr.mxu0 0.0
        %3347 = vmatpush1.msra.mxu0 %v3286
        %3348 = vmatprep.subr.mxu0 0.0
        %3349 = vmatpush1.msra.mxu0 %v3287
        %3350 = vmatprep.subr.mxu0 0.0
        %3351 = vmatpush1.msra.mxu0 %v3288
        %3352 = vmatprep.subr.mxu0 0.0
        %3353 = vmatpush1.msra.mxu0 %v3289
        %3354 = vmatprep.subr.mxu0 0.0
        %3355 = vmatpush1.msra.mxu0 %v3290
        %3356 = vmatprep.subr.mxu0 0.0
        %3357 = vmatpush1.msra.mxu0 %v3291
        %3358 = vmatprep.subr.mxu0 0.0
        %3359 = vmatpush1.msra.mxu0 %v3292
        %3360 = vmatprep.subr.mxu0 0.0
        %3361 = vmatpush1.msra.mxu0 %v3293
        %3362 = vmatprep.subr.mxu0 0.0
        %3363 = vmatpush1.msra.mxu0 %v3294
        %3364 = vmatprep.subr.mxu0 0.0
        %3365 = vmatpush1.msra.mxu0 %v3295
        %3366 = vmatprep.subr.mxu0 0.0
        %3367 = vmatpush1.msra.mxu0 %v3296
        %3368 = vmatprep.mubr.f32.mxu0 %v3262
        %3369 = vmatmul.mubr.f32.gmra.mrb[0].mxu0 %v3261
        %v3370 = vpop.f32.mrb[0].mxu0
        %v3371 = vadd.f32 %v3302, %v3370
        %v3372 = vpop.f32.mrb[0].mxu0
        %3373 = vmatprep.mubr.f32.mxu0 %v3264
        %3374 = vmatmul.mubr.f32.gmra.mrb[0].mxu0 %v3263
        %v3375 = vpop.f32.mrb[0].mxu0
        %v3376 = vadd.f32 %v3302, %v3375
        %v3377 = vpop.f32.mrb[0].mxu0
        %3378 = vdwg.mxu0
        %v3379 = vadd.f32 %v3072, %v3371
        %v3380 = vadd.f32 %v3073, %v3376
        %3381 = vst.msk [vmem:[%s883] sm:$0xff] %vm888, %v3379
        %3382 = vst.msk [vmem:[%s883 + $0x8] sm:$0xff] %vm888, %v3380
        %s3383 = sand.u32 %s464, 1
        %s3384 = scalar_lea.sflag [#allocation4], %s3383
        %s3385 = sand.u32 %s464, 1
        %s3386 = smul.addr %s3385, 16
        %s3387 = scalar_lea.vmem [#allocation32], %s3386
        // Predicated region
        $region173: #{two_stream_block_pallas.5} parent=95 // pred_check
          %p3388 = pneg %p474
        $region174: #{two_stream_block_pallas.5} parent=95 // pred_check_branch
          %3390 = sbr.rel (%p3388) target = $region176
        $region175: #{two_stream_block_pallas.5} parent=95 // pred_region
          %s3392 = ssub.s32 256, 256
          %3393 = vsyncadd %s3384, %s3392
          %s3394 = smul.addr %s47, 2
          %s3395 = smul.addr %s3394, 128
          %s3396 = scalar_lea.hbm %s19, %s3395
          %s3397 = sshll.u32 %s3387, 4
          %s3398 = int_to_ptr.vmem [resolvable:$true] %s3397
          %3403 = dma.vmem_to_hbm [thread:$0]  %s3398, 256, %s3396, %s3384, 128, 128, 8
        $region176: #{two_stream_block_pallas.5} parent=95 // pred_fallthru
          _
      $region96: #{two_stream_block_pallas.5} parent=5 // pred_fallthru
        _
      %p3404 = scmp.le.s32.totalorder 2, %s42
      // Predicated region
      $region177: #{two_stream_block_pallas.5} parent=5 // pred_check
        %p3405 = pneg %p3404
      $region178: #{two_stream_block_pallas.5} parent=5 // pred_check_branch
        %3407 = sbr.rel (%p3405) target = $region180
      $region179: #{two_stream_block_pallas.5} parent=5 // pred_region
        %s3408 = ssub.s32 %s42, 2
        // Predicated region
        $region181: #{two_stream_block_pallas.5} parent=179 // pred_check
          %p3409 = pneg %p480
        $region182: #{two_stream_block_pallas.5} parent=179 // pred_check_branch
          %3411 = sbr.rel (%p3409) target = $region184
        $region183: #{two_stream_block_pallas.5} parent=179 // pred_region
          %s3412 = sand.u32 %s465, 1
          %s3413 = scalar_lea.sflag [#allocation4], %s3412
          %s3414 = sand.u32 %s465, 1
          %s3415 = smul.addr %s3414, 16
          %s3416 = scalar_lea.vmem [#allocation32], %s3415
          %3417 = dma.done %s3413, 256
        $region184: #{two_stream_block_pallas.5} parent=179 // pred_fallthru
          _
      $region180: #{two_stream_block_pallas.5} parent=5 // pred_fallthru
        _
    $region6: #{two_stream_block_pallas.5} parent=1 // loop_footer
      %s46 = sadd.s32 1, %s42
    $region7: #{two_stream_block_pallas.5} parent=1 // loop_footer_branch
      %41 = sbr.rel target = $region3
    $region8: #{two_stream_block_pallas.5} parent=1 // loop_exit
      _
    %3418 = vsyncpa [#allocation3], 1
    %s3419 = scalar_lea.sflag [#allocation3], 1
    %3420 = vsyncpa %s3419, 1
    %3421 = vsyncpa [#allocation6], 1
    %s3422 = scalar_lea.sflag [#allocation6], 1
    %3423 = vsyncpa %s3422, 1
    %3424 = vsyncpa [#allocation9], 1
    %3425 = vsyncpa [#allocation12], 1
    %3426 = vsyncpa [#allocation15], 1
    %3427 = vsyncpa [#allocation18], 1
    %3428 = vsyncpa [#allocation21], 1
    %3429 = vsyncpa [#allocation24], 1
    %3430 = vsyncpa [#allocation27], 1
    %3431 = vsyncpa [#allocation30], 1
    %3432 = vsyncpa [#allocation4], 1
    %s3433 = scalar_lea.sflag [#allocation4], 1
    %3434 = vsyncpa %s3433, 1

// kernel: two_stream_block_pallas.4
$region0: #{two_stream_block_pallas.4}
  #allocation0 [shape = 'u32[]', space=smem, size = 0x4, offset = 0x4, fixed_abs, tag = 'smem constant byte address 0x4 - core index']
  #allocation1 [shape = 'u32[144,128]{1,0:T(1,128)}', space=vmem, size = 0x12000, scoped, tag = 'internal scratch']
  %s0 = inlined_call_operand.hbm [shape: f32[2,16,64], index: 0, kind: input, shape index: {}]
  %s1 = inlined_call_operand.hbm [shape: f32[2,32,32], index: 1, kind: input, shape index: {}]
  %s2 = inlined_call_operand.hbm [shape: f32[1,32], index: 2, kind: input, shape index: {}]
  %s3 = inlined_call_operand.hbm [shape: f32[1,32], index: 3, kind: input, shape index: {}]
  %s4 = inlined_call_operand.hbm [shape: f32[1,64], index: 4, kind: input, shape index: {}]
  %s5 = inlined_call_operand.hbm [shape: f32[1,64], index: 5, kind: input, shape index: {}]
  %s6 = inlined_call_operand.hbm [shape: f32[64,64], index: 6, kind: input, shape index: {}]
  %s7 = inlined_call_operand.hbm [shape: f32[32,128], index: 7, kind: input, shape index: {}]
  %s8 = inlined_call_operand.hbm [shape: f32[64,64], index: 8, kind: input, shape index: {}]
  %s9 = inlined_call_operand.hbm [shape: f32[1,64], index: 9, kind: input, shape index: {}]
  %s10 = inlined_call_operand.hbm [shape: f32[1,64], index: 10, kind: input, shape index: {}]
  %s11 = inlined_call_operand.hbm [shape: f32[1,64], index: 11, kind: input, shape index: {}]
  %s12 = inlined_call_operand.hbm [shape: f32[64,256], index: 12, kind: input, shape index: {}]
  %s13 = inlined_call_operand.hbm [shape: f32[1,256], index: 13, kind: input, shape index: {}]
  %s14 = inlined_call_operand.hbm [shape: f32[256,64], index: 14, kind: input, shape index: {}]
  %s15 = inlined_call_operand.hbm [shape: f32[1,64], index: 15, kind: input, shape index: {}]
  %s16 = inlined_call_operand.hbm [shape: f32[2,16,64], index: 16, kind: output, shape index: {}]
  %s17 = sld [smem:[#allocation0]]
  $region161: #{two_stream_block_pallas.4} parent=0
    _
  %s19 = ssub.s32 1, %s17
  %s20 = scalar_select 0, %s19, %s17
  $region1: #{two_stream_block_pallas.4} parent=0
    #allocation2 [shape = 'u8[16384]{0}', space=vmem, size = 0x4000, scoped, tag = 'input window, operand 0']
    #allocation3 [shape = 's32[2]{0}', space=sflag, size = 0x8, scoped, tag = 'scoped memory for two_stream_block_pallas.4']
    #allocation4 [shape = 's32[2]{0}', space=sflag, size = 0x8, scoped, tag = 'scoped memory for two_stream_block_pallas.4']
    #allocation5 [shape = 'u8[32768]{0}', space=vmem, size = 0x8000, scoped, tag = 'input window, operand 1']
    #allocation6 [shape = 's32[2]{0}', space=sflag, size = 0x8, scoped, tag = 'scoped memory for two_stream_block_pallas.4']
    #allocation7 [shape = 'u8[512]{0}', space=vmem, size = 0x400, scoped, tag = 'input window, operand 2, single buffered']
    #allocation8 [shape = 'u8[512]{0}', space=vmem, size = 0x400, scoped, tag = 'input window, operand 3, single buffered']
    #allocation9 [shape = 's32[1]{0}', space=sflag, size = 0x4, scoped, tag = 'scoped memory for two_stream_block_pallas.4']
    #allocation10 [shape = 'u8[512]{0}', space=vmem, size = 0x400, scoped, tag = 'input window, operand 4, single buffered']
    #allocation11 [shape = 'u8[512]{0}', space=vmem, size = 0x400, scoped, tag = 'input window, operand 5, single buffered']
    #allocation12 [shape = 's32[1]{0}', space=sflag, size = 0x4, scoped, tag = 'scoped memory for two_stream_block_pallas.4']
    #allocation13 [shape = 'u8[32768]{0}', space=vmem, size = 0x8000, scoped, tag = 'input window, operand 6, single buffered']
    #allocation14 [shape = 'u8[16384]{0}', space=vmem, size = 0x4000, scoped, tag = 'input window, operand 7, single buffered']
    #allocation15 [shape = 's32[1]{0}', space=sflag, size = 0x4, scoped, tag = 'scoped memory for two_stream_block_pallas.4']
    #allocation16 [shape = 'u8[32768]{0}', space=vmem, size = 0x8000, scoped, tag = 'input window, operand 8, single buffered']
    #allocation17 [shape = 'u8[512]{0}', space=vmem, size = 0x400, scoped, tag = 'input window, operand 9, single buffered']
    #allocation18 [shape = 's32[1]{0}', space=sflag, size = 0x4, scoped, tag = 'scoped memory for two_stream_block_pallas.4']
    #allocation19 [shape = 'u8[512]{0}', space=vmem, size = 0x400, scoped, tag = 'input window, operand 10, single buffered']
    #allocation20 [shape = 'u8[512]{0}', space=vmem, size = 0x400, scoped, tag = 'input window, operand 11, single buffered']
    #allocation21 [shape = 's32[1]{0}', space=sflag, size = 0x4, scoped, tag = 'scoped memory for two_stream_block_pallas.4']
    #allocation22 [shape = 'u8[65536]{0}', space=vmem, size = 0x10000, scoped, tag = 'input window, operand 12, single buffered']
    #allocation23 [shape = 'u8[1024]{0}', space=vmem, size = 0x400, scoped, tag = 'input window, operand 13, single buffered']
    #allocation24 [shape = 's32[1]{0}', space=sflag, size = 0x4, scoped, tag = 'scoped memory for two_stream_block_pallas.4']
    #allocation25 [shape = 'u8[131072]{0}', space=vmem, size = 0x20000, scoped, tag = 'input window, operand 14, single buffered']
    #allocation26 [shape = 'u8[512]{0}', space=vmem, size = 0x400, scoped, tag = 'input window, operand 15, single buffered']
    #allocation27 [shape = 's32[1]{0}', space=sflag, size = 0x4, scoped, tag = 'scoped memory for two_stream_block_pallas.4']
    #allocation28 [shape = 'u8[16384]{0}', space=vmem, size = 0x4000, scoped, tag = 'output window, operand 0']
    %21 = vsyncpa [#allocation3], 0
    %s22 = scalar_lea.sflag [#allocation3], 1
    %23 = vsyncpa %s22, 0
    %24 = vsyncpa [#allocation6], 0
    %s25 = scalar_lea.sflag [#allocation6], 1
    %26 = vsyncpa %s25, 0
    %27 = vsyncpa [#allocation9], 0
    %28 = vsyncpa [#allocation12], 0
    %29 = vsyncpa [#allocation15], 0
    %30 = vsyncpa [#allocation18], 0
    %31 = vsyncpa [#allocation21], 0
    %32 = vsyncpa [#allocation24], 0
    %33 = vsyncpa [#allocation27], 0
    %34 = vsyncpa [#allocation4], 0
    %s35 = scalar_lea.sflag [#allocation4], 1
    %36 = vsyncpa %s35, 0
    loop: start=0, step=1, limit=4
    $region2: #{two_stream_block_pallas.4} parent=1 // loop_pre_header
      _
    $region3: #{two_stream_block_pallas.4} parent=1 // loop_header
      %s38 = sphi 0, %s42
      %p39 = scmp.ge.s32.totalorder %s38, 4
      %s48 = sphi 0, %s50
      %s51 = sphi 0, %s48
      %s52 = sphi 0, %s51
      %s68 = sphi 0, %s52
      %s74 = sphi 0, %s76
      %s77 = sphi 0, %s74
      %s78 = sphi 0, %s77
      %s94 = sphi 0, %s78
      %s98 = sphi 0, %s98
      %s100 = sphi 0, %s98
      %s101 = sphi 0, %s100
      %s115 = sphi 0, %s101
      %s119 = sphi 0, %s119
      %s121 = sphi 0, %s119
      %s122 = sphi 0, %s121
      %s136 = sphi 0, %s122
      %s140 = sphi 0, %s140
      %s142 = sphi 0, %s140
      %s143 = sphi 0, %s142
      %s157 = sphi 0, %s143
      %s161 = sphi 0, %s161
      %s163 = sphi 0, %s161
      %s164 = sphi 0, %s163
      %s178 = sphi 0, %s164
      %s182 = sphi 0, %s182
      %s184 = sphi 0, %s182
      %s185 = sphi 0, %s184
      %s199 = sphi 0, %s185
      %s203 = sphi 0, %s203
      %s205 = sphi 0, %s203
      %s206 = sphi 0, %s205
      %s220 = sphi 0, %s206
      %s224 = sphi 0, %s224
      %s226 = sphi 0, %s224
      %s227 = sphi 0, %s226
      %s241 = sphi 0, %s227
      %s245 = sphi 0, %s245
      %s247 = sphi 0, %s245
      %s248 = sphi 0, %s247
      %s262 = sphi 0, %s248
      %s266 = sphi 0, %s266
      %s268 = sphi 0, %s266
      %s269 = sphi 0, %s268
      %s283 = sphi 0, %s269
      %s287 = sphi 0, %s287
      %s289 = sphi 0, %s287
      %s290 = sphi 0, %s289
      %s304 = sphi 0, %s290
      %s308 = sphi 0, %s308
      %s310 = sphi 0, %s308
      %s311 = sphi 0, %s310
      %s325 = sphi 0, %s311
      %s329 = sphi 0, %s329
      %s331 = sphi 0, %s329
      %s332 = sphi 0, %s331
      %s346 = sphi 0, %s332
      %s350 = sphi 0, %s350
      %s352 = sphi 0, %s350
      %s353 = sphi 0, %s352
      %s367 = sphi 0, %s353
      %s371 = sphi 0, %s371
      %s373 = sphi 0, %s371
      %s374 = sphi 0, %s373
      %s388 = sphi 0, %s374
      %s394 = sphi 0, %s396
      %s397 = sphi 0, %s394
      %s398 = sphi 0, %s397
      %s414 = sphi 0, %s398
    $region4: #{two_stream_block_pallas.4} parent=1 // loop_header_branch
      %41 = sbr.rel (%p39) target = $region8
    $region5: #{two_stream_block_pallas.4} parent=1 // loop_body
      %s43 = ssub.s32 %s38, 1
      %s44 = ssub.s32 %s38, 2
      %s45 = sadd.s32 %s38, 1
      %s46 = ssub.s32 %s38, %s45
      %p47 = scmp.eq.s32.totalorder %s46, 0
      %s49 = sadd.s32 %s48, 1
      %s50 = scalar_select %p47, %s48, %s49
      %p53 = pneg %p47
      %p54 = scmp.eq.s32.totalorder %s38, 1
      %p55 = por %p53, %p54
      %p56 = scmp.ne.s32.totalorder %s48, %s51
      %p57 = scmp.eq.s32.totalorder %s38, 0
      %p58 = por %p56, %p57
      %p59 = scmp.ne.s32.totalorder %s48, %s51
      %p60 = scmp.eq.s32.totalorder %s43, 1
      %p61 = por %p59, %p60
      %p62 = scmp.ne.s32.totalorder %s51, %s52
      %p63 = scmp.eq.s32.totalorder %s43, 0
      %p64 = por %p62, %p63
      %p65 = scmp.ne.s32.totalorder %s51, %s52
      %p66 = scmp.eq.s32.totalorder %s44, 1
      %p67 = por %p65, %p66
      %p69 = scmp.ne.s32.totalorder %s52, %s68
      %p70 = scmp.eq.s32.totalorder %s44, 0
      %p71 = por %p69, %p70
      %s72 = ssub.s32 %s38, %s45
      %p73 = scmp.eq.s32.totalorder %s72, 0
      %s75 = sadd.s32 %s74, 1
      %s76 = scalar_select %p73, %s74, %s75
      %p79 = pneg %p73
      %p80 = scmp.eq.s32.totalorder %s38, 1
      %p81 = por %p79, %p80
      %p82 = scmp.ne.s32.totalorder %s74, %s77
      %p83 = scmp.eq.s32.totalorder %s38, 0
      %p84 = por %p82, %p83
      %p85 = scmp.ne.s32.totalorder %s74, %s77
      %p86 = scmp.eq.s32.totalorder %s43, 1
      %p87 = por %p85, %p86
      %p88 = scmp.ne.s32.totalorder %s77, %s78
      %p89 = scmp.eq.s32.totalorder %s43, 0
      %p90 = por %p88, %p89
      %p91 = scmp.ne.s32.totalorder %s77, %s78
      %p92 = scmp.eq.s32.totalorder %s44, 1
      %p93 = por %p91, %p92
      %p95 = scmp.ne.s32.totalorder %s78, %s94
      %p96 = scmp.eq.s32.totalorder %s44, 0
      %p97 = por %p95, %p96
      %s99 = sadd.s32 %s98, 1
      %p102 = scmp.eq.s32.totalorder %s38, 1
      %p103 = scmp.ne.s32.totalorder %s98, %s100
      %p104 = scmp.eq.s32.totalorder %s38, 0
      %p105 = por %p103, %p104
      %p106 = scmp.ne.s32.totalorder %s98, %s100
      %p107 = scmp.eq.s32.totalorder %s43, 1
      %p108 = por %p106, %p107
      %p109 = scmp.ne.s32.totalorder %s100, %s101
      %p110 = scmp.eq.s32.totalorder %s43, 0
      %p111 = por %p109, %p110
      %p112 = scmp.ne.s32.totalorder %s100, %s101
      %p113 = scmp.eq.s32.totalorder %s44, 1
      %p114 = por %p112, %p113
      %p116 = scmp.ne.s32.totalorder %s101, %s115
      %p117 = scmp.eq.s32.totalorder %s44, 0
      %p118 = por %p116, %p117
      %s120 = sadd.s32 %s119, 1
      %p123 = scmp.eq.s32.totalorder %s38, 1
      %p124 = scmp.ne.s32.totalorder %s119, %s121
      %p125 = scmp.eq.s32.totalorder %s38, 0
      %p126 = por %p124, %p125
      %p127 = scmp.ne.s32.totalorder %s119, %s121
      %p128 = scmp.eq.s32.totalorder %s43, 1
      %p129 = por %p127, %p128
      %p130 = scmp.ne.s32.totalorder %s121, %s122
      %p131 = scmp.eq.s32.totalorder %s43, 0
      %p132 = por %p130, %p131
      %p133 = scmp.ne.s32.totalorder %s121, %s122
      %p134 = scmp.eq.s32.totalorder %s44, 1
      %p135 = por %p133, %p134
      %p137 = scmp.ne.s32.totalorder %s122, %s136
      %p138 = scmp.eq.s32.totalorder %s44, 0
      %p139 = por %p137, %p138
      %s141 = sadd.s32 %s140, 1
      %p144 = scmp.eq.s32.totalorder %s38, 1
      %p145 = scmp.ne.s32.totalorder %s140, %s142
      %p146 = scmp.eq.s32.totalorder %s38, 0
      %p147 = por %p145, %p146
      %p148 = scmp.ne.s32.totalorder %s140, %s142
      %p149 = scmp.eq.s32.totalorder %s43, 1
      %p150 = por %p148, %p149
      %p151 = scmp.ne.s32.totalorder %s142, %s143
      %p152 = scmp.eq.s32.totalorder %s43, 0
      %p153 = por %p151, %p152
      %p154 = scmp.ne.s32.totalorder %s142, %s143
      %p155 = scmp.eq.s32.totalorder %s44, 1
      %p156 = por %p154, %p155
      %p158 = scmp.ne.s32.totalorder %s143, %s157
      %p159 = scmp.eq.s32.totalorder %s44, 0
      %p160 = por %p158, %p159
      %s162 = sadd.s32 %s161, 1
      %p165 = scmp.eq.s32.totalorder %s38, 1
      %p166 = scmp.ne.s32.totalorder %s161, %s163
      %p167 = scmp.eq.s32.totalorder %s38, 0
      %p168 = por %p166, %p167
      %p169 = scmp.ne.s32.totalorder %s161, %s163
      %p170 = scmp.eq.s32.totalorder %s43, 1
      %p171 = por %p169, %p170
      %p172 = scmp.ne.s32.totalorder %s163, %s164
      %p173 = scmp.eq.s32.totalorder %s43, 0
      %p174 = por %p172, %p173
      %p175 = scmp.ne.s32.totalorder %s163, %s164
      %p176 = scmp.eq.s32.totalorder %s44, 1
      %p177 = por %p175, %p176
      %p179 = scmp.ne.s32.totalorder %s164, %s178
      %p180 = scmp.eq.s32.totalorder %s44, 0
      %p181 = por %p179, %p180
      %s183 = sadd.s32 %s182, 1
      %p186 = scmp.eq.s32.totalorder %s38, 1
      %p187 = scmp.ne.s32.totalorder %s182, %s184
      %p188 = scmp.eq.s32.totalorder %s38, 0
      %p189 = por %p187, %p188
      %p190 = scmp.ne.s32.totalorder %s182, %s184
      %p191 = scmp.eq.s32.totalorder %s43, 1
      %p192 = por %p190, %p191
      %p193 = scmp.ne.s32.totalorder %s184, %s185
      %p194 = scmp.eq.s32.totalorder %s43, 0
      %p195 = por %p193, %p194
      %p196 = scmp.ne.s32.totalorder %s184, %s185
      %p197 = scmp.eq.s32.totalorder %s44, 1
      %p198 = por %p196, %p197
      %p200 = scmp.ne.s32.totalorder %s185, %s199
      %p201 = scmp.eq.s32.totalorder %s44, 0
      %p202 = por %p200, %p201
      %s204 = sadd.s32 %s203, 1
      %p207 = scmp.eq.s32.totalorder %s38, 1
      %p208 = scmp.ne.s32.totalorder %s203, %s205
      %p209 = scmp.eq.s32.totalorder %s38, 0
      %p210 = por %p208, %p209
      %p211 = scmp.ne.s32.totalorder %s203, %s205
      %p212 = scmp.eq.s32.totalorder %s43, 1
      %p213 = por %p211, %p212
      %p214 = scmp.ne.s32.totalorder %s205, %s206
      %p215 = scmp.eq.s32.totalorder %s43, 0
      %p216 = por %p214, %p215
      %p217 = scmp.ne.s32.totalorder %s205, %s206
      %p218 = scmp.eq.s32.totalorder %s44, 1
      %p219 = por %p217, %p218
      %p221 = scmp.ne.s32.totalorder %s206, %s220
      %p222 = scmp.eq.s32.totalorder %s44, 0
      %p223 = por %p221, %p222
      %s225 = sadd.s32 %s224, 1
      %p228 = scmp.eq.s32.totalorder %s38, 1
      %p229 = scmp.ne.s32.totalorder %s224, %s226
      %p230 = scmp.eq.s32.totalorder %s38, 0
      %p231 = por %p229, %p230
      %p232 = scmp.ne.s32.totalorder %s224, %s226
      %p233 = scmp.eq.s32.totalorder %s43, 1
      %p234 = por %p232, %p233
      %p235 = scmp.ne.s32.totalorder %s226, %s227
      %p236 = scmp.eq.s32.totalorder %s43, 0
      %p237 = por %p235, %p236
      %p238 = scmp.ne.s32.totalorder %s226, %s227
      %p239 = scmp.eq.s32.totalorder %s44, 1
      %p240 = por %p238, %p239
      %p242 = scmp.ne.s32.totalorder %s227, %s241
      %p243 = scmp.eq.s32.totalorder %s44, 0
      %p244 = por %p242, %p243
      %s246 = sadd.s32 %s245, 1
      %p249 = scmp.eq.s32.totalorder %s38, 1
      %p250 = scmp.ne.s32.totalorder %s245, %s247
      %p251 = scmp.eq.s32.totalorder %s38, 0
      %p252 = por %p250, %p251
      %p253 = scmp.ne.s32.totalorder %s245, %s247
      %p254 = scmp.eq.s32.totalorder %s43, 1
      %p255 = por %p253, %p254
      %p256 = scmp.ne.s32.totalorder %s247, %s248
      %p257 = scmp.eq.s32.totalorder %s43, 0
      %p258 = por %p256, %p257
      %p259 = scmp.ne.s32.totalorder %s247, %s248
      %p260 = scmp.eq.s32.totalorder %s44, 1
      %p261 = por %p259, %p260
      %p263 = scmp.ne.s32.totalorder %s248, %s262
      %p264 = scmp.eq.s32.totalorder %s44, 0
      %p265 = por %p263, %p264
      %s267 = sadd.s32 %s266, 1
      %p270 = scmp.eq.s32.totalorder %s38, 1
      %p271 = scmp.ne.s32.totalorder %s266, %s268
      %p272 = scmp.eq.s32.totalorder %s38, 0
      %p273 = por %p271, %p272
      %p274 = scmp.ne.s32.totalorder %s266, %s268
      %p275 = scmp.eq.s32.totalorder %s43, 1
      %p276 = por %p274, %p275
      %p277 = scmp.ne.s32.totalorder %s268, %s269
      %p278 = scmp.eq.s32.totalorder %s43, 0
      %p279 = por %p277, %p278
      %p280 = scmp.ne.s32.totalorder %s268, %s269
      %p281 = scmp.eq.s32.totalorder %s44, 1
      %p282 = por %p280, %p281
      %p284 = scmp.ne.s32.totalorder %s269, %s283
      %p285 = scmp.eq.s32.totalorder %s44, 0
      %p286 = por %p284, %p285
      %s288 = sadd.s32 %s287, 1
      %p291 = scmp.eq.s32.totalorder %s38, 1
      %p292 = scmp.ne.s32.totalorder %s287, %s289
      %p293 = scmp.eq.s32.totalorder %s38, 0
      %p294 = por %p292, %p293
      %p295 = scmp.ne.s32.totalorder %s287, %s289
      %p296 = scmp.eq.s32.totalorder %s43, 1
      %p297 = por %p295, %p296
      %p298 = scmp.ne.s32.totalorder %s289, %s290
      %p299 = scmp.eq.s32.totalorder %s43, 0
      %p300 = por %p298, %p299
      %p301 = scmp.ne.s32.totalorder %s289, %s290
      %p302 = scmp.eq.s32.totalorder %s44, 1
      %p303 = por %p301, %p302
      %p305 = scmp.ne.s32.totalorder %s290, %s304
      %p306 = scmp.eq.s32.totalorder %s44, 0
      %p307 = por %p305, %p306
      %s309 = sadd.s32 %s308, 1
      %p312 = scmp.eq.s32.totalorder %s38, 1
      %p313 = scmp.ne.s32.totalorder %s308, %s310
      %p314 = scmp.eq.s32.totalorder %s38, 0
      %p315 = por %p313, %p314
      %p316 = scmp.ne.s32.totalorder %s308, %s310
      %p317 = scmp.eq.s32.totalorder %s43, 1
      %p318 = por %p316, %p317
      %p319 = scmp.ne.s32.totalorder %s310, %s311
      %p320 = scmp.eq.s32.totalorder %s43, 0
      %p321 = por %p319, %p320
      %p322 = scmp.ne.s32.totalorder %s310, %s311
      %p323 = scmp.eq.s32.totalorder %s44, 1
      %p324 = por %p322, %p323
      %p326 = scmp.ne.s32.totalorder %s311, %s325
      %p327 = scmp.eq.s32.totalorder %s44, 0
      %p328 = por %p326, %p327
      %s330 = sadd.s32 %s329, 1
      %p333 = scmp.eq.s32.totalorder %s38, 1
      %p334 = scmp.ne.s32.totalorder %s329, %s331
      %p335 = scmp.eq.s32.totalorder %s38, 0
      %p336 = por %p334, %p335
      %p337 = scmp.ne.s32.totalorder %s329, %s331
      %p338 = scmp.eq.s32.totalorder %s43, 1
      %p339 = por %p337, %p338
      %p340 = scmp.ne.s32.totalorder %s331, %s332
      %p341 = scmp.eq.s32.totalorder %s43, 0
      %p342 = por %p340, %p341
      %p343 = scmp.ne.s32.totalorder %s331, %s332
      %p344 = scmp.eq.s32.totalorder %s44, 1
      %p345 = por %p343, %p344
      %p347 = scmp.ne.s32.totalorder %s332, %s346
      %p348 = scmp.eq.s32.totalorder %s44, 0
      %p349 = por %p347, %p348
      %s351 = sadd.s32 %s350, 1
      %p354 = scmp.eq.s32.totalorder %s38, 1
      %p355 = scmp.ne.s32.totalorder %s350, %s352
      %p356 = scmp.eq.s32.totalorder %s38, 0
      %p357 = por %p355, %p356
      %p358 = scmp.ne.s32.totalorder %s350, %s352
      %p359 = scmp.eq.s32.totalorder %s43, 1
      %p360 = por %p358, %p359
      %p361 = scmp.ne.s32.totalorder %s352, %s353
      %p362 = scmp.eq.s32.totalorder %s43, 0
      %p363 = por %p361, %p362
      %p364 = scmp.ne.s32.totalorder %s352, %s353
      %p365 = scmp.eq.s32.totalorder %s44, 1
      %p366 = por %p364, %p365
      %p368 = scmp.ne.s32.totalorder %s353, %s367
      %p369 = scmp.eq.s32.totalorder %s44, 0
      %p370 = por %p368, %p369
      %s372 = sadd.s32 %s371, 1
      %p375 = scmp.eq.s32.totalorder %s38, 1
      %p376 = scmp.ne.s32.totalorder %s371, %s373
      %p377 = scmp.eq.s32.totalorder %s38, 0
      %p378 = por %p376, %p377
      %p379 = scmp.ne.s32.totalorder %s371, %s373
      %p380 = scmp.eq.s32.totalorder %s43, 1
      %p381 = por %p379, %p380
      %p382 = scmp.ne.s32.totalorder %s373, %s374
      %p383 = scmp.eq.s32.totalorder %s43, 0
      %p384 = por %p382, %p383
      %p385 = scmp.ne.s32.totalorder %s373, %s374
      %p386 = scmp.eq.s32.totalorder %s44, 1
      %p387 = por %p385, %p386
      %p389 = scmp.ne.s32.totalorder %s374, %s388
      %p390 = scmp.eq.s32.totalorder %s44, 0
      %p391 = por %p389, %p390
      %s392 = ssub.s32 %s38, %s45
      %p393 = scmp.eq.s32.totalorder %s392, 0
      %s395 = sadd.s32 %s394, 1
      %s396 = scalar_select %p393, %s394, %s395
      %p399 = pneg %p393
      %p400 = scmp.eq.s32.totalorder %s38, 1
      %p401 = por %p399, %p400
      %p402 = scmp.ne.s32.totalorder %s394, %s397
      %p403 = scmp.eq.s32.totalorder %s38, 0
      %p404 = por %p402, %p403
      %p405 = scmp.ne.s32.totalorder %s394, %s397
      %p406 = scmp.eq.s32.totalorder %s43, 1
      %p407 = por %p405, %p406
      %p408 = scmp.ne.s32.totalorder %s397, %s398
      %p409 = scmp.eq.s32.totalorder %s43, 0
      %p410 = por %p408, %p409
      %p411 = scmp.ne.s32.totalorder %s397, %s398
      %p412 = scmp.eq.s32.totalorder %s44, 1
      %p413 = por %p411, %p412
      %p415 = scmp.ne.s32.totalorder %s398, %s414
      %p416 = scmp.eq.s32.totalorder %s44, 0
      %p417 = por %p415, %p416
      %p418 = scmp.le.s32.totalorder 1, %s38
      %p419 = scmp.lt.s32.totalorder %s38, 3
      %p420 = pnand %p418, %p419
      %p421 = pneg %p420
      // Predicated region
      $region9: #{two_stream_block_pallas.4} parent=5 // pred_check
        _
      $region10: #{two_stream_block_pallas.4} parent=5 // pred_check_branch
        %423 = sbr.rel (%p420) target = $region12
      $region11: #{two_stream_block_pallas.4} parent=5 // pred_region
        %s424 = ssub.s32 %s38, 1
        // Predicated region
        $region13: #{two_stream_block_pallas.4} parent=11 // pred_check
          %p425 = pneg %p111
        $region14: #{two_stream_block_pallas.4} parent=11 // pred_check_branch
          %427 = sbr.rel (%p425) target = $region16
        $region15: #{two_stream_block_pallas.4} parent=11 // pred_region
          %s429 = ssub.s32 16, 16
          %430 = vsyncadd [#allocation6], %s429
          %s432 = sshll.u32 [#allocation7], 4
          %s433 = int_to_ptr.vmem [resolvable:$true] %s432
          %435 = dma.hbm_to_vmem [thread:$0]  %s2, 16, %s433, [#allocation6]
        $region16: #{two_stream_block_pallas.4} parent=11 // pred_fallthru
          _
        // Predicated region
        $region17: #{two_stream_block_pallas.4} parent=11 // pred_check
          %p436 = pneg %p132
        $region18: #{two_stream_block_pallas.4} parent=11 // pred_check_branch
          %438 = sbr.rel (%p436) target = $region20
        $region19: #{two_stream_block_pallas.4} parent=11 // pred_region
          %s440 = ssub.s32 16, 16
          %441 = vsyncadd [#allocation9], %s440
          %s443 = sshll.u32 [#allocation8], 4
          %s444 = int_to_ptr.vmem [resolvable:$true] %s443
          %446 = dma.hbm_to_vmem [thread:$0]  %s3, 16, %s444, [#allocation9]
        $region20: #{two_stream_block_pallas.4} parent=11 // pred_fallthru
          _
        // Predicated region
        $region21: #{two_stream_block_pallas.4} parent=11 // pred_check
          %p447 = pneg %p153
        $region22: #{two_stream_block_pallas.4} parent=11 // pred_check_branch
          %449 = sbr.rel (%p447) target = $region24
        $region23: #{two_stream_block_pallas.4} parent=11 // pred_region
          %s451 = ssub.s32 16, 16
          %452 = vsyncadd [#allocation9], %s451
          %s454 = sshll.u32 [#allocation10], 4
          %s455 = int_to_ptr.vmem [resolvable:$true] %s454
          %457 = dma.hbm_to_vmem [thread:$0]  %s4, 16, %s455, [#allocation9]
        $region24: #{two_stream_block_pallas.4} parent=11 // pred_fallthru
          _
        // Predicated region
        $region25: #{two_stream_block_pallas.4} parent=11 // pred_check
          %p458 = pneg %p174
        $region26: #{two_stream_block_pallas.4} parent=11 // pred_check_branch
          %460 = sbr.rel (%p458) target = $region28
        $region27: #{two_stream_block_pallas.4} parent=11 // pred_region
          %s462 = ssub.s32 16, 16
          %463 = vsyncadd [#allocation12], %s462
          %s465 = sshll.u32 [#allocation11], 4
          %s466 = int_to_ptr.vmem [resolvable:$true] %s465
          %468 = dma.hbm_to_vmem [thread:$0]  %s5, 16, %s466, [#allocation12]
        $region28: #{two_stream_block_pallas.4} parent=11 // pred_fallthru
          _
        // Predicated region
        $region29: #{two_stream_block_pallas.4} parent=11 // pred_check
          %p469 = pneg %p195
        $region30: #{two_stream_block_pallas.4} parent=11 // pred_check_branch
          %471 = sbr.rel (%p469) target = $region32
        $region31: #{two_stream_block_pallas.4} parent=11 // pred_region
          %s473 = ssub.s32 1024, 1024
          %474 = vsyncadd [#allocation12], %s473
          %s475 = sshll.u32 [#allocation13], 4
          %s476 = int_to_ptr.vmem [resolvable:$true] %s475
          %481 = dma.hbm_to_vmem [thread:$0]  %s6, 1024, %s476, [#allocation12], 128, 128, 8
        $region32: #{two_stream_block_pallas.4} parent=11 // pred_fallthru
          _
        // Predicated region
        $region33: #{two_stream_block_pallas.4} parent=11 // pred_check
          %p482 = pneg %p216
        $region34: #{two_stream_block_pallas.4} parent=11 // pred_check_branch
          %484 = sbr.rel (%p482) target = $region36
        $region35: #{two_stream_block_pallas.4} parent=11 // pred_region
          %s486 = ssub.s32 512, 512
          %487 = vsyncadd [#allocation15], %s486
          %s488 = sshll.u32 [#allocation14], 4
          %s489 = int_to_ptr.vmem [resolvable:$true] %s488
          %494 = dma.hbm_to_vmem [thread:$0]  %s7, 512, %s489, [#allocation15], 128, 128, 8
        $region36: #{two_stream_block_pallas.4} parent=11 // pred_fallthru
          _
        // Predicated region
        $region37: #{two_stream_block_pallas.4} parent=11 // pred_check
          %p495 = pneg %p237
        $region38: #{two_stream_block_pallas.4} parent=11 // pred_check_branch
          %497 = sbr.rel (%p495) target = $region40
        $region39: #{two_stream_block_pallas.4} parent=11 // pred_region
          %s499 = ssub.s32 1024, 1024
          %500 = vsyncadd [#allocation15], %s499
          %s501 = sshll.u32 [#allocation16], 4
          %s502 = int_to_ptr.vmem [resolvable:$true] %s501
          %507 = dma.hbm_to_vmem [thread:$0]  %s8, 1024, %s502, [#allocation15], 128, 128, 8
        $region40: #{two_stream_block_pallas.4} parent=11 // pred_fallthru
          _
        // Predicated region
        $region41: #{two_stream_block_pallas.4} parent=11 // pred_check
          %p508 = pneg %p258
        $region42: #{two_stream_block_pallas.4} parent=11 // pred_check_branch
          %510 = sbr.rel (%p508) target = $region44
        $region43: #{two_stream_block_pallas.4} parent=11 // pred_region
          %s512 = ssub.s32 16, 16
          %513 = vsyncadd [#allocation18], %s512
          %s515 = sshll.u32 [#allocation17], 4
          %s516 = int_to_ptr.vmem [resolvable:$true] %s515
          %518 = dma.hbm_to_vmem [thread:$0]  %s9, 16, %s516, [#allocation18]
        $region44: #{two_stream_block_pallas.4} parent=11 // pred_fallthru
          _
        // Predicated region
        $region45: #{two_stream_block_pallas.4} parent=11 // pred_check
          %p519 = pneg %p279
        $region46: #{two_stream_block_pallas.4} parent=11 // pred_check_branch
          %521 = sbr.rel (%p519) target = $region48
        $region47: #{two_stream_block_pallas.4} parent=11 // pred_region
          %s523 = ssub.s32 16, 16
          %524 = vsyncadd [#allocation18], %s523
          %s526 = sshll.u32 [#allocation19], 4
          %s527 = int_to_ptr.vmem [resolvable:$true] %s526
          %529 = dma.hbm_to_vmem [thread:$0]  %s10, 16, %s527, [#allocation18]
        $region48: #{two_stream_block_pallas.4} parent=11 // pred_fallthru
          _
        // Predicated region
        $region49: #{two_stream_block_pallas.4} parent=11 // pred_check
          %p530 = pneg %p300
        $region50: #{two_stream_block_pallas.4} parent=11 // pred_check_branch
          %532 = sbr.rel (%p530) target = $region52
        $region51: #{two_stream_block_pallas.4} parent=11 // pred_region
          %s534 = ssub.s32 16, 16
          %535 = vsyncadd [#allocation21], %s534
          %s537 = sshll.u32 [#allocation20], 4
          %s538 = int_to_ptr.vmem [resolvable:$true] %s537
          %540 = dma.hbm_to_vmem [thread:$0]  %s11, 16, %s538, [#allocation21]
        $region52: #{two_stream_block_pallas.4} parent=11 // pred_fallthru
          _
        // Predicated region
        $region53: #{two_stream_block_pallas.4} parent=11 // pred_check
          %p541 = pneg %p321
        $region54: #{two_stream_block_pallas.4} parent=11 // pred_check_branch
          %543 = sbr.rel (%p541) target = $region56
        $region55: #{two_stream_block_pallas.4} parent=11 // pred_region
          %s545 = ssub.s32 2048, 2048
          %546 = vsyncadd [#allocation21], %s545
          %s547 = sshll.u32 [#allocation22], 4
          %s548 = int_to_ptr.vmem [resolvable:$true] %s547
          %553 = dma.hbm_to_vmem [thread:$0]  %s12, 2048, %s548, [#allocation21], 256, 256, 16
        $region56: #{two_stream_block_pallas.4} parent=11 // pred_fallthru
          _
        // Predicated region
        $region57: #{two_stream_block_pallas.4} parent=11 // pred_check
          %p554 = pneg %p342
        $region58: #{two_stream_block_pallas.4} parent=11 // pred_check_branch
          %556 = sbr.rel (%p554) target = $region60
        $region59: #{two_stream_block_pallas.4} parent=11 // pred_region
          %s558 = ssub.s32 32, 32
          %559 = vsyncadd [#allocation24], %s558
          %s561 = sshll.u32 [#allocation23], 4
          %s562 = int_to_ptr.vmem [resolvable:$true] %s561
          %564 = dma.hbm_to_vmem [thread:$0]  %s13, 32, %s562, [#allocation24]
        $region60: #{two_stream_block_pallas.4} parent=11 // pred_fallthru
          _
        // Predicated region
        $region61: #{two_stream_block_pallas.4} parent=11 // pred_check
          %p565 = pneg %p363
        $region62: #{two_stream_block_pallas.4} parent=11 // pred_check_branch
          %567 = sbr.rel (%p565) target = $region64
        $region63: #{two_stream_block_pallas.4} parent=11 // pred_region
          %s569 = ssub.s32 4096, 4096
          %570 = vsyncadd [#allocation24], %s569
          %s571 = sshll.u32 [#allocation25], 4
          %s572 = int_to_ptr.vmem [resolvable:$true] %s571
          %577 = dma.hbm_to_vmem [thread:$0]  %s14, 4096, %s572, [#allocation24], 128, 128, 8
        $region64: #{two_stream_block_pallas.4} parent=11 // pred_fallthru
          _
        // Predicated region
        $region65: #{two_stream_block_pallas.4} parent=11 // pred_check
          %p578 = pneg %p384
        $region66: #{two_stream_block_pallas.4} parent=11 // pred_check_branch
          %580 = sbr.rel (%p578) target = $region68
        $region67: #{two_stream_block_pallas.4} parent=11 // pred_region
          %s582 = ssub.s32 16, 16
          %583 = vsyncadd [#allocation27], %s582
          %s585 = sshll.u32 [#allocation26], 4
          %s586 = int_to_ptr.vmem [resolvable:$true] %s585
          %588 = dma.hbm_to_vmem [thread:$0]  %s15, 16, %s586, [#allocation27]
        $region68: #{two_stream_block_pallas.4} parent=11 // pred_fallthru
          _
      $region12: #{two_stream_block_pallas.4} parent=5 // pred_fallthru
        _
      %p589 = scmp.lt.s32.totalorder %s38, 2
      // Predicated region
      $region69: #{two_stream_block_pallas.4} parent=5 // pred_check
        %p590 = pneg %p589
      $region70: #{two_stream_block_pallas.4} parent=5 // pred_check_branch
        %592 = sbr.rel (%p590) target = $region72
      $region71: #{two_stream_block_pallas.4} parent=5 // pred_region
        // Predicated region
        $region73: #{two_stream_block_pallas.4} parent=71 // pred_check
          %p593 = pneg %p58
        $region74: #{two_stream_block_pallas.4} parent=71 // pred_check_branch
          %595 = sbr.rel (%p593) target = $region76
        $region75: #{two_stream_block_pallas.4} parent=71 // pred_region
          %s596 = sand.u32 %s48, 1
          %s597 = scalar_lea.sflag [#allocation3], %s596
          %s598 = sand.u32 %s48, 1
          %s599 = smul.addr %s598, 16
          %s600 = scalar_lea.vmem [#allocation2], %s599
          %s602 = ssub.s32 256, 256
          %603 = vsyncadd %s597, %s602
          %s604 = smul.addr %s38, 2
          %s605 = smul.addr %s604, 128
          %s606 = scalar_lea.hbm %s0, %s605
          %s607 = sshll.u32 %s600, 4
          %s608 = int_to_ptr.vmem [resolvable:$true] %s607
          %613 = dma.hbm_to_vmem [thread:$0]  %s606, 256, %s608, %s597, 128, 128, 8
        $region76: #{two_stream_block_pallas.4} parent=71 // pred_fallthru
          _
        // Predicated region
        $region77: #{two_stream_block_pallas.4} parent=71 // pred_check
          %p614 = pneg %p84
        $region78: #{two_stream_block_pallas.4} parent=71 // pred_check_branch
          %616 = sbr.rel (%p614) target = $region80
        $region79: #{two_stream_block_pallas.4} parent=71 // pred_region
          %s617 = sand.u32 %s38, 1
          %s618 = scalar_lea.sflag [#allocation6], %s617
          %s619 = sand.u32 %s74, 1
          %s620 = smul.addr %s619, 32
          %s621 = scalar_lea.vmem [#allocation5], %s620
          %s623 = ssub.s32 512, 512
          %624 = vsyncadd %s618, %s623
          %s625 = smul.addr %s38, 4
          %s626 = smul.addr %s625, 128
          %s627 = scalar_lea.hbm %s1, %s626
          %s628 = sshll.u32 %s621, 4
          %s629 = int_to_ptr.vmem [resolvable:$true] %s628
          %634 = dma.hbm_to_vmem [thread:$0]  %s627, 512, %s629, %s618, 128, 128, 8
        $region80: #{two_stream_block_pallas.4} parent=71 // pred_fallthru
          _
      $region72: #{two_stream_block_pallas.4} parent=5 // pred_fallthru
        _
      %p635 = scmp.le.s32.totalorder 1, %s38
      %p636 = scmp.lt.s32.totalorder %s38, 3
      %p637 = pnand %p635, %p636
      %p638 = pneg %p637
      // Predicated region
      $region81: #{two_stream_block_pallas.4} parent=5 // pred_check
        _
      $region82: #{two_stream_block_pallas.4} parent=5 // pred_check_branch
        %640 = sbr.rel (%p637) target = $region84
      $region83: #{two_stream_block_pallas.4} parent=5 // pred_region
        %s641 = ssub.s32 %s38, 1
        %s642 = sand.u32 %s51, 1
        %s643 = scalar_lea.sflag [#allocation3], %s642
        %s644 = sand.u32 %s51, 1
        %s645 = smul.addr %s644, 16
        %s646 = scalar_lea.vmem [#allocation2], %s645
        // Predicated region
        $region85: #{two_stream_block_pallas.4} parent=83 // pred_check
          %p647 = pneg %p64
        $region86: #{two_stream_block_pallas.4} parent=83 // pred_check_branch
          %649 = sbr.rel (%p647) target = $region88
        $region87: #{two_stream_block_pallas.4} parent=83 // pred_region
          %650 = dma.done %s643, 256
        $region88: #{two_stream_block_pallas.4} parent=83 // pred_fallthru
          _
        %s651 = sand.u32 %s43, 1
        %s652 = scalar_lea.sflag [#allocation6], %s651
        %s653 = sand.u32 %s77, 1
        %s654 = smul.addr %s653, 32
        %s655 = scalar_lea.vmem [#allocation5], %s654
        // Predicated region
        $region89: #{two_stream_block_pallas.4} parent=83 // pred_check
          %p656 = pneg %p90
        $region90: #{two_stream_block_pallas.4} parent=83 // pred_check_branch
          %658 = sbr.rel (%p656) target = $region92
        $region91: #{two_stream_block_pallas.4} parent=83 // pred_region
          %659 = dma.done %s652, 512
        $region92: #{two_stream_block_pallas.4} parent=83 // pred_fallthru
          _
        // Predicated region
        $region93: #{two_stream_block_pallas.4} parent=83 // pred_check
          %p660 = pneg %p111
        $region94: #{two_stream_block_pallas.4} parent=83 // pred_check_branch
          %662 = sbr.rel (%p660) target = $region96
        $region95: #{two_stream_block_pallas.4} parent=83 // pred_region
          %663 = dma.done [#allocation6], 16
        $region96: #{two_stream_block_pallas.4} parent=83 // pred_fallthru
          _
        // Predicated region
        $region97: #{two_stream_block_pallas.4} parent=83 // pred_check
          %p664 = pneg %p132
        $region98: #{two_stream_block_pallas.4} parent=83 // pred_check_branch
          %666 = sbr.rel (%p664) target = $region100
        $region99: #{two_stream_block_pallas.4} parent=83 // pred_region
          %667 = dma.done [#allocation9], 16
        $region100: #{two_stream_block_pallas.4} parent=83 // pred_fallthru
          _
        // Predicated region
        $region101: #{two_stream_block_pallas.4} parent=83 // pred_check
          %p668 = pneg %p153
        $region102: #{two_stream_block_pallas.4} parent=83 // pred_check_branch
          %670 = sbr.rel (%p668) target = $region104
        $region103: #{two_stream_block_pallas.4} parent=83 // pred_region
          %671 = dma.done [#allocation9], 16
        $region104: #{two_stream_block_pallas.4} parent=83 // pred_fallthru
          _
        // Predicated region
        $region105: #{two_stream_block_pallas.4} parent=83 // pred_check
          %p672 = pneg %p174
        $region106: #{two_stream_block_pallas.4} parent=83 // pred_check_branch
          %674 = sbr.rel (%p672) target = $region108
        $region107: #{two_stream_block_pallas.4} parent=83 // pred_region
          %675 = dma.done [#allocation12], 16
        $region108: #{two_stream_block_pallas.4} parent=83 // pred_fallthru
          _
        // Predicated region
        $region109: #{two_stream_block_pallas.4} parent=83 // pred_check
          %p676 = pneg %p195
        $region110: #{two_stream_block_pallas.4} parent=83 // pred_check_branch
          %678 = sbr.rel (%p676) target = $region112
        $region111: #{two_stream_block_pallas.4} parent=83 // pred_region
          %679 = dma.done [#allocation12], 1024
        $region112: #{two_stream_block_pallas.4} parent=83 // pred_fallthru
          _
        // Predicated region
        $region113: #{two_stream_block_pallas.4} parent=83 // pred_check
          %p680 = pneg %p216
        $region114: #{two_stream_block_pallas.4} parent=83 // pred_check_branch
          %682 = sbr.rel (%p680) target = $region116
        $region115: #{two_stream_block_pallas.4} parent=83 // pred_region
          %683 = dma.done [#allocation15], 512
        $region116: #{two_stream_block_pallas.4} parent=83 // pred_fallthru
          _
        // Predicated region
        $region117: #{two_stream_block_pallas.4} parent=83 // pred_check
          %p684 = pneg %p237
        $region118: #{two_stream_block_pallas.4} parent=83 // pred_check_branch
          %686 = sbr.rel (%p684) target = $region120
        $region119: #{two_stream_block_pallas.4} parent=83 // pred_region
          %687 = dma.done [#allocation15], 1024
        $region120: #{two_stream_block_pallas.4} parent=83 // pred_fallthru
          _
        // Predicated region
        $region121: #{two_stream_block_pallas.4} parent=83 // pred_check
          %p688 = pneg %p258
        $region122: #{two_stream_block_pallas.4} parent=83 // pred_check_branch
          %690 = sbr.rel (%p688) target = $region124
        $region123: #{two_stream_block_pallas.4} parent=83 // pred_region
          %691 = dma.done [#allocation18], 16
        $region124: #{two_stream_block_pallas.4} parent=83 // pred_fallthru
          _
        // Predicated region
        $region125: #{two_stream_block_pallas.4} parent=83 // pred_check
          %p692 = pneg %p279
        $region126: #{two_stream_block_pallas.4} parent=83 // pred_check_branch
          %694 = sbr.rel (%p692) target = $region128
        $region127: #{two_stream_block_pallas.4} parent=83 // pred_region
          %695 = dma.done [#allocation18], 16
        $region128: #{two_stream_block_pallas.4} parent=83 // pred_fallthru
          _
        // Predicated region
        $region129: #{two_stream_block_pallas.4} parent=83 // pred_check
          %p696 = pneg %p300
        $region130: #{two_stream_block_pallas.4} parent=83 // pred_check_branch
          %698 = sbr.rel (%p696) target = $region132
        $region131: #{two_stream_block_pallas.4} parent=83 // pred_region
          %699 = dma.done [#allocation21], 16
        $region132: #{two_stream_block_pallas.4} parent=83 // pred_fallthru
          _
        // Predicated region
        $region133: #{two_stream_block_pallas.4} parent=83 // pred_check
          %p700 = pneg %p321
        $region134: #{two_stream_block_pallas.4} parent=83 // pred_check_branch
          %702 = sbr.rel (%p700) target = $region136
        $region135: #{two_stream_block_pallas.4} parent=83 // pred_region
          %703 = dma.done [#allocation21], 2048
        $region136: #{two_stream_block_pallas.4} parent=83 // pred_fallthru
          _
        // Predicated region
        $region137: #{two_stream_block_pallas.4} parent=83 // pred_check
          %p704 = pneg %p342
        $region138: #{two_stream_block_pallas.4} parent=83 // pred_check_branch
          %706 = sbr.rel (%p704) target = $region140
        $region139: #{two_stream_block_pallas.4} parent=83 // pred_region
          %707 = dma.done [#allocation24], 32
        $region140: #{two_stream_block_pallas.4} parent=83 // pred_fallthru
          _
        // Predicated region
        $region141: #{two_stream_block_pallas.4} parent=83 // pred_check
          %p708 = pneg %p363
        $region142: #{two_stream_block_pallas.4} parent=83 // pred_check_branch
          %710 = sbr.rel (%p708) target = $region144
        $region143: #{two_stream_block_pallas.4} parent=83 // pred_region
          %711 = dma.done [#allocation24], 4096
        $region144: #{two_stream_block_pallas.4} parent=83 // pred_fallthru
          _
        // Predicated region
        $region145: #{two_stream_block_pallas.4} parent=83 // pred_check
          %p712 = pneg %p384
        $region146: #{two_stream_block_pallas.4} parent=83 // pred_check_branch
          %714 = sbr.rel (%p712) target = $region148
        $region147: #{two_stream_block_pallas.4} parent=83 // pred_region
          %715 = dma.done [#allocation27], 16
        $region148: #{two_stream_block_pallas.4} parent=83 // pred_fallthru
          _
        %s716 = sand.u32 %s51, 1
        %s717 = scalar_lea.sflag [#allocation3], %s716
        %s718 = sand.u32 %s51, 1
        %s719 = smul.addr %s718, 16
        %s720 = scalar_lea.vmem [#allocation2], %s719
        %p721 = pneg %p64
        %p722 = pneg %p61
        %s723 = sand.u32 %s43, 1
        %s724 = scalar_lea.sflag [#allocation6], %s723
        %s725 = sand.u32 %s77, 1
        %s726 = smul.addr %s725, 32
        %s727 = scalar_lea.vmem [#allocation5], %s726
        %p728 = pneg %p90
        %p729 = pneg %p87
        %p730 = pneg %p111
        %p731 = pneg %p108
        %p732 = pneg %p132
        %p733 = pneg %p129
        %p734 = pneg %p153
        %p735 = pneg %p150
        %p736 = pneg %p174
        %p737 = pneg %p171
        %p738 = pneg %p195
        %p739 = pneg %p192
        %p740 = pneg %p216
        %p741 = pneg %p213
        %p742 = pneg %p237
        %p743 = pneg %p234
        %p744 = pneg %p258
        %p745 = pneg %p255
        %p746 = pneg %p279
        %p747 = pneg %p276
        %p748 = pneg %p300
        %p749 = pneg %p297
        %p750 = pneg %p321
        %p751 = pneg %p318
        %p752 = pneg %p342
        %p753 = pneg %p339
        %p754 = pneg %p363
        %p755 = pneg %p360
        %p756 = pneg %p384
        %p757 = pneg %p381
        %p758 = pneg %p410
        %p759 = pneg %p407
        %s760 = sand.u32 %s397, 1
        %s761 = scalar_lea.sflag [#allocation4], %s760
        %s762 = sand.u32 %s397, 1
        %s763 = smul.addr %s762, 16
        %s764 = scalar_lea.vmem [#allocation28], %s763
        %v765 = vld [vmem:[%s646] sm:$0xff]
        %v766 = vld [vmem:[%s646 + $0x8] sm:$0xff]
        %v767 = vld [vmem:[%s655] sm:$0xff]
        %v768 = vld [vmem:[%s655 + $0x8] sm:$0xff]
        %v769 = vld [vmem:[%s655 + $0x10] sm:$0xff]
        %v770 = vld [vmem:[%s655 + $0x18] sm:$0xff]
        %v771 = vld [vmem:[#allocation10] sm:$0x1]
        %v772 = vld [vmem:[#allocation11] sm:$0x1]
        %vm773 = vcmask 523264
        %v774 = vsel %vm773, %v765, 0.0
        %775 = vadd.xlane.f32.xlu0 %v774
        %v776 = vpop.xlane.xlu0 %775
        %v777 = vsel %vm773, %v766, 0.0
        %778 = vadd.xlane.f32.xlu0 %v777
        %v779 = vpop.xlane.xlu0 %778
        %v780 = vrcp.pop 64.0
        %v781 = vmul.f32 %v776, %v780
        %v782 = vmul.f32 %v779, %v780
        %v783 = vsub.f32 %v765, %v781
        %v784 = vsub.f32 %v766, %v782
        %v785 = vmul.f32 %v783, %v783
        %v786 = vmul.f32 %v784, %v784
        %v787 = vsel %vm773, %v785, 0.0
        %788 = vadd.xlane.f32.xlu0 %v787
        %v789 = vpop.xlane.xlu0 %788
        %v790 = vsel %vm773, %v786, 0.0
        %791 = vadd.xlane.f32.xlu0 %v790
        %v792 = vpop.xlane.xlu0 %791
        %v793 = vmul.f32 %v789, %v780
        %v794 = vmul.f32 %v792, %v780
        %v795 = vadd.f32 %v793, 1e-05
        %v796 = vadd.f32 %v794, 1e-05
        %v797 = vrsqrt.pop %v795
        %v798 = vrsqrt.pop %v796
        %v799 = vmul.f32 %v783, %v797
        %v800 = vmul.f32 %v784, %v798
        %v802 = vlaneseq
        %v803 = vshrl.u32 %v802, 7
        %v804 = vsub.s32 0, %v803
        %v805 = vrot.slane %v771, %v804
        %v807 = vmul.f32 %v799, %v805
        %v808 = vmul.f32 %v800, %v805
        %v810 = vlaneseq
        %v811 = vshrl.u32 %v810, 7
        %v812 = vsub.s32 0, %v811
        %v813 = vrot.slane %v772, %v812
        %v815 = vadd.f32 %v807, %v813
        %v816 = vadd.f32 %v808, %v813
        %v817 = vld [vmem:[#allocation7] sm:$0x1]
        %v818 = vld [vmem:[#allocation8] sm:$0x1]
        %vm819 = vcmask 261120
        %v820 = vsel %vm819, %v767, 0.0
        %821 = vadd.xlane.f32.xlu0 %v820
        %v822 = vpop.xlane.xlu0 %821
        %v823 = vsel %vm819, %v768, 0.0
        %824 = vadd.xlane.f32.xlu0 %v823
        %v825 = vpop.xlane.xlu0 %824
        %v826 = vsel %vm819, %v769, 0.0
        %827 = vadd.xlane.f32.xlu0 %v826
        %v828 = vpop.xlane.xlu0 %827
        %v829 = vsel %vm819, %v770, 0.0
        %830 = vadd.xlane.f32.xlu0 %v829
        %v831 = vpop.xlane.xlu0 %830
        %v832 = vrcp.pop 32.0
        %v833 = vmul.f32 %v822, %v832
        %v834 = vmul.f32 %v825, %v832
        %v835 = vmul.f32 %v828, %v832
        %v836 = vmul.f32 %v831, %v832
        %v837 = vsub.f32 %v767, %v833
        %v838 = vsub.f32 %v768, %v834
        %v839 = vsub.f32 %v769, %v835
        %v840 = vsub.f32 %v770, %v836
        %v841 = vmul.f32 %v837, %v837
        %v842 = vmul.f32 %v838, %v838
        %v843 = vmul.f32 %v839, %v839
        %v844 = vmul.f32 %v840, %v840
        %v845 = vsel %vm819, %v841, 0.0
        %846 = vadd.xlane.f32.xlu0 %v845
        %v847 = vpop.xlane.xlu0 %846
        %v848 = vsel %vm819, %v842, 0.0
        %849 = vadd.xlane.f32.xlu0 %v848
        %v850 = vpop.xlane.xlu0 %849
        %v851 = vsel %vm819, %v843, 0.0
        %852 = vadd.xlane.f32.xlu0 %v851
        %v853 = vpop.xlane.xlu0 %852
        %v854 = vsel %vm819, %v844, 0.0
        %855 = vadd.xlane.f32.xlu0 %v854
        %v856 = vpop.xlane.xlu0 %855
        %v857 = vmul.f32 %v847, %v832
        %v858 = vmul.f32 %v850, %v832
        %v859 = vmul.f32 %v853, %v832
        %v860 = vmul.f32 %v856, %v832
        %v861 = vadd.f32 %v857, 1e-05
        %v862 = vadd.f32 %v858, 1e-05
        %v863 = vadd.f32 %v859, 1e-05
        %v864 = vadd.f32 %v860, 1e-05
        %v865 = vrsqrt.pop %v861
        %v866 = vrsqrt.pop %v862
        %v867 = vrsqrt.pop %v863
        %v868 = vrsqrt.pop %v864
        %v869 = vmul.f32 %v837, %v865
        %v870 = vmul.f32 %v838, %v866
        %v871 = vmul.f32 %v839, %v867
        %v872 = vmul.f32 %v840, %v868
        %v874 = vlaneseq
        %v875 = vshrl.u32 %v874, 7
        %v876 = vsub.s32 0, %v875
        %v877 = vrot.slane %v817, %v876
        %v879 = vmul.f32 %v869, %v877
        %v880 = vmul.f32 %v870, %v877
        %v881 = vmul.f32 %v871, %v877
        %v882 = vmul.f32 %v872, %v877
        %v884 = vlaneseq
        %v885 = vshrl.u32 %v884, 7
        %v886 = vsub.s32 0, %v885
        %v887 = vrot.slane %v818, %v886
        %v889 = vadd.f32 %v879, %v887
        %v890 = vadd.f32 %v880, %v887
        %v891 = vadd.f32 %v881, %v887
        %v892 = vadd.f32 %v882, %v887
        %v893 = vld [vmem:[#allocation13] sm:$0xff]
        %v894 = vld [vmem:[#allocation13 + $0x8] sm:$0xff]
        %v895 = vld [vmem:[#allocation13 + $0x10] sm:$0xff]
        %v896 = vld [vmem:[#allocation13 + $0x18] sm:$0xff]
        %v897 = vld [vmem:[#allocation13 + $0x20] sm:$0xff]
        %v898 = vld [vmem:[#allocation13 + $0x28] sm:$0xff]
        %v899 = vld [vmem:[#allocation13 + $0x30] sm:$0xff]
        %v900 = vld [vmem:[#allocation13 + $0x38] sm:$0xff]
        %v902 = vsel %vm773, %v815, 0
        %v905 = vsel %vm773, %v816, 0
        %907 = vmatprep.subr.mxu0 0.0
        %908 = vmatpush1.msra.mxu0 %v893
        %909 = vmatprep.subr.mxu0 0.0
        %910 = vmatpush1.msra.mxu0 %v894
        %911 = vmatprep.subr.mxu0 0.0
        %912 = vmatpush1.msra.mxu0 %v895
        %913 = vmatprep.subr.mxu0 0.0
        %914 = vmatpush1.msra.mxu0 %v896
        %915 = vmatprep.subr.mxu0 0.0
        %916 = vmatpush1.msra.mxu0 %v897
        %917 = vmatprep.subr.mxu0 0.0
        %918 = vmatpush1.msra.mxu0 %v898
        %919 = vmatprep.subr.mxu0 0.0
        %920 = vmatpush1.msra.mxu0 %v899
        %921 = vmatprep.subr.mxu0 0.0
        %922 = vmatpush1.msra.mxu0 %v900
        %923 = vmatprep.subr.mxu0 0.0
        %924 = vmatpush1.msra.mxu0 0.0
        %925 = vmatprep.subr.mxu0 0.0
        %926 = vmatpush1.msra.mxu0 0.0
        %927 = vmatprep.subr.mxu0 0.0
        %928 = vmatpush1.msra.mxu0 0.0
        %929 = vmatprep.subr.mxu0 0.0
        %930 = vmatpush1.msra.mxu0 0.0
        %931 = vmatprep.subr.mxu0 0.0
        %932 = vmatpush1.msra.mxu0 0.0
        %933 = vmatprep.subr.mxu0 0.0
        %934 = vmatpush1.msra.mxu0 0.0
        %935 = vmatprep.subr.mxu0 0.0
        %936 = vmatpush1.msra.mxu0 0.0
        %937 = vmatprep.subr.mxu0 0.0
        %938 = vmatpush1.msra.mxu0 0.0
        %939 = vmatprep.subr.mxu0 0.0
        %940 = vmatpush1.msra.mxu0 0.0
        %941 = vmatprep.subr.mxu0 0.0
        %942 = vmatpush1.msra.mxu0 0.0
        %943 = vmatprep.subr.mxu0 0.0
        %944 = vmatpush1.msra.mxu0 0.0
        %945 = vmatprep.subr.mxu0 0.0
        %946 = vmatpush1.msra.mxu0 0.0
        %947 = vmatprep.subr.mxu0 0.0
        %948 = vmatpush1.msra.mxu0 0.0
        %949 = vmatprep.subr.mxu0 0.0
        %950 = vmatpush1.msra.mxu0 0.0
        %951 = vmatprep.subr.mxu0 0.0
        %952 = vmatpush1.msra.mxu0 0.0
        %953 = vmatprep.subr.mxu0 0.0
        %954 = vmatpush1.msra.mxu0 0.0
        %955 = vmatprep.subr.mxu0 0.0
        %956 = vmatpush1.msra.mxu0 0.0
        %957 = vmatprep.subr.mxu0 0.0
        %958 = vmatpush1.msra.mxu0 0.0
        %959 = vmatprep.subr.mxu0 0.0
        %960 = vmatpush1.msra.mxu0 0.0
        %961 = vmatprep.subr.mxu0 0.0
        %962 = vmatpush1.msra.mxu0 0.0
        %963 = vmatprep.subr.mxu0 0.0
        %964 = vmatpush1.msra.mxu0 0.0
        %965 = vmatprep.subr.mxu0 0.0
        %966 = vmatpush1.msra.mxu0 0.0
        %967 = vmatprep.subr.mxu0 0.0
        %968 = vmatpush1.msra.mxu0 0.0
        %969 = vmatprep.subr.mxu0 0.0
        %970 = vmatpush1.msra.mxu0 0.0
        %971 = vmatprep.mubr.f32.mxu0 0.0
        %972 = vmatmul.mubr.f32.gmra.mrb[0].mxu0 %v902
        %v973 = vpop.f32.mrb[0].mxu0
        %v974 = vadd.f32 0.0, %v973
        %v975 = vpop.f32.mrb[0].mxu0
        %976 = vmatprep.mubr.f32.mxu0 0.0
        %977 = vmatmul.mubr.f32.gmra.mrb[0].mxu0 %v905
        %v978 = vpop.f32.mrb[0].mxu0
        %v979 = vadd.f32 0.0, %v978
        %v980 = vpop.f32.mrb[0].mxu0
        %981 = vdwg.mxu0
        %v982 = vld [vmem:[#allocation14] sm:$0xff]
        %v983 = vld [vmem:[#allocation14 + $0x8] sm:$0xff]
        %v984 = vld [vmem:[#allocation14 + $0x10] sm:$0xff]
        %v985 = vld [vmem:[#allocation14 + $0x18] sm:$0xff]
        %v987 = vsel %vm819, %v889, 0
        %v990 = vsel %vm819, %v890, 0
        %v993 = vsel %vm819, %v891, 0
        %v996 = vsel %vm819, %v892, 0
        %998 = vmatprep.subr.mxu0 0.0
        %999 = vmatpush1.msra.mxu0 %v982
        %1000 = vmatprep.subr.mxu0 0.0
        %1001 = vmatpush1.msra.mxu0 %v983
        %1002 = vmatprep.subr.mxu0 0.0
        %1003 = vmatpush1.msra.mxu0 %v984
        %1004 = vmatprep.subr.mxu0 0.0
        %1005 = vmatpush1.msra.mxu0 %v985
        %1006 = vmatprep.subr.mxu0 0.0
        %1007 = vmatpush1.msra.mxu0 0.0
        %1008 = vmatprep.subr.mxu0 0.0
        %1009 = vmatpush1.msra.mxu0 0.0
        %1010 = vmatprep.subr.mxu0 0.0
        %1011 = vmatpush1.msra.mxu0 0.0
        %1012 = vmatprep.subr.mxu0 0.0
        %1013 = vmatpush1.msra.mxu0 0.0
        %1014 = vmatprep.subr.mxu0 0.0
        %1015 = vmatpush1.msra.mxu0 0.0
        %1016 = vmatprep.subr.mxu0 0.0
        %1017 = vmatpush1.msra.mxu0 0.0
        %1018 = vmatprep.subr.mxu0 0.0
        %1019 = vmatpush1.msra.mxu0 0.0
        %1020 = vmatprep.subr.mxu0 0.0
        %1021 = vmatpush1.msra.mxu0 0.0
        %1022 = vmatprep.subr.mxu0 0.0
        %1023 = vmatpush1.msra.mxu0 0.0
        %1024 = vmatprep.subr.mxu0 0.0
        %1025 = vmatpush1.msra.mxu0 0.0
        %1026 = vmatprep.subr.mxu0 0.0
        %1027 = vmatpush1.msra.mxu0 0.0
        %1028 = vmatprep.subr.mxu0 0.0
        %1029 = vmatpush1.msra.mxu0 0.0
        %1030 = vmatprep.subr.mxu0 0.0
        %1031 = vmatpush1.msra.mxu0 0.0
        %1032 = vmatprep.subr.mxu0 0.0
        %1033 = vmatpush1.msra.mxu0 0.0
        %1034 = vmatprep.subr.mxu0 0.0
        %1035 = vmatpush1.msra.mxu0 0.0
        %1036 = vmatprep.subr.mxu0 0.0
        %1037 = vmatpush1.msra.mxu0 0.0
        %1038 = vmatprep.subr.mxu0 0.0
        %1039 = vmatpush1.msra.mxu0 0.0
        %1040 = vmatprep.subr.mxu0 0.0
        %1041 = vmatpush1.msra.mxu0 0.0
        %1042 = vmatprep.subr.mxu0 0.0
        %1043 = vmatpush1.msra.mxu0 0.0
        %1044 = vmatprep.subr.mxu0 0.0
        %1045 = vmatpush1.msra.mxu0 0.0
        %1046 = vmatprep.subr.mxu0 0.0
        %1047 = vmatpush1.msra.mxu0 0.0
        %1048 = vmatprep.subr.mxu0 0.0
        %1049 = vmatpush1.msra.mxu0 0.0
        %1050 = vmatprep.subr.mxu0 0.0
        %1051 = vmatpush1.msra.mxu0 0.0
        %1052 = vmatprep.subr.mxu0 0.0
        %1053 = vmatpush1.msra.mxu0 0.0
        %1054 = vmatprep.subr.mxu0 0.0
        %1055 = vmatpush1.msra.mxu0 0.0
        %1056 = vmatprep.subr.mxu0 0.0
        %1057 = vmatpush1.msra.mxu0 0.0
        %1058 = vmatprep.subr.mxu0 0.0
        %1059 = vmatpush1.msra.mxu0 0.0
        %1060 = vmatprep.subr.mxu0 0.0
        %1061 = vmatpush1.msra.mxu0 0.0
        %1062 = vmatprep.mubr.f32.mxu0 0.0
        %1063 = vmatmul.mubr.f32.gmra.mrb[0].mxu0 %v987
        %v1064 = vpop.f32.mrb[0].mxu0
        %v1065 = vadd.f32 0.0, %v1064
        %v1066 = vpop.f32.mrb[0].mxu0
        %1067 = vmatprep.mubr.f32.mxu0 0.0
        %1068 = vmatmul.mubr.f32.gmra.mrb[0].mxu0 %v990
        %v1069 = vpop.f32.mrb[0].mxu0
        %v1070 = vadd.f32 0.0, %v1069
        %v1071 = vpop.f32.mrb[0].mxu0
        %1072 = vmatprep.mubr.f32.mxu0 0.0
        %1073 = vmatmul.mubr.f32.gmra.mrb[0].mxu0 %v993
        %v1074 = vpop.f32.mrb[0].mxu0
        %v1075 = vadd.f32 0.0, %v1074
        %v1076 = vpop.f32.mrb[0].mxu0
        %1077 = vmatprep.mubr.f32.mxu0 0.0
        %1078 = vmatmul.mubr.f32.gmra.mrb[0].mxu0 %v996
        %v1079 = vpop.f32.mrb[0].mxu0
        %v1080 = vadd.f32 0.0, %v1079
        %v1081 = vpop.f32.mrb[0].mxu0
        %1082 = vdwg.mxu0
        %vm1083 = vcmask 130048
        %v1085 = vsel %vm1083, %v974, 0
        %v1088 = vsel %vm1083, %v979, 0
        %v1091 = vsel %vm1083, %v1065, 0
        %v1094 = vsel %vm1083, %v1070, 0
        %v1097 = vsel %vm1083, %v1075, 0
        %v1100 = vsel %vm1083, %v1080, 0
        %1102 = vmatprep.subr.mxu0 0.0
        %1103 = vmatpush1.xpose.msra.mxu0 %v1091
        %1104 = vmatprep.subr.mxu0 0.0
        %1105 = vmatpush1.xpose.msra.mxu0 %v1094
        %1106 = vmatprep.subr.mxu0 0.0
        %1107 = vmatpush1.xpose.msra.mxu0 %v1097
        %1108 = vmatprep.subr.mxu0 0.0
        %1109 = vmatpush1.xpose.msra.mxu0 %v1100
        %1110 = vmatprep.subr.mxu0 0.0
        %1111 = vmatpush1.xpose.msra.mxu0 0.0
        %1112 = vmatprep.subr.mxu0 0.0
        %1113 = vmatpush1.xpose.msra.mxu0 0.0
        %1114 = vmatprep.subr.mxu0 0.0
        %1115 = vmatpush1.xpose.msra.mxu0 0.0
        %1116 = vmatprep.subr.mxu0 0.0
        %1117 = vmatpush1.xpose.msra.mxu0 0.0
        %1118 = vmatprep.subr.mxu0 0.0
        %1119 = vmatpush1.xpose.msra.mxu0 0.0
        %1120 = vmatprep.subr.mxu0 0.0
        %1121 = vmatpush1.xpose.msra.mxu0 0.0
        %1122 = vmatprep.subr.mxu0 0.0
        %1123 = vmatpush1.xpose.msra.mxu0 0.0
        %1124 = vmatprep.subr.mxu0 0.0
        %1125 = vmatpush1.xpose.msra.mxu0 0.0
        %1126 = vmatprep.subr.mxu0 0.0
        %1127 = vmatpush1.xpose.msra.mxu0 0.0
        %1128 = vmatprep.subr.mxu0 0.0
        %1129 = vmatpush1.xpose.msra.mxu0 0.0
        %1130 = vmatprep.subr.mxu0 0.0
        %1131 = vmatpush1.xpose.msra.mxu0 0.0
        %1132 = vmatprep.subr.mxu0 0.0
        %1133 = vmatpush1.xpose.msra.mxu0 0.0
        %1134 = vmatprep.subr.mxu0 0.0
        %1135 = vmatpush1.xpose.msra.mxu0 0.0
        %1136 = vmatprep.subr.mxu0 0.0
        %1137 = vmatpush1.xpose.msra.mxu0 0.0
        %1138 = vmatprep.subr.mxu0 0.0
        %1139 = vmatpush1.xpose.msra.mxu0 0.0
        %1140 = vmatprep.subr.mxu0 0.0
        %1141 = vmatpush1.xpose.msra.mxu0 0.0
        %1142 = vmatprep.subr.mxu0 0.0
        %1143 = vmatpush1.xpose.msra.mxu0 0.0
        %1144 = vmatprep.subr.mxu0 0.0
        %1145 = vmatpush1.xpose.msra.mxu0 0.0
        %1146 = vmatprep.subr.mxu0 0.0
        %1147 = vmatpush1.xpose.msra.mxu0 0.0
        %1148 = vmatprep.subr.mxu0 0.0
        %1149 = vmatpush1.xpose.msra.mxu0 0.0
        %1150 = vmatprep.subr.mxu0 0.0
        %1151 = vmatpush1.xpose.msra.mxu0 0.0
        %1152 = vmatprep.subr.mxu0 0.0
        %1153 = vmatpush1.xpose.msra.mxu0 0.0
        %1154 = vmatprep.subr.mxu0 0.0
        %1155 = vmatpush1.xpose.msra.mxu0 0.0
        %1156 = vmatprep.subr.mxu0 0.0
        %1157 = vmatpush1.xpose.msra.mxu0 0.0
        %1158 = vmatprep.subr.mxu0 0.0
        %1159 = vmatpush1.xpose.msra.mxu0 0.0
        %1160 = vmatprep.subr.mxu0 0.0
        %1161 = vmatpush1.xpose.msra.mxu0 0.0
        %1162 = vmatprep.subr.mxu0 0.0
        %1163 = vmatpush1.xpose.msra.mxu0 0.0
        %1164 = vmatprep.subr.mxu0 0.0
        %1165 = vmatpush1.xpose.msra.mxu0 0.0
        %1166 = vmatprep.mubr.f32.mxu0 0.0
        %1167 = vmatmul.mubr.f32.gmra.mrb[0].mxu0 %v1085
        %v1168 = vpop.f32.mrb[0].mxu0
        %v1169 = vadd.f32 0.0, %v1168
        %v1170 = vpop.f32.mrb[0].mxu0
        %1171 = vmatprep.mubr.f32.mxu0 0.0
        %1172 = vmatmul.mubr.f32.gmra.mrb[0].mxu0 %v1088
        %v1173 = vpop.f32.mrb[0].mxu0
        %v1174 = vadd.f32 0.0, %v1173
        %v1175 = vpop.f32.mrb[0].mxu0
        %1176 = vdwg.mxu0
        %v1177 = vsel %vm819, %v1169, -inf
        %1178 = vmax.xlane.f32.xlu0 %v1177
        %v1179 = vpop.xlane.xlu0 %1178
        %v1180 = vsel %vm819, %v1174, -inf
        %1181 = vmax.xlane.f32.xlu0 %v1180
        %v1182 = vpop.xlane.xlu0 %1181
        %v1183 = vsub.f32 %v1169, %v1179
        %v1184 = vsub.f32 %v1174, %v1182
        %v1185 = vmul.f32 %v1183, 1.442695
        %v1186 = vpow.pop %v1185
        %v1187 = vmul.f32 %v1184, 1.442695
        %v1188 = vpow.pop %v1187
        %v1189 = vsel %vm819, %v1186, 0.0
        %1190 = vadd.xlane.f32.xlu0 %v1189
        %v1191 = vpop.xlane.xlu0 %1190
        %v1192 = vsel %vm819, %v1188, 0.0
        %1193 = vadd.xlane.f32.xlu0 %v1192
        %v1194 = vpop.xlane.xlu0 %1193
        %1195 = vrot.lane.b32.xlu0 %v1065, 64
        %v1196 = vpop.permute.xlu0 %1195
        %1197 = vrot.lane.b32.xlu0 %v1070, 64
        %v1198 = vpop.permute.xlu0 %1197
        %1199 = vrot.lane.b32.xlu0 %v1075, 64
        %v1200 = vpop.permute.xlu0 %1199
        %1201 = vrot.lane.b32.xlu0 %v1080, 64
        %v1202 = vpop.permute.xlu0 %1201
        %v1208 = vsel %vm819, %v1186, 0
        %v1211 = vsel %vm819, %v1188, 0
        %1213 = vmatprep.subr.mxu0 0.0
        %1214 = vmatpush1.msra.mxu0 %v1196
        %1215 = vmatprep.subr.mxu0 0.0
        %1216 = vmatpush1.msra.mxu0 %v1198
        %1217 = vmatprep.subr.mxu0 0.0
        %1218 = vmatpush1.msra.mxu0 %v1200
        %1219 = vmatprep.subr.mxu0 0.0
        %1220 = vmatpush1.msra.mxu0 %v1202
        %1221 = vmatprep.subr.mxu0 0.0
        %1222 = vmatpush1.msra.mxu0 0.0
        %1223 = vmatprep.subr.mxu0 0.0
        %1224 = vmatpush1.msra.mxu0 0.0
        %1225 = vmatprep.subr.mxu0 0.0
        %1226 = vmatpush1.msra.mxu0 0.0
        %1227 = vmatprep.subr.mxu0 0.0
        %1228 = vmatpush1.msra.mxu0 0.0
        %1229 = vmatprep.subr.mxu0 0.0
        %1230 = vmatpush1.msra.mxu0 0.0
        %1231 = vmatprep.subr.mxu0 0.0
        %1232 = vmatpush1.msra.mxu0 0.0
        %1233 = vmatprep.subr.mxu0 0.0
        %1234 = vmatpush1.msra.mxu0 0.0
        %1235 = vmatprep.subr.mxu0 0.0
        %1236 = vmatpush1.msra.mxu0 0.0
        %1237 = vmatprep.subr.mxu0 0.0
        %1238 = vmatpush1.msra.mxu0 0.0
        %1239 = vmatprep.subr.mxu0 0.0
        %1240 = vmatpush1.msra.mxu0 0.0
        %1241 = vmatprep.subr.mxu0 0.0
        %1242 = vmatpush1.msra.mxu0 0.0
        %1243 = vmatprep.subr.mxu0 0.0
        %1244 = vmatpush1.msra.mxu0 0.0
        %1245 = vmatprep.subr.mxu0 0.0
        %1246 = vmatpush1.msra.mxu0 0.0
        %1247 = vmatprep.subr.mxu0 0.0
        %1248 = vmatpush1.msra.mxu0 0.0
        %1249 = vmatprep.subr.mxu0 0.0
        %1250 = vmatpush1.msra.mxu0 0.0
        %1251 = vmatprep.subr.mxu0 0.0
        %1252 = vmatpush1.msra.mxu0 0.0
        %1253 = vmatprep.subr.mxu0 0.0
        %1254 = vmatpush1.msra.mxu0 0.0
        %1255 = vmatprep.subr.mxu0 0.0
        %1256 = vmatpush1.msra.mxu0 0.0
        %1257 = vmatprep.subr.mxu0 0.0
        %1258 = vmatpush1.msra.mxu0 0.0
        %1259 = vmatprep.subr.mxu0 0.0
        %1260 = vmatpush1.msra.mxu0 0.0
        %1261 = vmatprep.subr.mxu0 0.0
        %1262 = vmatpush1.msra.mxu0 0.0
        %1263 = vmatprep.subr.mxu0 0.0
        %1264 = vmatpush1.msra.mxu0 0.0
        %1265 = vmatprep.subr.mxu0 0.0
        %1266 = vmatpush1.msra.mxu0 0.0
        %1267 = vmatprep.subr.mxu0 0.0
        %1268 = vmatpush1.msra.mxu0 0.0
        %1269 = vmatprep.subr.mxu0 0.0
        %1270 = vmatpush1.msra.mxu0 0.0
        %1271 = vmatprep.subr.mxu0 0.0
        %1272 = vmatpush1.msra.mxu0 0.0
        %1273 = vmatprep.subr.mxu0 0.0
        %1274 = vmatpush1.msra.mxu0 0.0
        %1275 = vmatprep.subr.mxu0 0.0
        %1276 = vmatpush1.msra.mxu0 0.0
        %1277 = vmatprep.mubr.f32.mxu0 0.0
        %1278 = vmatmul.mubr.f32.gmra.mrb[0].mxu0 %v1208
        %v1279 = vpop.f32.mrb[0].mxu0
        %v1280 = vadd.f32 0.0, %v1279
        %v1281 = vpop.f32.mrb[0].mxu0
        %1282 = vmatprep.mubr.f32.mxu0 0.0
        %1283 = vmatmul.mubr.f32.gmra.mrb[0].mxu0 %v1211
        %v1284 = vpop.f32.mrb[0].mxu0
        %v1285 = vadd.f32 0.0, %v1284
        %v1286 = vpop.f32.mrb[0].mxu0
        %1287 = vdwg.mxu0
        %v1288 = vrcp.pop %v1191
        %v1289 = vmul.f32 %v1280, %v1288
        %v1290 = vrcp.pop %v1194
        %v1291 = vmul.f32 %v1285, %v1290
        %1292 = vrot.lane.b32.xlu0 %v974, 112
        %v1293 = vpop.permute.xlu0 %1292
        %1294 = vrot.lane.b32.xlu0 %v979, 112
        %v1295 = vpop.permute.xlu0 %1294
        %1296 = vrot.lane.b32.xlu0 %v1065, 112
        %v1297 = vpop.permute.xlu0 %1296
        %1298 = vrot.lane.b32.xlu0 %v1070, 112
        %v1299 = vpop.permute.xlu0 %1298
        %1300 = vrot.lane.b32.xlu0 %v1075, 112
        %v1301 = vpop.permute.xlu0 %1300
        %1302 = vrot.lane.b32.xlu0 %v1080, 112
        %v1303 = vpop.permute.xlu0 %1302
        %v1304 = vsel %vm1083, %v1293, 0
        %v1306 = vsel %vm1083, %v1295, 0
        %v1308 = vsel %vm1083, %v1297, 0
        %v1310 = vsel %vm1083, %v1299, 0
        %v1312 = vsel %vm1083, %v1301, 0
        %v1314 = vsel %vm1083, %v1303, 0
        %1316 = vmatprep.subr.mxu0 0.0
        %1317 = vmatpush1.xpose.msra.mxu0 %v1308
        %1318 = vmatprep.subr.mxu0 0.0
        %1319 = vmatpush1.xpose.msra.mxu0 %v1310
        %1320 = vmatprep.subr.mxu0 0.0
        %1321 = vmatpush1.xpose.msra.mxu0 %v1312
        %1322 = vmatprep.subr.mxu0 0.0
        %1323 = vmatpush1.xpose.msra.mxu0 %v1314
        %1324 = vmatprep.subr.mxu0 0.0
        %1325 = vmatpush1.xpose.msra.mxu0 0.0
        %1326 = vmatprep.subr.mxu0 0.0
        %1327 = vmatpush1.xpose.msra.mxu0 0.0
        %1328 = vmatprep.subr.mxu0 0.0
        %1329 = vmatpush1.xpose.msra.mxu0 0.0
        %1330 = vmatprep.subr.mxu0 0.0
        %1331 = vmatpush1.xpose.msra.mxu0 0.0
        %1332 = vmatprep.subr.mxu0 0.0
        %1333 = vmatpush1.xpose.msra.mxu0 0.0
        %1334 = vmatprep.subr.mxu0 0.0
        %1335 = vmatpush1.xpose.msra.mxu0 0.0
        %1336 = vmatprep.subr.mxu0 0.0
        %1337 = vmatpush1.xpose.msra.mxu0 0.0
        %1338 = vmatprep.subr.mxu0 0.0
        %1339 = vmatpush1.xpose.msra.mxu0 0.0
        %1340 = vmatprep.subr.mxu0 0.0
        %1341 = vmatpush1.xpose.msra.mxu0 0.0
        %1342 = vmatprep.subr.mxu0 0.0
        %1343 = vmatpush1.xpose.msra.mxu0 0.0
        %1344 = vmatprep.subr.mxu0 0.0
        %1345 = vmatpush1.xpose.msra.mxu0 0.0
        %1346 = vmatprep.subr.mxu0 0.0
        %1347 = vmatpush1.xpose.msra.mxu0 0.0
        %1348 = vmatprep.subr.mxu0 0.0
        %1349 = vmatpush1.xpose.msra.mxu0 0.0
        %1350 = vmatprep.subr.mxu0 0.0
        %1351 = vmatpush1.xpose.msra.mxu0 0.0
        %1352 = vmatprep.subr.mxu0 0.0
        %1353 = vmatpush1.xpose.msra.mxu0 0.0
        %1354 = vmatprep.subr.mxu0 0.0
        %1355 = vmatpush1.xpose.msra.mxu0 0.0
        %1356 = vmatprep.subr.mxu0 0.0
        %1357 = vmatpush1.xpose.msra.mxu0 0.0
        %1358 = vmatprep.subr.mxu0 0.0
        %1359 = vmatpush1.xpose.msra.mxu0 0.0
        %1360 = vmatprep.subr.mxu0 0.0
        %1361 = vmatpush1.xpose.msra.mxu0 0.0
        %1362 = vmatprep.subr.mxu0 0.0
        %1363 = vmatpush1.xpose.msra.mxu0 0.0
        %1364 = vmatprep.subr.mxu0 0.0
        %1365 = vmatpush1.xpose.msra.mxu0 0.0
        %1366 = vmatprep.subr.mxu0 0.0
        %1367 = vmatpush1.xpose.msra.mxu0 0.0
        %1368 = vmatprep.subr.mxu0 0.0
        %1369 = vmatpush1.xpose.msra.mxu0 0.0
        %1370 = vmatprep.subr.mxu0 0.0
        %1371 = vmatpush1.xpose.msra.mxu0 0.0
        %1372 = vmatprep.subr.mxu0 0.0
        %1373 = vmatpush1.xpose.msra.mxu0 0.0
        %1374 = vmatprep.subr.mxu0 0.0
        %1375 = vmatpush1.xpose.msra.mxu0 0.0
        %1376 = vmatprep.subr.mxu0 0.0
        %1377 = vmatpush1.xpose.msra.mxu0 0.0
        %1378 = vmatprep.subr.mxu0 0.0
        %1379 = vmatpush1.xpose.msra.mxu0 0.0
        %1380 = vmatprep.mubr.f32.mxu0 0.0
        %1381 = vmatmul.mubr.f32.gmra.mrb[0].mxu0 %v1304
        %v1382 = vpop.f32.mrb[0].mxu0
        %v1383 = vadd.f32 0.0, %v1382
        %v1384 = vpop.f32.mrb[0].mxu0
        %1385 = vmatprep.mubr.f32.mxu0 0.0
        %1386 = vmatmul.mubr.f32.gmra.mrb[0].mxu0 %v1306
        %v1387 = vpop.f32.mrb[0].mxu0
        %v1388 = vadd.f32 0.0, %v1387
        %v1389 = vpop.f32.mrb[0].mxu0
        %1390 = vdwg.mxu0
        %v1391 = vsel %vm819, %v1383, -inf
        %1392 = vmax.xlane.f32.xlu0 %v1391
        %v1393 = vpop.xlane.xlu0 %1392
        %v1394 = vsel %vm819, %v1388, -inf
        %1395 = vmax.xlane.f32.xlu0 %v1394
        %v1396 = vpop.xlane.xlu0 %1395
        %v1397 = vsub.f32 %v1383, %v1393
        %v1398 = vsub.f32 %v1388, %v1396
        %v1399 = vmul.f32 %v1397, 1.442695
        %v1400 = vpow.pop %v1399
        %v1401 = vmul.f32 %v1398, 1.442695
        %v1402 = vpow.pop %v1401
        %v1403 = vsel %vm819, %v1400, 0.0
        %1404 = vadd.xlane.f32.xlu0 %v1403
        %v1405 = vpop.xlane.xlu0 %1404
        %v1406 = vsel %vm819, %v1402, 0.0
        %1407 = vadd.xlane.f32.xlu0 %v1406
        %v1408 = vpop.xlane.xlu0 %1407
        %1409 = vrot.lane.b32.xlu0 %v1065, 48
        %v1410 = vpop.permute.xlu0 %1409
        %1411 = vrot.lane.b32.xlu0 %v1070, 48
        %v1412 = vpop.permute.xlu0 %1411
        %1413 = vrot.lane.b32.xlu0 %v1075, 48
        %v1414 = vpop.permute.xlu0 %1413
        %1415 = vrot.lane.b32.xlu0 %v1080, 48
        %v1416 = vpop.permute.xlu0 %1415
        %v1422 = vsel %vm819, %v1400, 0
        %v1425 = vsel %vm819, %v1402, 0
        %1427 = vmatprep.subr.mxu0 0.0
        %1428 = vmatpush1.msra.mxu0 %v1410
        %1429 = vmatprep.subr.mxu0 0.0
        %1430 = vmatpush1.msra.mxu0 %v1412
        %1431 = vmatprep.subr.mxu0 0.0
        %1432 = vmatpush1.msra.mxu0 %v1414
        %1433 = vmatprep.subr.mxu0 0.0
        %1434 = vmatpush1.msra.mxu0 %v1416
        %1435 = vmatprep.subr.mxu0 0.0
        %1436 = vmatpush1.msra.mxu0 0.0
        %1437 = vmatprep.subr.mxu0 0.0
        %1438 = vmatpush1.msra.mxu0 0.0
        %1439 = vmatprep.subr.mxu0 0.0
        %1440 = vmatpush1.msra.mxu0 0.0
        %1441 = vmatprep.subr.mxu0 0.0
        %1442 = vmatpush1.msra.mxu0 0.0
        %1443 = vmatprep.subr.mxu0 0.0
        %1444 = vmatpush1.msra.mxu0 0.0
        %1445 = vmatprep.subr.mxu0 0.0
        %1446 = vmatpush1.msra.mxu0 0.0
        %1447 = vmatprep.subr.mxu0 0.0
        %1448 = vmatpush1.msra.mxu0 0.0
        %1449 = vmatprep.subr.mxu0 0.0
        %1450 = vmatpush1.msra.mxu0 0.0
        %1451 = vmatprep.subr.mxu0 0.0
        %1452 = vmatpush1.msra.mxu0 0.0
        %1453 = vmatprep.subr.mxu0 0.0
        %1454 = vmatpush1.msra.mxu0 0.0
        %1455 = vmatprep.subr.mxu0 0.0
        %1456 = vmatpush1.msra.mxu0 0.0
        %1457 = vmatprep.subr.mxu0 0.0
        %1458 = vmatpush1.msra.mxu0 0.0
        %1459 = vmatprep.subr.mxu0 0.0
        %1460 = vmatpush1.msra.mxu0 0.0
        %1461 = vmatprep.subr.mxu0 0.0
        %1462 = vmatpush1.msra.mxu0 0.0
        %1463 = vmatprep.subr.mxu0 0.0
        %1464 = vmatpush1.msra.mxu0 0.0
        %1465 = vmatprep.subr.mxu0 0.0
        %1466 = vmatpush1.msra.mxu0 0.0
        %1467 = vmatprep.subr.mxu0 0.0
        %1468 = vmatpush1.msra.mxu0 0.0
        %1469 = vmatprep.subr.mxu0 0.0
        %1470 = vmatpush1.msra.mxu0 0.0
        %1471 = vmatprep.subr.mxu0 0.0
        %1472 = vmatpush1.msra.mxu0 0.0
        %1473 = vmatprep.subr.mxu0 0.0
        %1474 = vmatpush1.msra.mxu0 0.0
        %1475 = vmatprep.subr.mxu0 0.0
        %1476 = vmatpush1.msra.mxu0 0.0
        %1477 = vmatprep.subr.mxu0 0.0
        %1478 = vmatpush1.msra.mxu0 0.0
        %1479 = vmatprep.subr.mxu0 0.0
        %1480 = vmatpush1.msra.mxu0 0.0
        %1481 = vmatprep.subr.mxu0 0.0
        %1482 = vmatpush1.msra.mxu0 0.0
        %1483 = vmatprep.subr.mxu0 0.0
        %1484 = vmatpush1.msra.mxu0 0.0
        %1485 = vmatprep.subr.mxu0 0.0
        %1486 = vmatpush1.msra.mxu0 0.0
        %1487 = vmatprep.subr.mxu0 0.0
        %1488 = vmatpush1.msra.mxu0 0.0
        %1489 = vmatprep.subr.mxu0 0.0
        %1490 = vmatpush1.msra.mxu0 0.0
        %1491 = vmatprep.mubr.f32.mxu0 0.0
        %1492 = vmatmul.mubr.f32.gmra.mrb[0].mxu0 %v1422
        %v1493 = vpop.f32.mrb[0].mxu0
        %v1494 = vadd.f32 0.0, %v1493
        %v1495 = vpop.f32.mrb[0].mxu0
        %1496 = vmatprep.mubr.f32.mxu0 0.0
        %1497 = vmatmul.mubr.f32.gmra.mrb[0].mxu0 %v1425
        %v1498 = vpop.f32.mrb[0].mxu0
        %v1499 = vadd.f32 0.0, %v1498
        %v1500 = vpop.f32.mrb[0].mxu0
        %1501 = vdwg.mxu0
        %v1502 = vrcp.pop %v1405
        %v1503 = vmul.f32 %v1494, %v1502
        %v1504 = vrcp.pop %v1408
        %v1505 = vmul.f32 %v1499, %v1504
        %1506 = vrot.lane.b32.xlu0 %v974, 96
        %v1507 = vpop.permute.xlu0 %1506
        %1508 = vrot.lane.b32.xlu0 %v979, 96
        %v1509 = vpop.permute.xlu0 %1508
        %1510 = vrot.lane.b32.xlu0 %v1065, 96
        %v1511 = vpop.permute.xlu0 %1510
        %1512 = vrot.lane.b32.xlu0 %v1070, 96
        %v1513 = vpop.permute.xlu0 %1512
        %1514 = vrot.lane.b32.xlu0 %v1075, 96
        %v1515 = vpop.permute.xlu0 %1514
        %1516 = vrot.lane.b32.xlu0 %v1080, 96
        %v1517 = vpop.permute.xlu0 %1516
        %v1518 = vsel %vm1083, %v1507, 0
        %v1520 = vsel %vm1083, %v1509, 0
        %v1522 = vsel %vm1083, %v1511, 0
        %v1524 = vsel %vm1083, %v1513, 0
        %v1526 = vsel %vm1083, %v1515, 0
        %v1528 = vsel %vm1083, %v1517, 0
        %1530 = vmatprep.subr.mxu0 0.0
        %1531 = vmatpush1.xpose.msra.mxu0 %v1522
        %1532 = vmatprep.subr.mxu0 0.0
        %1533 = vmatpush1.xpose.msra.mxu0 %v1524
        %1534 = vmatprep.subr.mxu0 0.0
        %1535 = vmatpush1.xpose.msra.mxu0 %v1526
        %1536 = vmatprep.subr.mxu0 0.0
        %1537 = vmatpush1.xpose.msra.mxu0 %v1528
        %1538 = vmatprep.subr.mxu0 0.0
        %1539 = vmatpush1.xpose.msra.mxu0 0.0
        %1540 = vmatprep.subr.mxu0 0.0
        %1541 = vmatpush1.xpose.msra.mxu0 0.0
        %1542 = vmatprep.subr.mxu0 0.0
        %1543 = vmatpush1.xpose.msra.mxu0 0.0
        %1544 = vmatprep.subr.mxu0 0.0
        %1545 = vmatpush1.xpose.msra.mxu0 0.0
        %1546 = vmatprep.subr.mxu0 0.0
        %1547 = vmatpush1.xpose.msra.mxu0 0.0
        %1548 = vmatprep.subr.mxu0 0.0
        %1549 = vmatpush1.xpose.msra.mxu0 0.0
        %1550 = vmatprep.subr.mxu0 0.0
        %1551 = vmatpush1.xpose.msra.mxu0 0.0
        %1552 = vmatprep.subr.mxu0 0.0
        %1553 = vmatpush1.xpose.msra.mxu0 0.0
        %1554 = vmatprep.subr.mxu0 0.0
        %1555 = vmatpush1.xpose.msra.mxu0 0.0
        %1556 = vmatprep.subr.mxu0 0.0
        %1557 = vmatpush1.xpose.msra.mxu0 0.0
        %1558 = vmatprep.subr.mxu0 0.0
        %1559 = vmatpush1.xpose.msra.mxu0 0.0
        %1560 = vmatprep.subr.mxu0 0.0
        %1561 = vmatpush1.xpose.msra.mxu0 0.0
        %1562 = vmatprep.subr.mxu0 0.0
        %1563 = vmatpush1.xpose.msra.mxu0 0.0
        %1564 = vmatprep.subr.mxu0 0.0
        %1565 = vmatpush1.xpose.msra.mxu0 0.0
        %1566 = vmatprep.subr.mxu0 0.0
        %1567 = vmatpush1.xpose.msra.mxu0 0.0
        %1568 = vmatprep.subr.mxu0 0.0
        %1569 = vmatpush1.xpose.msra.mxu0 0.0
        %1570 = vmatprep.subr.mxu0 0.0
        %1571 = vmatpush1.xpose.msra.mxu0 0.0
        %1572 = vmatprep.subr.mxu0 0.0
        %1573 = vmatpush1.xpose.msra.mxu0 0.0
        %1574 = vmatprep.subr.mxu0 0.0
        %1575 = vmatpush1.xpose.msra.mxu0 0.0
        %1576 = vmatprep.subr.mxu0 0.0
        %1577 = vmatpush1.xpose.msra.mxu0 0.0
        %1578 = vmatprep.subr.mxu0 0.0
        %1579 = vmatpush1.xpose.msra.mxu0 0.0
        %1580 = vmatprep.subr.mxu0 0.0
        %1581 = vmatpush1.xpose.msra.mxu0 0.0
        %1582 = vmatprep.subr.mxu0 0.0
        %1583 = vmatpush1.xpose.msra.mxu0 0.0
        %1584 = vmatprep.subr.mxu0 0.0
        %1585 = vmatpush1.xpose.msra.mxu0 0.0
        %1586 = vmatprep.subr.mxu0 0.0
        %1587 = vmatpush1.xpose.msra.mxu0 0.0
        %1588 = vmatprep.subr.mxu0 0.0
        %1589 = vmatpush1.xpose.msra.mxu0 0.0
        %1590 = vmatprep.subr.mxu0 0.0
        %1591 = vmatpush1.xpose.msra.mxu0 0.0
        %1592 = vmatprep.subr.mxu0 0.0
        %1593 = vmatpush1.xpose.msra.mxu0 0.0
        %1594 = vmatprep.mubr.f32.mxu0 0.0
        %1595 = vmatmul.mubr.f32.gmra.mrb[0].mxu0 %v1518
        %v1596 = vpop.f32.mrb[0].mxu0
        %v1597 = vadd.f32 0.0, %v1596
        %v1598 = vpop.f32.mrb[0].mxu0
        %1599 = vmatprep.mubr.f32.mxu0 0.0
        %1600 = vmatmul.mubr.f32.gmra.mrb[0].mxu0 %v1520
        %v1601 = vpop.f32.mrb[0].mxu0
        %v1602 = vadd.f32 0.0, %v1601
        %v1603 = vpop.f32.mrb[0].mxu0
        %1604 = vdwg.mxu0
        %v1605 = vsel %vm819, %v1597, -inf
        %1606 = vmax.xlane.f32.xlu0 %v1605
        %v1607 = vpop.xlane.xlu0 %1606
        %v1608 = vsel %vm819, %v1602, -inf
        %1609 = vmax.xlane.f32.xlu0 %v1608
        %v1610 = vpop.xlane.xlu0 %1609
        %v1611 = vsub.f32 %v1597, %v1607
        %v1612 = vsub.f32 %v1602, %v1610
        %v1613 = vmul.f32 %v1611, 1.442695
        %v1614 = vpow.pop %v1613
        %v1615 = vmul.f32 %v1612, 1.442695
        %v1616 = vpow.pop %v1615
        %v1617 = vsel %vm819, %v1614, 0.0
        %1618 = vadd.xlane.f32.xlu0 %v1617
        %v1619 = vpop.xlane.xlu0 %1618
        %v1620 = vsel %vm819, %v1616, 0.0
        %1621 = vadd.xlane.f32.xlu0 %v1620
        %v1622 = vpop.xlane.xlu0 %1621
        %1623 = vrot.lane.b32.xlu0 %v1065, 32
        %v1624 = vpop.permute.xlu0 %1623
        %1625 = vrot.lane.b32.xlu0 %v1070, 32
        %v1626 = vpop.permute.xlu0 %1625
        %1627 = vrot.lane.b32.xlu0 %v1075, 32
        %v1628 = vpop.permute.xlu0 %1627
        %1629 = vrot.lane.b32.xlu0 %v1080, 32
        %v1630 = vpop.permute.xlu0 %1629
        %v1636 = vsel %vm819, %v1614, 0
        %v1639 = vsel %vm819, %v1616, 0
        %1641 = vmatprep.subr.mxu0 0.0
        %1642 = vmatpush1.msra.mxu0 %v1624
        %1643 = vmatprep.subr.mxu0 0.0
        %1644 = vmatpush1.msra.mxu0 %v1626
        %1645 = vmatprep.subr.mxu0 0.0
        %1646 = vmatpush1.msra.mxu0 %v1628
        %1647 = vmatprep.subr.mxu0 0.0
        %1648 = vmatpush1.msra.mxu0 %v1630
        %1649 = vmatprep.subr.mxu0 0.0
        %1650 = vmatpush1.msra.mxu0 0.0
        %1651 = vmatprep.subr.mxu0 0.0
        %1652 = vmatpush1.msra.mxu0 0.0
        %1653 = vmatprep.subr.mxu0 0.0
        %1654 = vmatpush1.msra.mxu0 0.0
        %1655 = vmatprep.subr.mxu0 0.0
        %1656 = vmatpush1.msra.mxu0 0.0
        %1657 = vmatprep.subr.mxu0 0.0
        %1658 = vmatpush1.msra.mxu0 0.0
        %1659 = vmatprep.subr.mxu0 0.0
        %1660 = vmatpush1.msra.mxu0 0.0
        %1661 = vmatprep.subr.mxu0 0.0
        %1662 = vmatpush1.msra.mxu0 0.0
        %1663 = vmatprep.subr.mxu0 0.0
        %1664 = vmatpush1.msra.mxu0 0.0
        %1665 = vmatprep.subr.mxu0 0.0
        %1666 = vmatpush1.msra.mxu0 0.0
        %1667 = vmatprep.subr.mxu0 0.0
        %1668 = vmatpush1.msra.mxu0 0.0
        %1669 = vmatprep.subr.mxu0 0.0
        %1670 = vmatpush1.msra.mxu0 0.0
        %1671 = vmatprep.subr.mxu0 0.0
        %1672 = vmatpush1.msra.mxu0 0.0
        %1673 = vmatprep.subr.mxu0 0.0
        %1674 = vmatpush1.msra.mxu0 0.0
        %1675 = vmatprep.subr.mxu0 0.0
        %1676 = vmatpush1.msra.mxu0 0.0
        %1677 = vmatprep.subr.mxu0 0.0
        %1678 = vmatpush1.msra.mxu0 0.0
        %1679 = vmatprep.subr.mxu0 0.0
        %1680 = vmatpush1.msra.mxu0 0.0
        %1681 = vmatprep.subr.mxu0 0.0
        %1682 = vmatpush1.msra.mxu0 0.0
        %1683 = vmatprep.subr.mxu0 0.0
        %1684 = vmatpush1.msra.mxu0 0.0
        %1685 = vmatprep.subr.mxu0 0.0
        %1686 = vmatpush1.msra.mxu0 0.0
        %1687 = vmatprep.subr.mxu0 0.0
        %1688 = vmatpush1.msra.mxu0 0.0
        %1689 = vmatprep.subr.mxu0 0.0
        %1690 = vmatpush1.msra.mxu0 0.0
        %1691 = vmatprep.subr.mxu0 0.0
        %1692 = vmatpush1.msra.mxu0 0.0
        %1693 = vmatprep.subr.mxu0 0.0
        %1694 = vmatpush1.msra.mxu0 0.0
        %1695 = vmatprep.subr.mxu0 0.0
        %1696 = vmatpush1.msra.mxu0 0.0
        %1697 = vmatprep.subr.mxu0 0.0
        %1698 = vmatpush1.msra.mxu0 0.0
        %1699 = vmatprep.subr.mxu0 0.0
        %1700 = vmatpush1.msra.mxu0 0.0
        %1701 = vmatprep.subr.mxu0 0.0
        %1702 = vmatpush1.msra.mxu0 0.0
        %1703 = vmatprep.subr.mxu0 0.0
        %1704 = vmatpush1.msra.mxu0 0.0
        %1705 = vmatprep.mubr.f32.mxu0 0.0
        %1706 = vmatmul.mubr.f32.gmra.mrb[0].mxu0 %v1636
        %v1707 = vpop.f32.mrb[0].mxu0
        %v1708 = vadd.f32 0.0, %v1707
        %v1709 = vpop.f32.mrb[0].mxu0
        %1710 = vmatprep.mubr.f32.mxu0 0.0
        %1711 = vmatmul.mubr.f32.gmra.mrb[0].mxu0 %v1639
        %v1712 = vpop.f32.mrb[0].mxu0
        %v1713 = vadd.f32 0.0, %v1712
        %v1714 = vpop.f32.mrb[0].mxu0
        %1715 = vdwg.mxu0
        %v1716 = vrcp.pop %v1619
        %v1717 = vmul.f32 %v1708, %v1716
        %v1718 = vrcp.pop %v1622
        %v1719 = vmul.f32 %v1713, %v1718
        %1720 = vrot.lane.b32.xlu0 %v974, 80
        %v1721 = vpop.permute.xlu0 %1720
        %1722 = vrot.lane.b32.xlu0 %v979, 80
        %v1723 = vpop.permute.xlu0 %1722
        %1724 = vrot.lane.b32.xlu0 %v1065, 80
        %v1725 = vpop.permute.xlu0 %1724
        %1726 = vrot.lane.b32.xlu0 %v1070, 80
        %v1727 = vpop.permute.xlu0 %1726
        %1728 = vrot.lane.b32.xlu0 %v1075, 80
        %v1729 = vpop.permute.xlu0 %1728
        %1730 = vrot.lane.b32.xlu0 %v1080, 80
        %v1731 = vpop.permute.xlu0 %1730
        %v1732 = vsel %vm1083, %v1721, 0
        %v1734 = vsel %vm1083, %v1723, 0
        %v1736 = vsel %vm1083, %v1725, 0
        %v1738 = vsel %vm1083, %v1727, 0
        %v1740 = vsel %vm1083, %v1729, 0
        %v1742 = vsel %vm1083, %v1731, 0
        %1744 = vmatprep.subr.mxu0 0.0
        %1745 = vmatpush1.xpose.msra.mxu0 %v1736
        %1746 = vmatprep.subr.mxu0 0.0
        %1747 = vmatpush1.xpose.msra.mxu0 %v1738
        %1748 = vmatprep.subr.mxu0 0.0
        %1749 = vmatpush1.xpose.msra.mxu0 %v1740
        %1750 = vmatprep.subr.mxu0 0.0
        %1751 = vmatpush1.xpose.msra.mxu0 %v1742
        %1752 = vmatprep.subr.mxu0 0.0
        %1753 = vmatpush1.xpose.msra.mxu0 0.0
        %1754 = vmatprep.subr.mxu0 0.0
        %1755 = vmatpush1.xpose.msra.mxu0 0.0
        %1756 = vmatprep.subr.mxu0 0.0
        %1757 = vmatpush1.xpose.msra.mxu0 0.0
        %1758 = vmatprep.subr.mxu0 0.0
        %1759 = vmatpush1.xpose.msra.mxu0 0.0
        %1760 = vmatprep.subr.mxu0 0.0
        %1761 = vmatpush1.xpose.msra.mxu0 0.0
        %1762 = vmatprep.subr.mxu0 0.0
        %1763 = vmatpush1.xpose.msra.mxu0 0.0
        %1764 = vmatprep.subr.mxu0 0.0
        %1765 = vmatpush1.xpose.msra.mxu0 0.0
        %1766 = vmatprep.subr.mxu0 0.0
        %1767 = vmatpush1.xpose.msra.mxu0 0.0
        %1768 = vmatprep.subr.mxu0 0.0
        %1769 = vmatpush1.xpose.msra.mxu0 0.0
        %1770 = vmatprep.subr.mxu0 0.0
        %1771 = vmatpush1.xpose.msra.mxu0 0.0
        %1772 = vmatprep.subr.mxu0 0.0
        %1773 = vmatpush1.xpose.msra.mxu0 0.0
        %1774 = vmatprep.subr.mxu0 0.0
        %1775 = vmatpush1.xpose.msra.mxu0 0.0
        %1776 = vmatprep.subr.mxu0 0.0
        %1777 = vmatpush1.xpose.msra.mxu0 0.0
        %1778 = vmatprep.subr.mxu0 0.0
        %1779 = vmatpush1.xpose.msra.mxu0 0.0
        %1780 = vmatprep.subr.mxu0 0.0
        %1781 = vmatpush1.xpose.msra.mxu0 0.0
        %1782 = vmatprep.subr.mxu0 0.0
        %1783 = vmatpush1.xpose.msra.mxu0 0.0
        %1784 = vmatprep.subr.mxu0 0.0
        %1785 = vmatpush1.xpose.msra.mxu0 0.0
        %1786 = vmatprep.subr.mxu0 0.0
        %1787 = vmatpush1.xpose.msra.mxu0 0.0
        %1788 = vmatprep.subr.mxu0 0.0
        %1789 = vmatpush1.xpose.msra.mxu0 0.0
        %1790 = vmatprep.subr.mxu0 0.0
        %1791 = vmatpush1.xpose.msra.mxu0 0.0
        %1792 = vmatprep.subr.mxu0 0.0
        %1793 = vmatpush1.xpose.msra.mxu0 0.0
        %1794 = vmatprep.subr.mxu0 0.0
        %1795 = vmatpush1.xpose.msra.mxu0 0.0
        %1796 = vmatprep.subr.mxu0 0.0
        %1797 = vmatpush1.xpose.msra.mxu0 0.0
        %1798 = vmatprep.subr.mxu0 0.0
        %1799 = vmatpush1.xpose.msra.mxu0 0.0
        %1800 = vmatprep.subr.mxu0 0.0
        %1801 = vmatpush1.xpose.msra.mxu0 0.0
        %1802 = vmatprep.subr.mxu0 0.0
        %1803 = vmatpush1.xpose.msra.mxu0 0.0
        %1804 = vmatprep.subr.mxu0 0.0
        %1805 = vmatpush1.xpose.msra.mxu0 0.0
        %1806 = vmatprep.subr.mxu0 0.0
        %1807 = vmatpush1.xpose.msra.mxu0 0.0
        %1808 = vmatprep.mubr.f32.mxu0 0.0
        %1809 = vmatmul.mubr.f32.gmra.mrb[0].mxu0 %v1732
        %v1810 = vpop.f32.mrb[0].mxu0
        %v1811 = vadd.f32 0.0, %v1810
        %v1812 = vpop.f32.mrb[0].mxu0
        %1813 = vmatprep.mubr.f32.mxu0 0.0
        %1814 = vmatmul.mubr.f32.gmra.mrb[0].mxu0 %v1734
        %v1815 = vpop.f32.mrb[0].mxu0
        %v1816 = vadd.f32 0.0, %v1815
        %v1817 = vpop.f32.mrb[0].mxu0
        %1818 = vdwg.mxu0
        %v1819 = vsel %vm819, %v1811, -inf
        %1820 = vmax.xlane.f32.xlu0 %v1819
        %v1821 = vpop.xlane.xlu0 %1820
        %v1822 = vsel %vm819, %v1816, -inf
        %1823 = vmax.xlane.f32.xlu0 %v1822
        %v1824 = vpop.xlane.xlu0 %1823
        %v1825 = vsub.f32 %v1811, %v1821
        %v1826 = vsub.f32 %v1816, %v1824
        %v1827 = vmul.f32 %v1825, 1.442695
        %v1828 = vpow.pop %v1827
        %v1829 = vmul.f32 %v1826, 1.442695
        %v1830 = vpow.pop %v1829
        %v1831 = vsel %vm819, %v1828, 0.0
        %1832 = vadd.xlane.f32.xlu0 %v1831
        %v1833 = vpop.xlane.xlu0 %1832
        %v1834 = vsel %vm819, %v1830, 0.0
        %1835 = vadd.xlane.f32.xlu0 %v1834
        %v1836 = vpop.xlane.xlu0 %1835
        %1837 = vrot.lane.b32.xlu0 %v1065, 16
        %v1838 = vpop.permute.xlu0 %1837
        %1839 = vrot.lane.b32.xlu0 %v1070, 16
        %v1840 = vpop.permute.xlu0 %1839
        %1841 = vrot.lane.b32.xlu0 %v1075, 16
        %v1842 = vpop.permute.xlu0 %1841
        %1843 = vrot.lane.b32.xlu0 %v1080, 16
        %v1844 = vpop.permute.xlu0 %1843
        %v1850 = vsel %vm819, %v1828, 0
        %v1853 = vsel %vm819, %v1830, 0
        %1855 = vmatprep.subr.mxu0 0.0
        %1856 = vmatpush1.msra.mxu0 %v1838
        %1857 = vmatprep.subr.mxu0 0.0
        %1858 = vmatpush1.msra.mxu0 %v1840
        %1859 = vmatprep.subr.mxu0 0.0
        %1860 = vmatpush1.msra.mxu0 %v1842
        %1861 = vmatprep.subr.mxu0 0.0
        %1862 = vmatpush1.msra.mxu0 %v1844
        %1863 = vmatprep.subr.mxu0 0.0
        %1864 = vmatpush1.msra.mxu0 0.0
        %1865 = vmatprep.subr.mxu0 0.0
        %1866 = vmatpush1.msra.mxu0 0.0
        %1867 = vmatprep.subr.mxu0 0.0
        %1868 = vmatpush1.msra.mxu0 0.0
        %1869 = vmatprep.subr.mxu0 0.0
        %1870 = vmatpush1.msra.mxu0 0.0
        %1871 = vmatprep.subr.mxu0 0.0
        %1872 = vmatpush1.msra.mxu0 0.0
        %1873 = vmatprep.subr.mxu0 0.0
        %1874 = vmatpush1.msra.mxu0 0.0
        %1875 = vmatprep.subr.mxu0 0.0
        %1876 = vmatpush1.msra.mxu0 0.0
        %1877 = vmatprep.subr.mxu0 0.0
        %1878 = vmatpush1.msra.mxu0 0.0
        %1879 = vmatprep.subr.mxu0 0.0
        %1880 = vmatpush1.msra.mxu0 0.0
        %1881 = vmatprep.subr.mxu0 0.0
        %1882 = vmatpush1.msra.mxu0 0.0
        %1883 = vmatprep.subr.mxu0 0.0
        %1884 = vmatpush1.msra.mxu0 0.0
        %1885 = vmatprep.subr.mxu0 0.0
        %1886 = vmatpush1.msra.mxu0 0.0
        %1887 = vmatprep.subr.mxu0 0.0
        %1888 = vmatpush1.msra.mxu0 0.0
        %1889 = vmatprep.subr.mxu0 0.0
        %1890 = vmatpush1.msra.mxu0 0.0
        %1891 = vmatprep.subr.mxu0 0.0
        %1892 = vmatpush1.msra.mxu0 0.0
        %1893 = vmatprep.subr.mxu0 0.0
        %1894 = vmatpush1.msra.mxu0 0.0
        %1895 = vmatprep.subr.mxu0 0.0
        %1896 = vmatpush1.msra.mxu0 0.0
        %1897 = vmatprep.subr.mxu0 0.0
        %1898 = vmatpush1.msra.mxu0 0.0
        %1899 = vmatprep.subr.mxu0 0.0
        %1900 = vmatpush1.msra.mxu0 0.0
        %1901 = vmatprep.subr.mxu0 0.0
        %1902 = vmatpush1.msra.mxu0 0.0
        %1903 = vmatprep.subr.mxu0 0.0
        %1904 = vmatpush1.msra.mxu0 0.0
        %1905 = vmatprep.subr.mxu0 0.0
        %1906 = vmatpush1.msra.mxu0 0.0
        %1907 = vmatprep.subr.mxu0 0.0
        %1908 = vmatpush1.msra.mxu0 0.0
        %1909 = vmatprep.subr.mxu0 0.0
        %1910 = vmatpush1.msra.mxu0 0.0
        %1911 = vmatprep.subr.mxu0 0.0
        %1912 = vmatpush1.msra.mxu0 0.0
        %1913 = vmatprep.subr.mxu0 0.0
        %1914 = vmatpush1.msra.mxu0 0.0
        %1915 = vmatprep.subr.mxu0 0.0
        %1916 = vmatpush1.msra.mxu0 0.0
        %1917 = vmatprep.subr.mxu0 0.0
        %1918 = vmatpush1.msra.mxu0 0.0
        %1919 = vmatprep.mubr.f32.mxu0 0.0
        %1920 = vmatmul.mubr.f32.gmra.mrb[0].mxu0 %v1850
        %v1921 = vpop.f32.mrb[0].mxu0
        %v1922 = vadd.f32 0.0, %v1921
        %v1923 = vpop.f32.mrb[0].mxu0
        %1924 = vmatprep.mubr.f32.mxu0 0.0
        %1925 = vmatmul.mubr.f32.gmra.mrb[0].mxu0 %v1853
        %v1926 = vpop.f32.mrb[0].mxu0
        %v1927 = vadd.f32 0.0, %v1926
        %v1928 = vpop.f32.mrb[0].mxu0
        %1929 = vdwg.mxu0
        %v1930 = vrcp.pop %v1833
        %v1931 = vmul.f32 %v1922, %v1930
        %v1932 = vrcp.pop %v1836
        %v1933 = vmul.f32 %v1927, %v1932
        %1936 = vrot.lane.b32.xlu0 %v1503, 16
        %v1937 = vpop.permute.xlu0 %1936
        %1938 = vrot.lane.b32.xlu0 %v1505, 16
        %v1939 = vpop.permute.xlu0 %1938
        %1944 = vrot.lane.b32.xlu0 %v1717, 32
        %v1945 = vpop.permute.xlu0 %1944
        %1946 = vrot.lane.b32.xlu0 %v1719, 32
        %v1947 = vpop.permute.xlu0 %1946
        %1952 = vrot.lane.b32.xlu0 %v1931, 48
        %v1953 = vpop.permute.xlu0 %1952
        %1954 = vrot.lane.b32.xlu0 %v1933, 48
        %v1955 = vpop.permute.xlu0 %1954
        %v1958 = vsel %vm1083, %v1289, %v1937
        %v1959 = vsel %vm1083, %v1291, %v1939
        %v1960 = vsel %vm819, %v1958, %v1945
        %v1961 = vsel %vm819, %v1959, %v1947
        %vm1962 = vcmask 392192
        %v1963 = vsel %vm1962, %v1960, %v1953
        %v1964 = vsel %vm1962, %v1961, %v1955
        %v1965 = vld [vmem:[#allocation16] sm:$0xff]
        %v1966 = vld [vmem:[#allocation16 + $0x8] sm:$0xff]
        %v1967 = vld [vmem:[#allocation16 + $0x10] sm:$0xff]
        %v1968 = vld [vmem:[#allocation16 + $0x18] sm:$0xff]
        %v1969 = vld [vmem:[#allocation16 + $0x20] sm:$0xff]
        %v1970 = vld [vmem:[#allocation16 + $0x28] sm:$0xff]
        %v1971 = vld [vmem:[#allocation16 + $0x30] sm:$0xff]
        %v1972 = vld [vmem:[#allocation16 + $0x38] sm:$0xff]
        %v1973 = vld [vmem:[#allocation17] sm:$0x1]
        %v1975 = vlaneseq
        %v1976 = vshrl.u32 %v1975, 7
        %v1977 = vsub.s32 0, %v1976
        %v1978 = vrot.slane %v1973, %v1977
        %v1981 = vsel %vm773, %v1963, 0
        %v1984 = vsel %vm773, %v1964, 0
        %1986 = vmatprep.subr.mxu0 0.0
        %1987 = vmatpush1.msra.mxu0 %v1965
        %1988 = vmatprep.subr.mxu0 0.0
        %1989 = vmatpush1.msra.mxu0 %v1966
        %1990 = vmatprep.subr.mxu0 0.0
        %1991 = vmatpush1.msra.mxu0 %v1967
        %1992 = vmatprep.subr.mxu0 0.0
        %1993 = vmatpush1.msra.mxu0 %v1968
        %1994 = vmatprep.subr.mxu0 0.0
        %1995 = vmatpush1.msra.mxu0 %v1969
        %1996 = vmatprep.subr.mxu0 0.0
        %1997 = vmatpush1.msra.mxu0 %v1970
        %1998 = vmatprep.subr.mxu0 0.0
        %1999 = vmatpush1.msra.mxu0 %v1971
        %2000 = vmatprep.subr.mxu0 0.0
        %2001 = vmatpush1.msra.mxu0 %v1972
        %2002 = vmatprep.subr.mxu0 0.0
        %2003 = vmatpush1.msra.mxu0 0.0
        %2004 = vmatprep.subr.mxu0 0.0
        %2005 = vmatpush1.msra.mxu0 0.0
        %2006 = vmatprep.subr.mxu0 0.0
        %2007 = vmatpush1.msra.mxu0 0.0
        %2008 = vmatprep.subr.mxu0 0.0
        %2009 = vmatpush1.msra.mxu0 0.0
        %2010 = vmatprep.subr.mxu0 0.0
        %2011 = vmatpush1.msra.mxu0 0.0
        %2012 = vmatprep.subr.mxu0 0.0
        %2013 = vmatpush1.msra.mxu0 0.0
        %2014 = vmatprep.subr.mxu0 0.0
        %2015 = vmatpush1.msra.mxu0 0.0
        %2016 = vmatprep.subr.mxu0 0.0
        %2017 = vmatpush1.msra.mxu0 0.0
        %2018 = vmatprep.subr.mxu0 0.0
        %2019 = vmatpush1.msra.mxu0 0.0
        %2020 = vmatprep.subr.mxu0 0.0
        %2021 = vmatpush1.msra.mxu0 0.0
        %2022 = vmatprep.subr.mxu0 0.0
        %2023 = vmatpush1.msra.mxu0 0.0
        %2024 = vmatprep.subr.mxu0 0.0
        %2025 = vmatpush1.msra.mxu0 0.0
        %2026 = vmatprep.subr.mxu0 0.0
        %2027 = vmatpush1.msra.mxu0 0.0
        %2028 = vmatprep.subr.mxu0 0.0
        %2029 = vmatpush1.msra.mxu0 0.0
        %2030 = vmatprep.subr.mxu0 0.0
        %2031 = vmatpush1.msra.mxu0 0.0
        %2032 = vmatprep.subr.mxu0 0.0
        %2033 = vmatpush1.msra.mxu0 0.0
        %2034 = vmatprep.subr.mxu0 0.0
        %2035 = vmatpush1.msra.mxu0 0.0
        %2036 = vmatprep.subr.mxu0 0.0
        %2037 = vmatpush1.msra.mxu0 0.0
        %2038 = vmatprep.subr.mxu0 0.0
        %2039 = vmatpush1.msra.mxu0 0.0
        %2040 = vmatprep.subr.mxu0 0.0
        %2041 = vmatpush1.msra.mxu0 0.0
        %2042 = vmatprep.subr.mxu0 0.0
        %2043 = vmatpush1.msra.mxu0 0.0
        %2044 = vmatprep.subr.mxu0 0.0
        %2045 = vmatpush1.msra.mxu0 0.0
        %2046 = vmatprep.subr.mxu0 0.0
        %2047 = vmatpush1.msra.mxu0 0.0
        %2048 = vmatprep.subr.mxu0 0.0
        %2049 = vmatpush1.msra.mxu0 0.0
        %2050 = vmatprep.mubr.f32.mxu0 0.0
        %2051 = vmatmul.mubr.f32.gmra.mrb[0].mxu0 %v1981
        %v2052 = vpop.f32.mrb[0].mxu0
        %v2053 = vadd.f32 %v1978, %v2052
        %v2054 = vpop.f32.mrb[0].mxu0
        %2055 = vmatprep.mubr.f32.mxu0 0.0
        %2056 = vmatmul.mubr.f32.gmra.mrb[0].mxu0 %v1984
        %v2057 = vpop.f32.mrb[0].mxu0
        %v2058 = vadd.f32 %v1978, %v2057
        %v2059 = vpop.f32.mrb[0].mxu0
        %2060 = vdwg.mxu0
        %v2061 = vadd.f32 %v765, %v2053
        %v2062 = vadd.f32 %v766, %v2058
        %v2063 = vld [vmem:[#allocation19] sm:$0x1]
        %v2064 = vld [vmem:[#allocation20] sm:$0x1]
        %v2065 = vsel %vm773, %v2061, 0.0
        %2066 = vadd.xlane.f32.xlu0 %v2065
        %v2067 = vpop.xlane.xlu0 %2066
        %v2068 = vsel %vm773, %v2062, 0.0
        %2069 = vadd.xlane.f32.xlu0 %v2068
        %v2070 = vpop.xlane.xlu0 %2069
        %v2071 = vmul.f32 %v2067, %v780
        %v2072 = vmul.f32 %v2070, %v780
        %v2073 = vsub.f32 %v2061, %v2071
        %v2074 = vsub.f32 %v2062, %v2072
        %v2075 = vmul.f32 %v2073, %v2073
        %v2076 = vmul.f32 %v2074, %v2074
        %v2077 = vsel %vm773, %v2075, 0.0
        %2078 = vadd.xlane.f32.xlu0 %v2077
        %v2079 = vpop.xlane.xlu0 %2078
        %v2080 = vsel %vm773, %v2076, 0.0
        %2081 = vadd.xlane.f32.xlu0 %v2080
        %v2082 = vpop.xlane.xlu0 %2081
        %v2083 = vmul.f32 %v2079, %v780
        %v2084 = vmul.f32 %v2082, %v780
        %v2085 = vadd.f32 %v2083, 1e-05
        %v2086 = vadd.f32 %v2084, 1e-05
        %v2087 = vrsqrt.pop %v2085
        %v2088 = vrsqrt.pop %v2086
        %v2089 = vmul.f32 %v2073, %v2087
        %v2090 = vmul.f32 %v2074, %v2088
        %v2092 = vlaneseq
        %v2093 = vshrl.u32 %v2092, 7
        %v2094 = vsub.s32 0, %v2093
        %v2095 = vrot.slane %v2063, %v2094
        %v2097 = vmul.f32 %v2089, %v2095
        %v2098 = vmul.f32 %v2090, %v2095
        %v2100 = vlaneseq
        %v2101 = vshrl.u32 %v2100, 7
        %v2102 = vsub.s32 0, %v2101
        %v2103 = vrot.slane %v2064, %v2102
        %v2105 = vadd.f32 %v2097, %v2103
        %v2106 = vadd.f32 %v2098, %v2103
        %v2107 = vld [vmem:[#allocation22] sm:$0xff]
        %v2108 = vld [vmem:[#allocation22 + $0x8] sm:$0xff]
        %v2109 = vld [vmem:[#allocation22 + $0x10] sm:$0xff]
        %v2110 = vld [vmem:[#allocation22 + $0x18] sm:$0xff]
        %v2111 = vld [vmem:[#allocation22 + $0x20] sm:$0xff]
        %v2112 = vld [vmem:[#allocation22 + $0x28] sm:$0xff]
        %v2113 = vld [vmem:[#allocation22 + $0x30] sm:$0xff]
        %v2114 = vld [vmem:[#allocation22 + $0x38] sm:$0xff]
        %v2115 = vld [vmem:[#allocation22 + $0x40] sm:$0xff]
        %v2116 = vld [vmem:[#allocation22 + $0x48] sm:$0xff]
        %v2117 = vld [vmem:[#allocation22 + $0x50] sm:$0xff]
        %v2118 = vld [vmem:[#allocation22 + $0x58] sm:$0xff]
        %v2119 = vld [vmem:[#allocation22 + $0x60] sm:$0xff]
        %v2120 = vld [vmem:[#allocation22 + $0x68] sm:$0xff]
        %v2121 = vld [vmem:[#allocation22 + $0x70] sm:$0xff]
        %v2122 = vld [vmem:[#allocation22 + $0x78] sm:$0xff]
        %v2123 = vld [vmem:[#allocation23] sm:$0x3]
        %v2125 = vlaneseq
        %v2126 = vshrl.u32 %v2125, 7
        %v2127 = vsub.s32 0, %v2126
        %v2128 = vrot.slane %v2123, %v2127
        %v2129 = vlaneseq
        %v2130 = vshrl.u32 %v2129, 7
        %v2131 = vsub.s32 1, %v2130
        %v2132 = vrot.slane %v2123, %v2131
        %v2136 = vsel %vm773, %v2105, 0
        %v2139 = vsel %vm773, %v2106, 0
        %2141 = vmatprep.subr.mxu0 %v2108
        %2142 = vmatpush1.msra.mxu0 %v2107
        %2143 = vmatprep.subr.mxu0 %v2110
        %2144 = vmatpush1.msra.mxu0 %v2109
        %2145 = vmatprep.subr.mxu0 %v2112
        %2146 = vmatpush1.msra.mxu0 %v2111
        %2147 = vmatprep.subr.mxu0 %v2114
        %2148 = vmatpush1.msra.mxu0 %v2113
        %2149 = vmatprep.subr.mxu0 %v2116
        %2150 = vmatpush1.msra.mxu0 %v2115
        %2151 = vmatprep.subr.mxu0 %v2118
        %2152 = vmatpush1.msra.mxu0 %v2117
        %2153 = vmatprep.subr.mxu0 %v2120
        %2154 = vmatpush1.msra.mxu0 %v2119
        %2155 = vmatprep.subr.mxu0 %v2122
        %2156 = vmatpush1.msra.mxu0 %v2121
        %2157 = vmatprep.subr.mxu0 0.0
        %2158 = vmatpush1.msra.mxu0 0.0
        %2159 = vmatprep.subr.mxu0 0.0
        %2160 = vmatpush1.msra.mxu0 0.0
        %2161 = vmatprep.subr.mxu0 0.0
        %2162 = vmatpush1.msra.mxu0 0.0
        %2163 = vmatprep.subr.mxu0 0.0
        %2164 = vmatpush1.msra.mxu0 0.0
        %2165 = vmatprep.subr.mxu0 0.0
        %2166 = vmatpush1.msra.mxu0 0.0
        %2167 = vmatprep.subr.mxu0 0.0
        %2168 = vmatpush1.msra.mxu0 0.0
        %2169 = vmatprep.subr.mxu0 0.0
        %2170 = vmatpush1.msra.mxu0 0.0
        %2171 = vmatprep.subr.mxu0 0.0
        %2172 = vmatpush1.msra.mxu0 0.0
        %2173 = vmatprep.subr.mxu0 0.0
        %2174 = vmatpush1.msra.mxu0 0.0
        %2175 = vmatprep.subr.mxu0 0.0
        %2176 = vmatpush1.msra.mxu0 0.0
        %2177 = vmatprep.subr.mxu0 0.0
        %2178 = vmatpush1.msra.mxu0 0.0
        %2179 = vmatprep.subr.mxu0 0.0
        %2180 = vmatpush1.msra.mxu0 0.0
        %2181 = vmatprep.subr.mxu0 0.0
        %2182 = vmatpush1.msra.mxu0 0.0
        %2183 = vmatprep.subr.mxu0 0.0
        %2184 = vmatpush1.msra.mxu0 0.0
        %2185 = vmatprep.subr.mxu0 0.0
        %2186 = vmatpush1.msra.mxu0 0.0
        %2187 = vmatprep.subr.mxu0 0.0
        %2188 = vmatpush1.msra.mxu0 0.0
        %2189 = vmatprep.subr.mxu0 0.0
        %2190 = vmatpush1.msra.mxu0 0.0
        %2191 = vmatprep.subr.mxu0 0.0
        %2192 = vmatpush1.msra.mxu0 0.0
        %2193 = vmatprep.subr.mxu0 0.0
        %2194 = vmatpush1.msra.mxu0 0.0
        %2195 = vmatprep.subr.mxu0 0.0
        %2196 = vmatpush1.msra.mxu0 0.0
        %2197 = vmatprep.subr.mxu0 0.0
        %2198 = vmatpush1.msra.mxu0 0.0
        %2199 = vmatprep.subr.mxu0 0.0
        %2200 = vmatpush1.msra.mxu0 0.0
        %2201 = vmatprep.subr.mxu0 0.0
        %2202 = vmatpush1.msra.mxu0 0.0
        %2203 = vmatprep.subr.mxu0 0.0
        %2204 = vmatpush1.msra.mxu0 0.0
        %2205 = vmatprep.mubr.f32.mxu0 0.0
        %2206 = vmatmul.mubr.f32.gmra.mrb[0].mxu0 %v2136
        %v2207 = vpop.f32.mrb[0].mxu0
        %v2208 = vadd.f32 %v2128, %v2207
        %v2209 = vpop.f32.mrb[0].mxu0
        %v2210 = vadd.f32 %v2132, %v2209
        %2211 = vmatprep.mubr.f32.mxu0 0.0
        %2212 = vmatmul.mubr.f32.gmra.mrb[0].mxu0 %v2139
        %v2213 = vpop.f32.mrb[0].mxu0
        %v2214 = vadd.f32 %v2128, %v2213
        %v2215 = vpop.f32.mrb[0].mxu0
        %v2216 = vadd.f32 %v2132, %v2215
        %2217 = vdwg.mxu0
        %v2218 = vmul.f32 %v2208, %v2208
        %v2219 = vmul.f32 %v2210, %v2210
        %v2220 = vmul.f32 %v2214, %v2214
        %v2221 = vmul.f32 %v2216, %v2216
        %v2222 = vmul.f32 %v2208, %v2218
        %v2223 = vmul.f32 %v2210, %v2219
        %v2224 = vmul.f32 %v2214, %v2220
        %v2225 = vmul.f32 %v2216, %v2221
        %v2226 = vmul.f32 %v2222, 0.044715
        %v2227 = vmul.f32 %v2223, 0.044715
        %v2228 = vmul.f32 %v2224, 0.044715
        %v2229 = vmul.f32 %v2225, 0.044715
        %v2230 = vadd.f32 %v2208, %v2226
        %v2231 = vadd.f32 %v2210, %v2227
        %v2232 = vadd.f32 %v2214, %v2228
        %v2233 = vadd.f32 %v2216, %v2229
        %v2234 = vmul.f32 %v2230, 0.7978846
        %v2235 = vmul.f32 %v2231, 0.7978846
        %v2236 = vmul.f32 %v2232, 0.7978846
        %v2237 = vmul.f32 %v2233, 0.7978846
        %v2238 = vtanh.pop %v2234
        %v2239 = vtanh.pop %v2235
        %v2240 = vtanh.pop %v2236
        %v2241 = vtanh.pop %v2237
        %v2242 = vadd.f32 %v2238, 1.0
        %v2243 = vadd.f32 %v2239, 1.0
        %v2244 = vadd.f32 %v2240, 1.0
        %v2245 = vadd.f32 %v2241, 1.0
        %v2246 = vmul.f32 %v2242, 0.5
        %v2247 = vmul.f32 %v2243, 0.5
        %v2248 = vmul.f32 %v2244, 0.5
        %v2249 = vmul.f32 %v2245, 0.5
        %v2250 = vmul.f32 %v2208, %v2246
        %v2251 = vmul.f32 %v2210, %v2247
        %v2252 = vmul.f32 %v2214, %v2248
        %v2253 = vmul.f32 %v2216, %v2249
        %v2254 = vld [vmem:[#allocation25] sm:$0xff]
        %v2255 = vld [vmem:[#allocation25 + $0x8] sm:$0xff]
        %v2256 = vld [vmem:[#allocation25 + $0x10] sm:$0xff]
        %v2257 = vld [vmem:[#allocation25 + $0x18] sm:$0xff]
        %v2258 = vld [vmem:[#allocation25 + $0x20] sm:$0xff]
        %v2259 = vld [vmem:[#allocation25 + $0x28] sm:$0xff]
        %v2260 = vld [vmem:[#allocation25 + $0x30] sm:$0xff]
        %v2261 = vld [vmem:[#allocation25 + $0x38] sm:$0xff]
        %v2262 = vld [vmem:[#allocation25 + $0x40] sm:$0xff]
        %v2263 = vld [vmem:[#allocation25 + $0x48] sm:$0xff]
        %v2264 = vld [vmem:[#allocation25 + $0x50] sm:$0xff]
        %v2265 = vld [vmem:[#allocation25 + $0x58] sm:$0xff]
        %v2266 = vld [vmem:[#allocation25 + $0x60] sm:$0xff]
        %v2267 = vld [vmem:[#allocation25 + $0x68] sm:$0xff]
        %v2268 = vld [vmem:[#allocation25 + $0x70] sm:$0xff]
        %v2269 = vld [vmem:[#allocation25 + $0x78] sm:$0xff]
        %v2270 = vld [vmem:[#allocation25 + $0x80] sm:$0xff]
        %v2271 = vld [vmem:[#allocation25 + $0x88] sm:$0xff]
        %v2272 = vld [vmem:[#allocation25 + $0x90] sm:$0xff]
        %v2273 = vld [vmem:[#allocation25 + $0x98] sm:$0xff]
        %v2274 = vld [vmem:[#allocation25 + $0xa0] sm:$0xff]
        %v2275 = vld [vmem:[#allocation25 + $0xa8] sm:$0xff]
        %v2276 = vld [vmem:[#allocation25 + $0xb0] sm:$0xff]
        %v2277 = vld [vmem:[#allocation25 + $0xb8] sm:$0xff]
        %v2278 = vld [vmem:[#allocation25 + $0xc0] sm:$0xff]
        %v2279 = vld [vmem:[#allocation25 + $0xc8] sm:$0xff]
        %v2280 = vld [vmem:[#allocation25 + $0xd0] sm:$0xff]
        %v2281 = vld [vmem:[#allocation25 + $0xd8] sm:$0xff]
        %v2282 = vld [vmem:[#allocation25 + $0xe0] sm:$0xff]
        %v2283 = vld [vmem:[#allocation25 + $0xe8] sm:$0xff]
        %v2284 = vld [vmem:[#allocation25 + $0xf0] sm:$0xff]
        %v2285 = vld [vmem:[#allocation25 + $0xf8] sm:$0xff]
        %v2286 = vld [vmem:[#allocation26] sm:$0x1]
        %v2288 = vlaneseq
        %v2289 = vshrl.u32 %v2288, 7
        %v2290 = vsub.s32 0, %v2289
        %v2291 = vrot.slane %v2286, %v2290
        %2293 = vmatprep.subr.mxu0 0.0
        %2294 = vmatpush1.msra.mxu0 %v2254
        %2295 = vmatprep.subr.mxu0 0.0
        %2296 = vmatpush1.msra.mxu0 %v2255
        %2297 = vmatprep.subr.mxu0 0.0
        %2298 = vmatpush1.msra.mxu0 %v2256
        %2299 = vmatprep.subr.mxu0 0.0
        %2300 = vmatpush1.msra.mxu0 %v2257
        %2301 = vmatprep.subr.mxu0 0.0
        %2302 = vmatpush1.msra.mxu0 %v2258
        %2303 = vmatprep.subr.mxu0 0.0
        %2304 = vmatpush1.msra.mxu0 %v2259
        %2305 = vmatprep.subr.mxu0 0.0
        %2306 = vmatpush1.msra.mxu0 %v2260
        %2307 = vmatprep.subr.mxu0 0.0
        %2308 = vmatpush1.msra.mxu0 %v2261
        %2309 = vmatprep.subr.mxu0 0.0
        %2310 = vmatpush1.msra.mxu0 %v2262
        %2311 = vmatprep.subr.mxu0 0.0
        %2312 = vmatpush1.msra.mxu0 %v2263
        %2313 = vmatprep.subr.mxu0 0.0
        %2314 = vmatpush1.msra.mxu0 %v2264
        %2315 = vmatprep.subr.mxu0 0.0
        %2316 = vmatpush1.msra.mxu0 %v2265
        %2317 = vmatprep.subr.mxu0 0.0
        %2318 = vmatpush1.msra.mxu0 %v2266
        %2319 = vmatprep.subr.mxu0 0.0
        %2320 = vmatpush1.msra.mxu0 %v2267
        %2321 = vmatprep.subr.mxu0 0.0
        %2322 = vmatpush1.msra.mxu0 %v2268
        %2323 = vmatprep.subr.mxu0 0.0
        %2324 = vmatpush1.msra.mxu0 %v2269
        %2325 = vmatprep.subr.mxu0 0.0
        %2326 = vmatpush1.msra.mxu0 %v2270
        %2327 = vmatprep.subr.mxu0 0.0
        %2328 = vmatpush1.msra.mxu0 %v2271
        %2329 = vmatprep.subr.mxu0 0.0
        %2330 = vmatpush1.msra.mxu0 %v2272
        %2331 = vmatprep.subr.mxu0 0.0
        %2332 = vmatpush1.msra.mxu0 %v2273
        %2333 = vmatprep.subr.mxu0 0.0
        %2334 = vmatpush1.msra.mxu0 %v2274
        %2335 = vmatprep.subr.mxu0 0.0
        %2336 = vmatpush1.msra.mxu0 %v2275
        %2337 = vmatprep.subr.mxu0 0.0
        %2338 = vmatpush1.msra.mxu0 %v2276
        %2339 = vmatprep.subr.mxu0 0.0
        %2340 = vmatpush1.msra.mxu0 %v2277
        %2341 = vmatprep.subr.mxu0 0.0
        %2342 = vmatpush1.msra.mxu0 %v2278
        %2343 = vmatprep.subr.mxu0 0.0
        %2344 = vmatpush1.msra.mxu0 %v2279
        %2345 = vmatprep.subr.mxu0 0.0
        %2346 = vmatpush1.msra.mxu0 %v2280
        %2347 = vmatprep.subr.mxu0 0.0
        %2348 = vmatpush1.msra.mxu0 %v2281
        %2349 = vmatprep.subr.mxu0 0.0
        %2350 = vmatpush1.msra.mxu0 %v2282
        %2351 = vmatprep.subr.mxu0 0.0
        %2352 = vmatpush1.msra.mxu0 %v2283
        %2353 = vmatprep.subr.mxu0 0.0
        %2354 = vmatpush1.msra.mxu0 %v2284
        %2355 = vmatprep.subr.mxu0 0.0
        %2356 = vmatpush1.msra.mxu0 %v2285
        %2357 = vmatprep.mubr.f32.mxu0 %v2251
        %2358 = vmatmul.mubr.f32.gmra.mrb[0].mxu0 %v2250
        %v2359 = vpop.f32.mrb[0].mxu0
        %v2360 = vadd.f32 %v2291, %v2359
        %v2361 = vpop.f32.mrb[0].mxu0
        %2362 = vmatprep.mubr.f32.mxu0 %v2253
        %2363 = vmatmul.mubr.f32.gmra.mrb[0].mxu0 %v2252
        %v2364 = vpop.f32.mrb[0].mxu0
        %v2365 = vadd.f32 %v2291, %v2364
        %v2366 = vpop.f32.mrb[0].mxu0
        %2367 = vdwg.mxu0
        %v2368 = vadd.f32 %v2061, %v2360
        %v2369 = vadd.f32 %v2062, %v2365
        %2370 = vst.msk [vmem:[%s764] sm:$0xff] %vm773, %v2368
        %2371 = vst.msk [vmem:[%s764 + $0x8] sm:$0xff] %vm773, %v2369
        %s2372 = sand.u32 %s397, 1
        %s2373 = scalar_lea.sflag [#allocation4], %s2372
        %s2374 = sand.u32 %s397, 1
        %s2375 = smul.addr %s2374, 16
        %s2376 = scalar_lea.vmem [#allocation28], %s2375
        // Predicated region
        $region149: #{two_stream_block_pallas.4} parent=83 // pred_check
          %p2377 = pneg %p407
        $region150: #{two_stream_block_pallas.4} parent=83 // pred_check_branch
          %2379 = sbr.rel (%p2377) target = $region152
        $region151: #{two_stream_block_pallas.4} parent=83 // pred_region
          %s2381 = ssub.s32 256, 256
          %2382 = vsyncadd %s2373, %s2381
          %s2383 = smul.addr %s43, 2
          %s2384 = smul.addr %s2383, 128
          %s2385 = scalar_lea.hbm %s16, %s2384
          %s2386 = sshll.u32 %s2376, 4
          %s2387 = int_to_ptr.vmem [resolvable:$true] %s2386
          %2392 = dma.vmem_to_hbm [thread:$0]  %s2387, 256, %s2385, %s2373, 128, 128, 8
        $region152: #{two_stream_block_pallas.4} parent=83 // pred_fallthru
          _
      $region84: #{two_stream_block_pallas.4} parent=5 // pred_fallthru
        _
      %p2393 = scmp.le.s32.totalorder 2, %s38
      // Predicated region
      $region153: #{two_stream_block_pallas.4} parent=5 // pred_check
        %p2394 = pneg %p2393
      $region154: #{two_stream_block_pallas.4} parent=5 // pred_check_branch
        %2396 = sbr.rel (%p2394) target = $region156
      $region155: #{two_stream_block_pallas.4} parent=5 // pred_region
        %s2397 = ssub.s32 %s38, 2
        // Predicated region
        $region157: #{two_stream_block_pallas.4} parent=155 // pred_check
          %p2398 = pneg %p413
        $region158: #{two_stream_block_pallas.4} parent=155 // pred_check_branch
          %2400 = sbr.rel (%p2398) target = $region160
        $region159: #{two_stream_block_pallas.4} parent=155 // pred_region
          %s2401 = sand.u32 %s398, 1
          %s2402 = scalar_lea.sflag [#allocation4], %s2401
          %s2403 = sand.u32 %s398, 1
          %s2404 = smul.addr %s2403, 16
          %s2405 = scalar_lea.vmem [#allocation28], %s2404
          %2406 = dma.done %s2402, 256
        $region160: #{two_stream_block_pallas.4} parent=155 // pred_fallthru
          _
      $region156: #{two_stream_block_pallas.4} parent=5 // pred_fallthru
        _
    $region6: #{two_stream_block_pallas.4} parent=1 // loop_footer
      %s42 = sadd.s32 1, %s38
    $region7: #{two_stream_block_pallas.4} parent=1 // loop_footer_branch
      %37 = sbr.rel target = $region3
    $region8: #{two_stream_block_pallas.4} parent=1 // loop_exit
      _
    %2407 = vsyncpa [#allocation3], 1
    %s2408 = scalar_lea.sflag [#allocation3], 1
    %2409 = vsyncpa %s2408, 1
    %2410 = vsyncpa [#allocation6], 1
    %s2411 = scalar_lea.sflag [#allocation6], 1
    %2412 = vsyncpa %s2411, 1
    %2413 = vsyncpa [#allocation9], 1
    %2414 = vsyncpa [#allocation12], 1
    %2415 = vsyncpa [#allocation15], 1
    %2416 = vsyncpa [#allocation18], 1
    %2417 = vsyncpa [#allocation21], 1
    %2418 = vsyncpa [#allocation24], 1
    %2419 = vsyncpa [#allocation27], 1
    %2420 = vsyncpa [#allocation4], 1
    %s2421 = scalar_lea.sflag [#allocation4], 1
    %2422 = vsyncpa %s2421, 1

// kernel: two_stream_block_pallas.7
$region0: #{two_stream_block_pallas.7}
  #allocation0 [shape = 'u32[]', space=smem, size = 0x4, offset = 0x4, fixed_abs, tag = 'smem constant byte address 0x4 - core index']
  #allocation1 [shape = 'u32[144,128]{1,0:T(1,128)}', space=vmem, size = 0x12000, scoped, tag = 'internal scratch']
  %s0 = inlined_call_operand.hbm [shape: f32[2,32,32], index: 0, kind: input, shape index: {}]
  %s1 = inlined_call_operand.hbm [shape: f32[2,16,64], index: 1, kind: input, shape index: {}]
  %s2 = inlined_call_operand.hbm [shape: f32[1,64], index: 2, kind: input, shape index: {}]
  %s3 = inlined_call_operand.hbm [shape: f32[1,64], index: 3, kind: input, shape index: {}]
  %s4 = inlined_call_operand.hbm [shape: f32[1,32], index: 4, kind: input, shape index: {}]
  %s5 = inlined_call_operand.hbm [shape: f32[1,32], index: 5, kind: input, shape index: {}]
  %s6 = inlined_call_operand.hbm [shape: f32[32,32], index: 6, kind: input, shape index: {}]
  %s7 = inlined_call_operand.hbm [shape: f32[64,64], index: 7, kind: input, shape index: {}]
  %s8 = inlined_call_operand.hbm [shape: f32[32,32], index: 8, kind: input, shape index: {}]
  %s9 = inlined_call_operand.hbm [shape: f32[1,32], index: 9, kind: input, shape index: {}]
  %s10 = inlined_call_operand.hbm [shape: f32[1,32], index: 10, kind: input, shape index: {}]
  %s11 = inlined_call_operand.hbm [shape: f32[1,32], index: 11, kind: input, shape index: {}]
  %s12 = inlined_call_operand.hbm [shape: f32[32,128], index: 12, kind: input, shape index: {}]
  %s13 = inlined_call_operand.hbm [shape: f32[1,128], index: 13, kind: input, shape index: {}]
  %s14 = inlined_call_operand.hbm [shape: f32[128,32], index: 14, kind: input, shape index: {}]
  %s15 = inlined_call_operand.hbm [shape: f32[1,32], index: 15, kind: input, shape index: {}]
  %s16 = inlined_call_operand.hbm [shape: f32[2,32,32], index: 16, kind: output, shape index: {}]
  %s17 = sld [smem:[#allocation0]]
  $region161: #{two_stream_block_pallas.7} parent=0
    _
  %s19 = ssub.s32 1, %s17
  %s20 = scalar_select 0, %s19, %s17
  $region1: #{two_stream_block_pallas.7} parent=0
    #allocation2 [shape = 'u8[32768]{0}', space=vmem, size = 0x8000, scoped, tag = 'input window, operand 0']
    #allocation3 [shape = 's32[2]{0}', space=sflag, size = 0x8, scoped, tag = 'scoped memory for two_stream_block_pallas.7']
    #allocation4 [shape = 's32[2]{0}', space=sflag, size = 0x8, scoped, tag = 'scoped memory for two_stream_block_pallas.7']
    #allocation5 [shape = 'u8[16384]{0}', space=vmem, size = 0x4000, scoped, tag = 'input window, operand 1']
    #allocation6 [shape = 's32[2]{0}', space=sflag, size = 0x8, scoped, tag = 'scoped memory for two_stream_block_pallas.7']
    #allocation7 [shape = 'u8[512]{0}', space=vmem, size = 0x400, scoped, tag = 'input window, operand 2, single buffered']
    #allocation8 [shape = 'u8[512]{0}', space=vmem, size = 0x400, scoped, tag = 'input window, operand 3, single buffered']
    #allocation9 [shape = 's32[1]{0}', space=sflag, size = 0x4, scoped, tag = 'scoped memory for two_stream_block_pallas.7']
    #allocation10 [shape = 'u8[512]{0}', space=vmem, size = 0x400, scoped, tag = 'input window, operand 4, single buffered']
    #allocation11 [shape = 'u8[512]{0}', space=vmem, size = 0x400, scoped, tag = 'input window, operand 5, single buffered']
    #allocation12 [shape = 's32[1]{0}', space=sflag, size = 0x4, scoped, tag = 'scoped memory for two_stream_block_pallas.7']
    #allocation13 [shape = 'u8[16384]{0}', space=vmem, size = 0x4000, scoped, tag = 'input window, operand 6, single buffered']
    #allocation14 [shape = 'u8[32768]{0}', space=vmem, size = 0x8000, scoped, tag = 'input window, operand 7, single buffered']
    #allocation15 [shape = 's32[1]{0}', space=sflag, size = 0x4, scoped, tag = 'scoped memory for two_stream_block_pallas.7']
    #allocation16 [shape = 'u8[16384]{0}', space=vmem, size = 0x4000, scoped, tag = 'input window, operand 8, single buffered']
    #allocation17 [shape = 'u8[512]{0}', space=vmem, size = 0x400, scoped, tag = 'input window, operand 9, single buffered']
    #allocation18 [shape = 's32[1]{0}', space=sflag, size = 0x4, scoped, tag = 'scoped memory for two_stream_block_pallas.7']
    #allocation19 [shape = 'u8[512]{0}', space=vmem, size = 0x400, scoped, tag = 'input window, operand 10, single buffered']
    #allocation20 [shape = 'u8[512]{0}', space=vmem, size = 0x400, scoped, tag = 'input window, operand 11, single buffered']
    #allocation21 [shape = 's32[1]{0}', space=sflag, size = 0x4, scoped, tag = 'scoped memory for two_stream_block_pallas.7']
    #allocation22 [shape = 'u8[16384]{0}', space=vmem, size = 0x4000, scoped, tag = 'input window, operand 12, single buffered']
    #allocation23 [shape = 'u8[512]{0}', space=vmem, size = 0x400, scoped, tag = 'input window, operand 13, single buffered']
    #allocation24 [shape = 's32[1]{0}', space=sflag, size = 0x4, scoped, tag = 'scoped memory for two_stream_block_pallas.7']
    #allocation25 [shape = 'u8[65536]{0}', space=vmem, size = 0x10000, scoped, tag = 'input window, operand 14, single buffered']
    #allocation26 [shape = 'u8[512]{0}', space=vmem, size = 0x400, scoped, tag = 'input window, operand 15, single buffered']
    #allocation27 [shape = 's32[1]{0}', space=sflag, size = 0x4, scoped, tag = 'scoped memory for two_stream_block_pallas.7']
    #allocation28 [shape = 'u8[32768]{0}', space=vmem, size = 0x8000, scoped, tag = 'output window, operand 0']
    %21 = vsyncpa [#allocation3], 0
    %s22 = scalar_lea.sflag [#allocation3], 1
    %23 = vsyncpa %s22, 0
    %24 = vsyncpa [#allocation6], 0
    %s25 = scalar_lea.sflag [#allocation6], 1
    %26 = vsyncpa %s25, 0
    %27 = vsyncpa [#allocation9], 0
    %28 = vsyncpa [#allocation12], 0
    %29 = vsyncpa [#allocation15], 0
    %30 = vsyncpa [#allocation18], 0
    %31 = vsyncpa [#allocation21], 0
    %32 = vsyncpa [#allocation24], 0
    %33 = vsyncpa [#allocation27], 0
    %34 = vsyncpa [#allocation4], 0
    %s35 = scalar_lea.sflag [#allocation4], 1
    %36 = vsyncpa %s35, 0
    loop: start=0, step=1, limit=4
    $region2: #{two_stream_block_pallas.7} parent=1 // loop_pre_header
      _
    $region3: #{two_stream_block_pallas.7} parent=1 // loop_header
      %s38 = sphi 0, %s42
      %p39 = scmp.ge.s32.totalorder %s38, 4
      %s48 = sphi 0, %s50
      %s51 = sphi 0, %s48
      %s52 = sphi 0, %s51
      %s68 = sphi 0, %s52
      %s74 = sphi 0, %s76
      %s77 = sphi 0, %s74
      %s78 = sphi 0, %s77
      %s94 = sphi 0, %s78
      %s98 = sphi 0, %s98
      %s100 = sphi 0, %s98
      %s101 = sphi 0, %s100
      %s115 = sphi 0, %s101
      %s119 = sphi 0, %s119
      %s121 = sphi 0, %s119
      %s122 = sphi 0, %s121
      %s136 = sphi 0, %s122
      %s140 = sphi 0, %s140
      %s142 = sphi 0, %s140
      %s143 = sphi 0, %s142
      %s157 = sphi 0, %s143
      %s161 = sphi 0, %s161
      %s163 = sphi 0, %s161
      %s164 = sphi 0, %s163
      %s178 = sphi 0, %s164
      %s182 = sphi 0, %s182
      %s184 = sphi 0, %s182
      %s185 = sphi 0, %s184
      %s199 = sphi 0, %s185
      %s203 = sphi 0, %s203
      %s205 = sphi 0, %s203
      %s206 = sphi 0, %s205
      %s220 = sphi 0, %s206
      %s224 = sphi 0, %s224
      %s226 = sphi 0, %s224
      %s227 = sphi 0, %s226
      %s241 = sphi 0, %s227
      %s245 = sphi 0, %s245
      %s247 = sphi 0, %s245
      %s248 = sphi 0, %s247
      %s262 = sphi 0, %s248
      %s266 = sphi 0, %s266
      %s268 = sphi 0, %s266
      %s269 = sphi 0, %s268
      %s283 = sphi 0, %s269
      %s287 = sphi 0, %s287
      %s289 = sphi 0, %s287
      %s290 = sphi 0, %s289
      %s304 = sphi 0, %s290
      %s308 = sphi 0, %s308
      %s310 = sphi 0, %s308
      %s311 = sphi 0, %s310
      %s325 = sphi 0, %s311
      %s329 = sphi 0, %s329
      %s331 = sphi 0, %s329
      %s332 = sphi 0, %s331
      %s346 = sphi 0, %s332
      %s350 = sphi 0, %s350
      %s352 = sphi 0, %s350
      %s353 = sphi 0, %s352
      %s367 = sphi 0, %s353
      %s371 = sphi 0, %s371
      %s373 = sphi 0, %s371
      %s374 = sphi 0, %s373
      %s388 = sphi 0, %s374
      %s394 = sphi 0, %s396
      %s397 = sphi 0, %s394
      %s398 = sphi 0, %s397
      %s414 = sphi 0, %s398
    $region4: #{two_stream_block_pallas.7} parent=1 // loop_header_branch
      %41 = sbr.rel (%p39) target = $region8
    $region5: #{two_stream_block_pallas.7} parent=1 // loop_body
      %s43 = ssub.s32 %s38, 1
      %s44 = ssub.s32 %s38, 2
      %s45 = sadd.s32 %s38, 1
      %s46 = ssub.s32 %s38, %s45
      %p47 = scmp.eq.s32.totalorder %s46, 0
      %s49 = sadd.s32 %s48, 1
      %s50 = scalar_select %p47, %s48, %s49
      %p53 = pneg %p47
      %p54 = scmp.eq.s32.totalorder %s38, 1
      %p55 = por %p53, %p54
      %p56 = scmp.ne.s32.totalorder %s48, %s51
      %p57 = scmp.eq.s32.totalorder %s38, 0
      %p58 = por %p56, %p57
      %p59 = scmp.ne.s32.totalorder %s48, %s51
      %p60 = scmp.eq.s32.totalorder %s43, 1
      %p61 = por %p59, %p60
      %p62 = scmp.ne.s32.totalorder %s51, %s52
      %p63 = scmp.eq.s32.totalorder %s43, 0
      %p64 = por %p62, %p63
      %p65 = scmp.ne.s32.totalorder %s51, %s52
      %p66 = scmp.eq.s32.totalorder %s44, 1
      %p67 = por %p65, %p66
      %p69 = scmp.ne.s32.totalorder %s52, %s68
      %p70 = scmp.eq.s32.totalorder %s44, 0
      %p71 = por %p69, %p70
      %s72 = ssub.s32 %s38, %s45
      %p73 = scmp.eq.s32.totalorder %s72, 0
      %s75 = sadd.s32 %s74, 1
      %s76 = scalar_select %p73, %s74, %s75
      %p79 = pneg %p73
      %p80 = scmp.eq.s32.totalorder %s38, 1
      %p81 = por %p79, %p80
      %p82 = scmp.ne.s32.totalorder %s74, %s77
      %p83 = scmp.eq.s32.totalorder %s38, 0
      %p84 = por %p82, %p83
      %p85 = scmp.ne.s32.totalorder %s74, %s77
      %p86 = scmp.eq.s32.totalorder %s43, 1
      %p87 = por %p85, %p86
      %p88 = scmp.ne.s32.totalorder %s77, %s78
      %p89 = scmp.eq.s32.totalorder %s43, 0
      %p90 = por %p88, %p89
      %p91 = scmp.ne.s32.totalorder %s77, %s78
      %p92 = scmp.eq.s32.totalorder %s44, 1
      %p93 = por %p91, %p92
      %p95 = scmp.ne.s32.totalorder %s78, %s94
      %p96 = scmp.eq.s32.totalorder %s44, 0
      %p97 = por %p95, %p96
      %s99 = sadd.s32 %s98, 1
      %p102 = scmp.eq.s32.totalorder %s38, 1
      %p103 = scmp.ne.s32.totalorder %s98, %s100
      %p104 = scmp.eq.s32.totalorder %s38, 0
      %p105 = por %p103, %p104
      %p106 = scmp.ne.s32.totalorder %s98, %s100
      %p107 = scmp.eq.s32.totalorder %s43, 1
      %p108 = por %p106, %p107
      %p109 = scmp.ne.s32.totalorder %s100, %s101
      %p110 = scmp.eq.s32.totalorder %s43, 0
      %p111 = por %p109, %p110
      %p112 = scmp.ne.s32.totalorder %s100, %s101
      %p113 = scmp.eq.s32.totalorder %s44, 1
      %p114 = por %p112, %p113
      %p116 = scmp.ne.s32.totalorder %s101, %s115
      %p117 = scmp.eq.s32.totalorder %s44, 0
      %p118 = por %p116, %p117
      %s120 = sadd.s32 %s119, 1
      %p123 = scmp.eq.s32.totalorder %s38, 1
      %p124 = scmp.ne.s32.totalorder %s119, %s121
      %p125 = scmp.eq.s32.totalorder %s38, 0
      %p126 = por %p124, %p125
      %p127 = scmp.ne.s32.totalorder %s119, %s121
      %p128 = scmp.eq.s32.totalorder %s43, 1
      %p129 = por %p127, %p128
      %p130 = scmp.ne.s32.totalorder %s121, %s122
      %p131 = scmp.eq.s32.totalorder %s43, 0
      %p132 = por %p130, %p131
      %p133 = scmp.ne.s32.totalorder %s121, %s122
      %p134 = scmp.eq.s32.totalorder %s44, 1
      %p135 = por %p133, %p134
      %p137 = scmp.ne.s32.totalorder %s122, %s136
      %p138 = scmp.eq.s32.totalorder %s44, 0
      %p139 = por %p137, %p138
      %s141 = sadd.s32 %s140, 1
      %p144 = scmp.eq.s32.totalorder %s38, 1
      %p145 = scmp.ne.s32.totalorder %s140, %s142
      %p146 = scmp.eq.s32.totalorder %s38, 0
      %p147 = por %p145, %p146
      %p148 = scmp.ne.s32.totalorder %s140, %s142
      %p149 = scmp.eq.s32.totalorder %s43, 1
      %p150 = por %p148, %p149
      %p151 = scmp.ne.s32.totalorder %s142, %s143
      %p152 = scmp.eq.s32.totalorder %s43, 0
      %p153 = por %p151, %p152
      %p154 = scmp.ne.s32.totalorder %s142, %s143
      %p155 = scmp.eq.s32.totalorder %s44, 1
      %p156 = por %p154, %p155
      %p158 = scmp.ne.s32.totalorder %s143, %s157
      %p159 = scmp.eq.s32.totalorder %s44, 0
      %p160 = por %p158, %p159
      %s162 = sadd.s32 %s161, 1
      %p165 = scmp.eq.s32.totalorder %s38, 1
      %p166 = scmp.ne.s32.totalorder %s161, %s163
      %p167 = scmp.eq.s32.totalorder %s38, 0
      %p168 = por %p166, %p167
      %p169 = scmp.ne.s32.totalorder %s161, %s163
      %p170 = scmp.eq.s32.totalorder %s43, 1
      %p171 = por %p169, %p170
      %p172 = scmp.ne.s32.totalorder %s163, %s164
      %p173 = scmp.eq.s32.totalorder %s43, 0
      %p174 = por %p172, %p173
      %p175 = scmp.ne.s32.totalorder %s163, %s164
      %p176 = scmp.eq.s32.totalorder %s44, 1
      %p177 = por %p175, %p176
      %p179 = scmp.ne.s32.totalorder %s164, %s178
      %p180 = scmp.eq.s32.totalorder %s44, 0
      %p181 = por %p179, %p180
      %s183 = sadd.s32 %s182, 1
      %p186 = scmp.eq.s32.totalorder %s38, 1
      %p187 = scmp.ne.s32.totalorder %s182, %s184
      %p188 = scmp.eq.s32.totalorder %s38, 0
      %p189 = por %p187, %p188
      %p190 = scmp.ne.s32.totalorder %s182, %s184
      %p191 = scmp.eq.s32.totalorder %s43, 1
      %p192 = por %p190, %p191
      %p193 = scmp.ne.s32.totalorder %s184, %s185
      %p194 = scmp.eq.s32.totalorder %s43, 0
      %p195 = por %p193, %p194
      %p196 = scmp.ne.s32.totalorder %s184, %s185
      %p197 = scmp.eq.s32.totalorder %s44, 1
      %p198 = por %p196, %p197
      %p200 = scmp.ne.s32.totalorder %s185, %s199
      %p201 = scmp.eq.s32.totalorder %s44, 0
      %p202 = por %p200, %p201
      %s204 = sadd.s32 %s203, 1
      %p207 = scmp.eq.s32.totalorder %s38, 1
      %p208 = scmp.ne.s32.totalorder %s203, %s205
      %p209 = scmp.eq.s32.totalorder %s38, 0
      %p210 = por %p208, %p209
      %p211 = scmp.ne.s32.totalorder %s203, %s205
      %p212 = scmp.eq.s32.totalorder %s43, 1
      %p213 = por %p211, %p212
      %p214 = scmp.ne.s32.totalorder %s205, %s206
      %p215 = scmp.eq.s32.totalorder %s43, 0
      %p216 = por %p214, %p215
      %p217 = scmp.ne.s32.totalorder %s205, %s206
      %p218 = scmp.eq.s32.totalorder %s44, 1
      %p219 = por %p217, %p218
      %p221 = scmp.ne.s32.totalorder %s206, %s220
      %p222 = scmp.eq.s32.totalorder %s44, 0
      %p223 = por %p221, %p222
      %s225 = sadd.s32 %s224, 1
      %p228 = scmp.eq.s32.totalorder %s38, 1
      %p229 = scmp.ne.s32.totalorder %s224, %s226
      %p230 = scmp.eq.s32.totalorder %s38, 0
      %p231 = por %p229, %p230
      %p232 = scmp.ne.s32.totalorder %s224, %s226
      %p233 = scmp.eq.s32.totalorder %s43, 1
      %p234 = por %p232, %p233
      %p235 = scmp.ne.s32.totalorder %s226, %s227
      %p236 = scmp.eq.s32.totalorder %s43, 0
      %p237 = por %p235, %p236
      %p238 = scmp.ne.s32.totalorder %s226, %s227
      %p239 = scmp.eq.s32.totalorder %s44, 1
      %p240 = por %p238, %p239
      %p242 = scmp.ne.s32.totalorder %s227, %s241
      %p243 = scmp.eq.s32.totalorder %s44, 0
      %p244 = por %p242, %p243
      %s246 = sadd.s32 %s245, 1
      %p249 = scmp.eq.s32.totalorder %s38, 1
      %p250 = scmp.ne.s32.totalorder %s245, %s247
      %p251 = scmp.eq.s32.totalorder %s38, 0
      %p252 = por %p250, %p251
      %p253 = scmp.ne.s32.totalorder %s245, %s247
      %p254 = scmp.eq.s32.totalorder %s43, 1
      %p255 = por %p253, %p254
      %p256 = scmp.ne.s32.totalorder %s247, %s248
      %p257 = scmp.eq.s32.totalorder %s43, 0
      %p258 = por %p256, %p257
      %p259 = scmp.ne.s32.totalorder %s247, %s248
      %p260 = scmp.eq.s32.totalorder %s44, 1
      %p261 = por %p259, %p260
      %p263 = scmp.ne.s32.totalorder %s248, %s262
      %p264 = scmp.eq.s32.totalorder %s44, 0
      %p265 = por %p263, %p264
      %s267 = sadd.s32 %s266, 1
      %p270 = scmp.eq.s32.totalorder %s38, 1
      %p271 = scmp.ne.s32.totalorder %s266, %s268
      %p272 = scmp.eq.s32.totalorder %s38, 0
      %p273 = por %p271, %p272
      %p274 = scmp.ne.s32.totalorder %s266, %s268
      %p275 = scmp.eq.s32.totalorder %s43, 1
      %p276 = por %p274, %p275
      %p277 = scmp.ne.s32.totalorder %s268, %s269
      %p278 = scmp.eq.s32.totalorder %s43, 0
      %p279 = por %p277, %p278
      %p280 = scmp.ne.s32.totalorder %s268, %s269
      %p281 = scmp.eq.s32.totalorder %s44, 1
      %p282 = por %p280, %p281
      %p284 = scmp.ne.s32.totalorder %s269, %s283
      %p285 = scmp.eq.s32.totalorder %s44, 0
      %p286 = por %p284, %p285
      %s288 = sadd.s32 %s287, 1
      %p291 = scmp.eq.s32.totalorder %s38, 1
      %p292 = scmp.ne.s32.totalorder %s287, %s289
      %p293 = scmp.eq.s32.totalorder %s38, 0
      %p294 = por %p292, %p293
      %p295 = scmp.ne.s32.totalorder %s287, %s289
      %p296 = scmp.eq.s32.totalorder %s43, 1
      %p297 = por %p295, %p296
      %p298 = scmp.ne.s32.totalorder %s289, %s290
      %p299 = scmp.eq.s32.totalorder %s43, 0
      %p300 = por %p298, %p299
      %p301 = scmp.ne.s32.totalorder %s289, %s290
      %p302 = scmp.eq.s32.totalorder %s44, 1
      %p303 = por %p301, %p302
      %p305 = scmp.ne.s32.totalorder %s290, %s304
      %p306 = scmp.eq.s32.totalorder %s44, 0
      %p307 = por %p305, %p306
      %s309 = sadd.s32 %s308, 1
      %p312 = scmp.eq.s32.totalorder %s38, 1
      %p313 = scmp.ne.s32.totalorder %s308, %s310
      %p314 = scmp.eq.s32.totalorder %s38, 0
      %p315 = por %p313, %p314
      %p316 = scmp.ne.s32.totalorder %s308, %s310
      %p317 = scmp.eq.s32.totalorder %s43, 1
      %p318 = por %p316, %p317
      %p319 = scmp.ne.s32.totalorder %s310, %s311
      %p320 = scmp.eq.s32.totalorder %s43, 0
      %p321 = por %p319, %p320
      %p322 = scmp.ne.s32.totalorder %s310, %s311
      %p323 = scmp.eq.s32.totalorder %s44, 1
      %p324 = por %p322, %p323
      %p326 = scmp.ne.s32.totalorder %s311, %s325
      %p327 = scmp.eq.s32.totalorder %s44, 0
      %p328 = por %p326, %p327
      %s330 = sadd.s32 %s329, 1
      %p333 = scmp.eq.s32.totalorder %s38, 1
      %p334 = scmp.ne.s32.totalorder %s329, %s331
      %p335 = scmp.eq.s32.totalorder %s38, 0
      %p336 = por %p334, %p335
      %p337 = scmp.ne.s32.totalorder %s329, %s331
      %p338 = scmp.eq.s32.totalorder %s43, 1
      %p339 = por %p337, %p338
      %p340 = scmp.ne.s32.totalorder %s331, %s332
      %p341 = scmp.eq.s32.totalorder %s43, 0
      %p342 = por %p340, %p341
      %p343 = scmp.ne.s32.totalorder %s331, %s332
      %p344 = scmp.eq.s32.totalorder %s44, 1
      %p345 = por %p343, %p344
      %p347 = scmp.ne.s32.totalorder %s332, %s346
      %p348 = scmp.eq.s32.totalorder %s44, 0
      %p349 = por %p347, %p348
      %s351 = sadd.s32 %s350, 1
      %p354 = scmp.eq.s32.totalorder %s38, 1
      %p355 = scmp.ne.s32.totalorder %s350, %s352
      %p356 = scmp.eq.s32.totalorder %s38, 0
      %p357 = por %p355, %p356
      %p358 = scmp.ne.s32.totalorder %s350, %s352
      %p359 = scmp.eq.s32.totalorder %s43, 1
      %p360 = por %p358, %p359
      %p361 = scmp.ne.s32.totalorder %s352, %s353
      %p362 = scmp.eq.s32.totalorder %s43, 0
      %p363 = por %p361, %p362
      %p364 = scmp.ne.s32.totalorder %s352, %s353
      %p365 = scmp.eq.s32.totalorder %s44, 1
      %p366 = por %p364, %p365
      %p368 = scmp.ne.s32.totalorder %s353, %s367
      %p369 = scmp.eq.s32.totalorder %s44, 0
      %p370 = por %p368, %p369
      %s372 = sadd.s32 %s371, 1
      %p375 = scmp.eq.s32.totalorder %s38, 1
      %p376 = scmp.ne.s32.totalorder %s371, %s373
      %p377 = scmp.eq.s32.totalorder %s38, 0
      %p378 = por %p376, %p377
      %p379 = scmp.ne.s32.totalorder %s371, %s373
      %p380 = scmp.eq.s32.totalorder %s43, 1
      %p381 = por %p379, %p380
      %p382 = scmp.ne.s32.totalorder %s373, %s374
      %p383 = scmp.eq.s32.totalorder %s43, 0
      %p384 = por %p382, %p383
      %p385 = scmp.ne.s32.totalorder %s373, %s374
      %p386 = scmp.eq.s32.totalorder %s44, 1
      %p387 = por %p385, %p386
      %p389 = scmp.ne.s32.totalorder %s374, %s388
      %p390 = scmp.eq.s32.totalorder %s44, 0
      %p391 = por %p389, %p390
      %s392 = ssub.s32 %s38, %s45
      %p393 = scmp.eq.s32.totalorder %s392, 0
      %s395 = sadd.s32 %s394, 1
      %s396 = scalar_select %p393, %s394, %s395
      %p399 = pneg %p393
      %p400 = scmp.eq.s32.totalorder %s38, 1
      %p401 = por %p399, %p400
      %p402 = scmp.ne.s32.totalorder %s394, %s397
      %p403 = scmp.eq.s32.totalorder %s38, 0
      %p404 = por %p402, %p403
      %p405 = scmp.ne.s32.totalorder %s394, %s397
      %p406 = scmp.eq.s32.totalorder %s43, 1
      %p407 = por %p405, %p406
      %p408 = scmp.ne.s32.totalorder %s397, %s398
      %p409 = scmp.eq.s32.totalorder %s43, 0
      %p410 = por %p408, %p409
      %p411 = scmp.ne.s32.totalorder %s397, %s398
      %p412 = scmp.eq.s32.totalorder %s44, 1
      %p413 = por %p411, %p412
      %p415 = scmp.ne.s32.totalorder %s398, %s414
      %p416 = scmp.eq.s32.totalorder %s44, 0
      %p417 = por %p415, %p416
      %p418 = scmp.le.s32.totalorder 1, %s38
      %p419 = scmp.lt.s32.totalorder %s38, 3
      %p420 = pnand %p418, %p419
      %p421 = pneg %p420
      // Predicated region
      $region9: #{two_stream_block_pallas.7} parent=5 // pred_check
        _
      $region10: #{two_stream_block_pallas.7} parent=5 // pred_check_branch
        %423 = sbr.rel (%p420) target = $region12
      $region11: #{two_stream_block_pallas.7} parent=5 // pred_region
        %s424 = ssub.s32 %s38, 1
        // Predicated region
        $region13: #{two_stream_block_pallas.7} parent=11 // pred_check
          %p425 = pneg %p111
        $region14: #{two_stream_block_pallas.7} parent=11 // pred_check_branch
          %427 = sbr.rel (%p425) target = $region16
        $region15: #{two_stream_block_pallas.7} parent=11 // pred_region
          %s429 = ssub.s32 16, 16
          %430 = vsyncadd [#allocation6], %s429
          %s432 = sshll.u32 [#allocation7], 4
          %s433 = int_to_ptr.vmem [resolvable:$true] %s432
          %435 = dma.hbm_to_vmem [thread:$0]  %s2, 16, %s433, [#allocation6]
        $region16: #{two_stream_block_pallas.7} parent=11 // pred_fallthru
          _
        // Predicated region
        $region17: #{two_stream_block_pallas.7} parent=11 // pred_check
          %p436 = pneg %p132
        $region18: #{two_stream_block_pallas.7} parent=11 // pred_check_branch
          %438 = sbr.rel (%p436) target = $region20
        $region19: #{two_stream_block_pallas.7} parent=11 // pred_region
          %s440 = ssub.s32 16, 16
          %441 = vsyncadd [#allocation9], %s440
          %s443 = sshll.u32 [#allocation8], 4
          %s444 = int_to_ptr.vmem [resolvable:$true] %s443
          %446 = dma.hbm_to_vmem [thread:$0]  %s3, 16, %s444, [#allocation9]
        $region20: #{two_stream_block_pallas.7} parent=11 // pred_fallthru
          _
        // Predicated region
        $region21: #{two_stream_block_pallas.7} parent=11 // pred_check
          %p447 = pneg %p153
        $region22: #{two_stream_block_pallas.7} parent=11 // pred_check_branch
          %449 = sbr.rel (%p447) target = $region24
        $region23: #{two_stream_block_pallas.7} parent=11 // pred_region
          %s451 = ssub.s32 16, 16
          %452 = vsyncadd [#allocation9], %s451
          %s454 = sshll.u32 [#allocation10], 4
          %s455 = int_to_ptr.vmem [resolvable:$true] %s454
          %457 = dma.hbm_to_vmem [thread:$0]  %s4, 16, %s455, [#allocation9]
        $region24: #{two_stream_block_pallas.7} parent=11 // pred_fallthru
          _
        // Predicated region
        $region25: #{two_stream_block_pallas.7} parent=11 // pred_check
          %p458 = pneg %p174
        $region26: #{two_stream_block_pallas.7} parent=11 // pred_check_branch
          %460 = sbr.rel (%p458) target = $region28
        $region27: #{two_stream_block_pallas.7} parent=11 // pred_region
          %s462 = ssub.s32 16, 16
          %463 = vsyncadd [#allocation12], %s462
          %s465 = sshll.u32 [#allocation11], 4
          %s466 = int_to_ptr.vmem [resolvable:$true] %s465
          %468 = dma.hbm_to_vmem [thread:$0]  %s5, 16, %s466, [#allocation12]
        $region28: #{two_stream_block_pallas.7} parent=11 // pred_fallthru
          _
        // Predicated region
        $region29: #{two_stream_block_pallas.7} parent=11 // pred_check
          %p469 = pneg %p195
        $region30: #{two_stream_block_pallas.7} parent=11 // pred_check_branch
          %471 = sbr.rel (%p469) target = $region32
        $region31: #{two_stream_block_pallas.7} parent=11 // pred_region
          %s473 = ssub.s32 512, 512
          %474 = vsyncadd [#allocation12], %s473
          %s475 = sshll.u32 [#allocation13], 4
          %s476 = int_to_ptr.vmem [resolvable:$true] %s475
          %481 = dma.hbm_to_vmem [thread:$0]  %s6, 512, %s476, [#allocation12], 128, 128, 8
        $region32: #{two_stream_block_pallas.7} parent=11 // pred_fallthru
          _
        // Predicated region
        $region33: #{two_stream_block_pallas.7} parent=11 // pred_check
          %p482 = pneg %p216
        $region34: #{two_stream_block_pallas.7} parent=11 // pred_check_branch
          %484 = sbr.rel (%p482) target = $region36
        $region35: #{two_stream_block_pallas.7} parent=11 // pred_region
          %s486 = ssub.s32 1024, 1024
          %487 = vsyncadd [#allocation15], %s486
          %s488 = sshll.u32 [#allocation14], 4
          %s489 = int_to_ptr.vmem [resolvable:$true] %s488
          %494 = dma.hbm_to_vmem [thread:$0]  %s7, 1024, %s489, [#allocation15], 128, 128, 8
        $region36: #{two_stream_block_pallas.7} parent=11 // pred_fallthru
          _
        // Predicated region
        $region37: #{two_stream_block_pallas.7} parent=11 // pred_check
          %p495 = pneg %p237
        $region38: #{two_stream_block_pallas.7} parent=11 // pred_check_branch
          %497 = sbr.rel (%p495) target = $region40
        $region39: #{two_stream_block_pallas.7} parent=11 // pred_region
          %s499 = ssub.s32 512, 512
          %500 = vsyncadd [#allocation15], %s499
          %s501 = sshll.u32 [#allocation16], 4
          %s502 = int_to_ptr.vmem [resolvable:$true] %s501
          %507 = dma.hbm_to_vmem [thread:$0]  %s8, 512, %s502, [#allocation15], 128, 128, 8
        $region40: #{two_stream_block_pallas.7} parent=11 // pred_fallthru
          _
        // Predicated region
        $region41: #{two_stream_block_pallas.7} parent=11 // pred_check
          %p508 = pneg %p258
        $region42: #{two_stream_block_pallas.7} parent=11 // pred_check_branch
          %510 = sbr.rel (%p508) target = $region44
        $region43: #{two_stream_block_pallas.7} parent=11 // pred_region
          %s512 = ssub.s32 16, 16
          %513 = vsyncadd [#allocation18], %s512
          %s515 = sshll.u32 [#allocation17], 4
          %s516 = int_to_ptr.vmem [resolvable:$true] %s515
          %518 = dma.hbm_to_vmem [thread:$0]  %s9, 16, %s516, [#allocation18]
        $region44: #{two_stream_block_pallas.7} parent=11 // pred_fallthru
          _
        // Predicated region
        $region45: #{two_stream_block_pallas.7} parent=11 // pred_check
          %p519 = pneg %p279
        $region46: #{two_stream_block_pallas.7} parent=11 // pred_check_branch
          %521 = sbr.rel (%p519) target = $region48
        $region47: #{two_stream_block_pallas.7} parent=11 // pred_region
          %s523 = ssub.s32 16, 16
          %524 = vsyncadd [#allocation18], %s523
          %s526 = sshll.u32 [#allocation19], 4
          %s527 = int_to_ptr.vmem [resolvable:$true] %s526
          %529 = dma.hbm_to_vmem [thread:$0]  %s10, 16, %s527, [#allocation18]
        $region48: #{two_stream_block_pallas.7} parent=11 // pred_fallthru
          _
        // Predicated region
        $region49: #{two_stream_block_pallas.7} parent=11 // pred_check
          %p530 = pneg %p300
        $region50: #{two_stream_block_pallas.7} parent=11 // pred_check_branch
          %532 = sbr.rel (%p530) target = $region52
        $region51: #{two_stream_block_pallas.7} parent=11 // pred_region
          %s534 = ssub.s32 16, 16
          %535 = vsyncadd [#allocation21], %s534
          %s537 = sshll.u32 [#allocation20], 4
          %s538 = int_to_ptr.vmem [resolvable:$true] %s537
          %540 = dma.hbm_to_vmem [thread:$0]  %s11, 16, %s538, [#allocation21]
        $region52: #{two_stream_block_pallas.7} parent=11 // pred_fallthru
          _
        // Predicated region
        $region53: #{two_stream_block_pallas.7} parent=11 // pred_check
          %p541 = pneg %p321
        $region54: #{two_stream_block_pallas.7} parent=11 // pred_check_branch
          %543 = sbr.rel (%p541) target = $region56
        $region55: #{two_stream_block_pallas.7} parent=11 // pred_region
          %s545 = ssub.s32 512, 512
          %546 = vsyncadd [#allocation21], %s545
          %s547 = sshll.u32 [#allocation22], 4
          %s548 = int_to_ptr.vmem [resolvable:$true] %s547
          %553 = dma.hbm_to_vmem [thread:$0]  %s12, 512, %s548, [#allocation21], 128, 128, 8
        $region56: #{two_stream_block_pallas.7} parent=11 // pred_fallthru
          _
        // Predicated region
        $region57: #{two_stream_block_pallas.7} parent=11 // pred_check
          %p554 = pneg %p342
        $region58: #{two_stream_block_pallas.7} parent=11 // pred_check_branch
          %556 = sbr.rel (%p554) target = $region60
        $region59: #{two_stream_block_pallas.7} parent=11 // pred_region
          %s558 = ssub.s32 16, 16
          %559 = vsyncadd [#allocation24], %s558
          %s561 = sshll.u32 [#allocation23], 4
          %s562 = int_to_ptr.vmem [resolvable:$true] %s561
          %564 = dma.hbm_to_vmem [thread:$0]  %s13, 16, %s562, [#allocation24]
        $region60: #{two_stream_block_pallas.7} parent=11 // pred_fallthru
          _
        // Predicated region
        $region61: #{two_stream_block_pallas.7} parent=11 // pred_check
          %p565 = pneg %p363
        $region62: #{two_stream_block_pallas.7} parent=11 // pred_check_branch
          %567 = sbr.rel (%p565) target = $region64
        $region63: #{two_stream_block_pallas.7} parent=11 // pred_region
          %s569 = ssub.s32 2048, 2048
          %570 = vsyncadd [#allocation24], %s569
          %s571 = sshll.u32 [#allocation25], 4
          %s572 = int_to_ptr.vmem [resolvable:$true] %s571
          %577 = dma.hbm_to_vmem [thread:$0]  %s14, 2048, %s572, [#allocation24], 128, 128, 8
        $region64: #{two_stream_block_pallas.7} parent=11 // pred_fallthru
          _
        // Predicated region
        $region65: #{two_stream_block_pallas.7} parent=11 // pred_check
          %p578 = pneg %p384
        $region66: #{two_stream_block_pallas.7} parent=11 // pred_check_branch
          %580 = sbr.rel (%p578) target = $region68
        $region67: #{two_stream_block_pallas.7} parent=11 // pred_region
          %s582 = ssub.s32 16, 16
          %583 = vsyncadd [#allocation27], %s582
          %s585 = sshll.u32 [#allocation26], 4
          %s586 = int_to_ptr.vmem [resolvable:$true] %s585
          %588 = dma.hbm_to_vmem [thread:$0]  %s15, 16, %s586, [#allocation27]
        $region68: #{two_stream_block_pallas.7} parent=11 // pred_fallthru
          _
      $region12: #{two_stream_block_pallas.7} parent=5 // pred_fallthru
        _
      %p589 = scmp.lt.s32.totalorder %s38, 2
      // Predicated region
      $region69: #{two_stream_block_pallas.7} parent=5 // pred_check
        %p590 = pneg %p589
      $region70: #{two_stream_block_pallas.7} parent=5 // pred_check_branch
        %592 = sbr.rel (%p590) target = $region72
      $region71: #{two_stream_block_pallas.7} parent=5 // pred_region
        // Predicated region
        $region73: #{two_stream_block_pallas.7} parent=71 // pred_check
          %p593 = pneg %p58
        $region74: #{two_stream_block_pallas.7} parent=71 // pred_check_branch
          %595 = sbr.rel (%p593) target = $region76
        $region75: #{two_stream_block_pallas.7} parent=71 // pred_region
          %s596 = sand.u32 %s48, 1
          %s597 = scalar_lea.sflag [#allocation3], %s596
          %s598 = sand.u32 %s48, 1
          %s599 = smul.addr %s598, 32
          %s600 = scalar_lea.vmem [#allocation2], %s599
          %s602 = ssub.s32 512, 512
          %603 = vsyncadd %s597, %s602
          %s604 = smul.addr %s38, 4
          %s605 = smul.addr %s604, 128
          %s606 = scalar_lea.hbm %s0, %s605
          %s607 = sshll.u32 %s600, 4
          %s608 = int_to_ptr.vmem [resolvable:$true] %s607
          %613 = dma.hbm_to_vmem [thread:$0]  %s606, 512, %s608, %s597, 128, 128, 8
        $region76: #{two_stream_block_pallas.7} parent=71 // pred_fallthru
          _
        // Predicated region
        $region77: #{two_stream_block_pallas.7} parent=71 // pred_check
          %p614 = pneg %p84
        $region78: #{two_stream_block_pallas.7} parent=71 // pred_check_branch
          %616 = sbr.rel (%p614) target = $region80
        $region79: #{two_stream_block_pallas.7} parent=71 // pred_region
          %s617 = sand.u32 %s38, 1
          %s618 = scalar_lea.sflag [#allocation6], %s617
          %s619 = sand.u32 %s74, 1
          %s620 = smul.addr %s619, 16
          %s621 = scalar_lea.vmem [#allocation5], %s620
          %s623 = ssub.s32 256, 256
          %624 = vsyncadd %s618, %s623
          %s625 = smul.addr %s38, 2
          %s626 = smul.addr %s625, 128
          %s627 = scalar_lea.hbm %s1, %s626
          %s628 = sshll.u32 %s621, 4
          %s629 = int_to_ptr.vmem [resolvable:$true] %s628
          %634 = dma.hbm_to_vmem [thread:$0]  %s627, 256, %s629, %s618, 128, 128, 8
        $region80: #{two_stream_block_pallas.7} parent=71 // pred_fallthru
          _
      $region72: #{two_stream_block_pallas.7} parent=5 // pred_fallthru
        _
      %p635 = scmp.le.s32.totalorder 1, %s38
      %p636 = scmp.lt.s32.totalorder %s38, 3
      %p637 = pnand %p635, %p636
      %p638 = pneg %p637
      // Predicated region
      $region81: #{two_stream_block_pallas.7} parent=5 // pred_check
        _
      $region82: #{two_stream_block_pallas.7} parent=5 // pred_check_branch
        %640 = sbr.rel (%p637) target = $region84
      $region83: #{two_stream_block_pallas.7} parent=5 // pred_region
        %s641 = ssub.s32 %s38, 1
        %s642 = sand.u32 %s51, 1
        %s643 = scalar_lea.sflag [#allocation3], %s642
        %s644 = sand.u32 %s51, 1
        %s645 = smul.addr %s644, 32
        %s646 = scalar_lea.vmem [#allocation2], %s645
        // Predicated region
        $region85: #{two_stream_block_pallas.7} parent=83 // pred_check
          %p647 = pneg %p64
        $region86: #{two_stream_block_pallas.7} parent=83 // pred_check_branch
          %649 = sbr.rel (%p647) target = $region88
        $region87: #{two_stream_block_pallas.7} parent=83 // pred_region
          %650 = dma.done %s643, 512
        $region88: #{two_stream_block_pallas.7} parent=83 // pred_fallthru
          _
        %s651 = sand.u32 %s43, 1
        %s652 = scalar_lea.sflag [#allocation6], %s651
        %s653 = sand.u32 %s77, 1
        %s654 = smul.addr %s653, 16
        %s655 = scalar_lea.vmem [#allocation5], %s654
        // Predicated region
        $region89: #{two_stream_block_pallas.7} parent=83 // pred_check
          %p656 = pneg %p90
        $region90: #{two_stream_block_pallas.7} parent=83 // pred_check_branch
          %658 = sbr.rel (%p656) target = $region92
        $region91: #{two_stream_block_pallas.7} parent=83 // pred_region
          %659 = dma.done %s652, 256
        $region92: #{two_stream_block_pallas.7} parent=83 // pred_fallthru
          _
        // Predicated region
        $region93: #{two_stream_block_pallas.7} parent=83 // pred_check
          %p660 = pneg %p111
        $region94: #{two_stream_block_pallas.7} parent=83 // pred_check_branch
          %662 = sbr.rel (%p660) target = $region96
        $region95: #{two_stream_block_pallas.7} parent=83 // pred_region
          %663 = dma.done [#allocation6], 16
        $region96: #{two_stream_block_pallas.7} parent=83 // pred_fallthru
          _
        // Predicated region
        $region97: #{two_stream_block_pallas.7} parent=83 // pred_check
          %p664 = pneg %p132
        $region98: #{two_stream_block_pallas.7} parent=83 // pred_check_branch
          %666 = sbr.rel (%p664) target = $region100
        $region99: #{two_stream_block_pallas.7} parent=83 // pred_region
          %667 = dma.done [#allocation9], 16
        $region100: #{two_stream_block_pallas.7} parent=83 // pred_fallthru
          _
        // Predicated region
        $region101: #{two_stream_block_pallas.7} parent=83 // pred_check
          %p668 = pneg %p153
        $region102: #{two_stream_block_pallas.7} parent=83 // pred_check_branch
          %670 = sbr.rel (%p668) target = $region104
        $region103: #{two_stream_block_pallas.7} parent=83 // pred_region
          %671 = dma.done [#allocation9], 16
        $region104: #{two_stream_block_pallas.7} parent=83 // pred_fallthru
          _
        // Predicated region
        $region105: #{two_stream_block_pallas.7} parent=83 // pred_check
          %p672 = pneg %p174
        $region106: #{two_stream_block_pallas.7} parent=83 // pred_check_branch
          %674 = sbr.rel (%p672) target = $region108
        $region107: #{two_stream_block_pallas.7} parent=83 // pred_region
          %675 = dma.done [#allocation12], 16
        $region108: #{two_stream_block_pallas.7} parent=83 // pred_fallthru
          _
        // Predicated region
        $region109: #{two_stream_block_pallas.7} parent=83 // pred_check
          %p676 = pneg %p195
        $region110: #{two_stream_block_pallas.7} parent=83 // pred_check_branch
          %678 = sbr.rel (%p676) target = $region112
        $region111: #{two_stream_block_pallas.7} parent=83 // pred_region
          %679 = dma.done [#allocation12], 512
        $region112: #{two_stream_block_pallas.7} parent=83 // pred_fallthru
          _
        // Predicated region
        $region113: #{two_stream_block_pallas.7} parent=83 // pred_check
          %p680 = pneg %p216
        $region114: #{two_stream_block_pallas.7} parent=83 // pred_check_branch
          %682 = sbr.rel (%p680) target = $region116
        $region115: #{two_stream_block_pallas.7} parent=83 // pred_region
          %683 = dma.done [#allocation15], 1024
        $region116: #{two_stream_block_pallas.7} parent=83 // pred_fallthru
          _
        // Predicated region
        $region117: #{two_stream_block_pallas.7} parent=83 // pred_check
          %p684 = pneg %p237
        $region118: #{two_stream_block_pallas.7} parent=83 // pred_check_branch
          %686 = sbr.rel (%p684) target = $region120
        $region119: #{two_stream_block_pallas.7} parent=83 // pred_region
          %687 = dma.done [#allocation15], 512
        $region120: #{two_stream_block_pallas.7} parent=83 // pred_fallthru
          _
        // Predicated region
        $region121: #{two_stream_block_pallas.7} parent=83 // pred_check
          %p688 = pneg %p258
        $region122: #{two_stream_block_pallas.7} parent=83 // pred_check_branch
          %690 = sbr.rel (%p688) target = $region124
        $region123: #{two_stream_block_pallas.7} parent=83 // pred_region
          %691 = dma.done [#allocation18], 16
        $region124: #{two_stream_block_pallas.7} parent=83 // pred_fallthru
          _
        // Predicated region
        $region125: #{two_stream_block_pallas.7} parent=83 // pred_check
          %p692 = pneg %p279
        $region126: #{two_stream_block_pallas.7} parent=83 // pred_check_branch
          %694 = sbr.rel (%p692) target = $region128
        $region127: #{two_stream_block_pallas.7} parent=83 // pred_region
          %695 = dma.done [#allocation18], 16
        $region128: #{two_stream_block_pallas.7} parent=83 // pred_fallthru
          _
        // Predicated region
        $region129: #{two_stream_block_pallas.7} parent=83 // pred_check
          %p696 = pneg %p300
        $region130: #{two_stream_block_pallas.7} parent=83 // pred_check_branch
          %698 = sbr.rel (%p696) target = $region132
        $region131: #{two_stream_block_pallas.7} parent=83 // pred_region
          %699 = dma.done [#allocation21], 16
        $region132: #{two_stream_block_pallas.7} parent=83 // pred_fallthru
          _
        // Predicated region
        $region133: #{two_stream_block_pallas.7} parent=83 // pred_check
          %p700 = pneg %p321
        $region134: #{two_stream_block_pallas.7} parent=83 // pred_check_branch
          %702 = sbr.rel (%p700) target = $region136
        $region135: #{two_stream_block_pallas.7} parent=83 // pred_region
          %703 = dma.done [#allocation21], 512
        $region136: #{two_stream_block_pallas.7} parent=83 // pred_fallthru
          _
        // Predicated region
        $region137: #{two_stream_block_pallas.7} parent=83 // pred_check
          %p704 = pneg %p342
        $region138: #{two_stream_block_pallas.7} parent=83 // pred_check_branch
          %706 = sbr.rel (%p704) target = $region140
        $region139: #{two_stream_block_pallas.7} parent=83 // pred_region
          %707 = dma.done [#allocation24], 16
        $region140: #{two_stream_block_pallas.7} parent=83 // pred_fallthru
          _
        // Predicated region
        $region141: #{two_stream_block_pallas.7} parent=83 // pred_check
          %p708 = pneg %p363
        $region142: #{two_stream_block_pallas.7} parent=83 // pred_check_branch
          %710 = sbr.rel (%p708) target = $region144
        $region143: #{two_stream_block_pallas.7} parent=83 // pred_region
          %711 = dma.done [#allocation24], 2048
        $region144: #{two_stream_block_pallas.7} parent=83 // pred_fallthru
          _
        // Predicated region
        $region145: #{two_stream_block_pallas.7} parent=83 // pred_check
          %p712 = pneg %p384
        $region146: #{two_stream_block_pallas.7} parent=83 // pred_check_branch
          %714 = sbr.rel (%p712) target = $region148
        $region147: #{two_stream_block_pallas.7} parent=83 // pred_region
          %715 = dma.done [#allocation27], 16
        $region148: #{two_stream_block_pallas.7} parent=83 // pred_fallthru
          _
        %s716 = sand.u32 %s51, 1
        %s717 = scalar_lea.sflag [#allocation3], %s716
        %s718 = sand.u32 %s51, 1
        %s719 = smul.addr %s718, 32
        %s720 = scalar_lea.vmem [#allocation2], %s719
        %p721 = pneg %p64
        %p722 = pneg %p61
        %s723 = sand.u32 %s43, 1
        %s724 = scalar_lea.sflag [#allocation6], %s723
        %s725 = sand.u32 %s77, 1
        %s726 = smul.addr %s725, 16
        %s727 = scalar_lea.vmem [#allocation5], %s726
        %p728 = pneg %p90
        %p729 = pneg %p87
        %p730 = pneg %p111
        %p731 = pneg %p108
        %p732 = pneg %p132
        %p733 = pneg %p129
        %p734 = pneg %p153
        %p735 = pneg %p150
        %p736 = pneg %p174
        %p737 = pneg %p171
        %p738 = pneg %p195
        %p739 = pneg %p192
        %p740 = pneg %p216
        %p741 = pneg %p213
        %p742 = pneg %p237
        %p743 = pneg %p234
        %p744 = pneg %p258
        %p745 = pneg %p255
        %p746 = pneg %p279
        %p747 = pneg %p276
        %p748 = pneg %p300
        %p749 = pneg %p297
        %p750 = pneg %p321
        %p751 = pneg %p318
        %p752 = pneg %p342
        %p753 = pneg %p339
        %p754 = pneg %p363
        %p755 = pneg %p360
        %p756 = pneg %p384
        %p757 = pneg %p381
        %p758 = pneg %p410
        %p759 = pneg %p407
        %s760 = sand.u32 %s397, 1
        %s761 = scalar_lea.sflag [#allocation4], %s760
        %s762 = sand.u32 %s397, 1
        %s763 = smul.addr %s762, 32
        %s764 = scalar_lea.vmem [#allocation28], %s763
        %v765 = vld [vmem:[%s646] sm:$0xff]
        %v766 = vld [vmem:[%s646 + $0x8] sm:$0xff]
        %v767 = vld [vmem:[%s646 + $0x10] sm:$0xff]
        %v768 = vld [vmem:[%s646 + $0x18] sm:$0xff]
        %v769 = vld [vmem:[%s655] sm:$0xff]
        %v770 = vld [vmem:[%s655 + $0x8] sm:$0xff]
        %v771 = vld [vmem:[#allocation10] sm:$0x1]
        %v772 = vld [vmem:[#allocation11] sm:$0x1]
        %vm773 = vcmask 261120
        %v774 = vsel %vm773, %v765, 0.0
        %775 = vadd.xlane.f32.xlu0 %v774
        %v776 = vpop.xlane.xlu0 %775
        %v777 = vsel %vm773, %v766, 0.0
        %778 = vadd.xlane.f32.xlu0 %v777
        %v779 = vpop.xlane.xlu0 %778
        %v780 = vsel %vm773, %v767, 0.0
        %781 = vadd.xlane.f32.xlu0 %v780
        %v782 = vpop.xlane.xlu0 %781
        %v783 = vsel %vm773, %v768, 0.0
        %784 = vadd.xlane.f32.xlu0 %v783
        %v785 = vpop.xlane.xlu0 %784
        %v786 = vrcp.pop 32.0
        %v787 = vmul.f32 %v776, %v786
        %v788 = vmul.f32 %v779, %v786
        %v789 = vmul.f32 %v782, %v786
        %v790 = vmul.f32 %v785, %v786
        %v791 = vsub.f32 %v765, %v787
        %v792 = vsub.f32 %v766, %v788
        %v793 = vsub.f32 %v767, %v789
        %v794 = vsub.f32 %v768, %v790
        %v795 = vmul.f32 %v791, %v791
        %v796 = vmul.f32 %v792, %v792
        %v797 = vmul.f32 %v793, %v793
        %v798 = vmul.f32 %v794, %v794
        %v799 = vsel %vm773, %v795, 0.0
        %800 = vadd.xlane.f32.xlu0 %v799
        %v801 = vpop.xlane.xlu0 %800
        %v802 = vsel %vm773, %v796, 0.0
        %803 = vadd.xlane.f32.xlu0 %v802
        %v804 = vpop.xlane.xlu0 %803
        %v805 = vsel %vm773, %v797, 0.0
        %806 = vadd.xlane.f32.xlu0 %v805
        %v807 = vpop.xlane.xlu0 %806
        %v808 = vsel %vm773, %v798, 0.0
        %809 = vadd.xlane.f32.xlu0 %v808
        %v810 = vpop.xlane.xlu0 %809
        %v811 = vmul.f32 %v801, %v786
        %v812 = vmul.f32 %v804, %v786
        %v813 = vmul.f32 %v807, %v786
        %v814 = vmul.f32 %v810, %v786
        %v815 = vadd.f32 %v811, 1e-05
        %v816 = vadd.f32 %v812, 1e-05
        %v817 = vadd.f32 %v813, 1e-05
        %v818 = vadd.f32 %v814, 1e-05
        %v819 = vrsqrt.pop %v815
        %v820 = vrsqrt.pop %v816
        %v821 = vrsqrt.pop %v817
        %v822 = vrsqrt.pop %v818
        %v823 = vmul.f32 %v791, %v819
        %v824 = vmul.f32 %v792, %v820
        %v825 = vmul.f32 %v793, %v821
        %v826 = vmul.f32 %v794, %v822
        %v828 = vlaneseq
        %v829 = vshrl.u32 %v828, 7
        %v830 = vsub.s32 0, %v829
        %v831 = vrot.slane %v771, %v830
        %v833 = vmul.f32 %v823, %v831
        %v834 = vmul.f32 %v824, %v831
        %v835 = vmul.f32 %v825, %v831
        %v836 = vmul.f32 %v826, %v831
        %v838 = vlaneseq
        %v839 = vshrl.u32 %v838, 7
        %v840 = vsub.s32 0, %v839
        %v841 = vrot.slane %v772, %v840
        %v843 = vadd.f32 %v833, %v841
        %v844 = vadd.f32 %v834, %v841
        %v845 = vadd.f32 %v835, %v841
        %v846 = vadd.f32 %v836, %v841
        %v847 = vld [vmem:[#allocation7] sm:$0x1]
        %v848 = vld [vmem:[#allocation8] sm:$0x1]
        %vm849 = vcmask 523264
        %v850 = vsel %vm849, %v769, 0.0
        %851 = vadd.xlane.f32.xlu0 %v850
        %v852 = vpop.xlane.xlu0 %851
        %v853 = vsel %vm849, %v770, 0.0
        %854 = vadd.xlane.f32.xlu0 %v853
        %v855 = vpop.xlane.xlu0 %854
        %v856 = vrcp.pop 64.0
        %v857 = vmul.f32 %v852, %v856
        %v858 = vmul.f32 %v855, %v856
        %v859 = vsub.f32 %v769, %v857
        %v860 = vsub.f32 %v770, %v858
        %v861 = vmul.f32 %v859, %v859
        %v862 = vmul.f32 %v860, %v860
        %v863 = vsel %vm849, %v861, 0.0
        %864 = vadd.xlane.f32.xlu0 %v863
        %v865 = vpop.xlane.xlu0 %864
        %v866 = vsel %vm849, %v862, 0.0
        %867 = vadd.xlane.f32.xlu0 %v866
        %v868 = vpop.xlane.xlu0 %867
        %v869 = vmul.f32 %v865, %v856
        %v870 = vmul.f32 %v868, %v856
        %v871 = vadd.f32 %v869, 1e-05
        %v872 = vadd.f32 %v870, 1e-05
        %v873 = vrsqrt.pop %v871
        %v874 = vrsqrt.pop %v872
        %v875 = vmul.f32 %v859, %v873
        %v876 = vmul.f32 %v860, %v874
        %v878 = vlaneseq
        %v879 = vshrl.u32 %v878, 7
        %v880 = vsub.s32 0, %v879
        %v881 = vrot.slane %v847, %v880
        %v883 = vmul.f32 %v875, %v881
        %v884 = vmul.f32 %v876, %v881
        %v886 = vlaneseq
        %v887 = vshrl.u32 %v886, 7
        %v888 = vsub.s32 0, %v887
        %v889 = vrot.slane %v848, %v888
        %v891 = vadd.f32 %v883, %v889
        %v892 = vadd.f32 %v884, %v889
        %v893 = vld [vmem:[#allocation13] sm:$0xff]
        %v894 = vld [vmem:[#allocation13 + $0x8] sm:$0xff]
        %v895 = vld [vmem:[#allocation13 + $0x10] sm:$0xff]
        %v896 = vld [vmem:[#allocation13 + $0x18] sm:$0xff]
        %v898 = vsel %vm773, %v843, 0
        %v901 = vsel %vm773, %v844, 0
        %v904 = vsel %vm773, %v845, 0
        %v907 = vsel %vm773, %v846, 0
        %909 = vmatprep.subr.mxu0 0.0
        %910 = vmatpush1.msra.mxu0 %v893
        %911 = vmatprep.subr.mxu0 0.0
        %912 = vmatpush1.msra.mxu0 %v894
        %913 = vmatprep.subr.mxu0 0.0
        %914 = vmatpush1.msra.mxu0 %v895
        %915 = vmatprep.subr.mxu0 0.0
        %916 = vmatpush1.msra.mxu0 %v896
        %917 = vmatprep.subr.mxu0 0.0
        %918 = vmatpush1.msra.mxu0 0.0
        %919 = vmatprep.subr.mxu0 0.0
        %920 = vmatpush1.msra.mxu0 0.0
        %921 = vmatprep.subr.mxu0 0.0
        %922 = vmatpush1.msra.mxu0 0.0
        %923 = vmatprep.subr.mxu0 0.0
        %924 = vmatpush1.msra.mxu0 0.0
        %925 = vmatprep.subr.mxu0 0.0
        %926 = vmatpush1.msra.mxu0 0.0
        %927 = vmatprep.subr.mxu0 0.0
        %928 = vmatpush1.msra.mxu0 0.0
        %929 = vmatprep.subr.mxu0 0.0
        %930 = vmatpush1.msra.mxu0 0.0
        %931 = vmatprep.subr.mxu0 0.0
        %932 = vmatpush1.msra.mxu0 0.0
        %933 = vmatprep.subr.mxu0 0.0
        %934 = vmatpush1.msra.mxu0 0.0
        %935 = vmatprep.subr.mxu0 0.0
        %936 = vmatpush1.msra.mxu0 0.0
        %937 = vmatprep.subr.mxu0 0.0
        %938 = vmatpush1.msra.mxu0 0.0
        %939 = vmatprep.subr.mxu0 0.0
        %940 = vmatpush1.msra.mxu0 0.0
        %941 = vmatprep.subr.mxu0 0.0
        %942 = vmatpush1.msra.mxu0 0.0
        %943 = vmatprep.subr.mxu0 0.0
        %944 = vmatpush1.msra.mxu0 0.0
        %945 = vmatprep.subr.mxu0 0.0
        %946 = vmatpush1.msra.mxu0 0.0
        %947 = vmatprep.subr.mxu0 0.0
        %948 = vmatpush1.msra.mxu0 0.0
        %949 = vmatprep.subr.mxu0 0.0
        %950 = vmatpush1.msra.mxu0 0.0
        %951 = vmatprep.subr.mxu0 0.0
        %952 = vmatpush1.msra.mxu0 0.0
        %953 = vmatprep.subr.mxu0 0.0
        %954 = vmatpush1.msra.mxu0 0.0
        %955 = vmatprep.subr.mxu0 0.0
        %956 = vmatpush1.msra.mxu0 0.0
        %957 = vmatprep.subr.mxu0 0.0
        %958 = vmatpush1.msra.mxu0 0.0
        %959 = vmatprep.subr.mxu0 0.0
        %960 = vmatpush1.msra.mxu0 0.0
        %961 = vmatprep.subr.mxu0 0.0
        %962 = vmatpush1.msra.mxu0 0.0
        %963 = vmatprep.subr.mxu0 0.0
        %964 = vmatpush1.msra.mxu0 0.0
        %965 = vmatprep.subr.mxu0 0.0
        %966 = vmatpush1.msra.mxu0 0.0
        %967 = vmatprep.subr.mxu0 0.0
        %968 = vmatpush1.msra.mxu0 0.0
        %969 = vmatprep.subr.mxu0 0.0
        %970 = vmatpush1.msra.mxu0 0.0
        %971 = vmatprep.subr.mxu0 0.0
        %972 = vmatpush1.msra.mxu0 0.0
        %973 = vmatprep.mubr.f32.mxu0 0.0
        %974 = vmatmul.mubr.f32.gmra.mrb[0].mxu0 %v898
        %v975 = vpop.f32.mrb[0].mxu0
        %v976 = vadd.f32 0.0, %v975
        %v977 = vpop.f32.mrb[0].mxu0
        %978 = vmatprep.mubr.f32.mxu0 0.0
        %979 = vmatmul.mubr.f32.gmra.mrb[0].mxu0 %v901
        %v980 = vpop.f32.mrb[0].mxu0
        %v981 = vadd.f32 0.0, %v980
        %v982 = vpop.f32.mrb[0].mxu0
        %983 = vmatprep.mubr.f32.mxu0 0.0
        %984 = vmatmul.mubr.f32.gmra.mrb[0].mxu0 %v904
        %v985 = vpop.f32.mrb[0].mxu0
        %v986 = vadd.f32 0.0, %v985
        %v987 = vpop.f32.mrb[0].mxu0
        %988 = vmatprep.mubr.f32.mxu0 0.0
        %989 = vmatmul.mubr.f32.gmra.mrb[0].mxu0 %v907
        %v990 = vpop.f32.mrb[0].mxu0
        %v991 = vadd.f32 0.0, %v990
        %v992 = vpop.f32.mrb[0].mxu0
        %993 = vdwg.mxu0
        %v994 = vld [vmem:[#allocation14] sm:$0xff]
        %v995 = vld [vmem:[#allocation14 + $0x8] sm:$0xff]
        %v996 = vld [vmem:[#allocation14 + $0x10] sm:$0xff]
        %v997 = vld [vmem:[#allocation14 + $0x18] sm:$0xff]
        %v998 = vld [vmem:[#allocation14 + $0x20] sm:$0xff]
        %v999 = vld [vmem:[#allocation14 + $0x28] sm:$0xff]
        %v1000 = vld [vmem:[#allocation14 + $0x30] sm:$0xff]
        %v1001 = vld [vmem:[#allocation14 + $0x38] sm:$0xff]
        %v1003 = vsel %vm849, %v891, 0
        %v1006 = vsel %vm849, %v892, 0
        %1008 = vmatprep.subr.mxu0 0.0
        %1009 = vmatpush1.msra.mxu0 %v994
        %1010 = vmatprep.subr.mxu0 0.0
        %1011 = vmatpush1.msra.mxu0 %v995
        %1012 = vmatprep.subr.mxu0 0.0
        %1013 = vmatpush1.msra.mxu0 %v996
        %1014 = vmatprep.subr.mxu0 0.0
        %1015 = vmatpush1.msra.mxu0 %v997
        %1016 = vmatprep.subr.mxu0 0.0
        %1017 = vmatpush1.msra.mxu0 %v998
        %1018 = vmatprep.subr.mxu0 0.0
        %1019 = vmatpush1.msra.mxu0 %v999
        %1020 = vmatprep.subr.mxu0 0.0
        %1021 = vmatpush1.msra.mxu0 %v1000
        %1022 = vmatprep.subr.mxu0 0.0
        %1023 = vmatpush1.msra.mxu0 %v1001
        %1024 = vmatprep.subr.mxu0 0.0
        %1025 = vmatpush1.msra.mxu0 0.0
        %1026 = vmatprep.subr.mxu0 0.0
        %1027 = vmatpush1.msra.mxu0 0.0
        %1028 = vmatprep.subr.mxu0 0.0
        %1029 = vmatpush1.msra.mxu0 0.0
        %1030 = vmatprep.subr.mxu0 0.0
        %1031 = vmatpush1.msra.mxu0 0.0
        %1032 = vmatprep.subr.mxu0 0.0
        %1033 = vmatpush1.msra.mxu0 0.0
        %1034 = vmatprep.subr.mxu0 0.0
        %1035 = vmatpush1.msra.mxu0 0.0
        %1036 = vmatprep.subr.mxu0 0.0
        %1037 = vmatpush1.msra.mxu0 0.0
        %1038 = vmatprep.subr.mxu0 0.0
        %1039 = vmatpush1.msra.mxu0 0.0
        %1040 = vmatprep.subr.mxu0 0.0
        %1041 = vmatpush1.msra.mxu0 0.0
        %1042 = vmatprep.subr.mxu0 0.0
        %1043 = vmatpush1.msra.mxu0 0.0
        %1044 = vmatprep.subr.mxu0 0.0
        %1045 = vmatpush1.msra.mxu0 0.0
        %1046 = vmatprep.subr.mxu0 0.0
        %1047 = vmatpush1.msra.mxu0 0.0
        %1048 = vmatprep.subr.mxu0 0.0
        %1049 = vmatpush1.msra.mxu0 0.0
        %1050 = vmatprep.subr.mxu0 0.0
        %1051 = vmatpush1.msra.mxu0 0.0
        %1052 = vmatprep.subr.mxu0 0.0
        %1053 = vmatpush1.msra.mxu0 0.0
        %1054 = vmatprep.subr.mxu0 0.0
        %1055 = vmatpush1.msra.mxu0 0.0
        %1056 = vmatprep.subr.mxu0 0.0
        %1057 = vmatpush1.msra.mxu0 0.0
        %1058 = vmatprep.subr.mxu0 0.0
        %1059 = vmatpush1.msra.mxu0 0.0
        %1060 = vmatprep.subr.mxu0 0.0
        %1061 = vmatpush1.msra.mxu0 0.0
        %1062 = vmatprep.subr.mxu0 0.0
        %1063 = vmatpush1.msra.mxu0 0.0
        %1064 = vmatprep.subr.mxu0 0.0
        %1065 = vmatpush1.msra.mxu0 0.0
        %1066 = vmatprep.subr.mxu0 0.0
        %1067 = vmatpush1.msra.mxu0 0.0
        %1068 = vmatprep.subr.mxu0 0.0
        %1069 = vmatpush1.msra.mxu0 0.0
        %1070 = vmatprep.subr.mxu0 0.0
        %1071 = vmatpush1.msra.mxu0 0.0
        %1072 = vmatprep.mubr.f32.mxu0 0.0
        %1073 = vmatmul.mubr.f32.gmra.mrb[0].mxu0 %v1003
        %v1074 = vpop.f32.mrb[0].mxu0
        %v1075 = vadd.f32 0.0, %v1074
        %v1076 = vpop.f32.mrb[0].mxu0
        %1077 = vmatprep.mubr.f32.mxu0 0.0
        %1078 = vmatmul.mubr.f32.gmra.mrb[0].mxu0 %v1006
        %v1079 = vpop.f32.mrb[0].mxu0
        %v1080 = vadd.f32 0.0, %v1079
        %v1081 = vpop.f32.mrb[0].mxu0
        %1082 = vdwg.mxu0
        %vm1083 = vcmask 64512
        %v1085 = vsel %vm1083, %v976, 0
        %v1088 = vsel %vm1083, %v981, 0
        %v1091 = vsel %vm1083, %v986, 0
        %v1094 = vsel %vm1083, %v991, 0
        %v1097 = vsel %vm1083, %v1075, 0
        %v1100 = vsel %vm1083, %v1080, 0
        %1102 = vmatprep.subr.mxu0 0.0
        %1103 = vmatpush1.xpose.msra.mxu0 %v1097
        %1104 = vmatprep.subr.mxu0 0.0
        %1105 = vmatpush1.xpose.msra.mxu0 %v1100
        %1106 = vmatprep.subr.mxu0 0.0
        %1107 = vmatpush1.xpose.msra.mxu0 0.0
        %1108 = vmatprep.subr.mxu0 0.0
        %1109 = vmatpush1.xpose.msra.mxu0 0.0
        %1110 = vmatprep.subr.mxu0 0.0
        %1111 = vmatpush1.xpose.msra.mxu0 0.0
        %1112 = vmatprep.subr.mxu0 0.0
        %1113 = vmatpush1.xpose.msra.mxu0 0.0
        %1114 = vmatprep.subr.mxu0 0.0
        %1115 = vmatpush1.xpose.msra.mxu0 0.0
        %1116 = vmatprep.subr.mxu0 0.0
        %1117 = vmatpush1.xpose.msra.mxu0 0.0
        %1118 = vmatprep.subr.mxu0 0.0
        %1119 = vmatpush1.xpose.msra.mxu0 0.0
        %1120 = vmatprep.subr.mxu0 0.0
        %1121 = vmatpush1.xpose.msra.mxu0 0.0
        %1122 = vmatprep.subr.mxu0 0.0
        %1123 = vmatpush1.xpose.msra.mxu0 0.0
        %1124 = vmatprep.subr.mxu0 0.0
        %1125 = vmatpush1.xpose.msra.mxu0 0.0
        %1126 = vmatprep.subr.mxu0 0.0
        %1127 = vmatpush1.xpose.msra.mxu0 0.0
        %1128 = vmatprep.subr.mxu0 0.0
        %1129 = vmatpush1.xpose.msra.mxu0 0.0
        %1130 = vmatprep.subr.mxu0 0.0
        %1131 = vmatpush1.xpose.msra.mxu0 0.0
        %1132 = vmatprep.subr.mxu0 0.0
        %1133 = vmatpush1.xpose.msra.mxu0 0.0
        %1134 = vmatprep.subr.mxu0 0.0
        %1135 = vmatpush1.xpose.msra.mxu0 0.0
        %1136 = vmatprep.subr.mxu0 0.0
        %1137 = vmatpush1.xpose.msra.mxu0 0.0
        %1138 = vmatprep.subr.mxu0 0.0
        %1139 = vmatpush1.xpose.msra.mxu0 0.0
        %1140 = vmatprep.subr.mxu0 0.0
        %1141 = vmatpush1.xpose.msra.mxu0 0.0
        %1142 = vmatprep.subr.mxu0 0.0
        %1143 = vmatpush1.xpose.msra.mxu0 0.0
        %1144 = vmatprep.subr.mxu0 0.0
        %1145 = vmatpush1.xpose.msra.mxu0 0.0
        %1146 = vmatprep.subr.mxu0 0.0
        %1147 = vmatpush1.xpose.msra.mxu0 0.0
        %1148 = vmatprep.subr.mxu0 0.0
        %1149 = vmatpush1.xpose.msra.mxu0 0.0
        %1150 = vmatprep.subr.mxu0 0.0
        %1151 = vmatpush1.xpose.msra.mxu0 0.0
        %1152 = vmatprep.subr.mxu0 0.0
        %1153 = vmatpush1.xpose.msra.mxu0 0.0
        %1154 = vmatprep.subr.mxu0 0.0
        %1155 = vmatpush1.xpose.msra.mxu0 0.0
        %1156 = vmatprep.subr.mxu0 0.0
        %1157 = vmatpush1.xpose.msra.mxu0 0.0
        %1158 = vmatprep.subr.mxu0 0.0
        %1159 = vmatpush1.xpose.msra.mxu0 0.0
        %1160 = vmatprep.subr.mxu0 0.0
        %1161 = vmatpush1.xpose.msra.mxu0 0.0
        %1162 = vmatprep.subr.mxu0 0.0
        %1163 = vmatpush1.xpose.msra.mxu0 0.0
        %1164 = vmatprep.subr.mxu0 0.0
        %1165 = vmatpush1.xpose.msra.mxu0 0.0
        %1166 = vmatprep.mubr.f32.mxu0 0.0
        %1167 = vmatmul.mubr.f32.gmra.mrb[0].mxu0 %v1085
        %v1168 = vpop.f32.mrb[0].mxu0
        %v1169 = vadd.f32 0.0, %v1168
        %v1170 = vpop.f32.mrb[0].mxu0
        %1171 = vmatprep.mubr.f32.mxu0 0.0
        %1172 = vmatmul.mubr.f32.gmra.mrb[0].mxu0 %v1088
        %v1173 = vpop.f32.mrb[0].mxu0
        %v1174 = vadd.f32 0.0, %v1173
        %v1175 = vpop.f32.mrb[0].mxu0
        %1176 = vmatprep.mubr.f32.mxu0 0.0
        %1177 = vmatmul.mubr.f32.gmra.mrb[0].mxu0 %v1091
        %v1178 = vpop.f32.mrb[0].mxu0
        %v1179 = vadd.f32 0.0, %v1178
        %v1180 = vpop.f32.mrb[0].mxu0
        %1181 = vmatprep.mubr.f32.mxu0 0.0
        %1182 = vmatmul.mubr.f32.gmra.mrb[0].mxu0 %v1094
        %v1183 = vpop.f32.mrb[0].mxu0
        %v1184 = vadd.f32 0.0, %v1183
        %v1185 = vpop.f32.mrb[0].mxu0
        %1186 = vdwg.mxu0
        %vm1187 = vcmask 130048
        %v1188 = vsel %vm1187, %v1169, -inf
        %1189 = vmax.xlane.f32.xlu0 %v1188
        %v1190 = vpop.xlane.xlu0 %1189
        %v1191 = vsel %vm1187, %v1174, -inf
        %1192 = vmax.xlane.f32.xlu0 %v1191
        %v1193 = vpop.xlane.xlu0 %1192
        %v1194 = vsel %vm1187, %v1179, -inf
        %1195 = vmax.xlane.f32.xlu0 %v1194
        %v1196 = vpop.xlane.xlu0 %1195
        %v1197 = vsel %vm1187, %v1184, -inf
        %1198 = vmax.xlane.f32.xlu0 %v1197
        %v1199 = vpop.xlane.xlu0 %1198
        %v1200 = vsub.f32 %v1169, %v1190
        %v1201 = vsub.f32 %v1174, %v1193
        %v1202 = vsub.f32 %v1179, %v1196
        %v1203 = vsub.f32 %v1184, %v1199
        %v1204 = vmul.f32 %v1200, 1.442695
        %v1205 = vpow.pop %v1204
        %v1206 = vmul.f32 %v1201, 1.442695
        %v1207 = vpow.pop %v1206
        %v1208 = vmul.f32 %v1202, 1.442695
        %v1209 = vpow.pop %v1208
        %v1210 = vmul.f32 %v1203, 1.442695
        %v1211 = vpow.pop %v1210
        %v1212 = vsel %vm1187, %v1205, 0.0
        %1213 = vadd.xlane.f32.xlu0 %v1212
        %v1214 = vpop.xlane.xlu0 %1213
        %v1215 = vsel %vm1187, %v1207, 0.0
        %1216 = vadd.xlane.f32.xlu0 %v1215
        %v1217 = vpop.xlane.xlu0 %1216
        %v1218 = vsel %vm1187, %v1209, 0.0
        %1219 = vadd.xlane.f32.xlu0 %v1218
        %v1220 = vpop.xlane.xlu0 %1219
        %v1221 = vsel %vm1187, %v1211, 0.0
        %1222 = vadd.xlane.f32.xlu0 %v1221
        %v1223 = vpop.xlane.xlu0 %1222
        %1224 = vrot.lane.b32.xlu0 %v1075, 96
        %v1225 = vpop.permute.xlu0 %1224
        %1226 = vrot.lane.b32.xlu0 %v1080, 96
        %v1227 = vpop.permute.xlu0 %1226
        %v1231 = vsel %vm1187, %v1205, 0
        %v1234 = vsel %vm1187, %v1207, 0
        %v1237 = vsel %vm1187, %v1209, 0
        %v1240 = vsel %vm1187, %v1211, 0
        %1242 = vmatprep.subr.mxu0 0.0
        %1243 = vmatpush1.msra.mxu0 %v1225
        %1244 = vmatprep.subr.mxu0 0.0
        %1245 = vmatpush1.msra.mxu0 %v1227
        %1246 = vmatprep.subr.mxu0 0.0
        %1247 = vmatpush1.msra.mxu0 0.0
        %1248 = vmatprep.subr.mxu0 0.0
        %1249 = vmatpush1.msra.mxu0 0.0
        %1250 = vmatprep.subr.mxu0 0.0
        %1251 = vmatpush1.msra.mxu0 0.0
        %1252 = vmatprep.subr.mxu0 0.0
        %1253 = vmatpush1.msra.mxu0 0.0
        %1254 = vmatprep.subr.mxu0 0.0
        %1255 = vmatpush1.msra.mxu0 0.0
        %1256 = vmatprep.subr.mxu0 0.0
        %1257 = vmatpush1.msra.mxu0 0.0
        %1258 = vmatprep.subr.mxu0 0.0
        %1259 = vmatpush1.msra.mxu0 0.0
        %1260 = vmatprep.subr.mxu0 0.0
        %1261 = vmatpush1.msra.mxu0 0.0
        %1262 = vmatprep.subr.mxu0 0.0
        %1263 = vmatpush1.msra.mxu0 0.0
        %1264 = vmatprep.subr.mxu0 0.0
        %1265 = vmatpush1.msra.mxu0 0.0
        %1266 = vmatprep.subr.mxu0 0.0
        %1267 = vmatpush1.msra.mxu0 0.0
        %1268 = vmatprep.subr.mxu0 0.0
        %1269 = vmatpush1.msra.mxu0 0.0
        %1270 = vmatprep.subr.mxu0 0.0
        %1271 = vmatpush1.msra.mxu0 0.0
        %1272 = vmatprep.subr.mxu0 0.0
        %1273 = vmatpush1.msra.mxu0 0.0
        %1274 = vmatprep.subr.mxu0 0.0
        %1275 = vmatpush1.msra.mxu0 0.0
        %1276 = vmatprep.subr.mxu0 0.0
        %1277 = vmatpush1.msra.mxu0 0.0
        %1278 = vmatprep.subr.mxu0 0.0
        %1279 = vmatpush1.msra.mxu0 0.0
        %1280 = vmatprep.subr.mxu0 0.0
        %1281 = vmatpush1.msra.mxu0 0.0
        %1282 = vmatprep.subr.mxu0 0.0
        %1283 = vmatpush1.msra.mxu0 0.0
        %1284 = vmatprep.subr.mxu0 0.0
        %1285 = vmatpush1.msra.mxu0 0.0
        %1286 = vmatprep.subr.mxu0 0.0
        %1287 = vmatpush1.msra.mxu0 0.0
        %1288 = vmatprep.subr.mxu0 0.0
        %1289 = vmatpush1.msra.mxu0 0.0
        %1290 = vmatprep.subr.mxu0 0.0
        %1291 = vmatpush1.msra.mxu0 0.0
        %1292 = vmatprep.subr.mxu0 0.0
        %1293 = vmatpush1.msra.mxu0 0.0
        %1294 = vmatprep.subr.mxu0 0.0
        %1295 = vmatpush1.msra.mxu0 0.0
        %1296 = vmatprep.subr.mxu0 0.0
        %1297 = vmatpush1.msra.mxu0 0.0
        %1298 = vmatprep.subr.mxu0 0.0
        %1299 = vmatpush1.msra.mxu0 0.0
        %1300 = vmatprep.subr.mxu0 0.0
        %1301 = vmatpush1.msra.mxu0 0.0
        %1302 = vmatprep.subr.mxu0 0.0
        %1303 = vmatpush1.msra.mxu0 0.0
        %1304 = vmatprep.subr.mxu0 0.0
        %1305 = vmatpush1.msra.mxu0 0.0
        %1306 = vmatprep.mubr.f32.mxu0 0.0
        %1307 = vmatmul.mubr.f32.gmra.mrb[0].mxu0 %v1231
        %v1308 = vpop.f32.mrb[0].mxu0
        %v1309 = vadd.f32 0.0, %v1308
        %v1310 = vpop.f32.mrb[0].mxu0
        %1311 = vmatprep.mubr.f32.mxu0 0.0
        %1312 = vmatmul.mubr.f32.gmra.mrb[0].mxu0 %v1234
        %v1313 = vpop.f32.mrb[0].mxu0
        %v1314 = vadd.f32 0.0, %v1313
        %v1315 = vpop.f32.mrb[0].mxu0
        %1316 = vmatprep.mubr.f32.mxu0 0.0
        %1317 = vmatmul.mubr.f32.gmra.mrb[0].mxu0 %v1237
        %v1318 = vpop.f32.mrb[0].mxu0
        %v1319 = vadd.f32 0.0, %v1318
        %v1320 = vpop.f32.mrb[0].mxu0
        %1321 = vmatprep.mubr.f32.mxu0 0.0
        %1322 = vmatmul.mubr.f32.gmra.mrb[0].mxu0 %v1240
        %v1323 = vpop.f32.mrb[0].mxu0
        %v1324 = vadd.f32 0.0, %v1323
        %v1325 = vpop.f32.mrb[0].mxu0
        %1326 = vdwg.mxu0
        %v1327 = vrcp.pop %v1214
        %v1328 = vmul.f32 %v1309, %v1327
        %v1329 = vrcp.pop %v1217
        %v1330 = vmul.f32 %v1314, %v1329
        %v1331 = vrcp.pop %v1220
        %v1332 = vmul.f32 %v1319, %v1331
        %v1333 = vrcp.pop %v1223
        %v1334 = vmul.f32 %v1324, %v1333
        %1335 = vrot.lane.b32.xlu0 %v976, 120
        %v1336 = vpop.permute.xlu0 %1335
        %1337 = vrot.lane.b32.xlu0 %v981, 120
        %v1338 = vpop.permute.xlu0 %1337
        %1339 = vrot.lane.b32.xlu0 %v986, 120
        %v1340 = vpop.permute.xlu0 %1339
        %1341 = vrot.lane.b32.xlu0 %v991, 120
        %v1342 = vpop.permute.xlu0 %1341
        %1343 = vrot.lane.b32.xlu0 %v1075, 120
        %v1344 = vpop.permute.xlu0 %1343
        %1345 = vrot.lane.b32.xlu0 %v1080, 120
        %v1346 = vpop.permute.xlu0 %1345
        %v1347 = vsel %vm1083, %v1336, 0
        %v1349 = vsel %vm1083, %v1338, 0
        %v1351 = vsel %vm1083, %v1340, 0
        %v1353 = vsel %vm1083, %v1342, 0
        %v1355 = vsel %vm1083, %v1344, 0
        %v1357 = vsel %vm1083, %v1346, 0
        %1359 = vmatprep.subr.mxu0 0.0
        %1360 = vmatpush1.xpose.msra.mxu0 %v1355
        %1361 = vmatprep.subr.mxu0 0.0
        %1362 = vmatpush1.xpose.msra.mxu0 %v1357
        %1363 = vmatprep.subr.mxu0 0.0
        %1364 = vmatpush1.xpose.msra.mxu0 0.0
        %1365 = vmatprep.subr.mxu0 0.0
        %1366 = vmatpush1.xpose.msra.mxu0 0.0
        %1367 = vmatprep.subr.mxu0 0.0
        %1368 = vmatpush1.xpose.msra.mxu0 0.0
        %1369 = vmatprep.subr.mxu0 0.0
        %1370 = vmatpush1.xpose.msra.mxu0 0.0
        %1371 = vmatprep.subr.mxu0 0.0
        %1372 = vmatpush1.xpose.msra.mxu0 0.0
        %1373 = vmatprep.subr.mxu0 0.0
        %1374 = vmatpush1.xpose.msra.mxu0 0.0
        %1375 = vmatprep.subr.mxu0 0.0
        %1376 = vmatpush1.xpose.msra.mxu0 0.0
        %1377 = vmatprep.subr.mxu0 0.0
        %1378 = vmatpush1.xpose.msra.mxu0 0.0
        %1379 = vmatprep.subr.mxu0 0.0
        %1380 = vmatpush1.xpose.msra.mxu0 0.0
        %1381 = vmatprep.subr.mxu0 0.0
        %1382 = vmatpush1.xpose.msra.mxu0 0.0
        %1383 = vmatprep.subr.mxu0 0.0
        %1384 = vmatpush1.xpose.msra.mxu0 0.0
        %1385 = vmatprep.subr.mxu0 0.0
        %1386 = vmatpush1.xpose.msra.mxu0 0.0
        %1387 = vmatprep.subr.mxu0 0.0
        %1388 = vmatpush1.xpose.msra.mxu0 0.0
        %1389 = vmatprep.subr.mxu0 0.0
        %1390 = vmatpush1.xpose.msra.mxu0 0.0
        %1391 = vmatprep.subr.mxu0 0.0
        %1392 = vmatpush1.xpose.msra.mxu0 0.0
        %1393 = vmatprep.subr.mxu0 0.0
        %1394 = vmatpush1.xpose.msra.mxu0 0.0
        %1395 = vmatprep.subr.mxu0 0.0
        %1396 = vmatpush1.xpose.msra.mxu0 0.0
        %1397 = vmatprep.subr.mxu0 0.0
        %1398 = vmatpush1.xpose.msra.mxu0 0.0
        %1399 = vmatprep.subr.mxu0 0.0
        %1400 = vmatpush1.xpose.msra.mxu0 0.0
        %1401 = vmatprep.subr.mxu0 0.0
        %1402 = vmatpush1.xpose.msra.mxu0 0.0
        %1403 = vmatprep.subr.mxu0 0.0
        %1404 = vmatpush1.xpose.msra.mxu0 0.0
        %1405 = vmatprep.subr.mxu0 0.0
        %1406 = vmatpush1.xpose.msra.mxu0 0.0
        %1407 = vmatprep.subr.mxu0 0.0
        %1408 = vmatpush1.xpose.msra.mxu0 0.0
        %1409 = vmatprep.subr.mxu0 0.0
        %1410 = vmatpush1.xpose.msra.mxu0 0.0
        %1411 = vmatprep.subr.mxu0 0.0
        %1412 = vmatpush1.xpose.msra.mxu0 0.0
        %1413 = vmatprep.subr.mxu0 0.0
        %1414 = vmatpush1.xpose.msra.mxu0 0.0
        %1415 = vmatprep.subr.mxu0 0.0
        %1416 = vmatpush1.xpose.msra.mxu0 0.0
        %1417 = vmatprep.subr.mxu0 0.0
        %1418 = vmatpush1.xpose.msra.mxu0 0.0
        %1419 = vmatprep.subr.mxu0 0.0
        %1420 = vmatpush1.xpose.msra.mxu0 0.0
        %1421 = vmatprep.subr.mxu0 0.0
        %1422 = vmatpush1.xpose.msra.mxu0 0.0
        %1423 = vmatprep.mubr.f32.mxu0 0.0
        %1424 = vmatmul.mubr.f32.gmra.mrb[0].mxu0 %v1347
        %v1425 = vpop.f32.mrb[0].mxu0
        %v1426 = vadd.f32 0.0, %v1425
        %v1427 = vpop.f32.mrb[0].mxu0
        %1428 = vmatprep.mubr.f32.mxu0 0.0
        %1429 = vmatmul.mubr.f32.gmra.mrb[0].mxu0 %v1349
        %v1430 = vpop.f32.mrb[0].mxu0
        %v1431 = vadd.f32 0.0, %v1430
        %v1432 = vpop.f32.mrb[0].mxu0
        %1433 = vmatprep.mubr.f32.mxu0 0.0
        %1434 = vmatmul.mubr.f32.gmra.mrb[0].mxu0 %v1351
        %v1435 = vpop.f32.mrb[0].mxu0
        %v1436 = vadd.f32 0.0, %v1435
        %v1437 = vpop.f32.mrb[0].mxu0
        %1438 = vmatprep.mubr.f32.mxu0 0.0
        %1439 = vmatmul.mubr.f32.gmra.mrb[0].mxu0 %v1353
        %v1440 = vpop.f32.mrb[0].mxu0
        %v1441 = vadd.f32 0.0, %v1440
        %v1442 = vpop.f32.mrb[0].mxu0
        %1443 = vdwg.mxu0
        %v1444 = vsel %vm1187, %v1426, -inf
        %1445 = vmax.xlane.f32.xlu0 %v1444
        %v1446 = vpop.xlane.xlu0 %1445
        %v1447 = vsel %vm1187, %v1431, -inf
        %1448 = vmax.xlane.f32.xlu0 %v1447
        %v1449 = vpop.xlane.xlu0 %1448
        %v1450 = vsel %vm1187, %v1436, -inf
        %1451 = vmax.xlane.f32.xlu0 %v1450
        %v1452 = vpop.xlane.xlu0 %1451
        %v1453 = vsel %vm1187, %v1441, -inf
        %1454 = vmax.xlane.f32.xlu0 %v1453
        %v1455 = vpop.xlane.xlu0 %1454
        %v1456 = vsub.f32 %v1426, %v1446
        %v1457 = vsub.f32 %v1431, %v1449
        %v1458 = vsub.f32 %v1436, %v1452
        %v1459 = vsub.f32 %v1441, %v1455
        %v1460 = vmul.f32 %v1456, 1.442695
        %v1461 = vpow.pop %v1460
        %v1462 = vmul.f32 %v1457, 1.442695
        %v1463 = vpow.pop %v1462
        %v1464 = vmul.f32 %v1458, 1.442695
        %v1465 = vpow.pop %v1464
        %v1466 = vmul.f32 %v1459, 1.442695
        %v1467 = vpow.pop %v1466
        %v1468 = vsel %vm1187, %v1461, 0.0
        %1469 = vadd.xlane.f32.xlu0 %v1468
        %v1470 = vpop.xlane.xlu0 %1469
        %v1471 = vsel %vm1187, %v1463, 0.0
        %1472 = vadd.xlane.f32.xlu0 %v1471
        %v1473 = vpop.xlane.xlu0 %1472
        %v1474 = vsel %vm1187, %v1465, 0.0
        %1475 = vadd.xlane.f32.xlu0 %v1474
        %v1476 = vpop.xlane.xlu0 %1475
        %v1477 = vsel %vm1187, %v1467, 0.0
        %1478 = vadd.xlane.f32.xlu0 %v1477
        %v1479 = vpop.xlane.xlu0 %1478
        %1480 = vrot.lane.b32.xlu0 %v1075, 88
        %v1481 = vpop.permute.xlu0 %1480
        %1482 = vrot.lane.b32.xlu0 %v1080, 88
        %v1483 = vpop.permute.xlu0 %1482
        %v1487 = vsel %vm1187, %v1461, 0
        %v1490 = vsel %vm1187, %v1463, 0
        %v1493 = vsel %vm1187, %v1465, 0
        %v1496 = vsel %vm1187, %v1467, 0
        %1498 = vmatprep.subr.mxu0 0.0
        %1499 = vmatpush1.msra.mxu0 %v1481
        %1500 = vmatprep.subr.mxu0 0.0
        %1501 = vmatpush1.msra.mxu0 %v1483
        %1502 = vmatprep.subr.mxu0 0.0
        %1503 = vmatpush1.msra.mxu0 0.0
        %1504 = vmatprep.subr.mxu0 0.0
        %1505 = vmatpush1.msra.mxu0 0.0
        %1506 = vmatprep.subr.mxu0 0.0
        %1507 = vmatpush1.msra.mxu0 0.0
        %1508 = vmatprep.subr.mxu0 0.0
        %1509 = vmatpush1.msra.mxu0 0.0
        %1510 = vmatprep.subr.mxu0 0.0
        %1511 = vmatpush1.msra.mxu0 0.0
        %1512 = vmatprep.subr.mxu0 0.0
        %1513 = vmatpush1.msra.mxu0 0.0
        %1514 = vmatprep.subr.mxu0 0.0
        %1515 = vmatpush1.msra.mxu0 0.0
        %1516 = vmatprep.subr.mxu0 0.0
        %1517 = vmatpush1.msra.mxu0 0.0
        %1518 = vmatprep.subr.mxu0 0.0
        %1519 = vmatpush1.msra.mxu0 0.0
        %1520 = vmatprep.subr.mxu0 0.0
        %1521 = vmatpush1.msra.mxu0 0.0
        %1522 = vmatprep.subr.mxu0 0.0
        %1523 = vmatpush1.msra.mxu0 0.0
        %1524 = vmatprep.subr.mxu0 0.0
        %1525 = vmatpush1.msra.mxu0 0.0
        %1526 = vmatprep.subr.mxu0 0.0
        %1527 = vmatpush1.msra.mxu0 0.0
        %1528 = vmatprep.subr.mxu0 0.0
        %1529 = vmatpush1.msra.mxu0 0.0
        %1530 = vmatprep.subr.mxu0 0.0
        %1531 = vmatpush1.msra.mxu0 0.0
        %1532 = vmatprep.subr.mxu0 0.0
        %1533 = vmatpush1.msra.mxu0 0.0
        %1534 = vmatprep.subr.mxu0 0.0
        %1535 = vmatpush1.msra.mxu0 0.0
        %1536 = vmatprep.subr.mxu0 0.0
        %1537 = vmatpush1.msra.mxu0 0.0
        %1538 = vmatprep.subr.mxu0 0.0
        %1539 = vmatpush1.msra.mxu0 0.0
        %1540 = vmatprep.subr.mxu0 0.0
        %1541 = vmatpush1.msra.mxu0 0.0
        %1542 = vmatprep.subr.mxu0 0.0
        %1543 = vmatpush1.msra.mxu0 0.0
        %1544 = vmatprep.subr.mxu0 0.0
        %1545 = vmatpush1.msra.mxu0 0.0
        %1546 = vmatprep.subr.mxu0 0.0
        %1547 = vmatpush1.msra.mxu0 0.0
        %1548 = vmatprep.subr.mxu0 0.0
        %1549 = vmatpush1.msra.mxu0 0.0
        %1550 = vmatprep.subr.mxu0 0.0
        %1551 = vmatpush1.msra.mxu0 0.0
        %1552 = vmatprep.subr.mxu0 0.0
        %1553 = vmatpush1.msra.mxu0 0.0
        %1554 = vmatprep.subr.mxu0 0.0
        %1555 = vmatpush1.msra.mxu0 0.0
        %1556 = vmatprep.subr.mxu0 0.0
        %1557 = vmatpush1.msra.mxu0 0.0
        %1558 = vmatprep.subr.mxu0 0.0
        %1559 = vmatpush1.msra.mxu0 0.0
        %1560 = vmatprep.subr.mxu0 0.0
        %1561 = vmatpush1.msra.mxu0 0.0
        %1562 = vmatprep.mubr.f32.mxu0 0.0
        %1563 = vmatmul.mubr.f32.gmra.mrb[0].mxu0 %v1487
        %v1564 = vpop.f32.mrb[0].mxu0
        %v1565 = vadd.f32 0.0, %v1564
        %v1566 = vpop.f32.mrb[0].mxu0
        %1567 = vmatprep.mubr.f32.mxu0 0.0
        %1568 = vmatmul.mubr.f32.gmra.mrb[0].mxu0 %v1490
        %v1569 = vpop.f32.mrb[0].mxu0
        %v1570 = vadd.f32 0.0, %v1569
        %v1571 = vpop.f32.mrb[0].mxu0
        %1572 = vmatprep.mubr.f32.mxu0 0.0
        %1573 = vmatmul.mubr.f32.gmra.mrb[0].mxu0 %v1493
        %v1574 = vpop.f32.mrb[0].mxu0
        %v1575 = vadd.f32 0.0, %v1574
        %v1576 = vpop.f32.mrb[0].mxu0
        %1577 = vmatprep.mubr.f32.mxu0 0.0
        %1578 = vmatmul.mubr.f32.gmra.mrb[0].mxu0 %v1496
        %v1579 = vpop.f32.mrb[0].mxu0
        %v1580 = vadd.f32 0.0, %v1579
        %v1581 = vpop.f32.mrb[0].mxu0
        %1582 = vdwg.mxu0
        %v1583 = vrcp.pop %v1470
        %v1584 = vmul.f32 %v1565, %v1583
        %v1585 = vrcp.pop %v1473
        %v1586 = vmul.f32 %v1570, %v1585
        %v1587 = vrcp.pop %v1476
        %v1588 = vmul.f32 %v1575, %v1587
        %v1589 = vrcp.pop %v1479
        %v1590 = vmul.f32 %v1580, %v1589
        %1591 = vrot.lane.b32.xlu0 %v976, 112
        %v1592 = vpop.permute.xlu0 %1591
        %1593 = vrot.lane.b32.xlu0 %v981, 112
        %v1594 = vpop.permute.xlu0 %1593
        %1595 = vrot.lane.b32.xlu0 %v986, 112
        %v1596 = vpop.permute.xlu0 %1595
        %1597 = vrot.lane.b32.xlu0 %v991, 112
        %v1598 = vpop.permute.xlu0 %1597
        %1599 = vrot.lane.b32.xlu0 %v1075, 112
        %v1600 = vpop.permute.xlu0 %1599
        %1601 = vrot.lane.b32.xlu0 %v1080, 112
        %v1602 = vpop.permute.xlu0 %1601
        %v1603 = vsel %vm1083, %v1592, 0
        %v1605 = vsel %vm1083, %v1594, 0
        %v1607 = vsel %vm1083, %v1596, 0
        %v1609 = vsel %vm1083, %v1598, 0
        %v1611 = vsel %vm1083, %v1600, 0
        %v1613 = vsel %vm1083, %v1602, 0
        %1615 = vmatprep.subr.mxu0 0.0
        %1616 = vmatpush1.xpose.msra.mxu0 %v1611
        %1617 = vmatprep.subr.mxu0 0.0
        %1618 = vmatpush1.xpose.msra.mxu0 %v1613
        %1619 = vmatprep.subr.mxu0 0.0
        %1620 = vmatpush1.xpose.msra.mxu0 0.0
        %1621 = vmatprep.subr.mxu0 0.0
        %1622 = vmatpush1.xpose.msra.mxu0 0.0
        %1623 = vmatprep.subr.mxu0 0.0
        %1624 = vmatpush1.xpose.msra.mxu0 0.0
        %1625 = vmatprep.subr.mxu0 0.0
        %1626 = vmatpush1.xpose.msra.mxu0 0.0
        %1627 = vmatprep.subr.mxu0 0.0
        %1628 = vmatpush1.xpose.msra.mxu0 0.0
        %1629 = vmatprep.subr.mxu0 0.0
        %1630 = vmatpush1.xpose.msra.mxu0 0.0
        %1631 = vmatprep.subr.mxu0 0.0
        %1632 = vmatpush1.xpose.msra.mxu0 0.0
        %1633 = vmatprep.subr.mxu0 0.0
        %1634 = vmatpush1.xpose.msra.mxu0 0.0
        %1635 = vmatprep.subr.mxu0 0.0
        %1636 = vmatpush1.xpose.msra.mxu0 0.0
        %1637 = vmatprep.subr.mxu0 0.0
        %1638 = vmatpush1.xpose.msra.mxu0 0.0
        %1639 = vmatprep.subr.mxu0 0.0
        %1640 = vmatpush1.xpose.msra.mxu0 0.0
        %1641 = vmatprep.subr.mxu0 0.0
        %1642 = vmatpush1.xpose.msra.mxu0 0.0
        %1643 = vmatprep.subr.mxu0 0.0
        %1644 = vmatpush1.xpose.msra.mxu0 0.0
        %1645 = vmatprep.subr.mxu0 0.0
        %1646 = vmatpush1.xpose.msra.mxu0 0.0
        %1647 = vmatprep.subr.mxu0 0.0
        %1648 = vmatpush1.xpose.msra.mxu0 0.0
        %1649 = vmatprep.subr.mxu0 0.0
        %1650 = vmatpush1.xpose.msra.mxu0 0.0
        %1651 = vmatprep.subr.mxu0 0.0
        %1652 = vmatpush1.xpose.msra.mxu0 0.0
        %1653 = vmatprep.subr.mxu0 0.0
        %1654 = vmatpush1.xpose.msra.mxu0 0.0
        %1655 = vmatprep.subr.mxu0 0.0
        %1656 = vmatpush1.xpose.msra.mxu0 0.0
        %1657 = vmatprep.subr.mxu0 0.0
        %1658 = vmatpush1.xpose.msra.mxu0 0.0
        %1659 = vmatprep.subr.mxu0 0.0
        %1660 = vmatpush1.xpose.msra.mxu0 0.0
        %1661 = vmatprep.subr.mxu0 0.0
        %1662 = vmatpush1.xpose.msra.mxu0 0.0
        %1663 = vmatprep.subr.mxu0 0.0
        %1664 = vmatpush1.xpose.msra.mxu0 0.0
        %1665 = vmatprep.subr.mxu0 0.0
        %1666 = vmatpush1.xpose.msra.mxu0 0.0
        %1667 = vmatprep.subr.mxu0 0.0
        %1668 = vmatpush1.xpose.msra.mxu0 0.0
        %1669 = vmatprep.subr.mxu0 0.0
        %1670 = vmatpush1.xpose.msra.mxu0 0.0
        %1671 = vmatprep.subr.mxu0 0.0
        %1672 = vmatpush1.xpose.msra.mxu0 0.0
        %1673 = vmatprep.subr.mxu0 0.0
        %1674 = vmatpush1.xpose.msra.mxu0 0.0
        %1675 = vmatprep.subr.mxu0 0.0
        %1676 = vmatpush1.xpose.msra.mxu0 0.0
        %1677 = vmatprep.subr.mxu0 0.0
        %1678 = vmatpush1.xpose.msra.mxu0 0.0
        %1679 = vmatprep.mubr.f32.mxu0 0.0
        %1680 = vmatmul.mubr.f32.gmra.mrb[0].mxu0 %v1603
        %v1681 = vpop.f32.mrb[0].mxu0
        %v1682 = vadd.f32 0.0, %v1681
        %v1683 = vpop.f32.mrb[0].mxu0
        %1684 = vmatprep.mubr.f32.mxu0 0.0
        %1685 = vmatmul.mubr.f32.gmra.mrb[0].mxu0 %v1605
        %v1686 = vpop.f32.mrb[0].mxu0
        %v1687 = vadd.f32 0.0, %v1686
        %v1688 = vpop.f32.mrb[0].mxu0
        %1689 = vmatprep.mubr.f32.mxu0 0.0
        %1690 = vmatmul.mubr.f32.gmra.mrb[0].mxu0 %v1607
        %v1691 = vpop.f32.mrb[0].mxu0
        %v1692 = vadd.f32 0.0, %v1691
        %v1693 = vpop.f32.mrb[0].mxu0
        %1694 = vmatprep.mubr.f32.mxu0 0.0
        %1695 = vmatmul.mubr.f32.gmra.mrb[0].mxu0 %v1609
        %v1696 = vpop.f32.mrb[0].mxu0
        %v1697 = vadd.f32 0.0, %v1696
        %v1698 = vpop.f32.mrb[0].mxu0
        %1699 = vdwg.mxu0
        %v1700 = vsel %vm1187, %v1682, -inf
        %1701 = vmax.xlane.f32.xlu0 %v1700
        %v1702 = vpop.xlane.xlu0 %1701
        %v1703 = vsel %vm1187, %v1687, -inf
        %1704 = vmax.xlane.f32.xlu0 %v1703
        %v1705 = vpop.xlane.xlu0 %1704
        %v1706 = vsel %vm1187, %v1692, -inf
        %1707 = vmax.xlane.f32.xlu0 %v1706
        %v1708 = vpop.xlane.xlu0 %1707
        %v1709 = vsel %vm1187, %v1697, -inf
        %1710 = vmax.xlane.f32.xlu0 %v1709
        %v1711 = vpop.xlane.xlu0 %1710
        %v1712 = vsub.f32 %v1682, %v1702
        %v1713 = vsub.f32 %v1687, %v1705
        %v1714 = vsub.f32 %v1692, %v1708
        %v1715 = vsub.f32 %v1697, %v1711
        %v1716 = vmul.f32 %v1712, 1.442695
        %v1717 = vpow.pop %v1716
        %v1718 = vmul.f32 %v1713, 1.442695
        %v1719 = vpow.pop %v1718
        %v1720 = vmul.f32 %v1714, 1.442695
        %v1721 = vpow.pop %v1720
        %v1722 = vmul.f32 %v1715, 1.442695
        %v1723 = vpow.pop %v1722
        %v1724 = vsel %vm1187, %v1717, 0.0
        %1725 = vadd.xlane.f32.xlu0 %v1724
        %v1726 = vpop.xlane.xlu0 %1725
        %v1727 = vsel %vm1187, %v1719, 0.0
        %1728 = vadd.xlane.f32.xlu0 %v1727
        %v1729 = vpop.xlane.xlu0 %1728
        %v1730 = vsel %vm1187, %v1721, 0.0
        %1731 = vadd.xlane.f32.xlu0 %v1730
        %v1732 = vpop.xlane.xlu0 %1731
        %v1733 = vsel %vm1187, %v1723, 0.0
        %1734 = vadd.xlane.f32.xlu0 %v1733
        %v1735 = vpop.xlane.xlu0 %1734
        %1736 = vrot.lane.b32.xlu0 %v1075, 80
        %v1737 = vpop.permute.xlu0 %1736
        %1738 = vrot.lane.b32.xlu0 %v1080, 80
        %v1739 = vpop.permute.xlu0 %1738
        %v1743 = vsel %vm1187, %v1717, 0
        %v1746 = vsel %vm1187, %v1719, 0
        %v1749 = vsel %vm1187, %v1721, 0
        %v1752 = vsel %vm1187, %v1723, 0
        %1754 = vmatprep.subr.mxu0 0.0
        %1755 = vmatpush1.msra.mxu0 %v1737
        %1756 = vmatprep.subr.mxu0 0.0
        %1757 = vmatpush1.msra.mxu0 %v1739
        %1758 = vmatprep.subr.mxu0 0.0
        %1759 = vmatpush1.msra.mxu0 0.0
        %1760 = vmatprep.subr.mxu0 0.0
        %1761 = vmatpush1.msra.mxu0 0.0
        %1762 = vmatprep.subr.mxu0 0.0
        %1763 = vmatpush1.msra.mxu0 0.0
        %1764 = vmatprep.subr.mxu0 0.0
        %1765 = vmatpush1.msra.mxu0 0.0
        %1766 = vmatprep.subr.mxu0 0.0
        %1767 = vmatpush1.msra.mxu0 0.0
        %1768 = vmatprep.subr.mxu0 0.0
        %1769 = vmatpush1.msra.mxu0 0.0
        %1770 = vmatprep.subr.mxu0 0.0
        %1771 = vmatpush1.msra.mxu0 0.0
        %1772 = vmatprep.subr.mxu0 0.0
        %1773 = vmatpush1.msra.mxu0 0.0
        %1774 = vmatprep.subr.mxu0 0.0
        %1775 = vmatpush1.msra.mxu0 0.0
        %1776 = vmatprep.subr.mxu0 0.0
        %1777 = vmatpush1.msra.mxu0 0.0
        %1778 = vmatprep.subr.mxu0 0.0
        %1779 = vmatpush1.msra.mxu0 0.0
        %1780 = vmatprep.subr.mxu0 0.0
        %1781 = vmatpush1.msra.mxu0 0.0
        %1782 = vmatprep.subr.mxu0 0.0
        %1783 = vmatpush1.msra.mxu0 0.0
        %1784 = vmatprep.subr.mxu0 0.0
        %1785 = vmatpush1.msra.mxu0 0.0
        %1786 = vmatprep.subr.mxu0 0.0
        %1787 = vmatpush1.msra.mxu0 0.0
        %1788 = vmatprep.subr.mxu0 0.0
        %1789 = vmatpush1.msra.mxu0 0.0
        %1790 = vmatprep.subr.mxu0 0.0
        %1791 = vmatpush1.msra.mxu0 0.0
        %1792 = vmatprep.subr.mxu0 0.0
        %1793 = vmatpush1.msra.mxu0 0.0
        %1794 = vmatprep.subr.mxu0 0.0
        %1795 = vmatpush1.msra.mxu0 0.0
        %1796 = vmatprep.subr.mxu0 0.0
        %1797 = vmatpush1.msra.mxu0 0.0
        %1798 = vmatprep.subr.mxu0 0.0
        %1799 = vmatpush1.msra.mxu0 0.0
        %1800 = vmatprep.subr.mxu0 0.0
        %1801 = vmatpush1.msra.mxu0 0.0
        %1802 = vmatprep.subr.mxu0 0.0
        %1803 = vmatpush1.msra.mxu0 0.0
        %1804 = vmatprep.subr.mxu0 0.0
        %1805 = vmatpush1.msra.mxu0 0.0
        %1806 = vmatprep.subr.mxu0 0.0
        %1807 = vmatpush1.msra.mxu0 0.0
        %1808 = vmatprep.subr.mxu0 0.0
        %1809 = vmatpush1.msra.mxu0 0.0
        %1810 = vmatprep.subr.mxu0 0.0
        %1811 = vmatpush1.msra.mxu0 0.0
        %1812 = vmatprep.subr.mxu0 0.0
        %1813 = vmatpush1.msra.mxu0 0.0
        %1814 = vmatprep.subr.mxu0 0.0
        %1815 = vmatpush1.msra.mxu0 0.0
        %1816 = vmatprep.subr.mxu0 0.0
        %1817 = vmatpush1.msra.mxu0 0.0
        %1818 = vmatprep.mubr.f32.mxu0 0.0
        %1819 = vmatmul.mubr.f32.gmra.mrb[0].mxu0 %v1743
        %v1820 = vpop.f32.mrb[0].mxu0
        %v1821 = vadd.f32 0.0, %v1820
        %v1822 = vpop.f32.mrb[0].mxu0
        %1823 = vmatprep.mubr.f32.mxu0 0.0
        %1824 = vmatmul.mubr.f32.gmra.mrb[0].mxu0 %v1746
        %v1825 = vpop.f32.mrb[0].mxu0
        %v1826 = vadd.f32 0.0, %v1825
        %v1827 = vpop.f32.mrb[0].mxu0
        %1828 = vmatprep.mubr.f32.mxu0 0.0
        %1829 = vmatmul.mubr.f32.gmra.mrb[0].mxu0 %v1749
        %v1830 = vpop.f32.mrb[0].mxu0
        %v1831 = vadd.f32 0.0, %v1830
        %v1832 = vpop.f32.mrb[0].mxu0
        %1833 = vmatprep.mubr.f32.mxu0 0.0
        %1834 = vmatmul.mubr.f32.gmra.mrb[0].mxu0 %v1752
        %v1835 = vpop.f32.mrb[0].mxu0
        %v1836 = vadd.f32 0.0, %v1835
        %v1837 = vpop.f32.mrb[0].mxu0
        %1838 = vdwg.mxu0
        %v1839 = vrcp.pop %v1726
        %v1840 = vmul.f32 %v1821, %v1839
        %v1841 = vrcp.pop %v1729
        %v1842 = vmul.f32 %v1826, %v1841
        %v1843 = vrcp.pop %v1732
        %v1844 = vmul.f32 %v1831, %v1843
        %v1845 = vrcp.pop %v1735
        %v1846 = vmul.f32 %v1836, %v1845
        %1847 = vrot.lane.b32.xlu0 %v976, 104
        %v1848 = vpop.permute.xlu0 %1847
        %1849 = vrot.lane.b32.xlu0 %v981, 104
        %v1850 = vpop.permute.xlu0 %1849
        %1851 = vrot.lane.b32.xlu0 %v986, 104
        %v1852 = vpop.permute.xlu0 %1851
        %1853 = vrot.lane.b32.xlu0 %v991, 104
        %v1854 = vpop.permute.xlu0 %1853
        %1855 = vrot.lane.b32.xlu0 %v1075, 104
        %v1856 = vpop.permute.xlu0 %1855
        %1857 = vrot.lane.b32.xlu0 %v1080, 104
        %v1858 = vpop.permute.xlu0 %1857
        %v1859 = vsel %vm1083, %v1848, 0
        %v1861 = vsel %vm1083, %v1850, 0
        %v1863 = vsel %vm1083, %v1852, 0
        %v1865 = vsel %vm1083, %v1854, 0
        %v1867 = vsel %vm1083, %v1856, 0
        %v1869 = vsel %vm1083, %v1858, 0
        %1871 = vmatprep.subr.mxu0 0.0
        %1872 = vmatpush1.xpose.msra.mxu0 %v1867
        %1873 = vmatprep.subr.mxu0 0.0
        %1874 = vmatpush1.xpose.msra.mxu0 %v1869
        %1875 = vmatprep.subr.mxu0 0.0
        %1876 = vmatpush1.xpose.msra.mxu0 0.0
        %1877 = vmatprep.subr.mxu0 0.0
        %1878 = vmatpush1.xpose.msra.mxu0 0.0
        %1879 = vmatprep.subr.mxu0 0.0
        %1880 = vmatpush1.xpose.msra.mxu0 0.0
        %1881 = vmatprep.subr.mxu0 0.0
        %1882 = vmatpush1.xpose.msra.mxu0 0.0
        %1883 = vmatprep.subr.mxu0 0.0
        %1884 = vmatpush1.xpose.msra.mxu0 0.0
        %1885 = vmatprep.subr.mxu0 0.0
        %1886 = vmatpush1.xpose.msra.mxu0 0.0
        %1887 = vmatprep.subr.mxu0 0.0
        %1888 = vmatpush1.xpose.msra.mxu0 0.0
        %1889 = vmatprep.subr.mxu0 0.0
        %1890 = vmatpush1.xpose.msra.mxu0 0.0
        %1891 = vmatprep.subr.mxu0 0.0
        %1892 = vmatpush1.xpose.msra.mxu0 0.0
        %1893 = vmatprep.subr.mxu0 0.0
        %1894 = vmatpush1.xpose.msra.mxu0 0.0
        %1895 = vmatprep.subr.mxu0 0.0
        %1896 = vmatpush1.xpose.msra.mxu0 0.0
        %1897 = vmatprep.subr.mxu0 0.0
        %1898 = vmatpush1.xpose.msra.mxu0 0.0
        %1899 = vmatprep.subr.mxu0 0.0
        %1900 = vmatpush1.xpose.msra.mxu0 0.0
        %1901 = vmatprep.subr.mxu0 0.0
        %1902 = vmatpush1.xpose.msra.mxu0 0.0
        %1903 = vmatprep.subr.mxu0 0.0
        %1904 = vmatpush1.xpose.msra.mxu0 0.0
        %1905 = vmatprep.subr.mxu0 0.0
        %1906 = vmatpush1.xpose.msra.mxu0 0.0
        %1907 = vmatprep.subr.mxu0 0.0
        %1908 = vmatpush1.xpose.msra.mxu0 0.0
        %1909 = vmatprep.subr.mxu0 0.0
        %1910 = vmatpush1.xpose.msra.mxu0 0.0
        %1911 = vmatprep.subr.mxu0 0.0
        %1912 = vmatpush1.xpose.msra.mxu0 0.0
        %1913 = vmatprep.subr.mxu0 0.0
        %1914 = vmatpush1.xpose.msra.mxu0 0.0
        %1915 = vmatprep.subr.mxu0 0.0
        %1916 = vmatpush1.xpose.msra.mxu0 0.0
        %1917 = vmatprep.subr.mxu0 0.0
        %1918 = vmatpush1.xpose.msra.mxu0 0.0
        %1919 = vmatprep.subr.mxu0 0.0
        %1920 = vmatpush1.xpose.msra.mxu0 0.0
        %1921 = vmatprep.subr.mxu0 0.0
        %1922 = vmatpush1.xpose.msra.mxu0 0.0
        %1923 = vmatprep.subr.mxu0 0.0
        %1924 = vmatpush1.xpose.msra.mxu0 0.0
        %1925 = vmatprep.subr.mxu0 0.0
        %1926 = vmatpush1.xpose.msra.mxu0 0.0
        %1927 = vmatprep.subr.mxu0 0.0
        %1928 = vmatpush1.xpose.msra.mxu0 0.0
        %1929 = vmatprep.subr.mxu0 0.0
        %1930 = vmatpush1.xpose.msra.mxu0 0.0
        %1931 = vmatprep.subr.mxu0 0.0
        %1932 = vmatpush1.xpose.msra.mxu0 0.0
        %1933 = vmatprep.subr.mxu0 0.0
        %1934 = vmatpush1.xpose.msra.mxu0 0.0
        %1935 = vmatprep.mubr.f32.mxu0 0.0
        %1936 = vmatmul.mubr.f32.gmra.mrb[0].mxu0 %v1859
        %v1937 = vpop.f32.mrb[0].mxu0
        %v1938 = vadd.f32 0.0, %v1937
        %v1939 = vpop.f32.mrb[0].mxu0
        %1940 = vmatprep.mubr.f32.mxu0 0.0
        %1941 = vmatmul.mubr.f32.gmra.mrb[0].mxu0 %v1861
        %v1942 = vpop.f32.mrb[0].mxu0
        %v1943 = vadd.f32 0.0, %v1942
        %v1944 = vpop.f32.mrb[0].mxu0
        %1945 = vmatprep.mubr.f32.mxu0 0.0
        %1946 = vmatmul.mubr.f32.gmra.mrb[0].mxu0 %v1863
        %v1947 = vpop.f32.mrb[0].mxu0
        %v1948 = vadd.f32 0.0, %v1947
        %v1949 = vpop.f32.mrb[0].mxu0
        %1950 = vmatprep.mubr.f32.mxu0 0.0
        %1951 = vmatmul.mubr.f32.gmra.mrb[0].mxu0 %v1865
        %v1952 = vpop.f32.mrb[0].mxu0
        %v1953 = vadd.f32 0.0, %v1952
        %v1954 = vpop.f32.mrb[0].mxu0
        %1955 = vdwg.mxu0
        %v1956 = vsel %vm1187, %v1938, -inf
        %1957 = vmax.xlane.f32.xlu0 %v1956
        %v1958 = vpop.xlane.xlu0 %1957
        %v1959 = vsel %vm1187, %v1943, -inf
        %1960 = vmax.xlane.f32.xlu0 %v1959
        %v1961 = vpop.xlane.xlu0 %1960
        %v1962 = vsel %vm1187, %v1948, -inf
        %1963 = vmax.xlane.f32.xlu0 %v1962
        %v1964 = vpop.xlane.xlu0 %1963
        %v1965 = vsel %vm1187, %v1953, -inf
        %1966 = vmax.xlane.f32.xlu0 %v1965
        %v1967 = vpop.xlane.xlu0 %1966
        %v1968 = vsub.f32 %v1938, %v1958
        %v1969 = vsub.f32 %v1943, %v1961
        %v1970 = vsub.f32 %v1948, %v1964
        %v1971 = vsub.f32 %v1953, %v1967
        %v1972 = vmul.f32 %v1968, 1.442695
        %v1973 = vpow.pop %v1972
        %v1974 = vmul.f32 %v1969, 1.442695
        %v1975 = vpow.pop %v1974
        %v1976 = vmul.f32 %v1970, 1.442695
        %v1977 = vpow.pop %v1976
        %v1978 = vmul.f32 %v1971, 1.442695
        %v1979 = vpow.pop %v1978
        %v1980 = vsel %vm1187, %v1973, 0.0
        %1981 = vadd.xlane.f32.xlu0 %v1980
        %v1982 = vpop.xlane.xlu0 %1981
        %v1983 = vsel %vm1187, %v1975, 0.0
        %1984 = vadd.xlane.f32.xlu0 %v1983
        %v1985 = vpop.xlane.xlu0 %1984
        %v1986 = vsel %vm1187, %v1977, 0.0
        %1987 = vadd.xlane.f32.xlu0 %v1986
        %v1988 = vpop.xlane.xlu0 %1987
        %v1989 = vsel %vm1187, %v1979, 0.0
        %1990 = vadd.xlane.f32.xlu0 %v1989
        %v1991 = vpop.xlane.xlu0 %1990
        %1992 = vrot.lane.b32.xlu0 %v1075, 72
        %v1993 = vpop.permute.xlu0 %1992
        %1994 = vrot.lane.b32.xlu0 %v1080, 72
        %v1995 = vpop.permute.xlu0 %1994
        %v1999 = vsel %vm1187, %v1973, 0
        %v2002 = vsel %vm1187, %v1975, 0
        %v2005 = vsel %vm1187, %v1977, 0
        %v2008 = vsel %vm1187, %v1979, 0
        %2010 = vmatprep.subr.mxu0 0.0
        %2011 = vmatpush1.msra.mxu0 %v1993
        %2012 = vmatprep.subr.mxu0 0.0
        %2013 = vmatpush1.msra.mxu0 %v1995
        %2014 = vmatprep.subr.mxu0 0.0
        %2015 = vmatpush1.msra.mxu0 0.0
        %2016 = vmatprep.subr.mxu0 0.0
        %2017 = vmatpush1.msra.mxu0 0.0
        %2018 = vmatprep.subr.mxu0 0.0
        %2019 = vmatpush1.msra.mxu0 0.0
        %2020 = vmatprep.subr.mxu0 0.0
        %2021 = vmatpush1.msra.mxu0 0.0
        %2022 = vmatprep.subr.mxu0 0.0
        %2023 = vmatpush1.msra.mxu0 0.0
        %2024 = vmatprep.subr.mxu0 0.0
        %2025 = vmatpush1.msra.mxu0 0.0
        %2026 = vmatprep.subr.mxu0 0.0
        %2027 = vmatpush1.msra.mxu0 0.0
        %2028 = vmatprep.subr.mxu0 0.0
        %2029 = vmatpush1.msra.mxu0 0.0
        %2030 = vmatprep.subr.mxu0 0.0
        %2031 = vmatpush1.msra.mxu0 0.0
        %2032 = vmatprep.subr.mxu0 0.0
        %2033 = vmatpush1.msra.mxu0 0.0
        %2034 = vmatprep.subr.mxu0 0.0
        %2035 = vmatpush1.msra.mxu0 0.0
        %2036 = vmatprep.subr.mxu0 0.0
        %2037 = vmatpush1.msra.mxu0 0.0
        %2038 = vmatprep.subr.mxu0 0.0
        %2039 = vmatpush1.msra.mxu0 0.0
        %2040 = vmatprep.subr.mxu0 0.0
        %2041 = vmatpush1.msra.mxu0 0.0
        %2042 = vmatprep.subr.mxu0 0.0
        %2043 = vmatpush1.msra.mxu0 0.0
        %2044 = vmatprep.subr.mxu0 0.0
        %2045 = vmatpush1.msra.mxu0 0.0
        %2046 = vmatprep.subr.mxu0 0.0
        %2047 = vmatpush1.msra.mxu0 0.0
        %2048 = vmatprep.subr.mxu0 0.0
        %2049 = vmatpush1.msra.mxu0 0.0
        %2050 = vmatprep.subr.mxu0 0.0
        %2051 = vmatpush1.msra.mxu0 0.0
        %2052 = vmatprep.subr.mxu0 0.0
        %2053 = vmatpush1.msra.mxu0 0.0
        %2054 = vmatprep.subr.mxu0 0.0
        %2055 = vmatpush1.msra.mxu0 0.0
        %2056 = vmatprep.subr.mxu0 0.0
        %2057 = vmatpush1.msra.mxu0 0.0
        %2058 = vmatprep.subr.mxu0 0.0
        %2059 = vmatpush1.msra.mxu0 0.0
        %2060 = vmatprep.subr.mxu0 0.0
        %2061 = vmatpush1.msra.mxu0 0.0
        %2062 = vmatprep.subr.mxu0 0.0
        %2063 = vmatpush1.msra.mxu0 0.0
        %2064 = vmatprep.subr.mxu0 0.0
        %2065 = vmatpush1.msra.mxu0 0.0
        %2066 = vmatprep.subr.mxu0 0.0
        %2067 = vmatpush1.msra.mxu0 0.0
        %2068 = vmatprep.subr.mxu0 0.0
        %2069 = vmatpush1.msra.mxu0 0.0
        %2070 = vmatprep.subr.mxu0 0.0
        %2071 = vmatpush1.msra.mxu0 0.0
        %2072 = vmatprep.subr.mxu0 0.0
        %2073 = vmatpush1.msra.mxu0 0.0
        %2074 = vmatprep.mubr.f32.mxu0 0.0
        %2075 = vmatmul.mubr.f32.gmra.mrb[0].mxu0 %v1999
        %v2076 = vpop.f32.mrb[0].mxu0
        %v2077 = vadd.f32 0.0, %v2076
        %v2078 = vpop.f32.mrb[0].mxu0
        %2079 = vmatprep.mubr.f32.mxu0 0.0
        %2080 = vmatmul.mubr.f32.gmra.mrb[0].mxu0 %v2002
        %v2081 = vpop.f32.mrb[0].mxu0
        %v2082 = vadd.f32 0.0, %v2081
        %v2083 = vpop.f32.mrb[0].mxu0
        %2084 = vmatprep.mubr.f32.mxu0 0.0
        %2085 = vmatmul.mubr.f32.gmra.mrb[0].mxu0 %v2005
        %v2086 = vpop.f32.mrb[0].mxu0
        %v2087 = vadd.f32 0.0, %v2086
        %v2088 = vpop.f32.mrb[0].mxu0
        %2089 = vmatprep.mubr.f32.mxu0 0.0
        %2090 = vmatmul.mubr.f32.gmra.mrb[0].mxu0 %v2008
        %v2091 = vpop.f32.mrb[0].mxu0
        %v2092 = vadd.f32 0.0, %v2091
        %v2093 = vpop.f32.mrb[0].mxu0
        %2094 = vdwg.mxu0
        %v2095 = vrcp.pop %v1982
        %v2096 = vmul.f32 %v2077, %v2095
        %v2097 = vrcp.pop %v1985
        %v2098 = vmul.f32 %v2082, %v2097
        %v2099 = vrcp.pop %v1988
        %v2100 = vmul.f32 %v2087, %v2099
        %v2101 = vrcp.pop %v1991
        %v2102 = vmul.f32 %v2092, %v2101
        %2107 = vrot.lane.b32.xlu0 %v1584, 8
        %v2108 = vpop.permute.xlu0 %2107
        %2109 = vrot.lane.b32.xlu0 %v1586, 8
        %v2110 = vpop.permute.xlu0 %2109
        %2111 = vrot.lane.b32.xlu0 %v1588, 8
        %v2112 = vpop.permute.xlu0 %2111
        %2113 = vrot.lane.b32.xlu0 %v1590, 8
        %v2114 = vpop.permute.xlu0 %2113
        %2123 = vrot.lane.b32.xlu0 %v1840, 16
        %v2124 = vpop.permute.xlu0 %2123
        %2125 = vrot.lane.b32.xlu0 %v1842, 16
        %v2126 = vpop.permute.xlu0 %2125
        %2127 = vrot.lane.b32.xlu0 %v1844, 16
        %v2128 = vpop.permute.xlu0 %2127
        %2129 = vrot.lane.b32.xlu0 %v1846, 16
        %v2130 = vpop.permute.xlu0 %2129
        %2139 = vrot.lane.b32.xlu0 %v2096, 24
        %v2140 = vpop.permute.xlu0 %2139
        %2141 = vrot.lane.b32.xlu0 %v2098, 24
        %v2142 = vpop.permute.xlu0 %2141
        %2143 = vrot.lane.b32.xlu0 %v2100, 24
        %v2144 = vpop.permute.xlu0 %2143
        %2145 = vrot.lane.b32.xlu0 %v2102, 24
        %v2146 = vpop.permute.xlu0 %2145
        %v2151 = vsel %vm1083, %v1328, %v2108
        %v2152 = vsel %vm1083, %v1330, %v2110
        %v2153 = vsel %vm1083, %v1332, %v2112
        %v2154 = vsel %vm1083, %v1334, %v2114
        %v2155 = vsel %vm1187, %v2151, %v2124
        %v2156 = vsel %vm1187, %v2152, %v2126
        %v2157 = vsel %vm1187, %v2153, %v2128
        %v2158 = vsel %vm1187, %v2154, %v2130
        %vm2159 = vcmask 195584
        %v2160 = vsel %vm2159, %v2155, %v2140
        %v2161 = vsel %vm2159, %v2156, %v2142
        %v2162 = vsel %vm2159, %v2157, %v2144
        %v2163 = vsel %vm2159, %v2158, %v2146
        %v2164 = vld [vmem:[#allocation16] sm:$0xff]
        %v2165 = vld [vmem:[#allocation16 + $0x8] sm:$0xff]
        %v2166 = vld [vmem:[#allocation16 + $0x10] sm:$0xff]
        %v2167 = vld [vmem:[#allocation16 + $0x18] sm:$0xff]
        %v2168 = vld [vmem:[#allocation17] sm:$0x1]
        %v2170 = vlaneseq
        %v2171 = vshrl.u32 %v2170, 7
        %v2172 = vsub.s32 0, %v2171
        %v2173 = vrot.slane %v2168, %v2172
        %v2176 = vsel %vm773, %v2160, 0
        %v2179 = vsel %vm773, %v2161, 0
        %v2182 = vsel %vm773, %v2162, 0
        %v2185 = vsel %vm773, %v2163, 0
        %2187 = vmatprep.subr.mxu0 0.0
        %2188 = vmatpush1.msra.mxu0 %v2164
        %2189 = vmatprep.subr.mxu0 0.0
        %2190 = vmatpush1.msra.mxu0 %v2165
        %2191 = vmatprep.subr.mxu0 0.0
        %2192 = vmatpush1.msra.mxu0 %v2166
        %2193 = vmatprep.subr.mxu0 0.0
        %2194 = vmatpush1.msra.mxu0 %v2167
        %2195 = vmatprep.subr.mxu0 0.0
        %2196 = vmatpush1.msra.mxu0 0.0
        %2197 = vmatprep.subr.mxu0 0.0
        %2198 = vmatpush1.msra.mxu0 0.0
        %2199 = vmatprep.subr.mxu0 0.0
        %2200 = vmatpush1.msra.mxu0 0.0
        %2201 = vmatprep.subr.mxu0 0.0
        %2202 = vmatpush1.msra.mxu0 0.0
        %2203 = vmatprep.subr.mxu0 0.0
        %2204 = vmatpush1.msra.mxu0 0.0
        %2205 = vmatprep.subr.mxu0 0.0
        %2206 = vmatpush1.msra.mxu0 0.0
        %2207 = vmatprep.subr.mxu0 0.0
        %2208 = vmatpush1.msra.mxu0 0.0
        %2209 = vmatprep.subr.mxu0 0.0
        %2210 = vmatpush1.msra.mxu0 0.0
        %2211 = vmatprep.subr.mxu0 0.0
        %2212 = vmatpush1.msra.mxu0 0.0
        %2213 = vmatprep.subr.mxu0 0.0
        %2214 = vmatpush1.msra.mxu0 0.0
        %2215 = vmatprep.subr.mxu0 0.0
        %2216 = vmatpush1.msra.mxu0 0.0
        %2217 = vmatprep.subr.mxu0 0.0
        %2218 = vmatpush1.msra.mxu0 0.0
        %2219 = vmatprep.subr.mxu0 0.0
        %2220 = vmatpush1.msra.mxu0 0.0
        %2221 = vmatprep.subr.mxu0 0.0
        %2222 = vmatpush1.msra.mxu0 0.0
        %2223 = vmatprep.subr.mxu0 0.0
        %2224 = vmatpush1.msra.mxu0 0.0
        %2225 = vmatprep.subr.mxu0 0.0
        %2226 = vmatpush1.msra.mxu0 0.0
        %2227 = vmatprep.subr.mxu0 0.0
        %2228 = vmatpush1.msra.mxu0 0.0
        %2229 = vmatprep.subr.mxu0 0.0
        %2230 = vmatpush1.msra.mxu0 0.0
        %2231 = vmatprep.subr.mxu0 0.0
        %2232 = vmatpush1.msra.mxu0 0.0
        %2233 = vmatprep.subr.mxu0 0.0
        %2234 = vmatpush1.msra.mxu0 0.0
        %2235 = vmatprep.subr.mxu0 0.0
        %2236 = vmatpush1.msra.mxu0 0.0
        %2237 = vmatprep.subr.mxu0 0.0
        %2238 = vmatpush1.msra.mxu0 0.0
        %2239 = vmatprep.subr.mxu0 0.0
        %2240 = vmatpush1.msra.mxu0 0.0
        %2241 = vmatprep.subr.mxu0 0.0
        %2242 = vmatpush1.msra.mxu0 0.0
        %2243 = vmatprep.subr.mxu0 0.0
        %2244 = vmatpush1.msra.mxu0 0.0
        %2245 = vmatprep.subr.mxu0 0.0
        %2246 = vmatpush1.msra.mxu0 0.0
        %2247 = vmatprep.subr.mxu0 0.0
        %2248 = vmatpush1.msra.mxu0 0.0
        %2249 = vmatprep.subr.mxu0 0.0
        %2250 = vmatpush1.msra.mxu0 0.0
        %2251 = vmatprep.mubr.f32.mxu0 0.0
        %2252 = vmatmul.mubr.f32.gmra.mrb[0].mxu0 %v2176
        %v2253 = vpop.f32.mrb[0].mxu0
        %v2254 = vadd.f32 %v2173, %v2253
        %v2255 = vpop.f32.mrb[0].mxu0
        %2256 = vmatprep.mubr.f32.mxu0 0.0
        %2257 = vmatmul.mubr.f32.gmra.mrb[0].mxu0 %v2179
        %v2258 = vpop.f32.mrb[0].mxu0
        %v2259 = vadd.f32 %v2173, %v2258
        %v2260 = vpop.f32.mrb[0].mxu0
        %2261 = vmatprep.mubr.f32.mxu0 0.0
        %2262 = vmatmul.mubr.f32.gmra.mrb[0].mxu0 %v2182
        %v2263 = vpop.f32.mrb[0].mxu0
        %v2264 = vadd.f32 %v2173, %v2263
        %v2265 = vpop.f32.mrb[0].mxu0
        %2266 = vmatprep.mubr.f32.mxu0 0.0
        %2267 = vmatmul.mubr.f32.gmra.mrb[0].mxu0 %v2185
        %v2268 = vpop.f32.mrb[0].mxu0
        %v2269 = vadd.f32 %v2173, %v2268
        %v2270 = vpop.f32.mrb[0].mxu0
        %2271 = vdwg.mxu0
        %v2272 = vadd.f32 %v765, %v2254
        %v2273 = vadd.f32 %v766, %v2259
        %v2274 = vadd.f32 %v767, %v2264
        %v2275 = vadd.f32 %v768, %v2269
        %v2276 = vld [vmem:[#allocation19] sm:$0x1]
        %v2277 = vld [vmem:[#allocation20] sm:$0x1]
        %v2278 = vsel %vm773, %v2272, 0.0
        %2279 = vadd.xlane.f32.xlu0 %v2278
        %v2280 = vpop.xlane.xlu0 %2279
        %v2281 = vsel %vm773, %v2273, 0.0
        %2282 = vadd.xlane.f32.xlu0 %v2281
        %v2283 = vpop.xlane.xlu0 %2282
        %v2284 = vsel %vm773, %v2274, 0.0
        %2285 = vadd.xlane.f32.xlu0 %v2284
        %v2286 = vpop.xlane.xlu0 %2285
        %v2287 = vsel %vm773, %v2275, 0.0
        %2288 = vadd.xlane.f32.xlu0 %v2287
        %v2289 = vpop.xlane.xlu0 %2288
        %v2290 = vmul.f32 %v2280, %v786
        %v2291 = vmul.f32 %v2283, %v786
        %v2292 = vmul.f32 %v2286, %v786
        %v2293 = vmul.f32 %v2289, %v786
        %v2294 = vsub.f32 %v2272, %v2290
        %v2295 = vsub.f32 %v2273, %v2291
        %v2296 = vsub.f32 %v2274, %v2292
        %v2297 = vsub.f32 %v2275, %v2293
        %v2298 = vmul.f32 %v2294, %v2294
        %v2299 = vmul.f32 %v2295, %v2295
        %v2300 = vmul.f32 %v2296, %v2296
        %v2301 = vmul.f32 %v2297, %v2297
        %v2302 = vsel %vm773, %v2298, 0.0
        %2303 = vadd.xlane.f32.xlu0 %v2302
        %v2304 = vpop.xlane.xlu0 %2303
        %v2305 = vsel %vm773, %v2299, 0.0
        %2306 = vadd.xlane.f32.xlu0 %v2305
        %v2307 = vpop.xlane.xlu0 %2306
        %v2308 = vsel %vm773, %v2300, 0.0
        %2309 = vadd.xlane.f32.xlu0 %v2308
        %v2310 = vpop.xlane.xlu0 %2309
        %v2311 = vsel %vm773, %v2301, 0.0
        %2312 = vadd.xlane.f32.xlu0 %v2311
        %v2313 = vpop.xlane.xlu0 %2312
        %v2314 = vmul.f32 %v2304, %v786
        %v2315 = vmul.f32 %v2307, %v786
        %v2316 = vmul.f32 %v2310, %v786
        %v2317 = vmul.f32 %v2313, %v786
        %v2318 = vadd.f32 %v2314, 1e-05
        %v2319 = vadd.f32 %v2315, 1e-05
        %v2320 = vadd.f32 %v2316, 1e-05
        %v2321 = vadd.f32 %v2317, 1e-05
        %v2322 = vrsqrt.pop %v2318
        %v2323 = vrsqrt.pop %v2319
        %v2324 = vrsqrt.pop %v2320
        %v2325 = vrsqrt.pop %v2321
        %v2326 = vmul.f32 %v2294, %v2322
        %v2327 = vmul.f32 %v2295, %v2323
        %v2328 = vmul.f32 %v2296, %v2324
        %v2329 = vmul.f32 %v2297, %v2325
        %v2331 = vlaneseq
        %v2332 = vshrl.u32 %v2331, 7
        %v2333 = vsub.s32 0, %v2332
        %v2334 = vrot.slane %v2276, %v2333
        %v2336 = vmul.f32 %v2326, %v2334
        %v2337 = vmul.f32 %v2327, %v2334
        %v2338 = vmul.f32 %v2328, %v2334
        %v2339 = vmul.f32 %v2329, %v2334
        %v2341 = vlaneseq
        %v2342 = vshrl.u32 %v2341, 7
        %v2343 = vsub.s32 0, %v2342
        %v2344 = vrot.slane %v2277, %v2343
        %v2346 = vadd.f32 %v2336, %v2344
        %v2347 = vadd.f32 %v2337, %v2344
        %v2348 = vadd.f32 %v2338, %v2344
        %v2349 = vadd.f32 %v2339, %v2344
        %v2350 = vld [vmem:[#allocation22] sm:$0xff]
        %v2351 = vld [vmem:[#allocation22 + $0x8] sm:$0xff]
        %v2352 = vld [vmem:[#allocation22 + $0x10] sm:$0xff]
        %v2353 = vld [vmem:[#allocation22 + $0x18] sm:$0xff]
        %v2354 = vld [vmem:[#allocation23] sm:$0x1]
        %v2356 = vlaneseq
        %v2357 = vshrl.u32 %v2356, 7
        %v2358 = vsub.s32 0, %v2357
        %v2359 = vrot.slane %v2354, %v2358
        %v2362 = vsel %vm773, %v2346, 0
        %v2365 = vsel %vm773, %v2347, 0
        %v2368 = vsel %vm773, %v2348, 0
        %v2371 = vsel %vm773, %v2349, 0
        %2373 = vmatprep.subr.mxu0 0.0
        %2374 = vmatpush1.msra.mxu0 %v2350
        %2375 = vmatprep.subr.mxu0 0.0
        %2376 = vmatpush1.msra.mxu0 %v2351
        %2377 = vmatprep.subr.mxu0 0.0
        %2378 = vmatpush1.msra.mxu0 %v2352
        %2379 = vmatprep.subr.mxu0 0.0
        %2380 = vmatpush1.msra.mxu0 %v2353
        %2381 = vmatprep.subr.mxu0 0.0
        %2382 = vmatpush1.msra.mxu0 0.0
        %2383 = vmatprep.subr.mxu0 0.0
        %2384 = vmatpush1.msra.mxu0 0.0
        %2385 = vmatprep.subr.mxu0 0.0
        %2386 = vmatpush1.msra.mxu0 0.0
        %2387 = vmatprep.subr.mxu0 0.0
        %2388 = vmatpush1.msra.mxu0 0.0
        %2389 = vmatprep.subr.mxu0 0.0
        %2390 = vmatpush1.msra.mxu0 0.0
        %2391 = vmatprep.subr.mxu0 0.0
        %2392 = vmatpush1.msra.mxu0 0.0
        %2393 = vmatprep.subr.mxu0 0.0
        %2394 = vmatpush1.msra.mxu0 0.0
        %2395 = vmatprep.subr.mxu0 0.0
        %2396 = vmatpush1.msra.mxu0 0.0
        %2397 = vmatprep.subr.mxu0 0.0
        %2398 = vmatpush1.msra.mxu0 0.0
        %2399 = vmatprep.subr.mxu0 0.0
        %2400 = vmatpush1.msra.mxu0 0.0
        %2401 = vmatprep.subr.mxu0 0.0
        %2402 = vmatpush1.msra.mxu0 0.0
        %2403 = vmatprep.subr.mxu0 0.0
        %2404 = vmatpush1.msra.mxu0 0.0
        %2405 = vmatprep.subr.mxu0 0.0
        %2406 = vmatpush1.msra.mxu0 0.0
        %2407 = vmatprep.subr.mxu0 0.0
        %2408 = vmatpush1.msra.mxu0 0.0
        %2409 = vmatprep.subr.mxu0 0.0
        %2410 = vmatpush1.msra.mxu0 0.0
        %2411 = vmatprep.subr.mxu0 0.0
        %2412 = vmatpush1.msra.mxu0 0.0
        %2413 = vmatprep.subr.mxu0 0.0
        %2414 = vmatpush1.msra.mxu0 0.0
        %2415 = vmatprep.subr.mxu0 0.0
        %2416 = vmatpush1.msra.mxu0 0.0
        %2417 = vmatprep.subr.mxu0 0.0
        %2418 = vmatpush1.msra.mxu0 0.0
        %2419 = vmatprep.subr.mxu0 0.0
        %2420 = vmatpush1.msra.mxu0 0.0
        %2421 = vmatprep.subr.mxu0 0.0
        %2422 = vmatpush1.msra.mxu0 0.0
        %2423 = vmatprep.subr.mxu0 0.0
        %2424 = vmatpush1.msra.mxu0 0.0
        %2425 = vmatprep.subr.mxu0 0.0
        %2426 = vmatpush1.msra.mxu0 0.0
        %2427 = vmatprep.subr.mxu0 0.0
        %2428 = vmatpush1.msra.mxu0 0.0
        %2429 = vmatprep.subr.mxu0 0.0
        %2430 = vmatpush1.msra.mxu0 0.0
        %2431 = vmatprep.subr.mxu0 0.0
        %2432 = vmatpush1.msra.mxu0 0.0
        %2433 = vmatprep.subr.mxu0 0.0
        %2434 = vmatpush1.msra.mxu0 0.0
        %2435 = vmatprep.subr.mxu0 0.0
        %2436 = vmatpush1.msra.mxu0 0.0
        %2437 = vmatprep.mubr.f32.mxu0 0.0
        %2438 = vmatmul.mubr.f32.gmra.mrb[0].mxu0 %v2362
        %v2439 = vpop.f32.mrb[0].mxu0
        %v2440 = vadd.f32 %v2359, %v2439
        %v2441 = vpop.f32.mrb[0].mxu0
        %2442 = vmatprep.mubr.f32.mxu0 0.0
        %2443 = vmatmul.mubr.f32.gmra.mrb[0].mxu0 %v2365
        %v2444 = vpop.f32.mrb[0].mxu0
        %v2445 = vadd.f32 %v2359, %v2444
        %v2446 = vpop.f32.mrb[0].mxu0
        %2447 = vmatprep.mubr.f32.mxu0 0.0
        %2448 = vmatmul.mubr.f32.gmra.mrb[0].mxu0 %v2368
        %v2449 = vpop.f32.mrb[0].mxu0
        %v2450 = vadd.f32 %v2359, %v2449
        %v2451 = vpop.f32.mrb[0].mxu0
        %2452 = vmatprep.mubr.f32.mxu0 0.0
        %2453 = vmatmul.mubr.f32.gmra.mrb[0].mxu0 %v2371
        %v2454 = vpop.f32.mrb[0].mxu0
        %v2455 = vadd.f32 %v2359, %v2454
        %v2456 = vpop.f32.mrb[0].mxu0
        %2457 = vdwg.mxu0
        %v2458 = vmul.f32 %v2440, %v2440
        %v2459 = vmul.f32 %v2445, %v2445
        %v2460 = vmul.f32 %v2450, %v2450
        %v2461 = vmul.f32 %v2455, %v2455
        %v2462 = vmul.f32 %v2440, %v2458
        %v2463 = vmul.f32 %v2445, %v2459
        %v2464 = vmul.f32 %v2450, %v2460
        %v2465 = vmul.f32 %v2455, %v2461
        %v2466 = vmul.f32 %v2462, 0.044715
        %v2467 = vmul.f32 %v2463, 0.044715
        %v2468 = vmul.f32 %v2464, 0.044715
        %v2469 = vmul.f32 %v2465, 0.044715
        %v2470 = vadd.f32 %v2440, %v2466
        %v2471 = vadd.f32 %v2445, %v2467
        %v2472 = vadd.f32 %v2450, %v2468
        %v2473 = vadd.f32 %v2455, %v2469
        %v2474 = vmul.f32 %v2470, 0.7978846
        %v2475 = vmul.f32 %v2471, 0.7978846
        %v2476 = vmul.f32 %v2472, 0.7978846
        %v2477 = vmul.f32 %v2473, 0.7978846
        %v2478 = vtanh.pop %v2474
        %v2479 = vtanh.pop %v2475
        %v2480 = vtanh.pop %v2476
        %v2481 = vtanh.pop %v2477
        %v2482 = vadd.f32 %v2478, 1.0
        %v2483 = vadd.f32 %v2479, 1.0
        %v2484 = vadd.f32 %v2480, 1.0
        %v2485 = vadd.f32 %v2481, 1.0
        %v2486 = vmul.f32 %v2482, 0.5
        %v2487 = vmul.f32 %v2483, 0.5
        %v2488 = vmul.f32 %v2484, 0.5
        %v2489 = vmul.f32 %v2485, 0.5
        %v2490 = vmul.f32 %v2440, %v2486
        %v2491 = vmul.f32 %v2445, %v2487
        %v2492 = vmul.f32 %v2450, %v2488
        %v2493 = vmul.f32 %v2455, %v2489
        %v2494 = vld [vmem:[#allocation25] sm:$0xff]
        %v2495 = vld [vmem:[#allocation25 + $0x8] sm:$0xff]
        %v2496 = vld [vmem:[#allocation25 + $0x10] sm:$0xff]
        %v2497 = vld [vmem:[#allocation25 + $0x18] sm:$0xff]
        %v2498 = vld [vmem:[#allocation25 + $0x20] sm:$0xff]
        %v2499 = vld [vmem:[#allocation25 + $0x28] sm:$0xff]
        %v2500 = vld [vmem:[#allocation25 + $0x30] sm:$0xff]
        %v2501 = vld [vmem:[#allocation25 + $0x38] sm:$0xff]
        %v2502 = vld [vmem:[#allocation25 + $0x40] sm:$0xff]
        %v2503 = vld [vmem:[#allocation25 + $0x48] sm:$0xff]
        %v2504 = vld [vmem:[#allocation25 + $0x50] sm:$0xff]
        %v2505 = vld [vmem:[#allocation25 + $0x58] sm:$0xff]
        %v2506 = vld [vmem:[#allocation25 + $0x60] sm:$0xff]
        %v2507 = vld [vmem:[#allocation25 + $0x68] sm:$0xff]
        %v2508 = vld [vmem:[#allocation25 + $0x70] sm:$0xff]
        %v2509 = vld [vmem:[#allocation25 + $0x78] sm:$0xff]
        %v2510 = vld [vmem:[#allocation26] sm:$0x1]
        %v2512 = vlaneseq
        %v2513 = vshrl.u32 %v2512, 7
        %v2514 = vsub.s32 0, %v2513
        %v2515 = vrot.slane %v2510, %v2514
        %2517 = vmatprep.subr.mxu0 0.0
        %2518 = vmatpush1.msra.mxu0 %v2494
        %2519 = vmatprep.subr.mxu0 0.0
        %2520 = vmatpush1.msra.mxu0 %v2495
        %2521 = vmatprep.subr.mxu0 0.0
        %2522 = vmatpush1.msra.mxu0 %v2496
        %2523 = vmatprep.subr.mxu0 0.0
        %2524 = vmatpush1.msra.mxu0 %v2497
        %2525 = vmatprep.subr.mxu0 0.0
        %2526 = vmatpush1.msra.mxu0 %v2498
        %2527 = vmatprep.subr.mxu0 0.0
        %2528 = vmatpush1.msra.mxu0 %v2499
        %2529 = vmatprep.subr.mxu0 0.0
        %2530 = vmatpush1.msra.mxu0 %v2500
        %2531 = vmatprep.subr.mxu0 0.0
        %2532 = vmatpush1.msra.mxu0 %v2501
        %2533 = vmatprep.subr.mxu0 0.0
        %2534 = vmatpush1.msra.mxu0 %v2502
        %2535 = vmatprep.subr.mxu0 0.0
        %2536 = vmatpush1.msra.mxu0 %v2503
        %2537 = vmatprep.subr.mxu0 0.0
        %2538 = vmatpush1.msra.mxu0 %v2504
        %2539 = vmatprep.subr.mxu0 0.0
        %2540 = vmatpush1.msra.mxu0 %v2505
        %2541 = vmatprep.subr.mxu0 0.0
        %2542 = vmatpush1.msra.mxu0 %v2506
        %2543 = vmatprep.subr.mxu0 0.0
        %2544 = vmatpush1.msra.mxu0 %v2507
        %2545 = vmatprep.subr.mxu0 0.0
        %2546 = vmatpush1.msra.mxu0 %v2508
        %2547 = vmatprep.subr.mxu0 0.0
        %2548 = vmatpush1.msra.mxu0 %v2509
        %2549 = vmatprep.subr.mxu0 0.0
        %2550 = vmatpush1.msra.mxu0 0.0
        %2551 = vmatprep.subr.mxu0 0.0
        %2552 = vmatpush1.msra.mxu0 0.0
        %2553 = vmatprep.subr.mxu0 0.0
        %2554 = vmatpush1.msra.mxu0 0.0
        %2555 = vmatprep.subr.mxu0 0.0
        %2556 = vmatpush1.msra.mxu0 0.0
        %2557 = vmatprep.subr.mxu0 0.0
        %2558 = vmatpush1.msra.mxu0 0.0
        %2559 = vmatprep.subr.mxu0 0.0
        %2560 = vmatpush1.msra.mxu0 0.0
        %2561 = vmatprep.subr.mxu0 0.0
        %2562 = vmatpush1.msra.mxu0 0.0
        %2563 = vmatprep.subr.mxu0 0.0
        %2564 = vmatpush1.msra.mxu0 0.0
        %2565 = vmatprep.subr.mxu0 0.0
        %2566 = vmatpush1.msra.mxu0 0.0
        %2567 = vmatprep.subr.mxu0 0.0
        %2568 = vmatpush1.msra.mxu0 0.0
        %2569 = vmatprep.subr.mxu0 0.0
        %2570 = vmatpush1.msra.mxu0 0.0
        %2571 = vmatprep.subr.mxu0 0.0
        %2572 = vmatpush1.msra.mxu0 0.0
        %2573 = vmatprep.subr.mxu0 0.0
        %2574 = vmatpush1.msra.mxu0 0.0
        %2575 = vmatprep.subr.mxu0 0.0
        %2576 = vmatpush1.msra.mxu0 0.0
        %2577 = vmatprep.subr.mxu0 0.0
        %2578 = vmatpush1.msra.mxu0 0.0
        %2579 = vmatprep.subr.mxu0 0.0
        %2580 = vmatpush1.msra.mxu0 0.0
        %2581 = vmatprep.mubr.f32.mxu0 0.0
        %2582 = vmatmul.mubr.f32.gmra.mrb[0].mxu0 %v2490
        %v2583 = vpop.f32.mrb[0].mxu0
        %v2584 = vadd.f32 %v2515, %v2583
        %v2585 = vpop.f32.mrb[0].mxu0
        %2586 = vmatprep.mubr.f32.mxu0 0.0
        %2587 = vmatmul.mubr.f32.gmra.mrb[0].mxu0 %v2491
        %v2588 = vpop.f32.mrb[0].mxu0
        %v2589 = vadd.f32 %v2515, %v2588
        %v2590 = vpop.f32.mrb[0].mxu0
        %2591 = vmatprep.mubr.f32.mxu0 0.0
        %2592 = vmatmul.mubr.f32.gmra.mrb[0].mxu0 %v2492
        %v2593 = vpop.f32.mrb[0].mxu0
        %v2594 = vadd.f32 %v2515, %v2593
        %v2595 = vpop.f32.mrb[0].mxu0
        %2596 = vmatprep.mubr.f32.mxu0 0.0
        %2597 = vmatmul.mubr.f32.gmra.mrb[0].mxu0 %v2493
        %v2598 = vpop.f32.mrb[0].mxu0
        %v2599 = vadd.f32 %v2515, %v2598
        %v2600 = vpop.f32.mrb[0].mxu0
        %2601 = vdwg.mxu0
        %v2602 = vadd.f32 %v2272, %v2584
        %v2603 = vadd.f32 %v2273, %v2589
        %v2604 = vadd.f32 %v2274, %v2594
        %v2605 = vadd.f32 %v2275, %v2599
        %2606 = vst.msk [vmem:[%s764] sm:$0xff] %vm773, %v2602
        %2607 = vst.msk [vmem:[%s764 + $0x8] sm:$0xff] %vm773, %v2603
        %2608 = vst.msk [vmem:[%s764 + $0x10] sm:$0xff] %vm773, %v2604
        %2609 = vst.msk [vmem:[%s764 + $0x18] sm:$0xff] %vm773, %v2605
        %s2610 = sand.u32 %s397, 1
        %s2611 = scalar_lea.sflag [#allocation4], %s2610
        %s2612 = sand.u32 %s397, 1
        %s2613 = smul.addr %s2612, 32
        %s2614 = scalar_lea.vmem [#allocation28], %s2613
        // Predicated region
        $region149: #{two_stream_block_pallas.7} parent=83 // pred_check
          %p2615 = pneg %p407
        $region150: #{two_stream_block_pallas.7} parent=83 // pred_check_branch
          %2617 = sbr.rel (%p2615) target = $region152
        $region151: #{two_stream_block_pallas.7} parent=83 // pred_region
          %s2619 = ssub.s32 512, 512
          %2620 = vsyncadd %s2611, %s2619
          %s2621 = smul.addr %s43, 4
          %s2622 = smul.addr %s2621, 128
          %s2623 = scalar_lea.hbm %s16, %s2622
          %s2624 = sshll.u32 %s2614, 4
          %s2625 = int_to_ptr.vmem [resolvable:$true] %s2624
          %2630 = dma.vmem_to_hbm [thread:$0]  %s2625, 512, %s2623, %s2611, 128, 128, 8
        $region152: #{two_stream_block_pallas.7} parent=83 // pred_fallthru
          _
      $region84: #{two_stream_block_pallas.7} parent=5 // pred_fallthru
        _
      %p2631 = scmp.le.s32.totalorder 2, %s38
      // Predicated region
      $region153: #{two_stream_block_pallas.7} parent=5 // pred_check
        %p2632 = pneg %p2631
      $region154: #{two_stream_block_pallas.7} parent=5 // pred_check_branch
        %2634 = sbr.rel (%p2632) target = $region156
      $region155: #{two_stream_block_pallas.7} parent=5 // pred_region
        %s2635 = ssub.s32 %s38, 2
        // Predicated region
        $region157: #{two_stream_block_pallas.7} parent=155 // pred_check
          %p2636 = pneg %p413
        $region158: #{two_stream_block_pallas.7} parent=155 // pred_check_branch
          %2638 = sbr.rel (%p2636) target = $region160
        $region159: #{two_stream_block_pallas.7} parent=155 // pred_region
          %s2639 = sand.u32 %s398, 1
          %s2640 = scalar_lea.sflag [#allocation4], %s2639
          %s2641 = sand.u32 %s398, 1
          %s2642 = smul.addr %s2641, 32
          %s2643 = scalar_lea.vmem [#allocation28], %s2642
          %2644 = dma.done %s2640, 512
        $region160: #{two_stream_block_pallas.7} parent=155 // pred_fallthru
          _
      $region156: #{two_stream_block_pallas.7} parent=5 // pred_fallthru
        _
    $region6: #{two_stream_block_pallas.7} parent=1 // loop_footer
      %s42 = sadd.s32 1, %s38
    $region7: #{two_stream_block_pallas.7} parent=1 // loop_footer_branch
      %37 = sbr.rel target = $region3
    $region8: #{two_stream_block_pallas.7} parent=1 // loop_exit
      _
    %2645 = vsyncpa [#allocation3], 1
    %s2646 = scalar_lea.sflag [#allocation3], 1
    %2647 = vsyncpa %s2646, 1
    %2648 = vsyncpa [#allocation6], 1
    %s2649 = scalar_lea.sflag [#allocation6], 1
    %2650 = vsyncpa %s2649, 1
    %2651 = vsyncpa [#allocation9], 1
    %2652 = vsyncpa [#allocation12], 1
    %2653 = vsyncpa [#allocation15], 1
    %2654 = vsyncpa [#allocation18], 1
    %2655 = vsyncpa [#allocation21], 1
    %2656 = vsyncpa [#allocation24], 1
    %2657 = vsyncpa [#allocation27], 1
    %2658 = vsyncpa [#allocation4], 1
    %s2659 = scalar_lea.sflag [#allocation4], 1
    %2660 = vsyncpa %s2659, 1

</llo_original>
